<compile_context>
chip_gen: v7x
topology: tpu7x:2x2x1
jax: 0.10.0
libtpu: 0.0.40
codegen_flags: <defaults>
</compile_context>

<pallas_src>
import functools

import jax
import jax.numpy as jnp
from jax.experimental import pallas as pl
from jax.experimental.pallas import tpu as pltpu


# ----------------------------- Pallas kernels ------------------------------

def _conv_kernel(taps_ref, w_ref, b_ref, o_ref):
    """One fused KxK conv tile: (tm, T*Cin) @ (T*Cin, Cout) + bias."""
    o_ref[...] = jnp.dot(taps_ref[...], w_ref[...],
                         preferred_element_type=jnp.float32) + b_ref[...]


def _conv_pool_kernel(taps_ref, w_ref, b_ref, o_ref):
    """3x3 conv + bias + LeakyReLU(0.1) + 2x2 max-pool, fused.

    taps_ref : (4, tmo, T*C) bf16 -- 2x2 pool-window position on axis 0, rows (n,yo,xo).
    MaxPool is a max over the 4 pool positions; LeakyReLU is monotone so it commutes
    with the max and is applied once, after it (bias is channel-constant, also commutes).
    """
    w = w_ref[...]

    def mm(i):
        return jnp.dot(taps_ref[i], w, preferred_element_type=jnp.float32)

    a = jnp.maximum(jnp.maximum(mm(0), mm(1)), jnp.maximum(mm(2), mm(3))) + b_ref[...]
    o_ref[...] = jnp.where(a >= 0, a, jnp.float32(0.1) * a)


def _deconv_kernel(taps_ref, w1_ref, rowb_ref, w2_ref, b2_ref, o_ref):
    """Fused DeconvBlock tile (BN already folded into w1 / rowb):

      h = taps @ w1 + rowb        (== BN -> ConvT(5x5, pad 2))
      y = h  @ w2 + b2            (== ConvT(2x2, stride 2), (ky,kx,co) columns, 4*Cout=128)
      out = LeakyReLU(0.1)(y)
    """
    h = jnp.dot(taps_ref[...], w1_ref[...],
                preferred_element_type=jnp.float32) + rowb_ref[...]
    y = jnp.dot(h.astype(jnp.bfloat16), w2_ref[...],
                preferred_element_type=jnp.float32) + b2_ref[...]
    o_ref[...] = jnp.where(y >= 0, y, jnp.float32(0.1) * y)


def _conv_conv1x1_kernel(taps_ref, w_ref, b_ref, w3_ref, b3_ref, o_ref):
    """3x3 conv + bias, then 1x1 conv + bias (last two OutputBlock layers, fused)."""
    h = jnp.dot(taps_ref[...], w_ref[...],
                preferred_element_type=jnp.float32) + b_ref[...]
    o_ref[...] = jnp.dot(h.astype(jnp.bfloat16), w3_ref[...],
                         preferred_element_type=jnp.float32) + b3_ref[...]


# --------------------------- pallas_call plumbing ---------------------------

def _pick_tile(m, cap=256):
    """Largest row-tile <= cap that divides m (multiple of 8 when m > cap)."""
    if m <= cap:
        return m
    for t in range(cap, 7, -8):
        if m % t == 0:
            return t
    return m


def _full_spec(shape):
    nd = len(shape)
    return pl.BlockSpec(shape, lambda i, nd=nd: (0,) * nd)


def _row_spec(shape, tm, axis=0):
    blk = list(shape)
    blk[axis] = tm
    nd = len(shape)

    def imap(i, axis=axis, nd=nd):
        idx = [0] * nd
        idx[axis] = i
        return tuple(idx)

    return pl.BlockSpec(tuple(blk), imap)


def _pcall(kernel, grid_n, inputs, in_specs, out_shape, out_spec):
    return pl.pallas_call(
        kernel,
        out_shape=jax.ShapeDtypeStruct(out_shape, jnp.float32),
        grid=(grid_n,),
        in_specs=in_specs,
        out_specs=out_spec,
        compiler_params=pltpu.CompilerParams(
            dimension_semantics=("parallel",),          # megacore split on v7x
            vmem_limit_bytes=32 * 1024 * 1024,
        ),
    )(*inputs)


# --------------------------- XLA-side layout glue ---------------------------

def _im2col(xpad, k, dtype=jnp.bfloat16):
    """(N, Hp, Wp, C) padded -> (N*OH*OW, k*k*C) with column order (dy, dx, c)."""
    N, Hp, Wp, C = xpad.shape
    OH, OW = Hp - k + 1, Wp - k + 1
    cols = [xpad[:, dy:dy + OH, dx:dx + OW, :] for dy in range(k) for dx in range(k)]
    t = jnp.stack(cols, axis=3)                       # (N, OH, OW, T, C)
    return t.reshape(N * OH * OW, k * k * C).astype(dtype)


def _im2col_pooled(xpad, k, dtype=jnp.bfloat16):
    """Like _im2col, but (4, N*Ho*Wo, k*k*C) with the 2x2 pool-window position on axis 0,
    so the fused max-pool is a max over 4 matmul results on matching rows."""
    N, Hp, Wp, C = xpad.shape
    OH, OW = Hp - k + 1, Wp - k + 1
    Ho, Wo = OH // 2, OW // 2
    cols = [xpad[:, dy:dy + OH, dx:dx + OW, :] for dy in range(k) for dx in range(k)]
    t = jnp.stack(cols, axis=3)                       # (N, OH, OW, T, C)
    t = t.reshape(N, Ho, 2, Wo, 2, k * k, C)
    t = t.transpose(2, 4, 0, 1, 3, 5, 6)              # (py, px, N, Ho, Wo, T, C)
    return t.reshape(4, N * Ho * Wo, k * k * C).astype(dtype)


def _bn_scale_shift(x, gamma, beta, eps=1e-5):
    """Training-mode BatchNorm2d over (N,H,W): BN(x) = x*s + t per channel (biased var)."""
    mu = jnp.mean(x, axis=(0, 1, 2))
    var = jnp.var(x, axis=(0, 1, 2))
    s = gamma * jax.lax.rsqrt(var + eps)
    return s, beta - mu * s


def _conv_weight(w_oihw, s=None):
    """torch Conv2d weight (Cout, Cin, kh, kw) -> (kh*kw*Cin, Cout) bf16, row order
    (dy, dx, ci), with an optional BN scale folded along Cin."""
    co, ci, kh, kw = w_oihw.shape
    w = jnp.transpose(w_oihw, (2, 3, 1, 0))           # (kh, kw, ci, co)
    if s is not None:
        w = w * s.reshape(1, 1, ci, 1)
    return w.reshape(kh * kw * ci, co).astype(jnp.bfloat16)


def make_same_size(src, ref):
    """Faithful port of the torch helper (left pad = p//2+1, right pad = p//2, zeros)."""
    pads = []
    for d in range(4):
        p = max(ref.shape[d] - src.shape[d], 0)
        pads.append((p // 2 + 1, p // 2) if p > 0 else (0, 0))
    return jnp.pad(src, pads, mode='constant')


# ------------------------------- Module blocks -------------------------------

def conv_pool_block(x, p):
    """ConvPoolBlock: BN -> Pad2 -> Conv5 -> Pad1 -> Conv3 -> LeakyReLU -> MaxPool2."""
    N, H, W, Cin = x.shape
    Cout = p['w1'].shape[0]

    # ---- BN folded into the 5x5 conv (replication pad => pad(BN(x)) == BN(pad(x))). ----
    # TODO(synk): the per-channel batch-stat reduction + weight fold stay as tiny XLA ops;
    # they have to finish before the M-tiled conv kernel runs, so they can't live in it.
    s, t = _bn_scale_shift(x, p['bn_g'], p['bn_b'])
    w1 = _conv_weight(p['w1'], s)                                   # (25*Cin, Cout) bf16
    b1 = (p['b1'] + t @ p['w1'].sum(axis=(2, 3)).T).reshape(1, Cout)

    xp = jnp.pad(x, ((0, 0), (2, 2), (2, 2), (0, 0)), mode='edge')
    taps5 = _im2col(xp, 5)                                          # (M, 25*Cin) bf16
    M = N * H * W
    tm = _pick_tile(M)
    h = _pcall(_conv_kernel, M // tm,
               [taps5, w1, b1],
               [_row_spec(taps5.shape, tm), _full_spec(w1.shape), _full_spec(b1.shape)],
               (M, Cout), _row_spec((M, Cout), tm))
    h = h.reshape(N, H, W, Cout)

    # ---- Pad1 + Conv3 + LeakyReLU + MaxPool2 (fused kernel). ----
    hp = jnp.pad(h, ((0, 0), (1, 1), (1, 1), (0, 0)), mode='edge')
    taps3 = _im2col_pooled(hp, 3)                                   # (4, Mo, 9*Cout) bf16
    w2 = _conv_weight(p['w2'])
    b2 = p['b2'].reshape(1, Cout)
    Ho, Wo = H // 2, W // 2
    Mo = N * Ho * Wo
    tmo = _pick_tile(Mo)
    y = _pcall(_conv_pool_kernel, Mo // tmo,
               [taps3, w2, b2],
               [_row_spec(taps3.shape, tmo, axis=1), _full_spec(w2.shape), _full_spec(b2.shape)],
               (Mo, Cout), _row_spec((Mo, Cout), tmo))
    return y.reshape(N, Ho, Wo, Cout)


def deconv_block(x, p):
    """DeconvBlock: BN -> ConvT(5x5, pad 2) -> ConvT(2x2, stride 2) -> LeakyReLU (one kernel)."""
    N, H, W, Cin = x.shape
    Cmid = p['w1'].shape[1]                  # ConvTranspose weight: (Cin, Cout, 5, 5)
    Cout = p['w2'].shape[1]

    s, t = _bn_scale_shift(x, p['bn_g'], p['bn_b'])

    # ConvT(5x5, pad=2, stride=1) == conv of the ZERO-padded input with flipped/transposed W.
    xz = jnp.pad(x, ((0, 0), (2, 2), (2, 2), (0, 0)))
    taps5 = _im2col(xz, 5)                                          # (M, 25*Cin) bf16 (raw taps)
    wc = jnp.transpose(jnp.flip(p['w1'], axis=(2, 3)), (2, 3, 0, 1))  # (5,5,Cin,Cmid)
    w1 = (wc * s.reshape(1, 1, Cin, 1)).reshape(25 * Cin, Cmid).astype(jnp.bfloat16)

    # Per-row bias: conv of the zero-padded BN shift (t on real pixels, 0 in the padding),
    # computed as a tiny (H*W,25)@(25,Cmid) product, tiled over batch, plus the conv bias.
    tw = jnp.einsum('c,yxcm->yxm', t, wc).reshape(25, Cmid)
    ones = jnp.pad(jnp.ones((1, H, W, 1), jnp.float32), ((0, 0), (2, 2), (2, 2), (0, 0)))
    mask = _im2col(ones, 5, dtype=jnp.float32)                      # (H*W, 25)
    rowb = jnp.tile(mask @ tw, (N, 1)) + p['b1'].reshape(1, Cmid)   # (M, Cmid) f32

    # ConvT(2x2, stride=2): per-pixel matmul onto (ky,kx,co) = 4*Cout (=128, lane-dense) cols.
    w2 = jnp.transpose(p['w2'], (0, 2, 3, 1)).reshape(Cmid, 4 * Cout).astype(jnp.bfloat16)
    b2 = jnp.tile(p['b2'], 4).reshape(1, 4 * Cout)

    M = N * H * W
    tm = _pick_tile(M)
    y = _pcall(_deconv_kernel, M // tm,
               [taps5, w1, rowb, w2, b2],
               [_row_spec(taps5.shape, tm), _full_spec(w1.shape), _row_spec(rowb.shape, tm),
                _full_spec(w2.shape), _full_spec(b2.shape)],
               (M, 4 * Cout), _row_spec((M, 4 * Cout), tm))

    # TODO(synk): depth-to-space stays as XLA reshape/transpose glue (fuses into the next
    # block's im2col gather); scattering via out_spec index_map would need in-kernel relayout.
    y = y.reshape(N, H, W, 2, 2, Cout).transpose(0, 1, 3, 2, 4, 5)
    return y.reshape(N, 2 * H, 2 * W, Cout)


def output_block(x, p):
    """OutputBlock: Pad1 -> Conv3 -> Pad1 -> Conv3 -> Conv1 (no activations)."""
    N, H, W, Cin = x.shape
    Cout = p['w1'].shape[0]
    Cfin = p['w3'].shape[0]
    M = N * H * W
    tm = _pick_tile(M)

    xp = jnp.pad(x, ((0, 0), (1, 1), (1, 1), (0, 0)), mode='edge')
    taps = _im2col(xp, 3)
    w1 = _conv_weight(p['w1'])
    b1 = p['b1'].reshape(1, Cout)
    h = _pcall(_conv_kernel, M // tm,
               [taps, w1, b1],
               [_row_spec(taps.shape, tm), _full_spec(w1.shape), _full_spec(b1.shape)],
               (M, Cout), _row_spec((M, Cout), tm))
    h = h.reshape(N, H, W, Cout)

    hp = jnp.pad(h, ((0, 0), (1, 1), (1, 1), (0, 0)), mode='edge')
    taps2 = _im2col(hp, 3)
    w2 = _conv_weight(p['w2'])
    b2 = p['b2'].reshape(1, Cout)
    w3 = jnp.transpose(p['w3'], (2, 3, 1, 0)).reshape(Cout, Cfin).astype(jnp.bfloat16)
    b3 = p['b3'].reshape(1, Cfin)
    # TODO(synk): the final Cout=3 store is lane-sparse (masked vst); padding it to a
    # lane-dense slab would add HBM bytes at this size, so it is left as-is.
    y = _pcall(_conv_conv1x1_kernel, M // tm,
               [taps2, w2, b2, w3, b3],
               [_row_spec(taps2.shape, tm), _full_spec(w2.shape), _full_spec(b2.shape),
                _full_spec(w3.shape), _full_spec(b3.shape)],
               (M, Cfin), _row_spec((M, Cfin), tm))
    return y.reshape(N, H, W, Cfin)


def unet_decoder(x_nchw, params):
    x = jnp.transpose(x_nchw, (0, 2, 3, 1))                  # NCHW -> NHWC
    c1 = conv_pool_block(x, params['conv1'])
    c2 = conv_pool_block(c1, params['conv2'])
    x = conv_pool_block(c2, params['conv3'])
    x = deconv_block(x, params['deconv1'])
    x = make_same_size(x, c2)
    # TODO(synk): make_same_size + channel concat stay as (small) XLA copies between kernels.
    x = deconv_block(jnp.concatenate([c2, x], axis=-1), params['deconv2'])
    x = make_same_size(x, c1)
    x = deconv_block(jnp.concatenate([c1, x], axis=-1), params['deconv3'])
    x = output_block(x, params['output'])
    return jnp.transpose(x, (0, 3, 1, 2))                    # NHWC -> NCHW


# ------------------------------ Parameter init -------------------------------

def init_params(key, num_channels=3, num_classes=20):
    keys = iter(jax.random.split(key, 64))

    def w(shape, scale=0.05):
        return (scale * jax.random.normal(next(keys), shape)).astype(jnp.float32)

    def conv_pool(cin, cout):
        return dict(bn_g=(1.0 + w((cin,), 0.01)), bn_b=w((cin,), 0.01),
                    w1=w((cout, cin, 5, 5)), b1=w((cout,), 0.01),
                    w2=w((cout, cout, 3, 3)), b2=w((cout,), 0.01))

    def deconv(cin, cout):
        return dict(bn_g=(1.0 + w((cin,), 0.01)), bn_b=w((cin,), 0.01),
                    w1=w((cin, cout, 5, 5)), b1=w((cout,), 0.01),   # ConvTranspose: (in,out,kh,kw)
                    w2=w((cout, cout, 2, 2)), b2=w((cout,), 0.01))

    def output(cin, cout):
        return dict(w1=w((cout, cin, 3, 3)), b1=w((cout,), 0.01),
                    w2=w((cout, cout, 3, 3)), b2=w((cout,), 0.01),
                    w3=w((cout, cout, 1, 1)), b3=w((cout,), 0.01))

    return dict(conv1=conv_pool(num_classes, 32),
                conv2=conv_pool(32, 32),
                conv3=conv_pool(32, 64),
                deconv1=deconv(64, 32),
                deconv2=deconv(64, 32),
                deconv3=deconv(64, 32),
                output=output(32, num_channels))


# ----------------------------------- main -----------------------------------

if __name__ == "__main__":
    key = jax.random.PRNGKey(0)
    pkey, xkey = jax.random.split(key)
    num_channels, num_classes = 3, 20
    params = init_params(pkey, num_channels=num_channels, num_classes=num_classes)

    # x: class-probability-like input, NCHW = (batch, num_classes, H, W)
    x = jax.random.normal(xkey, (2, num_classes, 16, 16), dtype=jnp.float32)

    fwd = jax.jit(functools.partial(unet_decoder, params=params))
    y = jax.block_until_ready(fwd(x))

    assert y.shape == (2, num_channels, 16, 16), y.shape
    assert bool(jnp.all(jnp.isfinite(y)))
    print("KERNEL_OK")
</pallas_src>

<mosaic_0001>
module attributes {stable_mosaic.version = 11 : i64} {
  func.func @_conv_kernel(%arg0: i32, %arg1: memref<256x500xbf16, #tpu.memory_space<vmem>>, %arg2: memref<500x32xbf16, #tpu.memory_space<vmem>>, %arg3: memref<1x32xf32, #tpu.memory_space<vmem>>, %arg4: memref<256x32xf32, #tpu.memory_space<vmem>>) attributes {dimension_semantics = [#tpu.dimension_semantics<parallel>], iteration_bounds = array<i64: 2>, scalar_prefetch = 0 : i64, scratch_operands = 0 : i64, tpu.core_type = #tpu.core_type<tc>, window_params = [{transform_indices = @transform_0, window_bounds = array<i64: 256, 500>}, {pipeline_mode = #tpu.pipeline_mode<synchronous>, transform_indices = @transform_1, window_bounds = array<i64: 500, 32>}, {pipeline_mode = #tpu.pipeline_mode<synchronous>, transform_indices = @transform_2, window_bounds = array<i64: 1, 32>}, {transform_indices = @transform_3, window_bounds = array<i64: 256, 32>}]} {
    %c0 = arith.constant 0 : index
    %c0_0 = arith.constant 0 : index
    %0 = vector.load %arg1[%c0, %c0_0] : memref<256x500xbf16, #tpu.memory_space<vmem>>, vector<256x500xbf16>
    %c0_1 = arith.constant 0 : index
    %c0_2 = arith.constant 0 : index
    %1 = vector.load %arg2[%c0_1, %c0_2] : memref<500x32xbf16, #tpu.memory_space<vmem>>, vector<500x32xbf16>
    %cst = arith.constant dense<0.000000e+00> : vector<256x32xf32>
    %2 = tpu.matmul %0, %1, %cst {dimension_numbers = #tpu.dot_dimension_numbers<[1], [0], [0], [1], [0, 0, 1, 1], [], []>} : vector<256x500xbf16>, vector<500x32xbf16>, vector<256x32xf32> -> vector<256x32xf32>
    %c0_3 = arith.constant 0 : index
    %c0_4 = arith.constant 0 : index
    %3 = vector.load %arg3[%c0_3, %c0_4] : memref<1x32xf32, #tpu.memory_space<vmem>>, vector<1x32xf32>
    %4 = vector.broadcast %3 : vector<1x32xf32> to vector<256x32xf32>
    %5 = arith.addf %2, %4 : vector<256x32xf32>
    %c0_5 = arith.constant 0 : index
    %c0_6 = arith.constant 0 : index
    %6 = vector.load %arg4[%c0_5, %c0_6] : memref<256x32xf32, #tpu.memory_space<vmem>>, vector<256x32xf32>
    tpu.vector_store %arg4[%c0_5, %c0_6], %5 {strides = array<i32>} : memref<256x32xf32, #tpu.memory_space<vmem>>, vector<256x32xf32>,
    return
  }
  func.func @transform_0(%arg0: i32) -> (i32, i32) {
    %c0_i32 = arith.constant 0 : i32
    %c0_i32_0 = arith.constant 0 : i32
    return %arg0, %c0_i32 : i32, i32
  }
  func.func @transform_1(%arg0: i32) -> (i32, i32) {
    %c0_i32 = arith.constant 0 : i32
    %c0_i32_0 = arith.constant 0 : i32
    %c0_i32_1 = arith.constant 0 : i32
    return %c0_i32, %c0_i32_0 : i32, i32
  }
  func.func @transform_2(%arg0: i32) -> (i32, i32) {
    %c0_i32 = arith.constant 0 : i32
    %c0_i32_0 = arith.constant 0 : i32
    %c0_i32_1 = arith.constant 0 : i32
    return %c0_i32, %c0_i32_0 : i32, i32
  }
  func.func @transform_3(%arg0: i32) -> (i32, i32) {
    %c0_i32 = arith.constant 0 : i32
    %c0_i32_0 = arith.constant 0 : i32
    return %arg0, %c0_i32 : i32, i32
  }
}

module attributes {stable_mosaic.version = 11 : i64} {
  func.func @_conv_pool_kernel(%arg0: i32, %arg1: memref<4x128x288xbf16, #tpu.memory_space<vmem>>, %arg2: memref<288x32xbf16, #tpu.memory_space<vmem>>, %arg3: memref<1x32xf32, #tpu.memory_space<vmem>>, %arg4: memref<128x32xf32, #tpu.memory_space<vmem>>) attributes {dimension_semantics = [#tpu.dimension_semantics<parallel>], iteration_bounds = array<i64: 1>, scalar_prefetch = 0 : i64, scratch_operands = 0 : i64, tpu.core_type = #tpu.core_type<tc>, window_params = [{transform_indices = @transform_0, window_bounds = array<i64: 4, 128, 288>}, {pipeline_mode = #tpu.pipeline_mode<synchronous>, transform_indices = @transform_1, window_bounds = array<i64: 288, 32>}, {pipeline_mode = #tpu.pipeline_mode<synchronous>, transform_indices = @transform_2, window_bounds = array<i64: 1, 32>}, {transform_indices = @transform_3, window_bounds = array<i64: 128, 32>}]} {
    %c0 = arith.constant 0 : index
    %c0_0 = arith.constant 0 : index
    %0 = vector.load %arg2[%c0, %c0_0] : memref<288x32xbf16, #tpu.memory_space<vmem>>, vector<288x32xbf16>
    %c0_1 = arith.constant 0 : index
    %c0_2 = arith.constant 0 : index
    %c0_3 = arith.constant 0 : index
    %1 = vector.load %arg1[%c0_1, %c0_2, %c0_3] : memref<4x128x288xbf16, #tpu.memory_space<vmem>>, vector<1x128x288xbf16>
    %2 = vector.shape_cast %1 : vector<1x128x288xbf16> to vector<128x288xbf16>
    %cst = arith.constant dense<0.000000e+00> : vector<128x32xf32>
    %3 = tpu.matmul %2, %0, %cst {dimension_numbers = #tpu.dot_dimension_numbers<[1], [0], [0], [1], [0, 0, 1, 1], [], []>} : vector<128x288xbf16>, vector<288x32xbf16>, vector<128x32xf32> -> vector<128x32xf32>
    %c1 = arith.constant 1 : index
    %c0_4 = arith.constant 0 : index
    %c0_5 = arith.constant 0 : index
    %4 = vector.load %arg1[%c1, %c0_4, %c0_5] : memref<4x128x288xbf16, #tpu.memory_space<vmem>>, vector<1x128x288xbf16>
    %5 = vector.shape_cast %4 : vector<1x128x288xbf16> to vector<128x288xbf16>
    %cst_6 = arith.constant dense<0.000000e+00> : vector<128x32xf32>
    %6 = tpu.matmul %5, %0, %cst_6 {dimension_numbers = #tpu.dot_dimension_numbers<[1], [0], [0], [1], [0, 0, 1, 1], [], []>} : vector<128x288xbf16>, vector<288x32xbf16>, vector<128x32xf32> -> vector<128x32xf32>
    %7 = arith.maximumf %3, %6 : vector<128x32xf32>
    %c2 = arith.constant 2 : index
    %c0_7 = arith.constant 0 : index
    %c0_8 = arith.constant 0 : index
    %8 = vector.load %arg1[%c2, %c0_7, %c0_8] : memref<4x128x288xbf16, #tpu.memory_space<vmem>>, vector<1x128x288xbf16>
    %9 = vector.shape_cast %8 : vector<1x128x288xbf16> to vector<128x288xbf16>
    %cst_9 = arith.constant dense<0.000000e+00> : vector<128x32xf32>
    %10 = tpu.matmul %9, %0, %cst_9 {dimension_numbers = #tpu.dot_dimension_numbers<[1], [0], [0], [1], [0, 0, 1, 1], [], []>} : vector<128x288xbf16>, vector<288x32xbf16>, vector<128x32xf32> -> vector<128x32xf32>
    %c3 = arith.constant 3 : index
    %c0_10 = arith.constant 0 : index
    %c0_11 = arith.constant 0 : index
    %11 = vector.load %arg1[%c3, %c0_10, %c0_11] : memref<4x128x288xbf16, #tpu.memory_space<vmem>>, vector<1x128x288xbf16>
    %12 = vector.shape_cast %11 : vector<1x128x288xbf16> to vector<128x288xbf16>
    %cst_12 = arith.constant dense<0.000000e+00> : vector<128x32xf32>
    %13 = tpu.matmul %12, %0, %cst_12 {dimension_numbers = #tpu.dot_dimension_numbers<[1], [0], [0], [1], [0, 0, 1, 1], [], []>} : vector<128x288xbf16>, vector<288x32xbf16>, vector<128x32xf32> -> vector<128x32xf32>
    %14 = arith.maximumf %10, %13 : vector<128x32xf32>
    %15 = arith.maximumf %7, %14 : vector<128x32xf32>
    %c0_13 = arith.constant 0 : index
    %c0_14 = arith.constant 0 : index
    %16 = vector.load %arg3[%c0_13, %c0_14] : memref<1x32xf32, #tpu.memory_space<vmem>>, vector<1x32xf32>
    %17 = vector.broadcast %16 : vector<1x32xf32> to vector<128x32xf32>
    %18 = arith.addf %15, %17 : vector<128x32xf32>
    %cst_15 = arith.constant 0.000000e+00 : f32
    %19 = vector.broadcast %cst_15 : f32 to vector<128x32xf32>
    %20 = arith.cmpf oge, %18, %19 : vector<128x32xf32>
    %cst_16 = arith.constant 1.000000e-01 : f32
    %21 = vector.broadcast %cst_16 : f32 to vector<128x32xf32>
    %22 = arith.mulf %21, %18 : vector<128x32xf32>
    %23 = arith.select %20, %18, %22 : vector<128x32xi1>, vector<128x32xf32>
    %c0_17 = arith.constant 0 : index
    %c0_18 = arith.constant 0 : index
    %24 = vector.load %arg4[%c0_17, %c0_18] : memref<128x32xf32, #tpu.memory_space<vmem>>, vector<128x32xf32>
    tpu.vector_store %arg4[%c0_17, %c0_18], %23 {strides = array<i32>} : memref<128x32xf32, #tpu.memory_space<vmem>>, vector<128x32xf32>,
    return
  }
  func.func @transform_0(%arg0: i32) -> (i32, i32, i32) {
    %c0_i32 = arith.constant 0 : i32
    %c0_i32_0 = arith.constant 0 : i32
    %c0_i32_1 = arith.constant 0 : i32
    return %c0_i32, %arg0, %c0_i32_0 : i32, i32, i32
  }
  func.func @transform_1(%arg0: i32) -> (i32, i32) {
    %c0_i32 = arith.constant 0 : i32
    %c0_i32_0 = arith.constant 0 : i32
    %c0_i32_1 = arith.constant 0 : i32
    return %c0_i32, %c0_i32_0 : i32, i32
  }
  func.func @transform_2(%arg0: i32) -> (i32, i32) {
    %c0_i32 = arith.constant 0 : i32
    %c0_i32_0 = arith.constant 0 : i32
    %c0_i32_1 = arith.constant 0 : i32
    return %c0_i32, %c0_i32_0 : i32, i32
  }
  func.func @transform_3(%arg0: i32) -> (i32, i32) {
    %c0_i32 = arith.constant 0 : i32
    %c0_i32_0 = arith.constant 0 : i32
    return %arg0, %c0_i32 : i32, i32
  }
}

module attributes {stable_mosaic.version = 11 : i64} {
  func.func @_conv_kernel(%arg0: i32, %arg1: memref<128x800xbf16, #tpu.memory_space<vmem>>, %arg2: memref<800x32xbf16, #tpu.memory_space<vmem>>, %arg3: memref<1x32xf32, #tpu.memory_space<vmem>>, %arg4: memref<128x32xf32, #tpu.memory_space<vmem>>) attributes {dimension_semantics = [#tpu.dimension_semantics<parallel>], iteration_bounds = array<i64: 1>, scalar_prefetch = 0 : i64, scratch_operands = 0 : i64, tpu.core_type = #tpu.core_type<tc>, window_params = [{transform_indices = @transform_0, window_bounds = array<i64: 128, 800>}, {pipeline_mode = #tpu.pipeline_mode<synchronous>, transform_indices = @transform_1, window_bounds = array<i64: 800, 32>}, {pipeline_mode = #tpu.pipeline_mode<synchronous>, transform_indices = @transform_2, window_bounds = array<i64: 1, 32>}, {transform_indices = @transform_3, window_bounds = array<i64: 128, 32>}]} {
    %c0 = arith.constant 0 : index
    %c0_0 = arith.constant 0 : index
    %0 = vector.load %arg1[%c0, %c0_0] : memref<128x800xbf16, #tpu.memory_space<vmem>>, vector<128x800xbf16>
    %c0_1 = arith.constant 0 : index
    %c0_2 = arith.constant 0 : index
    %1 = vector.load %arg2[%c0_1, %c0_2] : memref<800x32xbf16, #tpu.memory_space<vmem>>, vector<800x32xbf16>
    %cst = arith.constant dense<0.000000e+00> : vector<128x32xf32>
    %2 = tpu.matmul %0, %1, %cst {dimension_numbers = #tpu.dot_dimension_numbers<[1], [0], [0], [1], [0, 0, 1, 1], [], []>} : vector<128x800xbf16>, vector<800x32xbf16>, vector<128x32xf32> -> vector<128x32xf32>
    %c0_3 = arith.constant 0 : index
    %c0_4 = arith.constant 0 : index
    %3 = vector.load %arg3[%c0_3, %c0_4] : memref<1x32xf32, #tpu.memory_space<vmem>>, vector<1x32xf32>
    %4 = vector.broadcast %3 : vector<1x32xf32> to vector<128x32xf32>
    %5 = arith.addf %2, %4 : vector<128x32xf32>
    %c0_5 = arith.constant 0 : index
    %c0_6 = arith.constant 0 : index
    %6 = vector.load %arg4[%c0_5, %c0_6] : memref<128x32xf32, #tpu.memory_space<vmem>>, vector<128x32xf32>
    tpu.vector_store %arg4[%c0_5, %c0_6], %5 {strides = array<i32>} : memref<128x32xf32, #tpu.memory_space<vmem>>, vector<128x32xf32>,
    return
  }
  func.func @transform_0(%arg0: i32) -> (i32, i32) {
    %c0_i32 = arith.constant 0 : i32
    %c0_i32_0 = arith.constant 0 : i32
    return %arg0, %c0_i32 : i32, i32
  }
  func.func @transform_1(%arg0: i32) -> (i32, i32) {
    %c0_i32 = arith.constant 0 : i32
    %c0_i32_0 = arith.constant 0 : i32
    %c0_i32_1 = arith.constant 0 : i32
    return %c0_i32, %c0_i32_0 : i32, i32
  }
  func.func @transform_2(%arg0: i32) -> (i32, i32) {
    %c0_i32 = arith.constant 0 : i32
    %c0_i32_0 = arith.constant 0 : i32
    %c0_i32_1 = arith.constant 0 : i32
    return %c0_i32, %c0_i32_0 : i32, i32
  }
  func.func @transform_3(%arg0: i32) -> (i32, i32) {
    %c0_i32 = arith.constant 0 : i32
    %c0_i32_0 = arith.constant 0 : i32
    return %arg0, %c0_i32 : i32, i32
  }
}

module attributes {stable_mosaic.version = 11 : i64} {
  func.func @_conv_pool_kernel(%arg0: i32, %arg1: memref<4x32x288xbf16, #tpu.memory_space<vmem>>, %arg2: memref<288x32xbf16, #tpu.memory_space<vmem>>, %arg3: memref<1x32xf32, #tpu.memory_space<vmem>>, %arg4: memref<32x32xf32, #tpu.memory_space<vmem>>) attributes {dimension_semantics = [#tpu.dimension_semantics<parallel>], iteration_bounds = array<i64: 1>, scalar_prefetch = 0 : i64, scratch_operands = 0 : i64, tpu.core_type = #tpu.core_type<tc>, window_params = [{transform_indices = @transform_0, window_bounds = array<i64: 4, 32, 288>}, {pipeline_mode = #tpu.pipeline_mode<synchronous>, transform_indices = @transform_1, window_bounds = array<i64: 288, 32>}, {pipeline_mode = #tpu.pipeline_mode<synchronous>, transform_indices = @transform_2, window_bounds = array<i64: 1, 32>}, {transform_indices = @transform_3, window_bounds = array<i64: 32, 32>}]} {
    %c0 = arith.constant 0 : index
    %c0_0 = arith.constant 0 : index
    %0 = vector.load %arg2[%c0, %c0_0] : memref<288x32xbf16, #tpu.memory_space<vmem>>, vector<288x32xbf16>
    %c0_1 = arith.constant 0 : index
    %c0_2 = arith.constant 0 : index
    %c0_3 = arith.constant 0 : index
    %1 = vector.load %arg1[%c0_1, %c0_2, %c0_3] : memref<4x32x288xbf16, #tpu.memory_space<vmem>>, vector<1x32x288xbf16>
    %2 = vector.shape_cast %1 : vector<1x32x288xbf16> to vector<32x288xbf16>
    %cst = arith.constant dense<0.000000e+00> : vector<32x32xf32>
    %3 = tpu.matmul %2, %0, %cst {dimension_numbers = #tpu.dot_dimension_numbers<[1], [0], [0], [1], [0, 0, 1, 1], [], []>} : vector<32x288xbf16>, vector<288x32xbf16>, vector<32x32xf32> -> vector<32x32xf32>
    %c1 = arith.constant 1 : index
    %c0_4 = arith.constant 0 : index
    %c0_5 = arith.constant 0 : index
    %4 = vector.load %arg1[%c1, %c0_4, %c0_5] : memref<4x32x288xbf16, #tpu.memory_space<vmem>>, vector<1x32x288xbf16>
    %5 = vector.shape_cast %4 : vector<1x32x288xbf16> to vector<32x288xbf16>
    %cst_6 = arith.constant dense<0.000000e+00> : vector<32x32xf32>
    %6 = tpu.matmul %5, %0, %cst_6 {dimension_numbers = #tpu.dot_dimension_numbers<[1], [0], [0], [1], [0, 0, 1, 1], [], []>} : vector<32x288xbf16>, vector<288x32xbf16>, vector<32x32xf32> -> vector<32x32xf32>
    %7 = arith.maximumf %3, %6 : vector<32x32xf32>
    %c2 = arith.constant 2 : index
    %c0_7 = arith.constant 0 : index
    %c0_8 = arith.constant 0 : index
    %8 = vector.load %arg1[%c2, %c0_7, %c0_8] : memref<4x32x288xbf16, #tpu.memory_space<vmem>>, vector<1x32x288xbf16>
    %9 = vector.shape_cast %8 : vector<1x32x288xbf16> to vector<32x288xbf16>
    %cst_9 = arith.constant dense<0.000000e+00> : vector<32x32xf32>
    %10 = tpu.matmul %9, %0, %cst_9 {dimension_numbers = #tpu.dot_dimension_numbers<[1], [0], [0], [1], [0, 0, 1, 1], [], []>} : vector<32x288xbf16>, vector<288x32xbf16>, vector<32x32xf32> -> vector<32x32xf32>
    %c3 = arith.constant 3 : index
    %c0_10 = arith.constant 0 : index
    %c0_11 = arith.constant 0 : index
    %11 = vector.load %arg1[%c3, %c0_10, %c0_11] : memref<4x32x288xbf16, #tpu.memory_space<vmem>>, vector<1x32x288xbf16>
    %12 = vector.shape_cast %11 : vector<1x32x288xbf16> to vector<32x288xbf16>
    %cst_12 = arith.constant dense<0.000000e+00> : vector<32x32xf32>
    %13 = tpu.matmul %12, %0, %cst_12 {dimension_numbers = #tpu.dot_dimension_numbers<[1], [0], [0], [1], [0, 0, 1, 1], [], []>} : vector<32x288xbf16>, vector<288x32xbf16>, vector<32x32xf32> -> vector<32x32xf32>
    %14 = arith.maximumf %10, %13 : vector<32x32xf32>
    %15 = arith.maximumf %7, %14 : vector<32x32xf32>
    %c0_13 = arith.constant 0 : index
    %c0_14 = arith.constant 0 : index
    %16 = vector.load %arg3[%c0_13, %c0_14] : memref<1x32xf32, #tpu.memory_space<vmem>>, vector<1x32xf32>
    %17 = vector.broadcast %16 : vector<1x32xf32> to vector<32x32xf32>
    %18 = arith.addf %15, %17 : vector<32x32xf32>
    %cst_15 = arith.constant 0.000000e+00 : f32
    %19 = vector.broadcast %cst_15 : f32 to vector<32x32xf32>
    %20 = arith.cmpf oge, %18, %19 : vector<32x32xf32>
    %cst_16 = arith.constant 1.000000e-01 : f32
    %21 = vector.broadcast %cst_16 : f32 to vector<32x32xf32>
    %22 = arith.mulf %21, %18 : vector<32x32xf32>
    %23 = arith.select %20, %18, %22 : vector<32x32xi1>, vector<32x32xf32>
    %c0_17 = arith.constant 0 : index
    %c0_18 = arith.constant 0 : index
    %24 = vector.load %arg4[%c0_17, %c0_18] : memref<32x32xf32, #tpu.memory_space<vmem>>, vector<32x32xf32>
    tpu.vector_store %arg4[%c0_17, %c0_18], %23 {strides = array<i32>} : memref<32x32xf32, #tpu.memory_space<vmem>>, vector<32x32xf32>,
    return
  }
  func.func @transform_0(%arg0: i32) -> (i32, i32, i32) {
    %c0_i32 = arith.constant 0 : i32
    %c0_i32_0 = arith.constant 0 : i32
    %c0_i32_1 = arith.constant 0 : i32
    return %c0_i32, %arg0, %c0_i32_0 : i32, i32, i32
  }
  func.func @transform_1(%arg0: i32) -> (i32, i32) {
    %c0_i32 = arith.constant 0 : i32
    %c0_i32_0 = arith.constant 0 : i32
    %c0_i32_1 = arith.constant 0 : i32
    return %c0_i32, %c0_i32_0 : i32, i32
  }
  func.func @transform_2(%arg0: i32) -> (i32, i32) {
    %c0_i32 = arith.constant 0 : i32
    %c0_i32_0 = arith.constant 0 : i32
    %c0_i32_1 = arith.constant 0 : i32
    return %c0_i32, %c0_i32_0 : i32, i32
  }
  func.func @transform_3(%arg0: i32) -> (i32, i32) {
    %c0_i32 = arith.constant 0 : i32
    %c0_i32_0 = arith.constant 0 : i32
    return %arg0, %c0_i32 : i32, i32
  }
}

module attributes {stable_mosaic.version = 11 : i64} {
  func.func @_conv_kernel(%arg0: i32, %arg1: memref<32x800xbf16, #tpu.memory_space<vmem>>, %arg2: memref<800x64xbf16, #tpu.memory_space<vmem>>, %arg3: memref<1x64xf32, #tpu.memory_space<vmem>>, %arg4: memref<32x64xf32, #tpu.memory_space<vmem>>) attributes {dimension_semantics = [#tpu.dimension_semantics<parallel>], iteration_bounds = array<i64: 1>, scalar_prefetch = 0 : i64, scratch_operands = 0 : i64, tpu.core_type = #tpu.core_type<tc>, window_params = [{transform_indices = @transform_0, window_bounds = array<i64: 32, 800>}, {pipeline_mode = #tpu.pipeline_mode<synchronous>, transform_indices = @transform_1, window_bounds = array<i64: 800, 64>}, {pipeline_mode = #tpu.pipeline_mode<synchronous>, transform_indices = @transform_2, window_bounds = array<i64: 1, 64>}, {transform_indices = @transform_3, window_bounds = array<i64: 32, 64>}]} {
    %c0 = arith.constant 0 : index
    %c0_0 = arith.constant 0 : index
    %0 = vector.load %arg1[%c0, %c0_0] : memref<32x800xbf16, #tpu.memory_space<vmem>>, vector<32x800xbf16>
    %c0_1 = arith.constant 0 : index
    %c0_2 = arith.constant 0 : index
    %1 = vector.load %arg2[%c0_1, %c0_2] : memref<800x64xbf16, #tpu.memory_space<vmem>>, vector<800x64xbf16>
    %cst = arith.constant dense<0.000000e+00> : vector<32x64xf32>
    %2 = tpu.matmul %0, %1, %cst {dimension_numbers = #tpu.dot_dimension_numbers<[1], [0], [0], [1], [0, 0, 1, 1], [], []>} : vector<32x800xbf16>, vector<800x64xbf16>, vector<32x64xf32> -> vector<32x64xf32>
    %c0_3 = arith.constant 0 : index
    %c0_4 = arith.constant 0 : index
    %3 = vector.load %arg3[%c0_3, %c0_4] : memref<1x64xf32, #tpu.memory_space<vmem>>, vector<1x64xf32>
    %4 = vector.broadcast %3 : vector<1x64xf32> to vector<32x64xf32>
    %5 = arith.addf %2, %4 : vector<32x64xf32>
    %c0_5 = arith.constant 0 : index
    %c0_6 = arith.constant 0 : index
    %6 = vector.load %arg4[%c0_5, %c0_6] : memref<32x64xf32, #tpu.memory_space<vmem>>, vector<32x64xf32>
    tpu.vector_store %arg4[%c0_5, %c0_6], %5 {strides = array<i32>} : memref<32x64xf32, #tpu.memory_space<vmem>>, vector<32x64xf32>,
    return
  }
  func.func @transform_0(%arg0: i32) -> (i32, i32) {
    %c0_i32 = arith.constant 0 : i32
    %c0_i32_0 = arith.constant 0 : i32
    return %arg0, %c0_i32 : i32, i32
  }
  func.func @transform_1(%arg0: i32) -> (i32, i32) {
    %c0_i32 = arith.constant 0 : i32
    %c0_i32_0 = arith.constant 0 : i32
    %c0_i32_1 = arith.constant 0 : i32
    return %c0_i32, %c0_i32_0 : i32, i32
  }
  func.func @transform_2(%arg0: i32) -> (i32, i32) {
    %c0_i32 = arith.constant 0 : i32
    %c0_i32_0 = arith.constant 0 : i32
    %c0_i32_1 = arith.constant 0 : i32
    return %c0_i32, %c0_i32_0 : i32, i32
  }
  func.func @transform_3(%arg0: i32) -> (i32, i32) {
    %c0_i32 = arith.constant 0 : i32
    %c0_i32_0 = arith.constant 0 : i32
    return %arg0, %c0_i32 : i32, i32
  }
}

module attributes {stable_mosaic.version = 11 : i64} {
  func.func @_conv_pool_kernel(%arg0: i32, %arg1: memref<4x8x576xbf16, #tpu.memory_space<vmem>>, %arg2: memref<576x64xbf16, #tpu.memory_space<vmem>>, %arg3: memref<1x64xf32, #tpu.memory_space<vmem>>, %arg4: memref<8x64xf32, #tpu.memory_space<vmem>>) attributes {dimension_semantics = [#tpu.dimension_semantics<parallel>], iteration_bounds = array<i64: 1>, scalar_prefetch = 0 : i64, scratch_operands = 0 : i64, tpu.core_type = #tpu.core_type<tc>, window_params = [{transform_indices = @transform_0, window_bounds = array<i64: 4, 8, 576>}, {pipeline_mode = #tpu.pipeline_mode<synchronous>, transform_indices = @transform_1, window_bounds = array<i64: 576, 64>}, {pipeline_mode = #tpu.pipeline_mode<synchronous>, transform_indices = @transform_2, window_bounds = array<i64: 1, 64>}, {transform_indices = @transform_3, window_bounds = array<i64: 8, 64>}]} {
    %c0 = arith.constant 0 : index
    %c0_0 = arith.constant 0 : index
    %0 = vector.load %arg2[%c0, %c0_0] : memref<576x64xbf16, #tpu.memory_space<vmem>>, vector<576x64xbf16>
    %c0_1 = arith.constant 0 : index
    %c0_2 = arith.constant 0 : index
    %c0_3 = arith.constant 0 : index
    %1 = vector.load %arg1[%c0_1, %c0_2, %c0_3] : memref<4x8x576xbf16, #tpu.memory_space<vmem>>, vector<1x8x576xbf16>
    %2 = vector.shape_cast %1 : vector<1x8x576xbf16> to vector<8x576xbf16>
    %cst = arith.constant dense<0.000000e+00> : vector<8x64xf32>
    %3 = tpu.matmul %2, %0, %cst {dimension_numbers = #tpu.dot_dimension_numbers<[1], [0], [0], [1], [0, 0, 1, 1], [], []>} : vector<8x576xbf16>, vector<576x64xbf16>, vector<8x64xf32> -> vector<8x64xf32>
    %c1 = arith.constant 1 : index
    %c0_4 = arith.constant 0 : index
    %c0_5 = arith.constant 0 : index
    %4 = vector.load %arg1[%c1, %c0_4, %c0_5] : memref<4x8x576xbf16, #tpu.memory_space<vmem>>, vector<1x8x576xbf16>
    %5 = vector.shape_cast %4 : vector<1x8x576xbf16> to vector<8x576xbf16>
    %cst_6 = arith.constant dense<0.000000e+00> : vector<8x64xf32>
    %6 = tpu.matmul %5, %0, %cst_6 {dimension_numbers = #tpu.dot_dimension_numbers<[1], [0], [0], [1], [0, 0, 1, 1], [], []>} : vector<8x576xbf16>, vector<576x64xbf16>, vector<8x64xf32> -> vector<8x64xf32>
    %7 = arith.maximumf %3, %6 : vector<8x64xf32>
    %c2 = arith.constant 2 : index
    %c0_7 = arith.constant 0 : index
    %c0_8 = arith.constant 0 : index
    %8 = vector.load %arg1[%c2, %c0_7, %c0_8] : memref<4x8x576xbf16, #tpu.memory_space<vmem>>, vector<1x8x576xbf16>
    %9 = vector.shape_cast %8 : vector<1x8x576xbf16> to vector<8x576xbf16>
    %cst_9 = arith.constant dense<0.000000e+00> : vector<8x64xf32>
    %10 = tpu.matmul %9, %0, %cst_9 {dimension_numbers = #tpu.dot_dimension_numbers<[1], [0], [0], [1], [0, 0, 1, 1], [], []>} : vector<8x576xbf16>, vector<576x64xbf16>, vector<8x64xf32> -> vector<8x64xf32>
    %c3 = arith.constant 3 : index
    %c0_10 = arith.constant 0 : index
    %c0_11 = arith.constant 0 : index
    %11 = vector.load %arg1[%c3, %c0_10, %c0_11] : memref<4x8x576xbf16, #tpu.memory_space<vmem>>, vector<1x8x576xbf16>
    %12 = vector.shape_cast %11 : vector<1x8x576xbf16> to vector<8x576xbf16>
    %cst_12 = arith.constant dense<0.000000e+00> : vector<8x64xf32>
    %13 = tpu.matmul %12, %0, %cst_12 {dimension_numbers = #tpu.dot_dimension_numbers<[1], [0], [0], [1], [0, 0, 1, 1], [], []>} : vector<8x576xbf16>, vector<576x64xbf16>, vector<8x64xf32> -> vector<8x64xf32>
    %14 = arith.maximumf %10, %13 : vector<8x64xf32>
    %15 = arith.maximumf %7, %14 : vector<8x64xf32>
    %c0_13 = arith.constant 0 : index
    %c0_14 = arith.constant 0 : index
    %16 = vector.load %arg3[%c0_13, %c0_14] : memref<1x64xf32, #tpu.memory_space<vmem>>, vector<1x64xf32>
    %17 = vector.broadcast %16 : vector<1x64xf32> to vector<8x64xf32>
    %18 = arith.addf %15, %17 : vector<8x64xf32>
    %cst_15 = arith.constant 0.000000e+00 : f32
    %19 = vector.broadcast %cst_15 : f32 to vector<8x64xf32>
    %20 = arith.cmpf oge, %18, %19 : vector<8x64xf32>
    %cst_16 = arith.constant 1.000000e-01 : f32
    %21 = vector.broadcast %cst_16 : f32 to vector<8x64xf32>
    %22 = arith.mulf %21, %18 : vector<8x64xf32>
    %23 = arith.select %20, %18, %22 : vector<8x64xi1>, vector<8x64xf32>
    %c0_17 = arith.constant 0 : index
    %c0_18 = arith.constant 0 : index
    %24 = vector.load %arg4[%c0_17, %c0_18] : memref<8x64xf32, #tpu.memory_space<vmem>>, vector<8x64xf32>
    tpu.vector_store %arg4[%c0_17, %c0_18], %23 {strides = array<i32>} : memref<8x64xf32, #tpu.memory_space<vmem>>, vector<8x64xf32>,
    return
  }
  func.func @transform_0(%arg0: i32) -> (i32, i32, i32) {
    %c0_i32 = arith.constant 0 : i32
    %c0_i32_0 = arith.constant 0 : i32
    %c0_i32_1 = arith.constant 0 : i32
    return %c0_i32, %arg0, %c0_i32_0 : i32, i32, i32
  }
  func.func @transform_1(%arg0: i32) -> (i32, i32) {
    %c0_i32 = arith.constant 0 : i32
    %c0_i32_0 = arith.constant 0 : i32
    %c0_i32_1 = arith.constant 0 : i32
    return %c0_i32, %c0_i32_0 : i32, i32
  }
  func.func @transform_2(%arg0: i32) -> (i32, i32) {
    %c0_i32 = arith.constant 0 : i32
    %c0_i32_0 = arith.constant 0 : i32
    %c0_i32_1 = arith.constant 0 : i32
    return %c0_i32, %c0_i32_0 : i32, i32
  }
  func.func @transform_3(%arg0: i32) -> (i32, i32) {
    %c0_i32 = arith.constant 0 : i32
    %c0_i32_0 = arith.constant 0 : i32
    return %arg0, %c0_i32 : i32, i32
  }
}

module attributes {stable_mosaic.version = 11 : i64} {
  func.func @_deconv_kernel(%arg0: i32, %arg1: memref<8x1600xbf16, #tpu.memory_space<vmem>>, %arg2: memref<1600x32xbf16, #tpu.memory_space<vmem>>, %arg3: memref<8x32xf32, #tpu.memory_space<vmem>>, %arg4: memref<32x128xbf16, #tpu.memory_space<vmem>>, %arg5: memref<1x128xf32, #tpu.memory_space<vmem>>, %arg6: memref<8x128xf32, #tpu.memory_space<vmem>>) attributes {dimension_semantics = [#tpu.dimension_semantics<parallel>], iteration_bounds = array<i64: 1>, scalar_prefetch = 0 : i64, scratch_operands = 0 : i64, tpu.core_type = #tpu.core_type<tc>, window_params = [{transform_indices = @transform_0, window_bounds = array<i64: 8, 1600>}, {pipeline_mode = #tpu.pipeline_mode<synchronous>, transform_indices = @transform_1, window_bounds = array<i64: 1600, 32>}, {transform_indices = @transform_2, window_bounds = array<i64: 8, 32>}, {pipeline_mode = #tpu.pipeline_mode<synchronous>, transform_indices = @transform_3, window_bounds = array<i64: 32, 128>}, {pipeline_mode = #tpu.pipeline_mode<synchronous>, transform_indices = @transform_4, window_bounds = array<i64: 1, 128>}, {transform_indices = @transform_5, window_bounds = array<i64: 8, 128>}]} {
    %c0 = arith.constant 0 : index
    %c0_0 = arith.constant 0 : index
    %0 = vector.load %arg1[%c0, %c0_0] : memref<8x1600xbf16, #tpu.memory_space<vmem>>, vector<8x1600xbf16>
    %c0_1 = arith.constant 0 : index
    %c0_2 = arith.constant 0 : index
    %1 = vector.load %arg2[%c0_1, %c0_2] : memref<1600x32xbf16, #tpu.memory_space<vmem>>, vector<1600x32xbf16>
    %cst = arith.constant dense<0.000000e+00> : vector<8x32xf32>
    %2 = tpu.matmul %0, %1, %cst {dimension_numbers = #tpu.dot_dimension_numbers<[1], [0], [0], [1], [0, 0, 1, 1], [], []>} : vector<8x1600xbf16>, vector<1600x32xbf16>, vector<8x32xf32> -> vector<8x32xf32>
    %c0_3 = arith.constant 0 : index
    %c0_4 = arith.constant 0 : index
    %3 = vector.load %arg3[%c0_3, %c0_4] : memref<8x32xf32, #tpu.memory_space<vmem>>, vector<8x32xf32>
    %4 = arith.addf %2, %3 : vector<8x32xf32>
    %5 = arith.truncf %4 : vector<8x32xf32> to vector<8x32xbf16>
    %c0_5 = arith.constant 0 : index
    %c0_6 = arith.constant 0 : index
    %6 = vector.load %arg4[%c0_5, %c0_6] : memref<32x128xbf16, #tpu.memory_space<vmem>>, vector<32x128xbf16>
    %cst_7 = arith.constant dense<0.000000e+00> : vector<8x128xf32>
    %7 = tpu.matmul %5, %6, %cst_7 {dimension_numbers = #tpu.dot_dimension_numbers<[1], [0], [0], [1], [0, 0, 1, 1], [], []>} : vector<8x32xbf16>, vector<32x128xbf16>, vector<8x128xf32> -> vector<8x128xf32>
    %c0_8 = arith.constant 0 : index
    %c0_9 = arith.constant 0 : index
    %8 = vector.load %arg5[%c0_8, %c0_9] : memref<1x128xf32, #tpu.memory_space<vmem>>, vector<1x128xf32>
    %9 = vector.broadcast %8 : vector<1x128xf32> to vector<8x128xf32>
    %10 = arith.addf %7, %9 : vector<8x128xf32>
    %cst_10 = arith.constant 0.000000e+00 : f32
    %11 = vector.broadcast %cst_10 : f32 to vector<8x128xf32>
    %12 = arith.cmpf oge, %10, %11 : vector<8x128xf32>
    %cst_11 = arith.constant 1.000000e-01 : f32
    %13 = vector.broadcast %cst_11 : f32 to vector<8x128xf32>
    %14 = arith.mulf %13, %10 : vector<8x128xf32>
    %15 = arith.select %12, %10, %14 : vector<8x128xi1>, vector<8x128xf32>
    %c0_12 = arith.constant 0 : index
    %c0_13 = arith.constant 0 : index
    %16 = vector.load %arg6[%c0_12, %c0_13] : memref<8x128xf32, #tpu.memory_space<vmem>>, vector<8x128xf32>
    tpu.vector_store %arg6[%c0_12, %c0_13], %15 {strides = array<i32>} : memref<8x128xf32, #tpu.memory_space<vmem>>, vector<8x128xf32>,
    return
  }
  func.func @transform_0(%arg0: i32) -> (i32, i32) {
    %c0_i32 = arith.constant 0 : i32
    %c0_i32_0 = arith.constant 0 : i32
    return %arg0, %c0_i32 : i32, i32
  }
  func.func @transform_1(%arg0: i32) -> (i32, i32) {
    %c0_i32 = arith.constant 0 : i32
    %c0_i32_0 = arith.constant 0 : i32
    %c0_i32_1 = arith.constant 0 : i32
    return %c0_i32, %c0_i32_0 : i32, i32
  }
  func.func @transform_2(%arg0: i32) -> (i32, i32) {
    %c0_i32 = arith.constant 0 : i32
    %c0_i32_0 = arith.constant 0 : i32
    return %arg0, %c0_i32 : i32, i32
  }
  func.func @transform_3(%arg0: i32) -> (i32, i32) {
    %c0_i32 = arith.constant 0 : i32
    %c0_i32_0 = arith.constant 0 : i32
    %c0_i32_1 = arith.constant 0 : i32
    return %c0_i32, %c0_i32_0 : i32, i32
  }
  func.func @transform_4(%arg0: i32) -> (i32, i32) {
    %c0_i32 = arith.constant 0 : i32
    %c0_i32_0 = arith.constant 0 : i32
    %c0_i32_1 = arith.constant 0 : i32
    return %c0_i32, %c0_i32_0 : i32, i32
  }
  func.func @transform_5(%arg0: i32) -> (i32, i32) {
    %c0_i32 = arith.constant 0 : i32
    %c0_i32_0 = arith.constant 0 : i32
    return %arg0, %c0_i32 : i32, i32
  }
}

module attributes {stable_mosaic.version = 11 : i64} {
  func.func @_deconv_kernel(%arg0: i32, %arg1: memref<32x1600xbf16, #tpu.memory_space<vmem>>, %arg2: memref<1600x32xbf16, #tpu.memory_space<vmem>>, %arg3: memref<32x32xf32, #tpu.memory_space<vmem>>, %arg4: memref<32x128xbf16, #tpu.memory_space<vmem>>, %arg5: memref<1x128xf32, #tpu.memory_space<vmem>>, %arg6: memref<32x128xf32, #tpu.memory_space<vmem>>) attributes {dimension_semantics = [#tpu.dimension_semantics<parallel>], iteration_bounds = array<i64: 1>, scalar_prefetch = 0 : i64, scratch_operands = 0 : i64, tpu.core_type = #tpu.core_type<tc>, window_params = [{transform_indices = @transform_0, window_bounds = array<i64: 32, 1600>}, {pipeline_mode = #tpu.pipeline_mode<synchronous>, transform_indices = @transform_1, window_bounds = array<i64: 1600, 32>}, {transform_indices = @transform_2, window_bounds = array<i64: 32, 32>}, {pipeline_mode = #tpu.pipeline_mode<synchronous>, transform_indices = @transform_3, window_bounds = array<i64: 32, 128>}, {pipeline_mode = #tpu.pipeline_mode<synchronous>, transform_indices = @transform_4, window_bounds = array<i64: 1, 128>}, {transform_indices = @transform_5, window_bounds = array<i64: 32, 128>}]} {
    %c0 = arith.constant 0 : index
    %c0_0 = arith.constant 0 : index
    %0 = vector.load %arg1[%c0, %c0_0] : memref<32x1600xbf16, #tpu.memory_space<vmem>>, vector<32x1600xbf16>
    %c0_1 = arith.constant 0 : index
    %c0_2 = arith.constant 0 : index
    %1 = vector.load %arg2[%c0_1, %c0_2] : memref<1600x32xbf16, #tpu.memory_space<vmem>>, vector<1600x32xbf16>
    %cst = arith.constant dense<0.000000e+00> : vector<32x32xf32>
    %2 = tpu.matmul %0, %1, %cst {dimension_numbers = #tpu.dot_dimension_numbers<[1], [0], [0], [1], [0, 0, 1, 1], [], []>} : vector<32x1600xbf16>, vector<1600x32xbf16>, vector<32x32xf32> -> vector<32x32xf32>
    %c0_3 = arith.constant 0 : index
    %c0_4 = arith.constant 0 : index
    %3 = vector.load %arg3[%c0_3, %c0_4] : memref<32x32xf32, #tpu.memory_space<vmem>>, vector<32x32xf32>
    %4 = arith.addf %2, %3 : vector<32x32xf32>
    %5 = arith.truncf %4 : vector<32x32xf32> to vector<32x32xbf16>
    %c0_5 = arith.constant 0 : index
    %c0_6 = arith.constant 0 : index
    %6 = vector.load %arg4[%c0_5, %c0_6] : memref<32x128xbf16, #tpu.memory_space<vmem>>, vector<32x128xbf16>
    %cst_7 = arith.constant dense<0.000000e+00> : vector<32x128xf32>
    %7 = tpu.matmul %5, %6, %cst_7 {dimension_numbers = #tpu.dot_dimension_numbers<[1], [0], [0], [1], [0, 0, 1, 1], [], []>} : vector<32x32xbf16>, vector<32x128xbf16>, vector<32x128xf32> -> vector<32x128xf32>
    %c0_8 = arith.constant 0 : index
    %c0_9 = arith.constant 0 : index
    %8 = vector.load %arg5[%c0_8, %c0_9] : memref<1x128xf32, #tpu.memory_space<vmem>>, vector<1x128xf32>
    %9 = vector.broadcast %8 : vector<1x128xf32> to vector<32x128xf32>
    %10 = arith.addf %7, %9 : vector<32x128xf32>
    %cst_10 = arith.constant 0.000000e+00 : f32
    %11 = vector.broadcast %cst_10 : f32 to vector<32x128xf32>
    %12 = arith.cmpf oge, %10, %11 : vector<32x128xf32>
    %cst_11 = arith.constant 1.000000e-01 : f32
    %13 = vector.broadcast %cst_11 : f32 to vector<32x128xf32>
    %14 = arith.mulf %13, %10 : vector<32x128xf32>
    %15 = arith.select %12, %10, %14 : vector<32x128xi1>, vector<32x128xf32>
    %c0_12 = arith.constant 0 : index
    %c0_13 = arith.constant 0 : index
    %16 = vector.load %arg6[%c0_12, %c0_13] : memref<32x128xf32, #tpu.memory_space<vmem>>, vector<32x128xf32>
    tpu.vector_store %arg6[%c0_12, %c0_13], %15 {strides = array<i32>} : memref<32x128xf32, #tpu.memory_space<vmem>>, vector<32x128xf32>,
    return
  }
  func.func @transform_0(%arg0: i32) -> (i32, i32) {
    %c0_i32 = arith.constant 0 : i32
    %c0_i32_0 = arith.constant 0 : i32
    return %arg0, %c0_i32 : i32, i32
  }
  func.func @transform_1(%arg0: i32) -> (i32, i32) {
    %c0_i32 = arith.constant 0 : i32
    %c0_i32_0 = arith.constant 0 : i32
    %c0_i32_1 = arith.constant 0 : i32
    return %c0_i32, %c0_i32_0 : i32, i32
  }
  func.func @transform_2(%arg0: i32) -> (i32, i32) {
    %c0_i32 = arith.constant 0 : i32
    %c0_i32_0 = arith.constant 0 : i32
    return %arg0, %c0_i32 : i32, i32
  }
  func.func @transform_3(%arg0: i32) -> (i32, i32) {
    %c0_i32 = arith.constant 0 : i32
    %c0_i32_0 = arith.constant 0 : i32
    %c0_i32_1 = arith.constant 0 : i32
    return %c0_i32, %c0_i32_0 : i32, i32
  }
  func.func @transform_4(%arg0: i32) -> (i32, i32) {
    %c0_i32 = arith.constant 0 : i32
    %c0_i32_0 = arith.constant 0 : i32
    %c0_i32_1 = arith.constant 0 : i32
    return %c0_i32, %c0_i32_0 : i32, i32
  }
  func.func @transform_5(%arg0: i32) -> (i32, i32) {
    %c0_i32 = arith.constant 0 : i32
    %c0_i32_0 = arith.constant 0 : i32
    return %arg0, %c0_i32 : i32, i32
  }
}

module attributes {stable_mosaic.version = 11 : i64} {
  func.func @_deconv_kernel(%arg0: i32, %arg1: memref<128x1600xbf16, #tpu.memory_space<vmem>>, %arg2: memref<1600x32xbf16, #tpu.memory_space<vmem>>, %arg3: memref<128x32xf32, #tpu.memory_space<vmem>>, %arg4: memref<32x128xbf16, #tpu.memory_space<vmem>>, %arg5: memref<1x128xf32, #tpu.memory_space<vmem>>, %arg6: memref<128x128xf32, #tpu.memory_space<vmem>>) attributes {dimension_semantics = [#tpu.dimension_semantics<parallel>], iteration_bounds = array<i64: 1>, scalar_prefetch = 0 : i64, scratch_operands = 0 : i64, tpu.core_type = #tpu.core_type<tc>, window_params = [{transform_indices = @transform_0, window_bounds = array<i64: 128, 1600>}, {pipeline_mode = #tpu.pipeline_mode<synchronous>, transform_indices = @transform_1, window_bounds = array<i64: 1600, 32>}, {transform_indices = @transform_2, window_bounds = array<i64: 128, 32>}, {pipeline_mode = #tpu.pipeline_mode<synchronous>, transform_indices = @transform_3, window_bounds = array<i64: 32, 128>}, {pipeline_mode = #tpu.pipeline_mode<synchronous>, transform_indices = @transform_4, window_bounds = array<i64: 1, 128>}, {transform_indices = @transform_5, window_bounds = array<i64: 128, 128>}]} {
    %c0 = arith.constant 0 : index
    %c0_0 = arith.constant 0 : index
    %0 = vector.load %arg1[%c0, %c0_0] : memref<128x1600xbf16, #tpu.memory_space<vmem>>, vector<128x1600xbf16>
    %c0_1 = arith.constant 0 : index
    %c0_2 = arith.constant 0 : index
    %1 = vector.load %arg2[%c0_1, %c0_2] : memref<1600x32xbf16, #tpu.memory_space<vmem>>, vector<1600x32xbf16>
    %cst = arith.constant dense<0.000000e+00> : vector<128x32xf32>
    %2 = tpu.matmul %0, %1, %cst {dimension_numbers = #tpu.dot_dimension_numbers<[1], [0], [0], [1], [0, 0, 1, 1], [], []>} : vector<128x1600xbf16>, vector<1600x32xbf16>, vector<128x32xf32> -> vector<128x32xf32>
    %c0_3 = arith.constant 0 : index
    %c0_4 = arith.constant 0 : index
    %3 = vector.load %arg3[%c0_3, %c0_4] : memref<128x32xf32, #tpu.memory_space<vmem>>, vector<128x32xf32>
    %4 = arith.addf %2, %3 : vector<128x32xf32>
    %5 = arith.truncf %4 : vector<128x32xf32> to vector<128x32xbf16>
    %c0_5 = arith.constant 0 : index
    %c0_6 = arith.constant 0 : index
    %6 = vector.load %arg4[%c0_5, %c0_6] : memref<32x128xbf16, #tpu.memory_space<vmem>>, vector<32x128xbf16>
    %cst_7 = arith.constant dense<0.000000e+00> : vector<128x128xf32>
    %7 = tpu.matmul %5, %6, %cst_7 {dimension_numbers = #tpu.dot_dimension_numbers<[1], [0], [0], [1], [0, 0, 1, 1], [], []>} : vector<128x32xbf16>, vector<32x128xbf16>, vector<128x128xf32> -> vector<128x128xf32>
    %c0_8 = arith.constant 0 : index
    %c0_9 = arith.constant 0 : index
    %8 = vector.load %arg5[%c0_8, %c0_9] : memref<1x128xf32, #tpu.memory_space<vmem>>, vector<1x128xf32>
    %9 = vector.broadcast %8 : vector<1x128xf32> to vector<128x128xf32>
    %10 = arith.addf %7, %9 : vector<128x128xf32>
    %cst_10 = arith.constant 0.000000e+00 : f32
    %11 = vector.broadcast %cst_10 : f32 to vector<128x128xf32>
    %12 = arith.cmpf oge, %10, %11 : vector<128x128xf32>
    %cst_11 = arith.constant 1.000000e-01 : f32
    %13 = vector.broadcast %cst_11 : f32 to vector<128x128xf32>
    %14 = arith.mulf %13, %10 : vector<128x128xf32>
    %15 = arith.select %12, %10, %14 : vector<128x128xi1>, vector<128x128xf32>
    %c0_12 = arith.constant 0 : index
    %c0_13 = arith.constant 0 : index
    %16 = vector.load %arg6[%c0_12, %c0_13] : memref<128x128xf32, #tpu.memory_space<vmem>>, vector<128x128xf32>
    tpu.vector_store %arg6[%c0_12, %c0_13], %15 {strides = array<i32>} : memref<128x128xf32, #tpu.memory_space<vmem>>, vector<128x128xf32>,
    return
  }
  func.func @transform_0(%arg0: i32) -> (i32, i32) {
    %c0_i32 = arith.constant 0 : i32
    %c0_i32_0 = arith.constant 0 : i32
    return %arg0, %c0_i32 : i32, i32
  }
  func.func @transform_1(%arg0: i32) -> (i32, i32) {
    %c0_i32 = arith.constant 0 : i32
    %c0_i32_0 = arith.constant 0 : i32
    %c0_i32_1 = arith.constant 0 : i32
    return %c0_i32, %c0_i32_0 : i32, i32
  }
  func.func @transform_2(%arg0: i32) -> (i32, i32) {
    %c0_i32 = arith.constant 0 : i32
    %c0_i32_0 = arith.constant 0 : i32
    return %arg0, %c0_i32 : i32, i32
  }
  func.func @transform_3(%arg0: i32) -> (i32, i32) {
    %c0_i32 = arith.constant 0 : i32
    %c0_i32_0 = arith.constant 0 : i32
    %c0_i32_1 = arith.constant 0 : i32
    return %c0_i32, %c0_i32_0 : i32, i32
  }
  func.func @transform_4(%arg0: i32) -> (i32, i32) {
    %c0_i32 = arith.constant 0 : i32
    %c0_i32_0 = arith.constant 0 : i32
    %c0_i32_1 = arith.constant 0 : i32
    return %c0_i32, %c0_i32_0 : i32, i32
  }
  func.func @transform_5(%arg0: i32) -> (i32, i32) {
    %c0_i32 = arith.constant 0 : i32
    %c0_i32_0 = arith.constant 0 : i32
    return %arg0, %c0_i32 : i32, i32
  }
}

module attributes {stable_mosaic.version = 11 : i64} {
  func.func @_conv_kernel(%arg0: i32, %arg1: memref<256x288xbf16, #tpu.memory_space<vmem>>, %arg2: memref<288x3xbf16, #tpu.memory_space<vmem>>, %arg3: memref<1x3xf32, #tpu.memory_space<vmem>>, %arg4: memref<256x3xf32, #tpu.memory_space<vmem>>) attributes {dimension_semantics = [#tpu.dimension_semantics<parallel>], iteration_bounds = array<i64: 2>, scalar_prefetch = 0 : i64, scratch_operands = 0 : i64, tpu.core_type = #tpu.core_type<tc>, window_params = [{transform_indices = @transform_0, window_bounds = array<i64: 256, 288>}, {pipeline_mode = #tpu.pipeline_mode<synchronous>, transform_indices = @transform_1, window_bounds = array<i64: 288, 3>}, {pipeline_mode = #tpu.pipeline_mode<synchronous>, transform_indices = @transform_2, window_bounds = array<i64: 1, 3>}, {transform_indices = @transform_3, window_bounds = array<i64: 256, 3>}]} {
    %c0 = arith.constant 0 : index
    %c0_0 = arith.constant 0 : index
    %0 = vector.load %arg1[%c0, %c0_0] : memref<256x288xbf16, #tpu.memory_space<vmem>>, vector<256x288xbf16>
    %c0_1 = arith.constant 0 : index
    %c0_2 = arith.constant 0 : index
    %1 = vector.load %arg2[%c0_1, %c0_2] : memref<288x3xbf16, #tpu.memory_space<vmem>>, vector<288x3xbf16>
    %cst = arith.constant dense<0.000000e+00> : vector<256x3xf32>
    %2 = tpu.matmul %0, %1, %cst {dimension_numbers = #tpu.dot_dimension_numbers<[1], [0], [0], [1], [0, 0, 1, 1], [], []>} : vector<256x288xbf16>, vector<288x3xbf16>, vector<256x3xf32> -> vector<256x3xf32>
    %c0_3 = arith.constant 0 : index
    %c0_4 = arith.constant 0 : index
    %3 = vector.load %arg3[%c0_3, %c0_4] : memref<1x3xf32, #tpu.memory_space<vmem>>, vector<1x3xf32>
    %4 = vector.broadcast %3 : vector<1x3xf32> to vector<256x3xf32>
    %5 = arith.addf %2, %4 : vector<256x3xf32>
    %c0_5 = arith.constant 0 : index
    %c0_6 = arith.constant 0 : index
    %6 = vector.load %arg4[%c0_5, %c0_6] : memref<256x3xf32, #tpu.memory_space<vmem>>, vector<256x3xf32>
    tpu.vector_store %arg4[%c0_5, %c0_6], %5 {strides = array<i32>} : memref<256x3xf32, #tpu.memory_space<vmem>>, vector<256x3xf32>,
    return
  }
  func.func @transform_0(%arg0: i32) -> (i32, i32) {
    %c0_i32 = arith.constant 0 : i32
    %c0_i32_0 = arith.constant 0 : i32
    return %arg0, %c0_i32 : i32, i32
  }
  func.func @transform_1(%arg0: i32) -> (i32, i32) {
    %c0_i32 = arith.constant 0 : i32
    %c0_i32_0 = arith.constant 0 : i32
    %c0_i32_1 = arith.constant 0 : i32
    return %c0_i32, %c0_i32_0 : i32, i32
  }
  func.func @transform_2(%arg0: i32) -> (i32, i32) {
    %c0_i32 = arith.constant 0 : i32
    %c0_i32_0 = arith.constant 0 : i32
    %c0_i32_1 = arith.constant 0 : i32
    return %c0_i32, %c0_i32_0 : i32, i32
  }
  func.func @transform_3(%arg0: i32) -> (i32, i32) {
    %c0_i32 = arith.constant 0 : i32
    %c0_i32_0 = arith.constant 0 : i32
    return %arg0, %c0_i32 : i32, i32
  }
}

module attributes {stable_mosaic.version = 11 : i64} {
  func.func @_conv_conv1x1_kernel(%arg0: i32, %arg1: memref<256x27xbf16, #tpu.memory_space<vmem>>, %arg2: memref<27x3xbf16, #tpu.memory_space<vmem>>, %arg3: memref<1x3xf32, #tpu.memory_space<vmem>>, %arg4: memref<3x3xbf16, #tpu.memory_space<vmem>>, %arg5: memref<1x3xf32, #tpu.memory_space<vmem>>, %arg6: memref<256x3xf32, #tpu.memory_space<vmem>>) attributes {dimension_semantics = [#tpu.dimension_semantics<parallel>], iteration_bounds = array<i64: 2>, scalar_prefetch = 0 : i64, scratch_operands = 0 : i64, tpu.core_type = #tpu.core_type<tc>, window_params = [{transform_indices = @transform_0, window_bounds = array<i64: 256, 27>}, {pipeline_mode = #tpu.pipeline_mode<synchronous>, transform_indices = @transform_1, window_bounds = array<i64: 27, 3>}, {pipeline_mode = #tpu.pipeline_mode<synchronous>, transform_indices = @transform_2, window_bounds = array<i64: 1, 3>}, {pipeline_mode = #tpu.pipeline_mode<synchronous>, transform_indices = @transform_3, window_bounds = array<i64: 3, 3>}, {pipeline_mode = #tpu.pipeline_mode<synchronous>, transform_indices = @transform_4, window_bounds = array<i64: 1, 3>}, {transform_indices = @transform_5, window_bounds = array<i64: 256, 3>}]} {
    %c0 = arith.constant 0 : index
    %c0_0 = arith.constant 0 : index
    %0 = vector.load %arg1[%c0, %c0_0] : memref<256x27xbf16, #tpu.memory_space<vmem>>, vector<256x27xbf16>
    %c0_1 = arith.constant 0 : index
    %c0_2 = arith.constant 0 : index
    %1 = vector.load %arg2[%c0_1, %c0_2] : memref<27x3xbf16, #tpu.memory_space<vmem>>, vector<27x3xbf16>
    %cst = arith.constant dense<0.000000e+00> : vector<256x3xf32>
    %2 = tpu.matmul %0, %1, %cst {dimension_numbers = #tpu.dot_dimension_numbers<[1], [0], [0], [1], [0, 0, 1, 1], [], []>} : vector<256x27xbf16>, vector<27x3xbf16>, vector<256x3xf32> -> vector<256x3xf32>
    %c0_3 = arith.constant 0 : index
    %c0_4 = arith.constant 0 : index
    %3 = vector.load %arg3[%c0_3, %c0_4] : memref<1x3xf32, #tpu.memory_space<vmem>>, vector<1x3xf32>
    %4 = vector.broadcast %3 : vector<1x3xf32> to vector<256x3xf32>
    %5 = arith.addf %2, %4 : vector<256x3xf32>
    %6 = arith.truncf %5 : vector<256x3xf32> to vector<256x3xbf16>
    %c0_5 = arith.constant 0 : index
    %c0_6 = arith.constant 0 : index
    %7 = vector.load %arg4[%c0_5, %c0_6] : memref<3x3xbf16, #tpu.memory_space<vmem>>, vector<3x3xbf16>
    %cst_7 = arith.constant dense<0.000000e+00> : vector<256x3xf32>
    %8 = tpu.matmul %6, %7, %cst_7 {dimension_numbers = #tpu.dot_dimension_numbers<[1], [0], [0], [1], [0, 0, 1, 1], [], []>} : vector<256x3xbf16>, vector<3x3xbf16>, vector<256x3xf32> -> vector<256x3xf32>
    %c0_8 = arith.constant 0 : index
    %c0_9 = arith.constant 0 : index
    %9 = vector.load %arg5[%c0_8, %c0_9] : memref<1x3xf32, #tpu.memory_space<vmem>>, vector<1x3xf32>
    %10 = vector.broadcast %9 : vector<1x3xf32> to vector<256x3xf32>
    %11 = arith.addf %8, %10 : vector<256x3xf32>
    %c0_10 = arith.constant 0 : index
    %c0_11 = arith.constant 0 : index
    %12 = vector.load %arg6[%c0_10, %c0_11] : memref<256x3xf32, #tpu.memory_space<vmem>>, vector<256x3xf32>
    tpu.vector_store %arg6[%c0_10, %c0_11], %11 {strides = array<i32>} : memref<256x3xf32, #tpu.memory_space<vmem>>, vector<256x3xf32>,
    return
  }
  func.func @transform_0(%arg0: i32) -> (i32, i32) {
    %c0_i32 = arith.constant 0 : i32
    %c0_i32_0 = arith.constant 0 : i32
    return %arg0, %c0_i32 : i32, i32
  }
  func.func @transform_1(%arg0: i32) -> (i32, i32) {
    %c0_i32 = arith.constant 0 : i32
    %c0_i32_0 = arith.constant 0 : i32
    %c0_i32_1 = arith.constant 0 : i32
    return %c0_i32, %c0_i32_0 : i32, i32
  }
  func.func @transform_2(%arg0: i32) -> (i32, i32) {
    %c0_i32 = arith.constant 0 : i32
    %c0_i32_0 = arith.constant 0 : i32
    %c0_i32_1 = arith.constant 0 : i32
    return %c0_i32, %c0_i32_0 : i32, i32
  }
  func.func @transform_3(%arg0: i32) -> (i32, i32) {
    %c0_i32 = arith.constant 0 : i32
    %c0_i32_0 = arith.constant 0 : i32
    %c0_i32_1 = arith.constant 0 : i32
    return %c0_i32, %c0_i32_0 : i32, i32
  }
  func.func @transform_4(%arg0: i32) -> (i32, i32) {
    %c0_i32 = arith.constant 0 : i32
    %c0_i32_0 = arith.constant 0 : i32
    %c0_i32_1 = arith.constant 0 : i32
    return %c0_i32, %c0_i32_0 : i32, i32
  }
  func.func @transform_5(%arg0: i32) -> (i32, i32) {
    %c0_i32 = arith.constant 0 : i32
    %c0_i32_0 = arith.constant 0 : i32
    return %arg0, %c0_i32 : i32, i32
  }
}

</mosaic_0001>

<llo_original>
// kernel: unet_decoder.11
$region0: #{unet_decoder.11}
  #allocation0 [shape = 'u32[]', space=smem, size = 0x4, offset = 0x4, fixed_abs, tag = 'smem constant byte address 0x4 - core index']
  #allocation1 [shape = 'u32[144,128]{1,0:T(1,128)}', space=vmem, size = 0x12000, scoped, tag = 'internal scratch']
  %s0 = inlined_call_operand.vmem [shape: bf16[512,500], index: 0, kind: input, shape index: {}]
  %s1 = inlined_call_operand.vmem [shape: bf16[500,32], index: 1, kind: input, shape index: {}]
  %s2 = inlined_call_operand.vmem [shape: f32[1,32], index: 2, kind: input, shape index: {}]
  %s3 = inlined_call_operand.vmem [shape: f32[512,32], index: 3, kind: output, shape index: {}]
  %s4 = sld [smem:[#allocation0]]
  $region45: #{unet_decoder.11} parent=0
    _
  %s6 = ssub.s32 1, %s4
  %s7 = scalar_select 0, %s6, %s4
  loop: start=0, step=1, limit=4
  $region2: #{unet_decoder.11} parent=0 // loop_pre_header
    _
  $region3: #{unet_decoder.11} parent=0 // loop_header
    %s9 = sphi 0, %s13
    %p10 = scmp.ge.s32.totalorder %s9, 4
    %s19 = sphi 0, %s21
    %s22 = sphi 0, %s19
    %s23 = sphi 0, %s22
    %s39 = sphi 0, %s23
    %s43 = sphi 0, %s43
    %s45 = sphi 0, %s43
    %s46 = sphi 0, %s45
    %s60 = sphi 0, %s46
    %s64 = sphi 0, %s64
    %s66 = sphi 0, %s64
    %s67 = sphi 0, %s66
    %s81 = sphi 0, %s67
    %s87 = sphi 0, %s89
    %s90 = sphi 0, %s87
    %s91 = sphi 0, %s90
    %s107 = sphi 0, %s91
  $region4: #{unet_decoder.11} parent=0 // loop_header_branch
    %12 = sbr.rel (%p10) target = $region8
  $region5: #{unet_decoder.11} parent=0 // loop_body
    %s14 = ssub.s32 %s9, 1
    %s15 = ssub.s32 %s9, 2
    %s16 = sadd.s32 %s9, 1
    %s17 = ssub.s32 %s9, %s16
    %p18 = scmp.eq.s32.totalorder %s17, 0
    %s20 = sadd.s32 %s19, 1
    %s21 = scalar_select %p18, %s19, %s20
    %p24 = pneg %p18
    %p25 = scmp.eq.s32.totalorder %s9, 1
    %p26 = por %p24, %p25
    %p27 = scmp.ne.s32.totalorder %s19, %s22
    %p28 = scmp.eq.s32.totalorder %s9, 0
    %p29 = por %p27, %p28
    %p30 = scmp.ne.s32.totalorder %s19, %s22
    %p31 = scmp.eq.s32.totalorder %s14, 1
    %p32 = por %p30, %p31
    %p33 = scmp.ne.s32.totalorder %s22, %s23
    %p34 = scmp.eq.s32.totalorder %s14, 0
    %p35 = por %p33, %p34
    %p36 = scmp.ne.s32.totalorder %s22, %s23
    %p37 = scmp.eq.s32.totalorder %s15, 1
    %p38 = por %p36, %p37
    %p40 = scmp.ne.s32.totalorder %s23, %s39
    %p41 = scmp.eq.s32.totalorder %s15, 0
    %p42 = por %p40, %p41
    %s44 = sadd.s32 %s43, 1
    %p47 = scmp.eq.s32.totalorder %s9, 1
    %p48 = scmp.ne.s32.totalorder %s43, %s45
    %p49 = scmp.eq.s32.totalorder %s9, 0
    %p50 = por %p48, %p49
    %p51 = scmp.ne.s32.totalorder %s43, %s45
    %p52 = scmp.eq.s32.totalorder %s14, 1
    %p53 = por %p51, %p52
    %p54 = scmp.ne.s32.totalorder %s45, %s46
    %p55 = scmp.eq.s32.totalorder %s14, 0
    %p56 = por %p54, %p55
    %p57 = scmp.ne.s32.totalorder %s45, %s46
    %p58 = scmp.eq.s32.totalorder %s15, 1
    %p59 = por %p57, %p58
    %p61 = scmp.ne.s32.totalorder %s46, %s60
    %p62 = scmp.eq.s32.totalorder %s15, 0
    %p63 = por %p61, %p62
    %s65 = sadd.s32 %s64, 1
    %p68 = scmp.eq.s32.totalorder %s9, 1
    %p69 = scmp.ne.s32.totalorder %s64, %s66
    %p70 = scmp.eq.s32.totalorder %s9, 0
    %p71 = por %p69, %p70
    %p72 = scmp.ne.s32.totalorder %s64, %s66
    %p73 = scmp.eq.s32.totalorder %s14, 1
    %p74 = por %p72, %p73
    %p75 = scmp.ne.s32.totalorder %s66, %s67
    %p76 = scmp.eq.s32.totalorder %s14, 0
    %p77 = por %p75, %p76
    %p78 = scmp.ne.s32.totalorder %s66, %s67
    %p79 = scmp.eq.s32.totalorder %s15, 1
    %p80 = por %p78, %p79
    %p82 = scmp.ne.s32.totalorder %s67, %s81
    %p83 = scmp.eq.s32.totalorder %s15, 0
    %p84 = por %p82, %p83
    %s85 = ssub.s32 %s9, %s16
    %p86 = scmp.eq.s32.totalorder %s85, 0
    %s88 = sadd.s32 %s87, 1
    %s89 = scalar_select %p86, %s87, %s88
    %p92 = pneg %p86
    %p93 = scmp.eq.s32.totalorder %s9, 1
    %p94 = por %p92, %p93
    %p95 = scmp.ne.s32.totalorder %s87, %s90
    %p96 = scmp.eq.s32.totalorder %s9, 0
    %p97 = por %p95, %p96
    %p98 = scmp.ne.s32.totalorder %s87, %s90
    %p99 = scmp.eq.s32.totalorder %s14, 1
    %p100 = por %p98, %p99
    %p101 = scmp.ne.s32.totalorder %s90, %s91
    %p102 = scmp.eq.s32.totalorder %s14, 0
    %p103 = por %p101, %p102
    %p104 = scmp.ne.s32.totalorder %s90, %s91
    %p105 = scmp.eq.s32.totalorder %s15, 1
    %p106 = por %p104, %p105
    %p108 = scmp.ne.s32.totalorder %s91, %s107
    %p109 = scmp.eq.s32.totalorder %s15, 0
    %p110 = por %p108, %p109
    %p111 = scmp.le.s32.totalorder 1, %s9
    %p112 = scmp.lt.s32.totalorder %s9, 3
    %p113 = pnand %p111, %p112
    %p114 = pneg %p113
    // Predicated region
    $region9: #{unet_decoder.11} parent=5 // pred_check
      _
    $region10: #{unet_decoder.11} parent=5 // pred_check_branch
      %116 = sbr.rel (%p113) target = $region12
    $region11: #{unet_decoder.11} parent=5 // pred_region
      %s117 = ssub.s32 %s9, 1
      // Predicated region
      $region13: #{unet_decoder.11} parent=11 // pred_check
        %p118 = pneg %p56
      $region14: #{unet_decoder.11} parent=11 // pred_check_branch
        %120 = sbr.rel (%p118) target = $region16
      $region15: #{unet_decoder.11} parent=11 // pred_region
        _
      $region16: #{unet_decoder.11} parent=11 // pred_fallthru
        _
      // Predicated region
      $region17: #{unet_decoder.11} parent=11 // pred_check
        %p121 = pneg %p77
      $region18: #{unet_decoder.11} parent=11 // pred_check_branch
        %123 = sbr.rel (%p121) target = $region20
      $region19: #{unet_decoder.11} parent=11 // pred_region
        _
      $region20: #{unet_decoder.11} parent=11 // pred_fallthru
        _
    $region12: #{unet_decoder.11} parent=5 // pred_fallthru
      _
    %p124 = scmp.lt.s32.totalorder %s9, 2
    // Predicated region
    $region21: #{unet_decoder.11} parent=5 // pred_check
      %p125 = pneg %p124
    $region22: #{unet_decoder.11} parent=5 // pred_check_branch
      %127 = sbr.rel (%p125) target = $region24
    $region23: #{unet_decoder.11} parent=5 // pred_region
      // Predicated region
      $region25: #{unet_decoder.11} parent=23 // pred_check
        %p128 = pneg %p29
      $region26: #{unet_decoder.11} parent=23 // pred_check_branch
        %130 = sbr.rel (%p128) target = $region28
      $region27: #{unet_decoder.11} parent=23 // pred_region
        %s131 = smul.u32 32, %s9
        %p132 = scmp.lt.s32.totalorder %s131, 63
        %s133 = scalar_select %p132, %s131, 63
        %s134 = smul.addr %s133, 4
        %s135 = smul.addr %s134, 4
        %s136 = scalar_lea.vmem %s0, %s135
        %s137 = smul.u32 32, %s9
      $region28: #{unet_decoder.11} parent=23 // pred_fallthru
        _
    $region24: #{unet_decoder.11} parent=5 // pred_fallthru
      _
    %p138 = scmp.le.s32.totalorder 1, %s9
    %p139 = scmp.lt.s32.totalorder %s9, 3
    %p140 = pnand %p138, %p139
    %p141 = pneg %p140
    // Predicated region
    $region29: #{unet_decoder.11} parent=5 // pred_check
      _
    $region30: #{unet_decoder.11} parent=5 // pred_check_branch
      %143 = sbr.rel (%p140) target = $region32
    $region31: #{unet_decoder.11} parent=5 // pred_region
      %s144 = ssub.s32 %s9, 1
      %s145 = smul.u32 32, %s14
      %p146 = scmp.lt.s32.totalorder %s145, 63
      %s147 = scalar_select %p146, %s145, 63
      %s148 = smul.addr %s147, 4
      %s149 = smul.addr %s148, 4
      %s150 = scalar_lea.vmem %s0, %s149
      %p151 = pneg %p35
      %p152 = pneg %p32
      %p153 = pneg %p56
      %p154 = pneg %p53
      %p155 = pneg %p77
      %p156 = pneg %p74
      %p157 = pneg %p103
      %p158 = pneg %p100
      %s159 = smul.u32 32, %s14
      %p160 = scmp.lt.s32.totalorder %s159, 63
      %s161 = scalar_select %p160, %s159, 63
      %s162 = smul.addr %s161, 8
      %s163 = scalar_lea.vmem %s3, %s162
      %s164 = smul.u32 32, %s14
      %p165 = scmp.lt.s32.totalorder %s164, 63
      %s166 = scalar_select %p165, %s164, 63
      %s167 = smul.addr %s166, 4
      %s168 = smul.addr %s167, 4
      %s169 = scalar_lea.vmem %s0, %s168
      %s170 = smul.u32 32, %s14
      %s171 = smul.u32 32, %s14
      %p172 = scmp.lt.s32.totalorder %s171, 63
      %s173 = scalar_select %p172, %s171, 63
      %s174 = smul.addr %s173, 8
      %s175 = scalar_lea.vmem %s3, %s174
      %s176 = smul.u32 32, %s14
      %v178 = vld [vmem:[%s169] sm:$0xff]
      %v179 = vld [vmem:[%s169 + $0x8] sm:$0xff]
      %v180 = vld [vmem:[%s169 + $0x10] sm:$0xff]
      %v181 = vld [vmem:[%s169 + $0x18] sm:$0xff]
      %v182 = vld [vmem:[%s169 + $0x20] sm:$0xff]
      %v183 = vld [vmem:[%s169 + $0x28] sm:$0xff]
      %v184 = vld [vmem:[%s169 + $0x30] sm:$0xff]
      %v185 = vld [vmem:[%s169 + $0x38] sm:$0xff]
      %v186 = vld [vmem:[%s169 + $0x40] sm:$0xff]
      %v187 = vld [vmem:[%s169 + $0x48] sm:$0xff]
      %v188 = vld [vmem:[%s169 + $0x50] sm:$0xff]
      %v189 = vld [vmem:[%s169 + $0x58] sm:$0xff]
      %v190 = vld [vmem:[%s169 + $0x60] sm:$0xff]
      %v191 = vld [vmem:[%s169 + $0x68] sm:$0xff]
      %v192 = vld [vmem:[%s169 + $0x70] sm:$0xff]
      %v193 = vld [vmem:[%s169 + $0x78] sm:$0xff]
      %v194 = vld [vmem:[%s169 + $0x80] sm:$0xff]
      %v195 = vld [vmem:[%s169 + $0x88] sm:$0xff]
      %v196 = vld [vmem:[%s169 + $0x90] sm:$0xff]
      %v197 = vld [vmem:[%s169 + $0x98] sm:$0xff]
      %v198 = vld [vmem:[%s169 + $0xa0] sm:$0xff]
      %v199 = vld [vmem:[%s169 + $0xa8] sm:$0xff]
      %v200 = vld [vmem:[%s169 + $0xb0] sm:$0xff]
      %v201 = vld [vmem:[%s169 + $0xb8] sm:$0xff]
      %v202 = vld [vmem:[%s169 + $0xc0] sm:$0xff]
      %v203 = vld [vmem:[%s169 + $0xc8] sm:$0xff]
      %v204 = vld [vmem:[%s169 + $0xd0] sm:$0xff]
      %v205 = vld [vmem:[%s169 + $0xd8] sm:$0xff]
      %v206 = vld [vmem:[%s169 + $0xe0] sm:$0xff]
      %v207 = vld [vmem:[%s169 + $0xe8] sm:$0xff]
      %v208 = vld [vmem:[%s169 + $0xf0] sm:$0xff]
      %v209 = vld [vmem:[%s169 + $0xf8] sm:$0xff]
      %v210 = vld [vmem:[%s169 + $0x100] sm:$0xff]
      %v211 = vld [vmem:[%s169 + $0x108] sm:$0xff]
      %v212 = vld [vmem:[%s169 + $0x110] sm:$0xff]
      %v213 = vld [vmem:[%s169 + $0x118] sm:$0xff]
      %v214 = vld [vmem:[%s169 + $0x120] sm:$0xff]
      %v215 = vld [vmem:[%s169 + $0x128] sm:$0xff]
      %v216 = vld [vmem:[%s169 + $0x130] sm:$0xff]
      %v217 = vld [vmem:[%s169 + $0x138] sm:$0xff]
      %v218 = vld [vmem:[%s169 + $0x140] sm:$0xff]
      %v219 = vld [vmem:[%s169 + $0x148] sm:$0xff]
      %v220 = vld [vmem:[%s169 + $0x150] sm:$0xff]
      %v221 = vld [vmem:[%s169 + $0x158] sm:$0xff]
      %v222 = vld [vmem:[%s169 + $0x160] sm:$0xff]
      %v223 = vld [vmem:[%s169 + $0x168] sm:$0xff]
      %v224 = vld [vmem:[%s169 + $0x170] sm:$0xff]
      %v225 = vld [vmem:[%s169 + $0x178] sm:$0xff]
      %v226 = vld [vmem:[%s169 + $0x180] sm:$0xff]
      %v227 = vld [vmem:[%s169 + $0x188] sm:$0xff]
      %v228 = vld [vmem:[%s169 + $0x190] sm:$0xff]
      %v229 = vld [vmem:[%s169 + $0x198] sm:$0xff]
      %v230 = vld [vmem:[%s169 + $0x1a0] sm:$0xff]
      %v231 = vld [vmem:[%s169 + $0x1a8] sm:$0xff]
      %v232 = vld [vmem:[%s169 + $0x1b0] sm:$0xff]
      %v233 = vld [vmem:[%s169 + $0x1b8] sm:$0xff]
      %v234 = vld [vmem:[%s169 + $0x1c0] sm:$0xff]
      %v235 = vld [vmem:[%s169 + $0x1c8] sm:$0xff]
      %v236 = vld [vmem:[%s169 + $0x1d0] sm:$0xff]
      %v237 = vld [vmem:[%s169 + $0x1d8] sm:$0xff]
      %v238 = vld [vmem:[%s169 + $0x1e0] sm:$0xff]
      %v239 = vld [vmem:[%s169 + $0x1e8] sm:$0xff]
      %v240 = vld [vmem:[%s169 + $0x1f0] sm:$0xff]
      %v241 = vld [vmem:[%s169 + $0x1f8] sm:$0xff]
      %v242 = vld [vmem:[%s1] sm:$0xf]
      %v243 = vld [vmem:[%s1 + $0x4] sm:$0xf]
      %v244 = vld [vmem:[%s1 + $0x8] sm:$0xf]
      %v245 = vld [vmem:[%s1 + $0xc] sm:$0xf]
      %v246 = vld [vmem:[%s1 + $0x10] sm:$0xf]
      %v247 = vld [vmem:[%s1 + $0x14] sm:$0xf]
      %v248 = vld [vmem:[%s1 + $0x18] sm:$0xf]
      %v249 = vld [vmem:[%s1 + $0x1c] sm:$0xf]
      %v250 = vld [vmem:[%s1 + $0x20] sm:$0xf]
      %v251 = vld [vmem:[%s1 + $0x24] sm:$0xf]
      %v252 = vld [vmem:[%s1 + $0x28] sm:$0xf]
      %v253 = vld [vmem:[%s1 + $0x2c] sm:$0xf]
      %v254 = vld [vmem:[%s1 + $0x30] sm:$0xf]
      %v255 = vld [vmem:[%s1 + $0x34] sm:$0xf]
      %v256 = vld [vmem:[%s1 + $0x38] sm:$0xf]
      %v257 = vld [vmem:[%s1 + $0x3c] sm:$0xf]
      %v258 = vld [vmem:[%s1 + $0x40] sm:$0xf]
      %v259 = vld [vmem:[%s1 + $0x44] sm:$0xf]
      %v260 = vld [vmem:[%s1 + $0x48] sm:$0xf]
      %v261 = vld [vmem:[%s1 + $0x4c] sm:$0xf]
      %v262 = vld [vmem:[%s1 + $0x50] sm:$0xf]
      %v263 = vld [vmem:[%s1 + $0x54] sm:$0xf]
      %v264 = vld [vmem:[%s1 + $0x58] sm:$0xf]
      %v265 = vld [vmem:[%s1 + $0x5c] sm:$0xf]
      %v266 = vld [vmem:[%s1 + $0x60] sm:$0xf]
      %v267 = vld [vmem:[%s1 + $0x64] sm:$0xf]
      %v268 = vld [vmem:[%s1 + $0x68] sm:$0xf]
      %v269 = vld [vmem:[%s1 + $0x6c] sm:$0xf]
      %v270 = vld [vmem:[%s1 + $0x70] sm:$0xf]
      %v271 = vld [vmem:[%s1 + $0x74] sm:$0xf]
      %v272 = vld [vmem:[%s1 + $0x78] sm:$0xf]
      %v273 = vld [vmem:[%s1 + $0x7c] sm:$0xf]
      %v274 = vld [vmem:[%s1 + $0x80] sm:$0xf]
      %v275 = vld [vmem:[%s1 + $0x84] sm:$0xf]
      %v276 = vld [vmem:[%s1 + $0x88] sm:$0xf]
      %v277 = vld [vmem:[%s1 + $0x8c] sm:$0xf]
      %v278 = vld [vmem:[%s1 + $0x90] sm:$0xf]
      %v279 = vld [vmem:[%s1 + $0x94] sm:$0xf]
      %v280 = vld [vmem:[%s1 + $0x98] sm:$0xf]
      %v281 = vld [vmem:[%s1 + $0x9c] sm:$0xf]
      %v282 = vld [vmem:[%s1 + $0xa0] sm:$0xf]
      %v283 = vld [vmem:[%s1 + $0xa4] sm:$0xf]
      %v284 = vld [vmem:[%s1 + $0xa8] sm:$0xf]
      %v285 = vld [vmem:[%s1 + $0xac] sm:$0xf]
      %v286 = vld [vmem:[%s1 + $0xb0] sm:$0xf]
      %v287 = vld [vmem:[%s1 + $0xb4] sm:$0xf]
      %v288 = vld [vmem:[%s1 + $0xb8] sm:$0xf]
      %v289 = vld [vmem:[%s1 + $0xbc] sm:$0xf]
      %v290 = vld [vmem:[%s1 + $0xc0] sm:$0xf]
      %v291 = vld [vmem:[%s1 + $0xc4] sm:$0xf]
      %v292 = vld [vmem:[%s1 + $0xc8] sm:$0xf]
      %v293 = vld [vmem:[%s1 + $0xcc] sm:$0xf]
      %v294 = vld [vmem:[%s1 + $0xd0] sm:$0xf]
      %v295 = vld [vmem:[%s1 + $0xd4] sm:$0xf]
      %v296 = vld [vmem:[%s1 + $0xd8] sm:$0xf]
      %v297 = vld [vmem:[%s1 + $0xdc] sm:$0xf]
      %v298 = vld [vmem:[%s1 + $0xe0] sm:$0xf]
      %v299 = vld [vmem:[%s1 + $0xe4] sm:$0xf]
      %v300 = vld [vmem:[%s1 + $0xe8] sm:$0xf]
      %v301 = vld [vmem:[%s1 + $0xec] sm:$0xf]
      %v302 = vld [vmem:[%s1 + $0xf0] sm:$0xf]
      %v303 = vld [vmem:[%s1 + $0xf4] sm:$0xf]
      %v304 = vld [vmem:[%s1 + $0xf8] sm:$0x3]
      %v305 = vld [vmem:[%s2] sm:$0x1]
      %v307 = vlaneseq
      %v308 = vshrl.u32 %v307, 7
      %v309 = vsub.s32 0, %v308
      %v310 = vrot.slane %v305, %v309
      %v376 = vunpack.c.l.b16 %v178
      %v377 = vunpack.c.h.b16 %v178
      %v378 = vunpack.c.l.b16 %v179
      %v379 = vunpack.c.h.b16 %v179
      %v380 = vunpack.c.l.b16 %v180
      %v381 = vunpack.c.h.b16 %v180
      %v382 = vunpack.c.l.b16 %v181
      %v383 = vunpack.c.h.b16 %v181
      %v384 = vunpack.c.l.b16 %v182
      %v385 = vunpack.c.h.b16 %v182
      %v386 = vunpack.c.l.b16 %v183
      %v387 = vunpack.c.h.b16 %v183
      %v388 = vunpack.c.l.b16 %v184
      %v389 = vunpack.c.h.b16 %v184
      %v390 = vunpack.c.l.b16 %v185
      %v391 = vunpack.c.h.b16 %v185
      %v392 = vunpack.c.l.b16 %v186
      %v393 = vunpack.c.h.b16 %v186
      %v394 = vunpack.c.l.b16 %v187
      %v395 = vunpack.c.h.b16 %v187
      %v396 = vunpack.c.l.b16 %v188
      %v397 = vunpack.c.h.b16 %v188
      %v398 = vunpack.c.l.b16 %v189
      %v399 = vunpack.c.h.b16 %v189
      %v400 = vunpack.c.l.b16 %v190
      %v401 = vunpack.c.h.b16 %v190
      %v402 = vunpack.c.l.b16 %v191
      %v403 = vunpack.c.h.b16 %v191
      %v404 = vunpack.c.l.b16 %v192
      %v405 = vunpack.c.h.b16 %v192
      %v406 = vunpack.c.l.b16 %v193
      %v407 = vunpack.c.h.b16 %v193
      %v408 = vunpack.c.l.b16 %v194
      %v409 = vunpack.c.h.b16 %v194
      %v410 = vunpack.c.l.b16 %v195
      %v411 = vunpack.c.h.b16 %v195
      %v412 = vunpack.c.l.b16 %v196
      %v413 = vunpack.c.h.b16 %v196
      %v414 = vunpack.c.l.b16 %v197
      %v415 = vunpack.c.h.b16 %v197
      %v416 = vunpack.c.l.b16 %v198
      %v417 = vunpack.c.h.b16 %v198
      %v418 = vunpack.c.l.b16 %v199
      %v419 = vunpack.c.h.b16 %v199
      %v420 = vunpack.c.l.b16 %v200
      %v421 = vunpack.c.h.b16 %v200
      %v422 = vunpack.c.l.b16 %v201
      %v423 = vunpack.c.h.b16 %v201
      %v424 = vunpack.c.l.b16 %v202
      %v425 = vunpack.c.h.b16 %v202
      %v426 = vunpack.c.l.b16 %v203
      %v427 = vunpack.c.h.b16 %v203
      %v428 = vunpack.c.l.b16 %v204
      %v429 = vunpack.c.h.b16 %v204
      %v430 = vunpack.c.l.b16 %v205
      %v431 = vunpack.c.h.b16 %v205
      %v432 = vunpack.c.l.b16 %v206
      %v433 = vunpack.c.h.b16 %v206
      %v434 = vunpack.c.l.b16 %v207
      %v435 = vunpack.c.h.b16 %v207
      %v436 = vunpack.c.l.b16 %v208
      %v437 = vunpack.c.h.b16 %v208
      %v438 = vunpack.c.l.b16 %v209
      %v439 = vunpack.c.h.b16 %v209
      %v440 = vunpack.c.l.b16 %v210
      %v441 = vunpack.c.h.b16 %v210
      %v442 = vunpack.c.l.b16 %v211
      %v443 = vunpack.c.h.b16 %v211
      %v444 = vunpack.c.l.b16 %v212
      %v445 = vunpack.c.h.b16 %v212
      %v446 = vunpack.c.l.b16 %v213
      %v447 = vunpack.c.h.b16 %v213
      %v448 = vunpack.c.l.b16 %v214
      %v449 = vunpack.c.h.b16 %v214
      %v450 = vunpack.c.l.b16 %v215
      %v451 = vunpack.c.h.b16 %v215
      %v452 = vunpack.c.l.b16 %v216
      %v453 = vunpack.c.h.b16 %v216
      %v454 = vunpack.c.l.b16 %v217
      %v455 = vunpack.c.h.b16 %v217
      %v456 = vunpack.c.l.b16 %v218
      %v457 = vunpack.c.h.b16 %v218
      %v458 = vunpack.c.l.b16 %v219
      %v459 = vunpack.c.h.b16 %v219
      %v460 = vunpack.c.l.b16 %v220
      %v461 = vunpack.c.h.b16 %v220
      %v462 = vunpack.c.l.b16 %v221
      %v463 = vunpack.c.h.b16 %v221
      %v464 = vunpack.c.l.b16 %v222
      %v465 = vunpack.c.h.b16 %v222
      %v466 = vunpack.c.l.b16 %v223
      %v467 = vunpack.c.h.b16 %v223
      %v468 = vunpack.c.l.b16 %v224
      %v469 = vunpack.c.h.b16 %v224
      %v470 = vunpack.c.l.b16 %v225
      %v471 = vunpack.c.h.b16 %v225
      %v472 = vunpack.c.l.b16 %v226
      %v473 = vunpack.c.h.b16 %v226
      %v474 = vunpack.c.l.b16 %v227
      %v475 = vunpack.c.h.b16 %v227
      %v476 = vunpack.c.l.b16 %v228
      %v477 = vunpack.c.h.b16 %v228
      %v478 = vunpack.c.l.b16 %v229
      %v479 = vunpack.c.h.b16 %v229
      %v480 = vunpack.c.l.b16 %v230
      %v481 = vunpack.c.h.b16 %v230
      %v482 = vunpack.c.l.b16 %v231
      %v483 = vunpack.c.h.b16 %v231
      %v484 = vunpack.c.l.b16 %v232
      %v485 = vunpack.c.h.b16 %v232
      %v486 = vunpack.c.l.b16 %v233
      %v487 = vunpack.c.h.b16 %v233
      %v488 = vunpack.c.l.b16 %v234
      %v489 = vunpack.c.h.b16 %v234
      %v490 = vunpack.c.l.b16 %v235
      %v491 = vunpack.c.h.b16 %v235
      %v492 = vunpack.c.l.b16 %v236
      %v493 = vunpack.c.h.b16 %v236
      %v494 = vunpack.c.l.b16 %v237
      %v495 = vunpack.c.h.b16 %v237
      %v496 = vunpack.c.l.b16 %v238
      %v497 = vunpack.c.h.b16 %v238
      %v498 = vunpack.c.l.b16 %v239
      %v499 = vunpack.c.h.b16 %v239
      %v500 = vunpack.c.l.b16 %v240
      %v501 = vunpack.c.h.b16 %v240
      %v502 = vunpack.c.l.b16 %v241
      %v503 = vunpack.c.h.b16 %v241
      %v504 = vpack.c.b16 %v380, %v376
      %v505 = vpack.c.b16 %v381, %v377
      %v506 = vpack.c.b16 %v382, %v378
      %v507 = vpack.c.b16 %v383, %v379
      %v508 = vpack.c.b16 %v388, %v384
      %v509 = vpack.c.b16 %v389, %v385
      %v510 = vpack.c.b16 %v390, %v386
      %v511 = vpack.c.b16 %v391, %v387
      %v512 = vpack.c.b16 %v396, %v392
      %v513 = vpack.c.b16 %v397, %v393
      %v514 = vpack.c.b16 %v398, %v394
      %v515 = vpack.c.b16 %v399, %v395
      %v516 = vpack.c.b16 %v404, %v400
      %v517 = vpack.c.b16 %v405, %v401
      %v518 = vpack.c.b16 %v406, %v402
      %v519 = vpack.c.b16 %v407, %v403
      %v520 = vpack.c.b16 %v412, %v408
      %v521 = vpack.c.b16 %v413, %v409
      %v522 = vpack.c.b16 %v414, %v410
      %v523 = vpack.c.b16 %v415, %v411
      %v524 = vpack.c.b16 %v420, %v416
      %v525 = vpack.c.b16 %v421, %v417
      %v526 = vpack.c.b16 %v422, %v418
      %v527 = vpack.c.b16 %v423, %v419
      %v528 = vpack.c.b16 %v428, %v424
      %v529 = vpack.c.b16 %v429, %v425
      %v530 = vpack.c.b16 %v430, %v426
      %v531 = vpack.c.b16 %v431, %v427
      %v532 = vpack.c.b16 %v436, %v432
      %v533 = vpack.c.b16 %v437, %v433
      %v534 = vpack.c.b16 %v438, %v434
      %v535 = vpack.c.b16 %v439, %v435
      %v536 = vpack.c.b16 %v444, %v440
      %v537 = vpack.c.b16 %v445, %v441
      %v538 = vpack.c.b16 %v446, %v442
      %v539 = vpack.c.b16 %v447, %v443
      %v540 = vpack.c.b16 %v452, %v448
      %v541 = vpack.c.b16 %v453, %v449
      %v542 = vpack.c.b16 %v454, %v450
      %v543 = vpack.c.b16 %v455, %v451
      %v544 = vpack.c.b16 %v460, %v456
      %v545 = vpack.c.b16 %v461, %v457
      %v546 = vpack.c.b16 %v462, %v458
      %v547 = vpack.c.b16 %v463, %v459
      %v548 = vpack.c.b16 %v468, %v464
      %v549 = vpack.c.b16 %v469, %v465
      %v550 = vpack.c.b16 %v470, %v466
      %v551 = vpack.c.b16 %v471, %v467
      %v552 = vpack.c.b16 %v476, %v472
      %v553 = vpack.c.b16 %v477, %v473
      %v554 = vpack.c.b16 %v478, %v474
      %v555 = vpack.c.b16 %v479, %v475
      %v556 = vpack.c.b16 %v484, %v480
      %v557 = vpack.c.b16 %v485, %v481
      %v558 = vpack.c.b16 %v486, %v482
      %v559 = vpack.c.b16 %v487, %v483
      %v560 = vpack.c.b16 %v492, %v488
      %v561 = vpack.c.b16 %v493, %v489
      %v562 = vpack.c.b16 %v494, %v490
      %v563 = vpack.c.b16 %v495, %v491
      %v564 = vpack.c.b16 %v500, %v496
      %v565 = vpack.c.b16 %v501, %v497
      %v566 = vpack.c.b16 %v502, %v498
      %v567 = vpack.c.b16 %v503, %v499
      %v679 = vunpack.c.l.b16 %v242
      %v680 = vunpack.c.l.b16 %v243
      %v681 = vunpack.c.l.b16 %v244
      %v682 = vunpack.c.l.b16 %v245
      %v683 = vunpack.c.l.b16 %v246
      %v684 = vunpack.c.l.b16 %v247
      %v685 = vunpack.c.l.b16 %v248
      %v686 = vunpack.c.l.b16 %v249
      %v687 = vunpack.c.l.b16 %v250
      %v688 = vunpack.c.l.b16 %v251
      %v689 = vunpack.c.l.b16 %v252
      %v690 = vunpack.c.l.b16 %v253
      %v691 = vunpack.c.l.b16 %v254
      %v692 = vunpack.c.l.b16 %v255
      %v693 = vunpack.c.l.b16 %v256
      %v694 = vunpack.c.l.b16 %v257
      %v695 = vunpack.c.l.b16 %v258
      %v696 = vunpack.c.l.b16 %v259
      %v697 = vunpack.c.l.b16 %v260
      %v698 = vunpack.c.l.b16 %v261
      %v699 = vunpack.c.l.b16 %v262
      %v700 = vunpack.c.l.b16 %v263
      %v701 = vunpack.c.l.b16 %v264
      %v702 = vunpack.c.l.b16 %v265
      %v703 = vunpack.c.l.b16 %v266
      %v704 = vunpack.c.l.b16 %v267
      %v705 = vunpack.c.l.b16 %v268
      %v706 = vunpack.c.l.b16 %v269
      %v707 = vunpack.c.l.b16 %v270
      %v708 = vunpack.c.l.b16 %v271
      %v709 = vunpack.c.l.b16 %v272
      %v710 = vunpack.c.l.b16 %v273
      %v711 = vunpack.c.l.b16 %v274
      %v712 = vunpack.c.l.b16 %v275
      %v713 = vunpack.c.l.b16 %v276
      %v714 = vunpack.c.l.b16 %v277
      %v715 = vunpack.c.l.b16 %v278
      %v716 = vunpack.c.l.b16 %v279
      %v717 = vunpack.c.l.b16 %v280
      %v718 = vunpack.c.l.b16 %v281
      %v719 = vunpack.c.l.b16 %v282
      %v720 = vunpack.c.l.b16 %v283
      %v721 = vunpack.c.l.b16 %v284
      %v722 = vunpack.c.l.b16 %v285
      %v723 = vunpack.c.l.b16 %v286
      %v724 = vunpack.c.l.b16 %v287
      %v725 = vunpack.c.l.b16 %v288
      %v726 = vunpack.c.l.b16 %v289
      %v727 = vunpack.c.l.b16 %v290
      %v728 = vunpack.c.l.b16 %v291
      %v729 = vunpack.c.l.b16 %v292
      %v730 = vunpack.c.l.b16 %v293
      %v731 = vunpack.c.l.b16 %v294
      %v732 = vunpack.c.l.b16 %v295
      %v733 = vunpack.c.l.b16 %v296
      %v734 = vunpack.c.l.b16 %v297
      %v735 = vunpack.c.l.b16 %v298
      %v736 = vunpack.c.l.b16 %v299
      %v737 = vunpack.c.l.b16 %v300
      %v738 = vunpack.c.l.b16 %v301
      %v739 = vunpack.c.l.b16 %v302
      %v740 = vunpack.c.l.b16 %v303
      %v741 = vunpack.c.l.b16 %v304
      %v742 = vpack.c.b16 %v680, %v679
      %v743 = vpack.c.b16 %v682, %v681
      %v744 = vpack.c.b16 %v684, %v683
      %v745 = vpack.c.b16 %v686, %v685
      %v746 = vpack.c.b16 %v688, %v687
      %v747 = vpack.c.b16 %v690, %v689
      %v748 = vpack.c.b16 %v692, %v691
      %v749 = vpack.c.b16 %v694, %v693
      %v750 = vpack.c.b16 %v696, %v695
      %v751 = vpack.c.b16 %v698, %v697
      %v752 = vpack.c.b16 %v700, %v699
      %v753 = vpack.c.b16 %v702, %v701
      %v754 = vpack.c.b16 %v704, %v703
      %v755 = vpack.c.b16 %v706, %v705
      %v756 = vpack.c.b16 %v708, %v707
      %v757 = vpack.c.b16 %v710, %v709
      %v758 = vpack.c.b16 %v712, %v711
      %v759 = vpack.c.b16 %v714, %v713
      %v760 = vpack.c.b16 %v716, %v715
      %v761 = vpack.c.b16 %v718, %v717
      %v762 = vpack.c.b16 %v720, %v719
      %v763 = vpack.c.b16 %v722, %v721
      %v764 = vpack.c.b16 %v724, %v723
      %v765 = vpack.c.b16 %v726, %v725
      %v766 = vpack.c.b16 %v728, %v727
      %v767 = vpack.c.b16 %v730, %v729
      %v768 = vpack.c.b16 %v732, %v731
      %v769 = vpack.c.b16 %v734, %v733
      %v770 = vpack.c.b16 %v736, %v735
      %v771 = vpack.c.b16 %v738, %v737
      %v772 = vpack.c.b16 %v740, %v739
      %v773 = vpack.c.b16 %v741, %v741
      %vm805 = vcmask 949248
      %v807 = vsel %vm805, %v507, 0
      %v810 = vsel %vm805, %v511, 0
      %v813 = vsel %vm805, %v515, 0
      %v816 = vsel %vm805, %v519, 0
      %v819 = vsel %vm805, %v523, 0
      %v822 = vsel %vm805, %v527, 0
      %v825 = vsel %vm805, %v531, 0
      %v828 = vsel %vm805, %v535, 0
      %v831 = vsel %vm805, %v539, 0
      %v834 = vsel %vm805, %v543, 0
      %v837 = vsel %vm805, %v547, 0
      %v840 = vsel %vm805, %v551, 0
      %v843 = vsel %vm805, %v555, 0
      %v846 = vsel %vm805, %v559, 0
      %v849 = vsel %vm805, %v563, 0
      %v852 = vsel %vm805, %v567, 0
      %vm854 = vcmask 1041408
      %v856 = vsel %vm854, %v773, 0
      %858 = vmatprep.subr.bf16.mxu0 0
      %859 = vmatpush1.bf16.msra.mxu0 %v742
      %860 = vmatprep.subr.bf16.mxu0 0
      %861 = vmatpush1.bf16.msra.mxu0 %v743
      %862 = vmatprep.subr.bf16.mxu0 0
      %863 = vmatpush1.bf16.msra.mxu0 %v744
      %864 = vmatprep.subr.bf16.mxu0 0
      %865 = vmatpush1.bf16.msra.mxu0 %v745
      %866 = vmatprep.subr.bf16.mxu0 0
      %867 = vmatpush1.bf16.msra.mxu0 %v746
      %868 = vmatprep.subr.bf16.mxu0 0
      %869 = vmatpush1.bf16.msra.mxu0 %v747
      %870 = vmatprep.subr.bf16.mxu0 0
      %871 = vmatpush1.bf16.msra.mxu0 %v748
      %872 = vmatprep.subr.bf16.mxu0 0
      %873 = vmatpush1.bf16.msra.mxu0 %v749
      %874 = vmatprep.subr.bf16.mxu0 0
      %875 = vmatpush1.bf16.msra.mxu0 %v750
      %876 = vmatprep.subr.bf16.mxu0 0
      %877 = vmatpush1.bf16.msra.mxu0 %v751
      %878 = vmatprep.subr.bf16.mxu0 0
      %879 = vmatpush1.bf16.msra.mxu0 %v752
      %880 = vmatprep.subr.bf16.mxu0 0
      %881 = vmatpush1.bf16.msra.mxu0 %v753
      %882 = vmatprep.subr.bf16.mxu0 0
      %883 = vmatpush1.bf16.msra.mxu0 %v754
      %884 = vmatprep.subr.bf16.mxu0 0
      %885 = vmatpush1.bf16.msra.mxu0 %v755
      %886 = vmatprep.subr.bf16.mxu0 0
      %887 = vmatpush1.bf16.msra.mxu0 %v756
      %888 = vmatprep.subr.bf16.mxu0 0
      %889 = vmatpush1.bf16.msra.mxu0 %v757
      %890 = vmatprep.mubr.bf16.mxu0 %v505
      %891 = vmatmul.mubr.bf16.gmra.mrb[0].mxu0 %v504
      %v892 = vpop.f32.mrb[0].mxu0
      %v893 = vadd.f32 %v310, %v892
      %v894 = vpop.f32.mrb[0].mxu0
      %v895 = vpop.f32.mrb[0].mxu0
      %v896 = vadd.f32 %v310, %v895
      %v897 = vpop.f32.mrb[0].mxu0
      %898 = vmatprep.mubr.bf16.mxu0 %v509
      %899 = vmatmul.mubr.bf16.gmra.mrb[0].mxu0 %v508
      %v900 = vpop.f32.mrb[0].mxu0
      %v901 = vadd.f32 %v310, %v900
      %v902 = vpop.f32.mrb[0].mxu0
      %v903 = vpop.f32.mrb[0].mxu0
      %v904 = vadd.f32 %v310, %v903
      %v905 = vpop.f32.mrb[0].mxu0
      %906 = vmatprep.mubr.bf16.mxu0 %v513
      %907 = vmatmul.mubr.bf16.gmra.mrb[0].mxu0 %v512
      %v908 = vpop.f32.mrb[0].mxu0
      %v909 = vadd.f32 %v310, %v908
      %v910 = vpop.f32.mrb[0].mxu0
      %v911 = vpop.f32.mrb[0].mxu0
      %v912 = vadd.f32 %v310, %v911
      %v913 = vpop.f32.mrb[0].mxu0
      %914 = vmatprep.mubr.bf16.mxu0 %v517
      %915 = vmatmul.mubr.bf16.gmra.mrb[0].mxu0 %v516
      %v916 = vpop.f32.mrb[0].mxu0
      %v917 = vadd.f32 %v310, %v916
      %v918 = vpop.f32.mrb[0].mxu0
      %v919 = vpop.f32.mrb[0].mxu0
      %v920 = vadd.f32 %v310, %v919
      %v921 = vpop.f32.mrb[0].mxu0
      %922 = vmatprep.mubr.bf16.mxu0 %v521
      %923 = vmatmul.mubr.bf16.gmra.mrb[0].mxu0 %v520
      %v924 = vpop.f32.mrb[0].mxu0
      %v925 = vadd.f32 %v310, %v924
      %v926 = vpop.f32.mrb[0].mxu0
      %v927 = vpop.f32.mrb[0].mxu0
      %v928 = vadd.f32 %v310, %v927
      %v929 = vpop.f32.mrb[0].mxu0
      %930 = vmatprep.mubr.bf16.mxu0 %v525
      %931 = vmatmul.mubr.bf16.gmra.mrb[0].mxu0 %v524
      %v932 = vpop.f32.mrb[0].mxu0
      %v933 = vadd.f32 %v310, %v932
      %v934 = vpop.f32.mrb[0].mxu0
      %v935 = vpop.f32.mrb[0].mxu0
      %v936 = vadd.f32 %v310, %v935
      %v937 = vpop.f32.mrb[0].mxu0
      %938 = vmatprep.mubr.bf16.mxu0 %v529
      %939 = vmatmul.mubr.bf16.gmra.mrb[0].mxu0 %v528
      %v940 = vpop.f32.mrb[0].mxu0
      %v941 = vadd.f32 %v310, %v940
      %v942 = vpop.f32.mrb[0].mxu0
      %v943 = vpop.f32.mrb[0].mxu0
      %v944 = vadd.f32 %v310, %v943
      %v945 = vpop.f32.mrb[0].mxu0
      %946 = vmatprep.mubr.bf16.mxu0 %v533
      %947 = vmatmul.mubr.bf16.gmra.mrb[0].mxu0 %v532
      %v948 = vpop.f32.mrb[0].mxu0
      %v949 = vadd.f32 %v310, %v948
      %v950 = vpop.f32.mrb[0].mxu0
      %v951 = vpop.f32.mrb[0].mxu0
      %v952 = vadd.f32 %v310, %v951
      %v953 = vpop.f32.mrb[0].mxu0
      %954 = vmatprep.mubr.bf16.mxu0 %v537
      %955 = vmatmul.mubr.bf16.gmra.mrb[0].mxu0 %v536
      %v956 = vpop.f32.mrb[0].mxu0
      %v957 = vadd.f32 %v310, %v956
      %v958 = vpop.f32.mrb[0].mxu0
      %v959 = vpop.f32.mrb[0].mxu0
      %v960 = vadd.f32 %v310, %v959
      %v961 = vpop.f32.mrb[0].mxu0
      %962 = vmatprep.mubr.bf16.mxu0 %v541
      %963 = vmatmul.mubr.bf16.gmra.mrb[0].mxu0 %v540
      %v964 = vpop.f32.mrb[0].mxu0
      %v965 = vadd.f32 %v310, %v964
      %v966 = vpop.f32.mrb[0].mxu0
      %v967 = vpop.f32.mrb[0].mxu0
      %v968 = vadd.f32 %v310, %v967
      %v969 = vpop.f32.mrb[0].mxu0
      %970 = vmatprep.mubr.bf16.mxu0 %v545
      %971 = vmatmul.mubr.bf16.gmra.mrb[0].mxu0 %v544
      %v972 = vpop.f32.mrb[0].mxu0
      %v973 = vadd.f32 %v310, %v972
      %v974 = vpop.f32.mrb[0].mxu0
      %v975 = vpop.f32.mrb[0].mxu0
      %v976 = vadd.f32 %v310, %v975
      %v977 = vpop.f32.mrb[0].mxu0
      %978 = vmatprep.mubr.bf16.mxu0 %v549
      %979 = vmatmul.mubr.bf16.gmra.mrb[0].mxu0 %v548
      %v980 = vpop.f32.mrb[0].mxu0
      %v981 = vadd.f32 %v310, %v980
      %v982 = vpop.f32.mrb[0].mxu0
      %v983 = vpop.f32.mrb[0].mxu0
      %v984 = vadd.f32 %v310, %v983
      %v985 = vpop.f32.mrb[0].mxu0
      %986 = vmatprep.mubr.bf16.mxu0 %v553
      %987 = vmatmul.mubr.bf16.gmra.mrb[0].mxu0 %v552
      %v988 = vpop.f32.mrb[0].mxu0
      %v989 = vadd.f32 %v310, %v988
      %v990 = vpop.f32.mrb[0].mxu0
      %v991 = vpop.f32.mrb[0].mxu0
      %v992 = vadd.f32 %v310, %v991
      %v993 = vpop.f32.mrb[0].mxu0
      %994 = vmatprep.mubr.bf16.mxu0 %v557
      %995 = vmatmul.mubr.bf16.gmra.mrb[0].mxu0 %v556
      %v996 = vpop.f32.mrb[0].mxu0
      %v997 = vadd.f32 %v310, %v996
      %v998 = vpop.f32.mrb[0].mxu0
      %v999 = vpop.f32.mrb[0].mxu0
      %v1000 = vadd.f32 %v310, %v999
      %v1001 = vpop.f32.mrb[0].mxu0
      %1002 = vmatprep.mubr.bf16.mxu0 %v561
      %1003 = vmatmul.mubr.bf16.gmra.mrb[0].mxu0 %v560
      %v1004 = vpop.f32.mrb[0].mxu0
      %v1005 = vadd.f32 %v310, %v1004
      %v1006 = vpop.f32.mrb[0].mxu0
      %v1007 = vpop.f32.mrb[0].mxu0
      %v1008 = vadd.f32 %v310, %v1007
      %v1009 = vpop.f32.mrb[0].mxu0
      %1010 = vmatprep.mubr.bf16.mxu0 %v565
      %1011 = vmatmul.mubr.bf16.gmra.mrb[0].mxu0 %v564
      %v1012 = vpop.f32.mrb[0].mxu0
      %v1013 = vadd.f32 %v310, %v1012
      %v1014 = vpop.f32.mrb[0].mxu0
      %v1015 = vpop.f32.mrb[0].mxu0
      %v1016 = vadd.f32 %v310, %v1015
      %v1017 = vpop.f32.mrb[0].mxu0
      %1018 = vdwg.mxu0
      %1019 = vmatprep.subr.bf16.mxu0 0
      %1020 = vmatpush1.bf16.msra.mxu0 %v758
      %1021 = vmatprep.subr.bf16.mxu0 0
      %1022 = vmatpush1.bf16.msra.mxu0 %v759
      %1023 = vmatprep.subr.bf16.mxu0 0
      %1024 = vmatpush1.bf16.msra.mxu0 %v760
      %1025 = vmatprep.subr.bf16.mxu0 0
      %1026 = vmatpush1.bf16.msra.mxu0 %v761
      %1027 = vmatprep.subr.bf16.mxu0 0
      %1028 = vmatpush1.bf16.msra.mxu0 %v762
      %1029 = vmatprep.subr.bf16.mxu0 0
      %1030 = vmatpush1.bf16.msra.mxu0 %v763
      %1031 = vmatprep.subr.bf16.mxu0 0
      %1032 = vmatpush1.bf16.msra.mxu0 %v764
      %1033 = vmatprep.subr.bf16.mxu0 0
      %1034 = vmatpush1.bf16.msra.mxu0 %v765
      %1035 = vmatprep.subr.bf16.mxu0 0
      %1036 = vmatpush1.bf16.msra.mxu0 %v766
      %1037 = vmatprep.subr.bf16.mxu0 0
      %1038 = vmatpush1.bf16.msra.mxu0 %v767
      %1039 = vmatprep.subr.bf16.mxu0 0
      %1040 = vmatpush1.bf16.msra.mxu0 %v768
      %1041 = vmatprep.subr.bf16.mxu0 0
      %1042 = vmatpush1.bf16.msra.mxu0 %v769
      %1043 = vmatprep.subr.bf16.mxu0 0
      %1044 = vmatpush1.bf16.msra.mxu0 %v770
      %1045 = vmatprep.subr.bf16.mxu0 0
      %1046 = vmatpush1.bf16.msra.mxu0 %v771
      %1047 = vmatprep.subr.bf16.mxu0 0
      %1048 = vmatpush1.bf16.msra.mxu0 %v772
      %1049 = vmatprep.subr.bf16.mxu0 0
      %1050 = vmatpush1.bf16.msra.mxu0 %v856
      %1051 = vmatprep.mubr.bf16.mxu0 %v807
      %1052 = vmatmul.mubr.bf16.gmra.mrb[0].mxu0 %v506
      %v1053 = vpop.f32.mrb[0].mxu0
      %v1054 = vadd.f32 %v893, %v1053
      %v1055 = vpop.f32.mrb[0].mxu0
      %v1056 = vpop.f32.mrb[0].mxu0
      %v1057 = vadd.f32 %v896, %v1056
      %v1058 = vpop.f32.mrb[0].mxu0
      %1059 = vmatprep.mubr.bf16.mxu0 %v810
      %1060 = vmatmul.mubr.bf16.gmra.mrb[0].mxu0 %v510
      %v1061 = vpop.f32.mrb[0].mxu0
      %v1062 = vadd.f32 %v901, %v1061
      %v1063 = vpop.f32.mrb[0].mxu0
      %v1064 = vpop.f32.mrb[0].mxu0
      %v1065 = vadd.f32 %v904, %v1064
      %v1066 = vpop.f32.mrb[0].mxu0
      %1067 = vmatprep.mubr.bf16.mxu0 %v813
      %1068 = vmatmul.mubr.bf16.gmra.mrb[0].mxu0 %v514
      %v1069 = vpop.f32.mrb[0].mxu0
      %v1070 = vadd.f32 %v909, %v1069
      %v1071 = vpop.f32.mrb[0].mxu0
      %v1072 = vpop.f32.mrb[0].mxu0
      %v1073 = vadd.f32 %v912, %v1072
      %v1074 = vpop.f32.mrb[0].mxu0
      %1075 = vmatprep.mubr.bf16.mxu0 %v816
      %1076 = vmatmul.mubr.bf16.gmra.mrb[0].mxu0 %v518
      %v1077 = vpop.f32.mrb[0].mxu0
      %v1078 = vadd.f32 %v917, %v1077
      %v1079 = vpop.f32.mrb[0].mxu0
      %v1080 = vpop.f32.mrb[0].mxu0
      %v1081 = vadd.f32 %v920, %v1080
      %v1082 = vpop.f32.mrb[0].mxu0
      %1083 = vmatprep.mubr.bf16.mxu0 %v819
      %1084 = vmatmul.mubr.bf16.gmra.mrb[0].mxu0 %v522
      %v1085 = vpop.f32.mrb[0].mxu0
      %v1086 = vadd.f32 %v925, %v1085
      %v1087 = vpop.f32.mrb[0].mxu0
      %v1088 = vpop.f32.mrb[0].mxu0
      %v1089 = vadd.f32 %v928, %v1088
      %v1090 = vpop.f32.mrb[0].mxu0
      %1091 = vmatprep.mubr.bf16.mxu0 %v822
      %1092 = vmatmul.mubr.bf16.gmra.mrb[0].mxu0 %v526
      %v1093 = vpop.f32.mrb[0].mxu0
      %v1094 = vadd.f32 %v933, %v1093
      %v1095 = vpop.f32.mrb[0].mxu0
      %v1096 = vpop.f32.mrb[0].mxu0
      %v1097 = vadd.f32 %v936, %v1096
      %v1098 = vpop.f32.mrb[0].mxu0
      %1099 = vmatprep.mubr.bf16.mxu0 %v825
      %1100 = vmatmul.mubr.bf16.gmra.mrb[0].mxu0 %v530
      %v1101 = vpop.f32.mrb[0].mxu0
      %v1102 = vadd.f32 %v941, %v1101
      %v1103 = vpop.f32.mrb[0].mxu0
      %v1104 = vpop.f32.mrb[0].mxu0
      %v1105 = vadd.f32 %v944, %v1104
      %v1106 = vpop.f32.mrb[0].mxu0
      %1107 = vmatprep.mubr.bf16.mxu0 %v828
      %1108 = vmatmul.mubr.bf16.gmra.mrb[0].mxu0 %v534
      %v1109 = vpop.f32.mrb[0].mxu0
      %v1110 = vadd.f32 %v949, %v1109
      %v1111 = vpop.f32.mrb[0].mxu0
      %v1112 = vpop.f32.mrb[0].mxu0
      %v1113 = vadd.f32 %v952, %v1112
      %v1114 = vpop.f32.mrb[0].mxu0
      %1115 = vmatprep.mubr.bf16.mxu0 %v831
      %1116 = vmatmul.mubr.bf16.gmra.mrb[0].mxu0 %v538
      %v1117 = vpop.f32.mrb[0].mxu0
      %v1118 = vadd.f32 %v957, %v1117
      %v1119 = vpop.f32.mrb[0].mxu0
      %v1120 = vpop.f32.mrb[0].mxu0
      %v1121 = vadd.f32 %v960, %v1120
      %v1122 = vpop.f32.mrb[0].mxu0
      %1123 = vmatprep.mubr.bf16.mxu0 %v834
      %1124 = vmatmul.mubr.bf16.gmra.mrb[0].mxu0 %v542
      %v1125 = vpop.f32.mrb[0].mxu0
      %v1126 = vadd.f32 %v965, %v1125
      %v1127 = vpop.f32.mrb[0].mxu0
      %v1128 = vpop.f32.mrb[0].mxu0
      %v1129 = vadd.f32 %v968, %v1128
      %v1130 = vpop.f32.mrb[0].mxu0
      %1131 = vmatprep.mubr.bf16.mxu0 %v837
      %1132 = vmatmul.mubr.bf16.gmra.mrb[0].mxu0 %v546
      %v1133 = vpop.f32.mrb[0].mxu0
      %v1134 = vadd.f32 %v973, %v1133
      %v1135 = vpop.f32.mrb[0].mxu0
      %v1136 = vpop.f32.mrb[0].mxu0
      %v1137 = vadd.f32 %v976, %v1136
      %v1138 = vpop.f32.mrb[0].mxu0
      %1139 = vmatprep.mubr.bf16.mxu0 %v840
      %1140 = vmatmul.mubr.bf16.gmra.mrb[0].mxu0 %v550
      %v1141 = vpop.f32.mrb[0].mxu0
      %v1142 = vadd.f32 %v981, %v1141
      %v1143 = vpop.f32.mrb[0].mxu0
      %v1144 = vpop.f32.mrb[0].mxu0
      %v1145 = vadd.f32 %v984, %v1144
      %v1146 = vpop.f32.mrb[0].mxu0
      %1147 = vmatprep.mubr.bf16.mxu0 %v843
      %1148 = vmatmul.mubr.bf16.gmra.mrb[0].mxu0 %v554
      %v1149 = vpop.f32.mrb[0].mxu0
      %v1150 = vadd.f32 %v989, %v1149
      %v1151 = vpop.f32.mrb[0].mxu0
      %v1152 = vpop.f32.mrb[0].mxu0
      %v1153 = vadd.f32 %v992, %v1152
      %v1154 = vpop.f32.mrb[0].mxu0
      %1155 = vmatprep.mubr.bf16.mxu0 %v846
      %1156 = vmatmul.mubr.bf16.gmra.mrb[0].mxu0 %v558
      %v1157 = vpop.f32.mrb[0].mxu0
      %v1158 = vadd.f32 %v997, %v1157
      %v1159 = vpop.f32.mrb[0].mxu0
      %v1160 = vpop.f32.mrb[0].mxu0
      %v1161 = vadd.f32 %v1000, %v1160
      %v1162 = vpop.f32.mrb[0].mxu0
      %1163 = vmatprep.mubr.bf16.mxu0 %v849
      %1164 = vmatmul.mubr.bf16.gmra.mrb[0].mxu0 %v562
      %v1165 = vpop.f32.mrb[0].mxu0
      %v1166 = vadd.f32 %v1005, %v1165
      %v1167 = vpop.f32.mrb[0].mxu0
      %v1168 = vpop.f32.mrb[0].mxu0
      %v1169 = vadd.f32 %v1008, %v1168
      %v1170 = vpop.f32.mrb[0].mxu0
      %1171 = vmatprep.mubr.bf16.mxu0 %v852
      %1172 = vmatmul.mubr.bf16.gmra.mrb[0].mxu0 %v566
      %v1173 = vpop.f32.mrb[0].mxu0
      %v1174 = vadd.f32 %v1013, %v1173
      %v1175 = vpop.f32.mrb[0].mxu0
      %v1176 = vpop.f32.mrb[0].mxu0
      %v1177 = vadd.f32 %v1016, %v1176
      %v1178 = vpop.f32.mrb[0].mxu0
      %1179 = vdwg.mxu0
      %vm1180 = vcmask 261120
      %1181 = vst.msk [vmem:[%s175] sm:$0xff] %vm1180, %v1054
      %1182 = vst.msk [vmem:[%s175 + $0x8] sm:$0xff] %vm1180, %v1057
      %1183 = vst.msk [vmem:[%s175 + $0x10] sm:$0xff] %vm1180, %v1062
      %1184 = vst.msk [vmem:[%s175 + $0x18] sm:$0xff] %vm1180, %v1065
      %1185 = vst.msk [vmem:[%s175 + $0x20] sm:$0xff] %vm1180, %v1070
      %1186 = vst.msk [vmem:[%s175 + $0x28] sm:$0xff] %vm1180, %v1073
      %1187 = vst.msk [vmem:[%s175 + $0x30] sm:$0xff] %vm1180, %v1078
      %1188 = vst.msk [vmem:[%s175 + $0x38] sm:$0xff] %vm1180, %v1081
      %1189 = vst.msk [vmem:[%s175 + $0x40] sm:$0xff] %vm1180, %v1086
      %1190 = vst.msk [vmem:[%s175 + $0x48] sm:$0xff] %vm1180, %v1089
      %1191 = vst.msk [vmem:[%s175 + $0x50] sm:$0xff] %vm1180, %v1094
      %1192 = vst.msk [vmem:[%s175 + $0x58] sm:$0xff] %vm1180, %v1097
      %1193 = vst.msk [vmem:[%s175 + $0x60] sm:$0xff] %vm1180, %v1102
      %1194 = vst.msk [vmem:[%s175 + $0x68] sm:$0xff] %vm1180, %v1105
      %1195 = vst.msk [vmem:[%s175 + $0x70] sm:$0xff] %vm1180, %v1110
      %1196 = vst.msk [vmem:[%s175 + $0x78] sm:$0xff] %vm1180, %v1113
      %1197 = vst.msk [vmem:[%s175 + $0x80] sm:$0xff] %vm1180, %v1118
      %1198 = vst.msk [vmem:[%s175 + $0x88] sm:$0xff] %vm1180, %v1121
      %1199 = vst.msk [vmem:[%s175 + $0x90] sm:$0xff] %vm1180, %v1126
      %1200 = vst.msk [vmem:[%s175 + $0x98] sm:$0xff] %vm1180, %v1129
      %1201 = vst.msk [vmem:[%s175 + $0xa0] sm:$0xff] %vm1180, %v1134
      %1202 = vst.msk [vmem:[%s175 + $0xa8] sm:$0xff] %vm1180, %v1137
      %1203 = vst.msk [vmem:[%s175 + $0xb0] sm:$0xff] %vm1180, %v1142
      %1204 = vst.msk [vmem:[%s175 + $0xb8] sm:$0xff] %vm1180, %v1145
      %1205 = vst.msk [vmem:[%s175 + $0xc0] sm:$0xff] %vm1180, %v1150
      %1206 = vst.msk [vmem:[%s175 + $0xc8] sm:$0xff] %vm1180, %v1153
      %1207 = vst.msk [vmem:[%s175 + $0xd0] sm:$0xff] %vm1180, %v1158
      %1208 = vst.msk [vmem:[%s175 + $0xd8] sm:$0xff] %vm1180, %v1161
      %1209 = vst.msk [vmem:[%s175 + $0xe0] sm:$0xff] %vm1180, %v1166
      %1210 = vst.msk [vmem:[%s175 + $0xe8] sm:$0xff] %vm1180, %v1169
      %1211 = vst.msk [vmem:[%s175 + $0xf0] sm:$0xff] %vm1180, %v1174
      %1212 = vst.msk [vmem:[%s175 + $0xf8] sm:$0xff] %vm1180, %v1177
      %s1213 = smul.u32 32, %s14
      %p1214 = scmp.lt.s32.totalorder %s1213, 63
      %s1215 = scalar_select %p1214, %s1213, 63
      %s1216 = smul.addr %s1215, 8
      %s1217 = scalar_lea.vmem %s3, %s1216
      // Predicated region
      $region33: #{unet_decoder.11} parent=31 // pred_check
        %p1218 = pneg %p100
      $region34: #{unet_decoder.11} parent=31 // pred_check_branch
        %1220 = sbr.rel (%p1218) target = $region36
      $region35: #{unet_decoder.11} parent=31 // pred_region
        %s1221 = smul.u32 32, %s14
      $region36: #{unet_decoder.11} parent=31 // pred_fallthru
        _
    $region32: #{unet_decoder.11} parent=5 // pred_fallthru
      _
    %p1222 = scmp.le.s32.totalorder 2, %s9
    // Predicated region
    $region37: #{unet_decoder.11} parent=5 // pred_check
      %p1223 = pneg %p1222
    $region38: #{unet_decoder.11} parent=5 // pred_check_branch
      %1225 = sbr.rel (%p1223) target = $region40
    $region39: #{unet_decoder.11} parent=5 // pred_region
      %s1226 = ssub.s32 %s9, 2
      // Predicated region
      $region41: #{unet_decoder.11} parent=39 // pred_check
        %p1227 = pneg %p106
      $region42: #{unet_decoder.11} parent=39 // pred_check_branch
        %1229 = sbr.rel (%p1227) target = $region44
      $region43: #{unet_decoder.11} parent=39 // pred_region
        %s1230 = smul.u32 32, %s15
        %p1231 = scmp.lt.s32.totalorder %s1230, 63
        %s1232 = scalar_select %p1231, %s1230, 63
        %s1233 = smul.addr %s1232, 8
        %s1234 = scalar_lea.vmem %s3, %s1233
      $region44: #{unet_decoder.11} parent=39 // pred_fallthru
        _
    $region40: #{unet_decoder.11} parent=5 // pred_fallthru
      _
  $region6: #{unet_decoder.11} parent=0 // loop_footer
    %s13 = sadd.s32 1, %s9
  $region7: #{unet_decoder.11} parent=0 // loop_footer_branch
    %8 = sbr.rel target = $region3
  $region8: #{unet_decoder.11} parent=0 // loop_exit
    _

// kernel: unet_decoder.12
$region0: #{unet_decoder.12}
  #allocation0 [shape = 'u32[]', space=smem, size = 0x4, offset = 0x4, fixed_abs, tag = 'smem constant byte address 0x4 - core index']
  #allocation1 [shape = 'u32[144,128]{1,0:T(1,128)}', space=vmem, size = 0x12000, scoped, tag = 'internal scratch']
  %s0 = inlined_call_operand.vmem [shape: bf16[4,128,288], index: 0, kind: input, shape index: {}]
  %s1 = inlined_call_operand.vmem [shape: bf16[288,32], index: 1, kind: input, shape index: {}]
  %s2 = inlined_call_operand.vmem [shape: f32[1,32], index: 2, kind: input, shape index: {}]
  %s3 = inlined_call_operand.vmem [shape: f32[128,32], index: 3, kind: output, shape index: {}]
  %s4 = sld [smem:[#allocation0]]
  $region22: #{unet_decoder.12} parent=0
    _
  %s6 = ssub.s32 1, %s4
  %s7 = scalar_select 0, %s6, %s4
  // Predicated region
  $region2: #{unet_decoder.12} parent=0 // pred_check
    _
  $region3: #{unet_decoder.12} parent=0 // pred_check_branch
    %9 = sbr.rel (0) target = $region5
  $region4: #{unet_decoder.12} parent=0 // pred_region
    _
  $region5: #{unet_decoder.12} parent=0 // pred_fallthru
    _
  // Predicated region
  $region6: #{unet_decoder.12} parent=0 // pred_check
    _
  $region7: #{unet_decoder.12} parent=0 // pred_check_branch
    %11 = sbr.rel (0) target = $region9
  $region8: #{unet_decoder.12} parent=0 // pred_region
    _
  $region9: #{unet_decoder.12} parent=0 // pred_fallthru
    _
  // Predicated region
  $region10: #{unet_decoder.12} parent=0 // pred_check
    _
  $region11: #{unet_decoder.12} parent=0 // pred_check_branch
    %13 = sbr.rel (0) target = $region13
  $region12: #{unet_decoder.12} parent=0 // pred_region
    _
  $region13: #{unet_decoder.12} parent=0 // pred_fallthru
    _
  %v15 = vld [vmem:[%s1] sm:$0xf]
  %v16 = vld [vmem:[%s1 + $0x4] sm:$0xf]
  %v17 = vld [vmem:[%s1 + $0x8] sm:$0xf]
  %v18 = vld [vmem:[%s1 + $0xc] sm:$0xf]
  %v19 = vld [vmem:[%s1 + $0x10] sm:$0xf]
  %v20 = vld [vmem:[%s1 + $0x14] sm:$0xf]
  %v21 = vld [vmem:[%s1 + $0x18] sm:$0xf]
  %v22 = vld [vmem:[%s1 + $0x1c] sm:$0xf]
  %v23 = vld [vmem:[%s1 + $0x20] sm:$0xf]
  %v24 = vld [vmem:[%s1 + $0x24] sm:$0xf]
  %v25 = vld [vmem:[%s1 + $0x28] sm:$0xf]
  %v26 = vld [vmem:[%s1 + $0x2c] sm:$0xf]
  %v27 = vld [vmem:[%s1 + $0x30] sm:$0xf]
  %v28 = vld [vmem:[%s1 + $0x34] sm:$0xf]
  %v29 = vld [vmem:[%s1 + $0x38] sm:$0xf]
  %v30 = vld [vmem:[%s1 + $0x3c] sm:$0xf]
  %v31 = vld [vmem:[%s1 + $0x40] sm:$0xf]
  %v32 = vld [vmem:[%s1 + $0x44] sm:$0xf]
  %v33 = vld [vmem:[%s1 + $0x48] sm:$0xf]
  %v34 = vld [vmem:[%s1 + $0x4c] sm:$0xf]
  %v35 = vld [vmem:[%s1 + $0x50] sm:$0xf]
  %v36 = vld [vmem:[%s1 + $0x54] sm:$0xf]
  %v37 = vld [vmem:[%s1 + $0x58] sm:$0xf]
  %v38 = vld [vmem:[%s1 + $0x5c] sm:$0xf]
  %v39 = vld [vmem:[%s1 + $0x60] sm:$0xf]
  %v40 = vld [vmem:[%s1 + $0x64] sm:$0xf]
  %v41 = vld [vmem:[%s1 + $0x68] sm:$0xf]
  %v42 = vld [vmem:[%s1 + $0x6c] sm:$0xf]
  %v43 = vld [vmem:[%s1 + $0x70] sm:$0xf]
  %v44 = vld [vmem:[%s1 + $0x74] sm:$0xf]
  %v45 = vld [vmem:[%s1 + $0x78] sm:$0xf]
  %v46 = vld [vmem:[%s1 + $0x7c] sm:$0xf]
  %v47 = vld [vmem:[%s1 + $0x80] sm:$0xf]
  %v48 = vld [vmem:[%s1 + $0x84] sm:$0xf]
  %v49 = vld [vmem:[%s1 + $0x88] sm:$0xf]
  %v50 = vld [vmem:[%s1 + $0x8c] sm:$0xf]
  %v51 = vld [vmem:[%s0] sm:$0xff]
  %v52 = vld [vmem:[%s0 + $0x8] sm:$0xf]
  %v53 = vld [vmem:[%s0 + $0xc] sm:$0xff]
  %v54 = vld [vmem:[%s0 + $0x14] sm:$0xf]
  %v55 = vld [vmem:[%s0 + $0x18] sm:$0xff]
  %v56 = vld [vmem:[%s0 + $0x20] sm:$0xf]
  %v57 = vld [vmem:[%s0 + $0x24] sm:$0xff]
  %v58 = vld [vmem:[%s0 + $0x2c] sm:$0xf]
  %v59 = vld [vmem:[%s0 + $0x30] sm:$0xff]
  %v60 = vld [vmem:[%s0 + $0x38] sm:$0xf]
  %v61 = vld [vmem:[%s0 + $0x3c] sm:$0xff]
  %v62 = vld [vmem:[%s0 + $0x44] sm:$0xf]
  %v63 = vld [vmem:[%s0 + $0x48] sm:$0xff]
  %v64 = vld [vmem:[%s0 + $0x50] sm:$0xf]
  %v65 = vld [vmem:[%s0 + $0x54] sm:$0xff]
  %v66 = vld [vmem:[%s0 + $0x5c] sm:$0xf]
  %v67 = vld [vmem:[%s0 + $0x60] sm:$0xff]
  %v68 = vld [vmem:[%s0 + $0x68] sm:$0xf]
  %v69 = vld [vmem:[%s0 + $0x6c] sm:$0xff]
  %v70 = vld [vmem:[%s0 + $0x74] sm:$0xf]
  %v71 = vld [vmem:[%s0 + $0x78] sm:$0xff]
  %v72 = vld [vmem:[%s0 + $0x80] sm:$0xf]
  %v73 = vld [vmem:[%s0 + $0x84] sm:$0xff]
  %v74 = vld [vmem:[%s0 + $0x8c] sm:$0xf]
  %v75 = vld [vmem:[%s0 + $0x90] sm:$0xff]
  %v76 = vld [vmem:[%s0 + $0x98] sm:$0xf]
  %v77 = vld [vmem:[%s0 + $0x9c] sm:$0xff]
  %v78 = vld [vmem:[%s0 + $0xa4] sm:$0xf]
  %v79 = vld [vmem:[%s0 + $0xa8] sm:$0xff]
  %v80 = vld [vmem:[%s0 + $0xb0] sm:$0xf]
  %v81 = vld [vmem:[%s0 + $0xb4] sm:$0xff]
  %v82 = vld [vmem:[%s0 + $0xbc] sm:$0xf]
  %v115 = vunpack.c.l.b16 %v51
  %v116 = vunpack.c.h.b16 %v51
  %v117 = vunpack.c.l.b16 %v52
  %v118 = vunpack.c.l.b16 %v53
  %v119 = vunpack.c.h.b16 %v53
  %v120 = vunpack.c.l.b16 %v54
  %v121 = vunpack.c.l.b16 %v55
  %v122 = vunpack.c.h.b16 %v55
  %v123 = vunpack.c.l.b16 %v56
  %v124 = vunpack.c.l.b16 %v57
  %v125 = vunpack.c.h.b16 %v57
  %v126 = vunpack.c.l.b16 %v58
  %v127 = vunpack.c.l.b16 %v59
  %v128 = vunpack.c.h.b16 %v59
  %v129 = vunpack.c.l.b16 %v60
  %v130 = vunpack.c.l.b16 %v61
  %v131 = vunpack.c.h.b16 %v61
  %v132 = vunpack.c.l.b16 %v62
  %v133 = vunpack.c.l.b16 %v63
  %v134 = vunpack.c.h.b16 %v63
  %v135 = vunpack.c.l.b16 %v64
  %v136 = vunpack.c.l.b16 %v65
  %v137 = vunpack.c.h.b16 %v65
  %v138 = vunpack.c.l.b16 %v66
  %v139 = vunpack.c.l.b16 %v67
  %v140 = vunpack.c.h.b16 %v67
  %v141 = vunpack.c.l.b16 %v68
  %v142 = vunpack.c.l.b16 %v69
  %v143 = vunpack.c.h.b16 %v69
  %v144 = vunpack.c.l.b16 %v70
  %v145 = vunpack.c.l.b16 %v71
  %v146 = vunpack.c.h.b16 %v71
  %v147 = vunpack.c.l.b16 %v72
  %v148 = vunpack.c.l.b16 %v73
  %v149 = vunpack.c.h.b16 %v73
  %v150 = vunpack.c.l.b16 %v74
  %v151 = vunpack.c.l.b16 %v75
  %v152 = vunpack.c.h.b16 %v75
  %v153 = vunpack.c.l.b16 %v76
  %v154 = vunpack.c.l.b16 %v77
  %v155 = vunpack.c.h.b16 %v77
  %v156 = vunpack.c.l.b16 %v78
  %v157 = vunpack.c.l.b16 %v79
  %v158 = vunpack.c.h.b16 %v79
  %v159 = vunpack.c.l.b16 %v80
  %v160 = vunpack.c.l.b16 %v81
  %v161 = vunpack.c.h.b16 %v81
  %v162 = vunpack.c.l.b16 %v82
  %v163 = vpack.c.b16 %v118, %v115
  %v164 = vpack.c.b16 %v119, %v116
  %v165 = vpack.c.b16 %v120, %v117
  %v166 = vpack.c.b16 %v124, %v121
  %v167 = vpack.c.b16 %v125, %v122
  %v168 = vpack.c.b16 %v126, %v123
  %v169 = vpack.c.b16 %v130, %v127
  %v170 = vpack.c.b16 %v131, %v128
  %v171 = vpack.c.b16 %v132, %v129
  %v172 = vpack.c.b16 %v136, %v133
  %v173 = vpack.c.b16 %v137, %v134
  %v174 = vpack.c.b16 %v138, %v135
  %v175 = vpack.c.b16 %v142, %v139
  %v176 = vpack.c.b16 %v143, %v140
  %v177 = vpack.c.b16 %v144, %v141
  %v178 = vpack.c.b16 %v148, %v145
  %v179 = vpack.c.b16 %v149, %v146
  %v180 = vpack.c.b16 %v150, %v147
  %v181 = vpack.c.b16 %v154, %v151
  %v182 = vpack.c.b16 %v155, %v152
  %v183 = vpack.c.b16 %v156, %v153
  %v184 = vpack.c.b16 %v160, %v157
  %v185 = vpack.c.b16 %v161, %v158
  %v186 = vpack.c.b16 %v162, %v159
  %v239 = vunpack.c.l.b16 %v15
  %v240 = vunpack.c.l.b16 %v16
  %v241 = vunpack.c.l.b16 %v17
  %v242 = vunpack.c.l.b16 %v18
  %v243 = vunpack.c.l.b16 %v19
  %v244 = vunpack.c.l.b16 %v20
  %v245 = vunpack.c.l.b16 %v21
  %v246 = vunpack.c.l.b16 %v22
  %v247 = vunpack.c.l.b16 %v23
  %v248 = vunpack.c.l.b16 %v24
  %v249 = vunpack.c.l.b16 %v25
  %v250 = vunpack.c.l.b16 %v26
  %v251 = vunpack.c.l.b16 %v27
  %v252 = vunpack.c.l.b16 %v28
  %v253 = vunpack.c.l.b16 %v29
  %v254 = vunpack.c.l.b16 %v30
  %v255 = vunpack.c.l.b16 %v31
  %v256 = vunpack.c.l.b16 %v32
  %v257 = vunpack.c.l.b16 %v33
  %v258 = vunpack.c.l.b16 %v34
  %v259 = vunpack.c.l.b16 %v35
  %v260 = vunpack.c.l.b16 %v36
  %v261 = vunpack.c.l.b16 %v37
  %v262 = vunpack.c.l.b16 %v38
  %v263 = vunpack.c.l.b16 %v39
  %v264 = vunpack.c.l.b16 %v40
  %v265 = vunpack.c.l.b16 %v41
  %v266 = vunpack.c.l.b16 %v42
  %v267 = vunpack.c.l.b16 %v43
  %v268 = vunpack.c.l.b16 %v44
  %v269 = vunpack.c.l.b16 %v45
  %v270 = vunpack.c.l.b16 %v46
  %v271 = vunpack.c.l.b16 %v47
  %v272 = vunpack.c.l.b16 %v48
  %v273 = vunpack.c.l.b16 %v49
  %v274 = vunpack.c.l.b16 %v50
  %v275 = vpack.c.b16 %v240, %v239
  %v276 = vpack.c.b16 %v242, %v241
  %v277 = vpack.c.b16 %v244, %v243
  %v278 = vpack.c.b16 %v246, %v245
  %v279 = vpack.c.b16 %v248, %v247
  %v280 = vpack.c.b16 %v250, %v249
  %v281 = vpack.c.b16 %v252, %v251
  %v282 = vpack.c.b16 %v254, %v253
  %v283 = vpack.c.b16 %v256, %v255
  %v284 = vpack.c.b16 %v258, %v257
  %v285 = vpack.c.b16 %v260, %v259
  %v286 = vpack.c.b16 %v262, %v261
  %v287 = vpack.c.b16 %v264, %v263
  %v288 = vpack.c.b16 %v266, %v265
  %v289 = vpack.c.b16 %v268, %v267
  %v290 = vpack.c.b16 %v270, %v269
  %v291 = vpack.c.b16 %v272, %v271
  %v292 = vpack.c.b16 %v274, %v273
  %vm311 = vcmask 261120
  %v313 = vsel %vm311, %v165, 0
  %v316 = vsel %vm311, %v168, 0
  %v319 = vsel %vm311, %v171, 0
  %v322 = vsel %vm311, %v174, 0
  %v325 = vsel %vm311, %v177, 0
  %v328 = vsel %vm311, %v180, 0
  %v331 = vsel %vm311, %v183, 0
  %v334 = vsel %vm311, %v186, 0
  %336 = vmatprep.subr.bf16.mxu0 0
  %337 = vmatpush1.bf16.msra.mxu0 %v275
  %338 = vmatprep.subr.bf16.mxu0 0
  %339 = vmatpush1.bf16.msra.mxu0 %v276
  %340 = vmatprep.subr.bf16.mxu0 0
  %341 = vmatpush1.bf16.msra.mxu0 %v277
  %342 = vmatprep.subr.bf16.mxu0 0
  %343 = vmatpush1.bf16.msra.mxu0 %v278
  %344 = vmatprep.subr.bf16.mxu0 0
  %345 = vmatpush1.bf16.msra.mxu0 %v279
  %346 = vmatprep.subr.bf16.mxu0 0
  %347 = vmatpush1.bf16.msra.mxu0 %v280
  %348 = vmatprep.subr.bf16.mxu0 0
  %349 = vmatpush1.bf16.msra.mxu0 %v281
  %350 = vmatprep.subr.bf16.mxu0 0
  %351 = vmatpush1.bf16.msra.mxu0 %v282
  %352 = vmatprep.subr.bf16.mxu0 0
  %353 = vmatpush1.bf16.msra.mxu0 %v283
  %354 = vmatprep.subr.bf16.mxu0 0
  %355 = vmatpush1.bf16.msra.mxu0 %v284
  %356 = vmatprep.subr.bf16.mxu0 0
  %357 = vmatpush1.bf16.msra.mxu0 %v285
  %358 = vmatprep.subr.bf16.mxu0 0
  %359 = vmatpush1.bf16.msra.mxu0 %v286
  %360 = vmatprep.subr.bf16.mxu0 0
  %361 = vmatpush1.bf16.msra.mxu0 %v287
  %362 = vmatprep.subr.bf16.mxu0 0
  %363 = vmatpush1.bf16.msra.mxu0 %v288
  %364 = vmatprep.subr.bf16.mxu0 0
  %365 = vmatpush1.bf16.msra.mxu0 %v289
  %366 = vmatprep.subr.bf16.mxu0 0
  %367 = vmatpush1.bf16.msra.mxu0 %v290
  %368 = vmatprep.mubr.bf16.mxu0 %v164
  %369 = vmatmul.mubr.bf16.gmra.mrb[0].mxu0 %v163
  %v370 = vpop.f32.mrb[0].mxu0
  %v371 = vadd.f32 0.0, %v370
  %v372 = vpop.f32.mrb[0].mxu0
  %v373 = vpop.f32.mrb[0].mxu0
  %v374 = vadd.f32 0.0, %v373
  %v375 = vpop.f32.mrb[0].mxu0
  %376 = vmatprep.mubr.bf16.mxu0 %v167
  %377 = vmatmul.mubr.bf16.gmra.mrb[0].mxu0 %v166
  %v378 = vpop.f32.mrb[0].mxu0
  %v379 = vadd.f32 0.0, %v378
  %v380 = vpop.f32.mrb[0].mxu0
  %v381 = vpop.f32.mrb[0].mxu0
  %v382 = vadd.f32 0.0, %v381
  %v383 = vpop.f32.mrb[0].mxu0
  %384 = vmatprep.mubr.bf16.mxu0 %v170
  %385 = vmatmul.mubr.bf16.gmra.mrb[0].mxu0 %v169
  %v386 = vpop.f32.mrb[0].mxu0
  %v387 = vadd.f32 0.0, %v386
  %v388 = vpop.f32.mrb[0].mxu0
  %v389 = vpop.f32.mrb[0].mxu0
  %v390 = vadd.f32 0.0, %v389
  %v391 = vpop.f32.mrb[0].mxu0
  %392 = vmatprep.mubr.bf16.mxu0 %v173
  %393 = vmatmul.mubr.bf16.gmra.mrb[0].mxu0 %v172
  %v394 = vpop.f32.mrb[0].mxu0
  %v395 = vadd.f32 0.0, %v394
  %v396 = vpop.f32.mrb[0].mxu0
  %v397 = vpop.f32.mrb[0].mxu0
  %v398 = vadd.f32 0.0, %v397
  %v399 = vpop.f32.mrb[0].mxu0
  %400 = vmatprep.mubr.bf16.mxu0 %v176
  %401 = vmatmul.mubr.bf16.gmra.mrb[0].mxu0 %v175
  %v402 = vpop.f32.mrb[0].mxu0
  %v403 = vadd.f32 0.0, %v402
  %v404 = vpop.f32.mrb[0].mxu0
  %v405 = vpop.f32.mrb[0].mxu0
  %v406 = vadd.f32 0.0, %v405
  %v407 = vpop.f32.mrb[0].mxu0
  %408 = vmatprep.mubr.bf16.mxu0 %v179
  %409 = vmatmul.mubr.bf16.gmra.mrb[0].mxu0 %v178
  %v410 = vpop.f32.mrb[0].mxu0
  %v411 = vadd.f32 0.0, %v410
  %v412 = vpop.f32.mrb[0].mxu0
  %v413 = vpop.f32.mrb[0].mxu0
  %v414 = vadd.f32 0.0, %v413
  %v415 = vpop.f32.mrb[0].mxu0
  %416 = vmatprep.mubr.bf16.mxu0 %v182
  %417 = vmatmul.mubr.bf16.gmra.mrb[0].mxu0 %v181
  %v418 = vpop.f32.mrb[0].mxu0
  %v419 = vadd.f32 0.0, %v418
  %v420 = vpop.f32.mrb[0].mxu0
  %v421 = vpop.f32.mrb[0].mxu0
  %v422 = vadd.f32 0.0, %v421
  %v423 = vpop.f32.mrb[0].mxu0
  %424 = vmatprep.mubr.bf16.mxu0 %v185
  %425 = vmatmul.mubr.bf16.gmra.mrb[0].mxu0 %v184
  %v426 = vpop.f32.mrb[0].mxu0
  %v427 = vadd.f32 0.0, %v426
  %v428 = vpop.f32.mrb[0].mxu0
  %v429 = vpop.f32.mrb[0].mxu0
  %v430 = vadd.f32 0.0, %v429
  %v431 = vpop.f32.mrb[0].mxu0
  %432 = vdwg.mxu0
  %433 = vmatprep.subr.bf16.mxu0 0
  %434 = vmatpush1.bf16.msra.mxu0 %v291
  %435 = vmatprep.subr.bf16.mxu0 0
  %436 = vmatpush1.bf16.msra.mxu0 %v292
  %437 = vmatprep.subr.bf16.mxu0 0
  %438 = vmatpush1.bf16.msra.mxu0 0
  %439 = vmatprep.subr.bf16.mxu0 0
  %440 = vmatpush1.bf16.msra.mxu0 0
  %441 = vmatprep.subr.bf16.mxu0 0
  %442 = vmatpush1.bf16.msra.mxu0 0
  %443 = vmatprep.subr.bf16.mxu0 0
  %444 = vmatpush1.bf16.msra.mxu0 0
  %445 = vmatprep.subr.bf16.mxu0 0
  %446 = vmatpush1.bf16.msra.mxu0 0
  %447 = vmatprep.subr.bf16.mxu0 0
  %448 = vmatpush1.bf16.msra.mxu0 0
  %449 = vmatprep.subr.bf16.mxu0 0
  %450 = vmatpush1.bf16.msra.mxu0 0
  %451 = vmatprep.subr.bf16.mxu0 0
  %452 = vmatpush1.bf16.msra.mxu0 0
  %453 = vmatprep.subr.bf16.mxu0 0
  %454 = vmatpush1.bf16.msra.mxu0 0
  %455 = vmatprep.subr.bf16.mxu0 0
  %456 = vmatpush1.bf16.msra.mxu0 0
  %457 = vmatprep.subr.bf16.mxu0 0
  %458 = vmatpush1.bf16.msra.mxu0 0
  %459 = vmatprep.subr.bf16.mxu0 0
  %460 = vmatpush1.bf16.msra.mxu0 0
  %461 = vmatprep.subr.bf16.mxu0 0
  %462 = vmatpush1.bf16.msra.mxu0 0
  %463 = vmatprep.subr.bf16.mxu0 0
  %464 = vmatpush1.bf16.msra.mxu0 0
  %465 = vmatprep.mubr.bf16.mxu0 0
  %466 = vmatmul.mubr.bf16.gmra.mrb[0].mxu0 %v313
  %v467 = vpop.f32.mrb[0].mxu0
  %v468 = vadd.f32 %v371, %v467
  %v469 = vpop.f32.mrb[0].mxu0
  %v470 = vpop.f32.mrb[0].mxu0
  %v471 = vadd.f32 %v374, %v470
  %v472 = vpop.f32.mrb[0].mxu0
  %473 = vmatprep.mubr.bf16.mxu0 0
  %474 = vmatmul.mubr.bf16.gmra.mrb[0].mxu0 %v316
  %v475 = vpop.f32.mrb[0].mxu0
  %v476 = vadd.f32 %v379, %v475
  %v477 = vpop.f32.mrb[0].mxu0
  %v478 = vpop.f32.mrb[0].mxu0
  %v479 = vadd.f32 %v382, %v478
  %v480 = vpop.f32.mrb[0].mxu0
  %481 = vmatprep.mubr.bf16.mxu0 0
  %482 = vmatmul.mubr.bf16.gmra.mrb[0].mxu0 %v319
  %v483 = vpop.f32.mrb[0].mxu0
  %v484 = vadd.f32 %v387, %v483
  %v485 = vpop.f32.mrb[0].mxu0
  %v486 = vpop.f32.mrb[0].mxu0
  %v487 = vadd.f32 %v390, %v486
  %v488 = vpop.f32.mrb[0].mxu0
  %489 = vmatprep.mubr.bf16.mxu0 0
  %490 = vmatmul.mubr.bf16.gmra.mrb[0].mxu0 %v322
  %v491 = vpop.f32.mrb[0].mxu0
  %v492 = vadd.f32 %v395, %v491
  %v493 = vpop.f32.mrb[0].mxu0
  %v494 = vpop.f32.mrb[0].mxu0
  %v495 = vadd.f32 %v398, %v494
  %v496 = vpop.f32.mrb[0].mxu0
  %497 = vmatprep.mubr.bf16.mxu0 0
  %498 = vmatmul.mubr.bf16.gmra.mrb[0].mxu0 %v325
  %v499 = vpop.f32.mrb[0].mxu0
  %v500 = vadd.f32 %v403, %v499
  %v501 = vpop.f32.mrb[0].mxu0
  %v502 = vpop.f32.mrb[0].mxu0
  %v503 = vadd.f32 %v406, %v502
  %v504 = vpop.f32.mrb[0].mxu0
  %505 = vmatprep.mubr.bf16.mxu0 0
  %506 = vmatmul.mubr.bf16.gmra.mrb[0].mxu0 %v328
  %v507 = vpop.f32.mrb[0].mxu0
  %v508 = vadd.f32 %v411, %v507
  %v509 = vpop.f32.mrb[0].mxu0
  %v510 = vpop.f32.mrb[0].mxu0
  %v511 = vadd.f32 %v414, %v510
  %v512 = vpop.f32.mrb[0].mxu0
  %513 = vmatprep.mubr.bf16.mxu0 0
  %514 = vmatmul.mubr.bf16.gmra.mrb[0].mxu0 %v331
  %v515 = vpop.f32.mrb[0].mxu0
  %v516 = vadd.f32 %v419, %v515
  %v517 = vpop.f32.mrb[0].mxu0
  %v518 = vpop.f32.mrb[0].mxu0
  %v519 = vadd.f32 %v422, %v518
  %v520 = vpop.f32.mrb[0].mxu0
  %521 = vmatprep.mubr.bf16.mxu0 0
  %522 = vmatmul.mubr.bf16.gmra.mrb[0].mxu0 %v334
  %v523 = vpop.f32.mrb[0].mxu0
  %v524 = vadd.f32 %v427, %v523
  %v525 = vpop.f32.mrb[0].mxu0
  %v526 = vpop.f32.mrb[0].mxu0
  %v527 = vadd.f32 %v430, %v526
  %v528 = vpop.f32.mrb[0].mxu0
  %529 = vdwg.mxu0
  %s530 = scalar_lea.vmem %s0, 192
  %v531 = vld [vmem:[%s530] sm:$0xff]
  %v532 = vld [vmem:[%s530 + $0x8] sm:$0xf]
  %v533 = vld [vmem:[%s530 + $0xc] sm:$0xff]
  %v534 = vld [vmem:[%s530 + $0x14] sm:$0xf]
  %v535 = vld [vmem:[%s530 + $0x18] sm:$0xff]
  %v536 = vld [vmem:[%s530 + $0x20] sm:$0xf]
  %v537 = vld [vmem:[%s530 + $0x24] sm:$0xff]
  %v538 = vld [vmem:[%s530 + $0x2c] sm:$0xf]
  %v539 = vld [vmem:[%s530 + $0x30] sm:$0xff]
  %v540 = vld [vmem:[%s530 + $0x38] sm:$0xf]
  %v541 = vld [vmem:[%s530 + $0x3c] sm:$0xff]
  %v542 = vld [vmem:[%s530 + $0x44] sm:$0xf]
  %v543 = vld [vmem:[%s530 + $0x48] sm:$0xff]
  %v544 = vld [vmem:[%s530 + $0x50] sm:$0xf]
  %v545 = vld [vmem:[%s530 + $0x54] sm:$0xff]
  %v546 = vld [vmem:[%s530 + $0x5c] sm:$0xf]
  %v547 = vld [vmem:[%s530 + $0x60] sm:$0xff]
  %v548 = vld [vmem:[%s530 + $0x68] sm:$0xf]
  %v549 = vld [vmem:[%s530 + $0x6c] sm:$0xff]
  %v550 = vld [vmem:[%s530 + $0x74] sm:$0xf]
  %v551 = vld [vmem:[%s530 + $0x78] sm:$0xff]
  %v552 = vld [vmem:[%s530 + $0x80] sm:$0xf]
  %v553 = vld [vmem:[%s530 + $0x84] sm:$0xff]
  %v554 = vld [vmem:[%s530 + $0x8c] sm:$0xf]
  %v555 = vld [vmem:[%s530 + $0x90] sm:$0xff]
  %v556 = vld [vmem:[%s530 + $0x98] sm:$0xf]
  %v557 = vld [vmem:[%s530 + $0x9c] sm:$0xff]
  %v558 = vld [vmem:[%s530 + $0xa4] sm:$0xf]
  %v559 = vld [vmem:[%s530 + $0xa8] sm:$0xff]
  %v560 = vld [vmem:[%s530 + $0xb0] sm:$0xf]
  %v561 = vld [vmem:[%s530 + $0xb4] sm:$0xff]
  %v562 = vld [vmem:[%s530 + $0xbc] sm:$0xf]
  %v595 = vunpack.c.l.b16 %v531
  %v596 = vunpack.c.h.b16 %v531
  %v597 = vunpack.c.l.b16 %v532
  %v598 = vunpack.c.l.b16 %v533
  %v599 = vunpack.c.h.b16 %v533
  %v600 = vunpack.c.l.b16 %v534
  %v601 = vunpack.c.l.b16 %v535
  %v602 = vunpack.c.h.b16 %v535
  %v603 = vunpack.c.l.b16 %v536
  %v604 = vunpack.c.l.b16 %v537
  %v605 = vunpack.c.h.b16 %v537
  %v606 = vunpack.c.l.b16 %v538
  %v607 = vunpack.c.l.b16 %v539
  %v608 = vunpack.c.h.b16 %v539
  %v609 = vunpack.c.l.b16 %v540
  %v610 = vunpack.c.l.b16 %v541
  %v611 = vunpack.c.h.b16 %v541
  %v612 = vunpack.c.l.b16 %v542
  %v613 = vunpack.c.l.b16 %v543
  %v614 = vunpack.c.h.b16 %v543
  %v615 = vunpack.c.l.b16 %v544
  %v616 = vunpack.c.l.b16 %v545
  %v617 = vunpack.c.h.b16 %v545
  %v618 = vunpack.c.l.b16 %v546
  %v619 = vunpack.c.l.b16 %v547
  %v620 = vunpack.c.h.b16 %v547
  %v621 = vunpack.c.l.b16 %v548
  %v622 = vunpack.c.l.b16 %v549
  %v623 = vunpack.c.h.b16 %v549
  %v624 = vunpack.c.l.b16 %v550
  %v625 = vunpack.c.l.b16 %v551
  %v626 = vunpack.c.h.b16 %v551
  %v627 = vunpack.c.l.b16 %v552
  %v628 = vunpack.c.l.b16 %v553
  %v629 = vunpack.c.h.b16 %v553
  %v630 = vunpack.c.l.b16 %v554
  %v631 = vunpack.c.l.b16 %v555
  %v632 = vunpack.c.h.b16 %v555
  %v633 = vunpack.c.l.b16 %v556
  %v634 = vunpack.c.l.b16 %v557
  %v635 = vunpack.c.h.b16 %v557
  %v636 = vunpack.c.l.b16 %v558
  %v637 = vunpack.c.l.b16 %v559
  %v638 = vunpack.c.h.b16 %v559
  %v639 = vunpack.c.l.b16 %v560
  %v640 = vunpack.c.l.b16 %v561
  %v641 = vunpack.c.h.b16 %v561
  %v642 = vunpack.c.l.b16 %v562
  %v643 = vpack.c.b16 %v598, %v595
  %v644 = vpack.c.b16 %v599, %v596
  %v645 = vpack.c.b16 %v600, %v597
  %v646 = vpack.c.b16 %v604, %v601
  %v647 = vpack.c.b16 %v605, %v602
  %v648 = vpack.c.b16 %v606, %v603
  %v649 = vpack.c.b16 %v610, %v607
  %v650 = vpack.c.b16 %v611, %v608
  %v651 = vpack.c.b16 %v612, %v609
  %v652 = vpack.c.b16 %v616, %v613
  %v653 = vpack.c.b16 %v617, %v614
  %v654 = vpack.c.b16 %v618, %v615
  %v655 = vpack.c.b16 %v622, %v619
  %v656 = vpack.c.b16 %v623, %v620
  %v657 = vpack.c.b16 %v624, %v621
  %v658 = vpack.c.b16 %v628, %v625
  %v659 = vpack.c.b16 %v629, %v626
  %v660 = vpack.c.b16 %v630, %v627
  %v661 = vpack.c.b16 %v634, %v631
  %v662 = vpack.c.b16 %v635, %v632
  %v663 = vpack.c.b16 %v636, %v633
  %v664 = vpack.c.b16 %v640, %v637
  %v665 = vpack.c.b16 %v641, %v638
  %v666 = vpack.c.b16 %v642, %v639
  %v684 = vsel %vm311, %v645, 0
  %v687 = vsel %vm311, %v648, 0
  %v690 = vsel %vm311, %v651, 0
  %v693 = vsel %vm311, %v654, 0
  %v696 = vsel %vm311, %v657, 0
  %v699 = vsel %vm311, %v660, 0
  %v702 = vsel %vm311, %v663, 0
  %v705 = vsel %vm311, %v666, 0
  %707 = vmatprep.subr.bf16.mxu0 0
  %708 = vmatpush1.bf16.msra.mxu0 %v275
  %709 = vmatprep.subr.bf16.mxu0 0
  %710 = vmatpush1.bf16.msra.mxu0 %v276
  %711 = vmatprep.subr.bf16.mxu0 0
  %712 = vmatpush1.bf16.msra.mxu0 %v277
  %713 = vmatprep.subr.bf16.mxu0 0
  %714 = vmatpush1.bf16.msra.mxu0 %v278
  %715 = vmatprep.subr.bf16.mxu0 0
  %716 = vmatpush1.bf16.msra.mxu0 %v279
  %717 = vmatprep.subr.bf16.mxu0 0
  %718 = vmatpush1.bf16.msra.mxu0 %v280
  %719 = vmatprep.subr.bf16.mxu0 0
  %720 = vmatpush1.bf16.msra.mxu0 %v281
  %721 = vmatprep.subr.bf16.mxu0 0
  %722 = vmatpush1.bf16.msra.mxu0 %v282
  %723 = vmatprep.subr.bf16.mxu0 0
  %724 = vmatpush1.bf16.msra.mxu0 %v283
  %725 = vmatprep.subr.bf16.mxu0 0
  %726 = vmatpush1.bf16.msra.mxu0 %v284
  %727 = vmatprep.subr.bf16.mxu0 0
  %728 = vmatpush1.bf16.msra.mxu0 %v285
  %729 = vmatprep.subr.bf16.mxu0 0
  %730 = vmatpush1.bf16.msra.mxu0 %v286
  %731 = vmatprep.subr.bf16.mxu0 0
  %732 = vmatpush1.bf16.msra.mxu0 %v287
  %733 = vmatprep.subr.bf16.mxu0 0
  %734 = vmatpush1.bf16.msra.mxu0 %v288
  %735 = vmatprep.subr.bf16.mxu0 0
  %736 = vmatpush1.bf16.msra.mxu0 %v289
  %737 = vmatprep.subr.bf16.mxu0 0
  %738 = vmatpush1.bf16.msra.mxu0 %v290
  %739 = vmatprep.mubr.bf16.mxu0 %v644
  %740 = vmatmul.mubr.bf16.gmra.mrb[0].mxu0 %v643
  %v741 = vpop.f32.mrb[0].mxu0
  %v742 = vadd.f32 0.0, %v741
  %v743 = vpop.f32.mrb[0].mxu0
  %v744 = vpop.f32.mrb[0].mxu0
  %v745 = vadd.f32 0.0, %v744
  %v746 = vpop.f32.mrb[0].mxu0
  %747 = vmatprep.mubr.bf16.mxu0 %v647
  %748 = vmatmul.mubr.bf16.gmra.mrb[0].mxu0 %v646
  %v749 = vpop.f32.mrb[0].mxu0
  %v750 = vadd.f32 0.0, %v749
  %v751 = vpop.f32.mrb[0].mxu0
  %v752 = vpop.f32.mrb[0].mxu0
  %v753 = vadd.f32 0.0, %v752
  %v754 = vpop.f32.mrb[0].mxu0
  %755 = vmatprep.mubr.bf16.mxu0 %v650
  %756 = vmatmul.mubr.bf16.gmra.mrb[0].mxu0 %v649
  %v757 = vpop.f32.mrb[0].mxu0
  %v758 = vadd.f32 0.0, %v757
  %v759 = vpop.f32.mrb[0].mxu0
  %v760 = vpop.f32.mrb[0].mxu0
  %v761 = vadd.f32 0.0, %v760
  %v762 = vpop.f32.mrb[0].mxu0
  %763 = vmatprep.mubr.bf16.mxu0 %v653
  %764 = vmatmul.mubr.bf16.gmra.mrb[0].mxu0 %v652
  %v765 = vpop.f32.mrb[0].mxu0
  %v766 = vadd.f32 0.0, %v765
  %v767 = vpop.f32.mrb[0].mxu0
  %v768 = vpop.f32.mrb[0].mxu0
  %v769 = vadd.f32 0.0, %v768
  %v770 = vpop.f32.mrb[0].mxu0
  %771 = vmatprep.mubr.bf16.mxu0 %v656
  %772 = vmatmul.mubr.bf16.gmra.mrb[0].mxu0 %v655
  %v773 = vpop.f32.mrb[0].mxu0
  %v774 = vadd.f32 0.0, %v773
  %v775 = vpop.f32.mrb[0].mxu0
  %v776 = vpop.f32.mrb[0].mxu0
  %v777 = vadd.f32 0.0, %v776
  %v778 = vpop.f32.mrb[0].mxu0
  %779 = vmatprep.mubr.bf16.mxu0 %v659
  %780 = vmatmul.mubr.bf16.gmra.mrb[0].mxu0 %v658
  %v781 = vpop.f32.mrb[0].mxu0
  %v782 = vadd.f32 0.0, %v781
  %v783 = vpop.f32.mrb[0].mxu0
  %v784 = vpop.f32.mrb[0].mxu0
  %v785 = vadd.f32 0.0, %v784
  %v786 = vpop.f32.mrb[0].mxu0
  %787 = vmatprep.mubr.bf16.mxu0 %v662
  %788 = vmatmul.mubr.bf16.gmra.mrb[0].mxu0 %v661
  %v789 = vpop.f32.mrb[0].mxu0
  %v790 = vadd.f32 0.0, %v789
  %v791 = vpop.f32.mrb[0].mxu0
  %v792 = vpop.f32.mrb[0].mxu0
  %v793 = vadd.f32 0.0, %v792
  %v794 = vpop.f32.mrb[0].mxu0
  %795 = vmatprep.mubr.bf16.mxu0 %v665
  %796 = vmatmul.mubr.bf16.gmra.mrb[0].mxu0 %v664
  %v797 = vpop.f32.mrb[0].mxu0
  %v798 = vadd.f32 0.0, %v797
  %v799 = vpop.f32.mrb[0].mxu0
  %v800 = vpop.f32.mrb[0].mxu0
  %v801 = vadd.f32 0.0, %v800
  %v802 = vpop.f32.mrb[0].mxu0
  %803 = vdwg.mxu0
  %804 = vmatprep.subr.bf16.mxu0 0
  %805 = vmatpush1.bf16.msra.mxu0 %v291
  %806 = vmatprep.subr.bf16.mxu0 0
  %807 = vmatpush1.bf16.msra.mxu0 %v292
  %808 = vmatprep.subr.bf16.mxu0 0
  %809 = vmatpush1.bf16.msra.mxu0 0
  %810 = vmatprep.subr.bf16.mxu0 0
  %811 = vmatpush1.bf16.msra.mxu0 0
  %812 = vmatprep.subr.bf16.mxu0 0
  %813 = vmatpush1.bf16.msra.mxu0 0
  %814 = vmatprep.subr.bf16.mxu0 0
  %815 = vmatpush1.bf16.msra.mxu0 0
  %816 = vmatprep.subr.bf16.mxu0 0
  %817 = vmatpush1.bf16.msra.mxu0 0
  %818 = vmatprep.subr.bf16.mxu0 0
  %819 = vmatpush1.bf16.msra.mxu0 0
  %820 = vmatprep.subr.bf16.mxu0 0
  %821 = vmatpush1.bf16.msra.mxu0 0
  %822 = vmatprep.subr.bf16.mxu0 0
  %823 = vmatpush1.bf16.msra.mxu0 0
  %824 = vmatprep.subr.bf16.mxu0 0
  %825 = vmatpush1.bf16.msra.mxu0 0
  %826 = vmatprep.subr.bf16.mxu0 0
  %827 = vmatpush1.bf16.msra.mxu0 0
  %828 = vmatprep.subr.bf16.mxu0 0
  %829 = vmatpush1.bf16.msra.mxu0 0
  %830 = vmatprep.subr.bf16.mxu0 0
  %831 = vmatpush1.bf16.msra.mxu0 0
  %832 = vmatprep.subr.bf16.mxu0 0
  %833 = vmatpush1.bf16.msra.mxu0 0
  %834 = vmatprep.subr.bf16.mxu0 0
  %835 = vmatpush1.bf16.msra.mxu0 0
  %836 = vmatprep.mubr.bf16.mxu0 0
  %837 = vmatmul.mubr.bf16.gmra.mrb[0].mxu0 %v684
  %v838 = vpop.f32.mrb[0].mxu0
  %v839 = vadd.f32 %v742, %v838
  %v840 = vpop.f32.mrb[0].mxu0
  %v841 = vpop.f32.mrb[0].mxu0
  %v842 = vadd.f32 %v745, %v841
  %v843 = vpop.f32.mrb[0].mxu0
  %844 = vmatprep.mubr.bf16.mxu0 0
  %845 = vmatmul.mubr.bf16.gmra.mrb[0].mxu0 %v687
  %v846 = vpop.f32.mrb[0].mxu0
  %v847 = vadd.f32 %v750, %v846
  %v848 = vpop.f32.mrb[0].mxu0
  %v849 = vpop.f32.mrb[0].mxu0
  %v850 = vadd.f32 %v753, %v849
  %v851 = vpop.f32.mrb[0].mxu0
  %852 = vmatprep.mubr.bf16.mxu0 0
  %853 = vmatmul.mubr.bf16.gmra.mrb[0].mxu0 %v690
  %v854 = vpop.f32.mrb[0].mxu0
  %v855 = vadd.f32 %v758, %v854
  %v856 = vpop.f32.mrb[0].mxu0
  %v857 = vpop.f32.mrb[0].mxu0
  %v858 = vadd.f32 %v761, %v857
  %v859 = vpop.f32.mrb[0].mxu0
  %860 = vmatprep.mubr.bf16.mxu0 0
  %861 = vmatmul.mubr.bf16.gmra.mrb[0].mxu0 %v693
  %v862 = vpop.f32.mrb[0].mxu0
  %v863 = vadd.f32 %v766, %v862
  %v864 = vpop.f32.mrb[0].mxu0
  %v865 = vpop.f32.mrb[0].mxu0
  %v866 = vadd.f32 %v769, %v865
  %v867 = vpop.f32.mrb[0].mxu0
  %868 = vmatprep.mubr.bf16.mxu0 0
  %869 = vmatmul.mubr.bf16.gmra.mrb[0].mxu0 %v696
  %v870 = vpop.f32.mrb[0].mxu0
  %v871 = vadd.f32 %v774, %v870
  %v872 = vpop.f32.mrb[0].mxu0
  %v873 = vpop.f32.mrb[0].mxu0
  %v874 = vadd.f32 %v777, %v873
  %v875 = vpop.f32.mrb[0].mxu0
  %876 = vmatprep.mubr.bf16.mxu0 0
  %877 = vmatmul.mubr.bf16.gmra.mrb[0].mxu0 %v699
  %v878 = vpop.f32.mrb[0].mxu0
  %v879 = vadd.f32 %v782, %v878
  %v880 = vpop.f32.mrb[0].mxu0
  %v881 = vpop.f32.mrb[0].mxu0
  %v882 = vadd.f32 %v785, %v881
  %v883 = vpop.f32.mrb[0].mxu0
  %884 = vmatprep.mubr.bf16.mxu0 0
  %885 = vmatmul.mubr.bf16.gmra.mrb[0].mxu0 %v702
  %v886 = vpop.f32.mrb[0].mxu0
  %v887 = vadd.f32 %v790, %v886
  %v888 = vpop.f32.mrb[0].mxu0
  %v889 = vpop.f32.mrb[0].mxu0
  %v890 = vadd.f32 %v793, %v889
  %v891 = vpop.f32.mrb[0].mxu0
  %892 = vmatprep.mubr.bf16.mxu0 0
  %893 = vmatmul.mubr.bf16.gmra.mrb[0].mxu0 %v705
  %v894 = vpop.f32.mrb[0].mxu0
  %v895 = vadd.f32 %v798, %v894
  %v896 = vpop.f32.mrb[0].mxu0
  %v897 = vpop.f32.mrb[0].mxu0
  %v898 = vadd.f32 %v801, %v897
  %v899 = vpop.f32.mrb[0].mxu0
  %900 = vdwg.mxu0
  %v901 = vmax.f32 %v468, %v839
  %v902 = vmax.f32 %v471, %v842
  %v903 = vmax.f32 %v476, %v847
  %v904 = vmax.f32 %v479, %v850
  %v905 = vmax.f32 %v484, %v855
  %v906 = vmax.f32 %v487, %v858
  %v907 = vmax.f32 %v492, %v863
  %v908 = vmax.f32 %v495, %v866
  %v909 = vmax.f32 %v500, %v871
  %v910 = vmax.f32 %v503, %v874
  %v911 = vmax.f32 %v508, %v879
  %v912 = vmax.f32 %v511, %v882
  %v913 = vmax.f32 %v516, %v887
  %v914 = vmax.f32 %v519, %v890
  %v915 = vmax.f32 %v524, %v895
  %v916 = vmax.f32 %v527, %v898
  %s917 = scalar_lea.vmem %s0, 384
  %v918 = vld [vmem:[%s917] sm:$0xff]
  %v919 = vld [vmem:[%s917 + $0x8] sm:$0xf]
  %v920 = vld [vmem:[%s917 + $0xc] sm:$0xff]
  %v921 = vld [vmem:[%s917 + $0x14] sm:$0xf]
  %v922 = vld [vmem:[%s917 + $0x18] sm:$0xff]
  %v923 = vld [vmem:[%s917 + $0x20] sm:$0xf]
  %v924 = vld [vmem:[%s917 + $0x24] sm:$0xff]
  %v925 = vld [vmem:[%s917 + $0x2c] sm:$0xf]
  %v926 = vld [vmem:[%s917 + $0x30] sm:$0xff]
  %v927 = vld [vmem:[%s917 + $0x38] sm:$0xf]
  %v928 = vld [vmem:[%s917 + $0x3c] sm:$0xff]
  %v929 = vld [vmem:[%s917 + $0x44] sm:$0xf]
  %v930 = vld [vmem:[%s917 + $0x48] sm:$0xff]
  %v931 = vld [vmem:[%s917 + $0x50] sm:$0xf]
  %v932 = vld [vmem:[%s917 + $0x54] sm:$0xff]
  %v933 = vld [vmem:[%s917 + $0x5c] sm:$0xf]
  %v934 = vld [vmem:[%s917 + $0x60] sm:$0xff]
  %v935 = vld [vmem:[%s917 + $0x68] sm:$0xf]
  %v936 = vld [vmem:[%s917 + $0x6c] sm:$0xff]
  %v937 = vld [vmem:[%s917 + $0x74] sm:$0xf]
  %v938 = vld [vmem:[%s917 + $0x78] sm:$0xff]
  %v939 = vld [vmem:[%s917 + $0x80] sm:$0xf]
  %v940 = vld [vmem:[%s917 + $0x84] sm:$0xff]
  %v941 = vld [vmem:[%s917 + $0x8c] sm:$0xf]
  %v942 = vld [vmem:[%s917 + $0x90] sm:$0xff]
  %v943 = vld [vmem:[%s917 + $0x98] sm:$0xf]
  %v944 = vld [vmem:[%s917 + $0x9c] sm:$0xff]
  %v945 = vld [vmem:[%s917 + $0xa4] sm:$0xf]
  %v946 = vld [vmem:[%s917 + $0xa8] sm:$0xff]
  %v947 = vld [vmem:[%s917 + $0xb0] sm:$0xf]
  %v948 = vld [vmem:[%s917 + $0xb4] sm:$0xff]
  %v949 = vld [vmem:[%s917 + $0xbc] sm:$0xf]
  %v982 = vunpack.c.l.b16 %v918
  %v983 = vunpack.c.h.b16 %v918
  %v984 = vunpack.c.l.b16 %v919
  %v985 = vunpack.c.l.b16 %v920
  %v986 = vunpack.c.h.b16 %v920
  %v987 = vunpack.c.l.b16 %v921
  %v988 = vunpack.c.l.b16 %v922
  %v989 = vunpack.c.h.b16 %v922
  %v990 = vunpack.c.l.b16 %v923
  %v991 = vunpack.c.l.b16 %v924
  %v992 = vunpack.c.h.b16 %v924
  %v993 = vunpack.c.l.b16 %v925
  %v994 = vunpack.c.l.b16 %v926
  %v995 = vunpack.c.h.b16 %v926
  %v996 = vunpack.c.l.b16 %v927
  %v997 = vunpack.c.l.b16 %v928
  %v998 = vunpack.c.h.b16 %v928
  %v999 = vunpack.c.l.b16 %v929
  %v1000 = vunpack.c.l.b16 %v930
  %v1001 = vunpack.c.h.b16 %v930
  %v1002 = vunpack.c.l.b16 %v931
  %v1003 = vunpack.c.l.b16 %v932
  %v1004 = vunpack.c.h.b16 %v932
  %v1005 = vunpack.c.l.b16 %v933
  %v1006 = vunpack.c.l.b16 %v934
  %v1007 = vunpack.c.h.b16 %v934
  %v1008 = vunpack.c.l.b16 %v935
  %v1009 = vunpack.c.l.b16 %v936
  %v1010 = vunpack.c.h.b16 %v936
  %v1011 = vunpack.c.l.b16 %v937
  %v1012 = vunpack.c.l.b16 %v938
  %v1013 = vunpack.c.h.b16 %v938
  %v1014 = vunpack.c.l.b16 %v939
  %v1015 = vunpack.c.l.b16 %v940
  %v1016 = vunpack.c.h.b16 %v940
  %v1017 = vunpack.c.l.b16 %v941
  %v1018 = vunpack.c.l.b16 %v942
  %v1019 = vunpack.c.h.b16 %v942
  %v1020 = vunpack.c.l.b16 %v943
  %v1021 = vunpack.c.l.b16 %v944
  %v1022 = vunpack.c.h.b16 %v944
  %v1023 = vunpack.c.l.b16 %v945
  %v1024 = vunpack.c.l.b16 %v946
  %v1025 = vunpack.c.h.b16 %v946
  %v1026 = vunpack.c.l.b16 %v947
  %v1027 = vunpack.c.l.b16 %v948
  %v1028 = vunpack.c.h.b16 %v948
  %v1029 = vunpack.c.l.b16 %v949
  %v1030 = vpack.c.b16 %v985, %v982
  %v1031 = vpack.c.b16 %v986, %v983
  %v1032 = vpack.c.b16 %v987, %v984
  %v1033 = vpack.c.b16 %v991, %v988
  %v1034 = vpack.c.b16 %v992, %v989
  %v1035 = vpack.c.b16 %v993, %v990
  %v1036 = vpack.c.b16 %v997, %v994
  %v1037 = vpack.c.b16 %v998, %v995
  %v1038 = vpack.c.b16 %v999, %v996
  %v1039 = vpack.c.b16 %v1003, %v1000
  %v1040 = vpack.c.b16 %v1004, %v1001
  %v1041 = vpack.c.b16 %v1005, %v1002
  %v1042 = vpack.c.b16 %v1009, %v1006
  %v1043 = vpack.c.b16 %v1010, %v1007
  %v1044 = vpack.c.b16 %v1011, %v1008
  %v1045 = vpack.c.b16 %v1015, %v1012
  %v1046 = vpack.c.b16 %v1016, %v1013
  %v1047 = vpack.c.b16 %v1017, %v1014
  %v1048 = vpack.c.b16 %v1021, %v1018
  %v1049 = vpack.c.b16 %v1022, %v1019
  %v1050 = vpack.c.b16 %v1023, %v1020
  %v1051 = vpack.c.b16 %v1027, %v1024
  %v1052 = vpack.c.b16 %v1028, %v1025
  %v1053 = vpack.c.b16 %v1029, %v1026
  %v1071 = vsel %vm311, %v1032, 0
  %v1074 = vsel %vm311, %v1035, 0
  %v1077 = vsel %vm311, %v1038, 0
  %v1080 = vsel %vm311, %v1041, 0
  %v1083 = vsel %vm311, %v1044, 0
  %v1086 = vsel %vm311, %v1047, 0
  %v1089 = vsel %vm311, %v1050, 0
  %v1092 = vsel %vm311, %v1053, 0
  %1094 = vmatprep.subr.bf16.mxu0 0
  %1095 = vmatpush1.bf16.msra.mxu0 %v275
  %1096 = vmatprep.subr.bf16.mxu0 0
  %1097 = vmatpush1.bf16.msra.mxu0 %v276
  %1098 = vmatprep.subr.bf16.mxu0 0
  %1099 = vmatpush1.bf16.msra.mxu0 %v277
  %1100 = vmatprep.subr.bf16.mxu0 0
  %1101 = vmatpush1.bf16.msra.mxu0 %v278
  %1102 = vmatprep.subr.bf16.mxu0 0
  %1103 = vmatpush1.bf16.msra.mxu0 %v279
  %1104 = vmatprep.subr.bf16.mxu0 0
  %1105 = vmatpush1.bf16.msra.mxu0 %v280
  %1106 = vmatprep.subr.bf16.mxu0 0
  %1107 = vmatpush1.bf16.msra.mxu0 %v281
  %1108 = vmatprep.subr.bf16.mxu0 0
  %1109 = vmatpush1.bf16.msra.mxu0 %v282
  %1110 = vmatprep.subr.bf16.mxu0 0
  %1111 = vmatpush1.bf16.msra.mxu0 %v283
  %1112 = vmatprep.subr.bf16.mxu0 0
  %1113 = vmatpush1.bf16.msra.mxu0 %v284
  %1114 = vmatprep.subr.bf16.mxu0 0
  %1115 = vmatpush1.bf16.msra.mxu0 %v285
  %1116 = vmatprep.subr.bf16.mxu0 0
  %1117 = vmatpush1.bf16.msra.mxu0 %v286
  %1118 = vmatprep.subr.bf16.mxu0 0
  %1119 = vmatpush1.bf16.msra.mxu0 %v287
  %1120 = vmatprep.subr.bf16.mxu0 0
  %1121 = vmatpush1.bf16.msra.mxu0 %v288
  %1122 = vmatprep.subr.bf16.mxu0 0
  %1123 = vmatpush1.bf16.msra.mxu0 %v289
  %1124 = vmatprep.subr.bf16.mxu0 0
  %1125 = vmatpush1.bf16.msra.mxu0 %v290
  %1126 = vmatprep.mubr.bf16.mxu0 %v1031
  %1127 = vmatmul.mubr.bf16.gmra.mrb[0].mxu0 %v1030
  %v1128 = vpop.f32.mrb[0].mxu0
  %v1129 = vadd.f32 0.0, %v1128
  %v1130 = vpop.f32.mrb[0].mxu0
  %v1131 = vpop.f32.mrb[0].mxu0
  %v1132 = vadd.f32 0.0, %v1131
  %v1133 = vpop.f32.mrb[0].mxu0
  %1134 = vmatprep.mubr.bf16.mxu0 %v1034
  %1135 = vmatmul.mubr.bf16.gmra.mrb[0].mxu0 %v1033
  %v1136 = vpop.f32.mrb[0].mxu0
  %v1137 = vadd.f32 0.0, %v1136
  %v1138 = vpop.f32.mrb[0].mxu0
  %v1139 = vpop.f32.mrb[0].mxu0
  %v1140 = vadd.f32 0.0, %v1139
  %v1141 = vpop.f32.mrb[0].mxu0
  %1142 = vmatprep.mubr.bf16.mxu0 %v1037
  %1143 = vmatmul.mubr.bf16.gmra.mrb[0].mxu0 %v1036
  %v1144 = vpop.f32.mrb[0].mxu0
  %v1145 = vadd.f32 0.0, %v1144
  %v1146 = vpop.f32.mrb[0].mxu0
  %v1147 = vpop.f32.mrb[0].mxu0
  %v1148 = vadd.f32 0.0, %v1147
  %v1149 = vpop.f32.mrb[0].mxu0
  %1150 = vmatprep.mubr.bf16.mxu0 %v1040
  %1151 = vmatmul.mubr.bf16.gmra.mrb[0].mxu0 %v1039
  %v1152 = vpop.f32.mrb[0].mxu0
  %v1153 = vadd.f32 0.0, %v1152
  %v1154 = vpop.f32.mrb[0].mxu0
  %v1155 = vpop.f32.mrb[0].mxu0
  %v1156 = vadd.f32 0.0, %v1155
  %v1157 = vpop.f32.mrb[0].mxu0
  %1158 = vmatprep.mubr.bf16.mxu0 %v1043
  %1159 = vmatmul.mubr.bf16.gmra.mrb[0].mxu0 %v1042
  %v1160 = vpop.f32.mrb[0].mxu0
  %v1161 = vadd.f32 0.0, %v1160
  %v1162 = vpop.f32.mrb[0].mxu0
  %v1163 = vpop.f32.mrb[0].mxu0
  %v1164 = vadd.f32 0.0, %v1163
  %v1165 = vpop.f32.mrb[0].mxu0
  %1166 = vmatprep.mubr.bf16.mxu0 %v1046
  %1167 = vmatmul.mubr.bf16.gmra.mrb[0].mxu0 %v1045
  %v1168 = vpop.f32.mrb[0].mxu0
  %v1169 = vadd.f32 0.0, %v1168
  %v1170 = vpop.f32.mrb[0].mxu0
  %v1171 = vpop.f32.mrb[0].mxu0
  %v1172 = vadd.f32 0.0, %v1171
  %v1173 = vpop.f32.mrb[0].mxu0
  %1174 = vmatprep.mubr.bf16.mxu0 %v1049
  %1175 = vmatmul.mubr.bf16.gmra.mrb[0].mxu0 %v1048
  %v1176 = vpop.f32.mrb[0].mxu0
  %v1177 = vadd.f32 0.0, %v1176
  %v1178 = vpop.f32.mrb[0].mxu0
  %v1179 = vpop.f32.mrb[0].mxu0
  %v1180 = vadd.f32 0.0, %v1179
  %v1181 = vpop.f32.mrb[0].mxu0
  %1182 = vmatprep.mubr.bf16.mxu0 %v1052
  %1183 = vmatmul.mubr.bf16.gmra.mrb[0].mxu0 %v1051
  %v1184 = vpop.f32.mrb[0].mxu0
  %v1185 = vadd.f32 0.0, %v1184
  %v1186 = vpop.f32.mrb[0].mxu0
  %v1187 = vpop.f32.mrb[0].mxu0
  %v1188 = vadd.f32 0.0, %v1187
  %v1189 = vpop.f32.mrb[0].mxu0
  %1190 = vdwg.mxu0
  %1191 = vmatprep.subr.bf16.mxu0 0
  %1192 = vmatpush1.bf16.msra.mxu0 %v291
  %1193 = vmatprep.subr.bf16.mxu0 0
  %1194 = vmatpush1.bf16.msra.mxu0 %v292
  %1195 = vmatprep.subr.bf16.mxu0 0
  %1196 = vmatpush1.bf16.msra.mxu0 0
  %1197 = vmatprep.subr.bf16.mxu0 0
  %1198 = vmatpush1.bf16.msra.mxu0 0
  %1199 = vmatprep.subr.bf16.mxu0 0
  %1200 = vmatpush1.bf16.msra.mxu0 0
  %1201 = vmatprep.subr.bf16.mxu0 0
  %1202 = vmatpush1.bf16.msra.mxu0 0
  %1203 = vmatprep.subr.bf16.mxu0 0
  %1204 = vmatpush1.bf16.msra.mxu0 0
  %1205 = vmatprep.subr.bf16.mxu0 0
  %1206 = vmatpush1.bf16.msra.mxu0 0
  %1207 = vmatprep.subr.bf16.mxu0 0
  %1208 = vmatpush1.bf16.msra.mxu0 0
  %1209 = vmatprep.subr.bf16.mxu0 0
  %1210 = vmatpush1.bf16.msra.mxu0 0
  %1211 = vmatprep.subr.bf16.mxu0 0
  %1212 = vmatpush1.bf16.msra.mxu0 0
  %1213 = vmatprep.subr.bf16.mxu0 0
  %1214 = vmatpush1.bf16.msra.mxu0 0
  %1215 = vmatprep.subr.bf16.mxu0 0
  %1216 = vmatpush1.bf16.msra.mxu0 0
  %1217 = vmatprep.subr.bf16.mxu0 0
  %1218 = vmatpush1.bf16.msra.mxu0 0
  %1219 = vmatprep.subr.bf16.mxu0 0
  %1220 = vmatpush1.bf16.msra.mxu0 0
  %1221 = vmatprep.subr.bf16.mxu0 0
  %1222 = vmatpush1.bf16.msra.mxu0 0
  %1223 = vmatprep.mubr.bf16.mxu0 0
  %1224 = vmatmul.mubr.bf16.gmra.mrb[0].mxu0 %v1071
  %v1225 = vpop.f32.mrb[0].mxu0
  %v1226 = vadd.f32 %v1129, %v1225
  %v1227 = vpop.f32.mrb[0].mxu0
  %v1228 = vpop.f32.mrb[0].mxu0
  %v1229 = vadd.f32 %v1132, %v1228
  %v1230 = vpop.f32.mrb[0].mxu0
  %1231 = vmatprep.mubr.bf16.mxu0 0
  %1232 = vmatmul.mubr.bf16.gmra.mrb[0].mxu0 %v1074
  %v1233 = vpop.f32.mrb[0].mxu0
  %v1234 = vadd.f32 %v1137, %v1233
  %v1235 = vpop.f32.mrb[0].mxu0
  %v1236 = vpop.f32.mrb[0].mxu0
  %v1237 = vadd.f32 %v1140, %v1236
  %v1238 = vpop.f32.mrb[0].mxu0
  %1239 = vmatprep.mubr.bf16.mxu0 0
  %1240 = vmatmul.mubr.bf16.gmra.mrb[0].mxu0 %v1077
  %v1241 = vpop.f32.mrb[0].mxu0
  %v1242 = vadd.f32 %v1145, %v1241
  %v1243 = vpop.f32.mrb[0].mxu0
  %v1244 = vpop.f32.mrb[0].mxu0
  %v1245 = vadd.f32 %v1148, %v1244
  %v1246 = vpop.f32.mrb[0].mxu0
  %1247 = vmatprep.mubr.bf16.mxu0 0
  %1248 = vmatmul.mubr.bf16.gmra.mrb[0].mxu0 %v1080
  %v1249 = vpop.f32.mrb[0].mxu0
  %v1250 = vadd.f32 %v1153, %v1249
  %v1251 = vpop.f32.mrb[0].mxu0
  %v1252 = vpop.f32.mrb[0].mxu0
  %v1253 = vadd.f32 %v1156, %v1252
  %v1254 = vpop.f32.mrb[0].mxu0
  %1255 = vmatprep.mubr.bf16.mxu0 0
  %1256 = vmatmul.mubr.bf16.gmra.mrb[0].mxu0 %v1083
  %v1257 = vpop.f32.mrb[0].mxu0
  %v1258 = vadd.f32 %v1161, %v1257
  %v1259 = vpop.f32.mrb[0].mxu0
  %v1260 = vpop.f32.mrb[0].mxu0
  %v1261 = vadd.f32 %v1164, %v1260
  %v1262 = vpop.f32.mrb[0].mxu0
  %1263 = vmatprep.mubr.bf16.mxu0 0
  %1264 = vmatmul.mubr.bf16.gmra.mrb[0].mxu0 %v1086
  %v1265 = vpop.f32.mrb[0].mxu0
  %v1266 = vadd.f32 %v1169, %v1265
  %v1267 = vpop.f32.mrb[0].mxu0
  %v1268 = vpop.f32.mrb[0].mxu0
  %v1269 = vadd.f32 %v1172, %v1268
  %v1270 = vpop.f32.mrb[0].mxu0
  %1271 = vmatprep.mubr.bf16.mxu0 0
  %1272 = vmatmul.mubr.bf16.gmra.mrb[0].mxu0 %v1089
  %v1273 = vpop.f32.mrb[0].mxu0
  %v1274 = vadd.f32 %v1177, %v1273
  %v1275 = vpop.f32.mrb[0].mxu0
  %v1276 = vpop.f32.mrb[0].mxu0
  %v1277 = vadd.f32 %v1180, %v1276
  %v1278 = vpop.f32.mrb[0].mxu0
  %1279 = vmatprep.mubr.bf16.mxu0 0
  %1280 = vmatmul.mubr.bf16.gmra.mrb[0].mxu0 %v1092
  %v1281 = vpop.f32.mrb[0].mxu0
  %v1282 = vadd.f32 %v1185, %v1281
  %v1283 = vpop.f32.mrb[0].mxu0
  %v1284 = vpop.f32.mrb[0].mxu0
  %v1285 = vadd.f32 %v1188, %v1284
  %v1286 = vpop.f32.mrb[0].mxu0
  %1287 = vdwg.mxu0
  %s1288 = scalar_lea.vmem %s0, 576
  %v1289 = vld [vmem:[%s1288] sm:$0xff]
  %v1290 = vld [vmem:[%s1288 + $0x8] sm:$0xf]
  %v1291 = vld [vmem:[%s1288 + $0xc] sm:$0xff]
  %v1292 = vld [vmem:[%s1288 + $0x14] sm:$0xf]
  %v1293 = vld [vmem:[%s1288 + $0x18] sm:$0xff]
  %v1294 = vld [vmem:[%s1288 + $0x20] sm:$0xf]
  %v1295 = vld [vmem:[%s1288 + $0x24] sm:$0xff]
  %v1296 = vld [vmem:[%s1288 + $0x2c] sm:$0xf]
  %v1297 = vld [vmem:[%s1288 + $0x30] sm:$0xff]
  %v1298 = vld [vmem:[%s1288 + $0x38] sm:$0xf]
  %v1299 = vld [vmem:[%s1288 + $0x3c] sm:$0xff]
  %v1300 = vld [vmem:[%s1288 + $0x44] sm:$0xf]
  %v1301 = vld [vmem:[%s1288 + $0x48] sm:$0xff]
  %v1302 = vld [vmem:[%s1288 + $0x50] sm:$0xf]
  %v1303 = vld [vmem:[%s1288 + $0x54] sm:$0xff]
  %v1304 = vld [vmem:[%s1288 + $0x5c] sm:$0xf]
  %v1305 = vld [vmem:[%s1288 + $0x60] sm:$0xff]
  %v1306 = vld [vmem:[%s1288 + $0x68] sm:$0xf]
  %v1307 = vld [vmem:[%s1288 + $0x6c] sm:$0xff]
  %v1308 = vld [vmem:[%s1288 + $0x74] sm:$0xf]
  %v1309 = vld [vmem:[%s1288 + $0x78] sm:$0xff]
  %v1310 = vld [vmem:[%s1288 + $0x80] sm:$0xf]
  %v1311 = vld [vmem:[%s1288 + $0x84] sm:$0xff]
  %v1312 = vld [vmem:[%s1288 + $0x8c] sm:$0xf]
  %v1313 = vld [vmem:[%s1288 + $0x90] sm:$0xff]
  %v1314 = vld [vmem:[%s1288 + $0x98] sm:$0xf]
  %v1315 = vld [vmem:[%s1288 + $0x9c] sm:$0xff]
  %v1316 = vld [vmem:[%s1288 + $0xa4] sm:$0xf]
  %v1317 = vld [vmem:[%s1288 + $0xa8] sm:$0xff]
  %v1318 = vld [vmem:[%s1288 + $0xb0] sm:$0xf]
  %v1319 = vld [vmem:[%s1288 + $0xb4] sm:$0xff]
  %v1320 = vld [vmem:[%s1288 + $0xbc] sm:$0xf]
  %v1353 = vunpack.c.l.b16 %v1289
  %v1354 = vunpack.c.h.b16 %v1289
  %v1355 = vunpack.c.l.b16 %v1290
  %v1356 = vunpack.c.l.b16 %v1291
  %v1357 = vunpack.c.h.b16 %v1291
  %v1358 = vunpack.c.l.b16 %v1292
  %v1359 = vunpack.c.l.b16 %v1293
  %v1360 = vunpack.c.h.b16 %v1293
  %v1361 = vunpack.c.l.b16 %v1294
  %v1362 = vunpack.c.l.b16 %v1295
  %v1363 = vunpack.c.h.b16 %v1295
  %v1364 = vunpack.c.l.b16 %v1296
  %v1365 = vunpack.c.l.b16 %v1297
  %v1366 = vunpack.c.h.b16 %v1297
  %v1367 = vunpack.c.l.b16 %v1298
  %v1368 = vunpack.c.l.b16 %v1299
  %v1369 = vunpack.c.h.b16 %v1299
  %v1370 = vunpack.c.l.b16 %v1300
  %v1371 = vunpack.c.l.b16 %v1301
  %v1372 = vunpack.c.h.b16 %v1301
  %v1373 = vunpack.c.l.b16 %v1302
  %v1374 = vunpack.c.l.b16 %v1303
  %v1375 = vunpack.c.h.b16 %v1303
  %v1376 = vunpack.c.l.b16 %v1304
  %v1377 = vunpack.c.l.b16 %v1305
  %v1378 = vunpack.c.h.b16 %v1305
  %v1379 = vunpack.c.l.b16 %v1306
  %v1380 = vunpack.c.l.b16 %v1307
  %v1381 = vunpack.c.h.b16 %v1307
  %v1382 = vunpack.c.l.b16 %v1308
  %v1383 = vunpack.c.l.b16 %v1309
  %v1384 = vunpack.c.h.b16 %v1309
  %v1385 = vunpack.c.l.b16 %v1310
  %v1386 = vunpack.c.l.b16 %v1311
  %v1387 = vunpack.c.h.b16 %v1311
  %v1388 = vunpack.c.l.b16 %v1312
  %v1389 = vunpack.c.l.b16 %v1313
  %v1390 = vunpack.c.h.b16 %v1313
  %v1391 = vunpack.c.l.b16 %v1314
  %v1392 = vunpack.c.l.b16 %v1315
  %v1393 = vunpack.c.h.b16 %v1315
  %v1394 = vunpack.c.l.b16 %v1316
  %v1395 = vunpack.c.l.b16 %v1317
  %v1396 = vunpack.c.h.b16 %v1317
  %v1397 = vunpack.c.l.b16 %v1318
  %v1398 = vunpack.c.l.b16 %v1319
  %v1399 = vunpack.c.h.b16 %v1319
  %v1400 = vunpack.c.l.b16 %v1320
  %v1401 = vpack.c.b16 %v1356, %v1353
  %v1402 = vpack.c.b16 %v1357, %v1354
  %v1403 = vpack.c.b16 %v1358, %v1355
  %v1404 = vpack.c.b16 %v1362, %v1359
  %v1405 = vpack.c.b16 %v1363, %v1360
  %v1406 = vpack.c.b16 %v1364, %v1361
  %v1407 = vpack.c.b16 %v1368, %v1365
  %v1408 = vpack.c.b16 %v1369, %v1366
  %v1409 = vpack.c.b16 %v1370, %v1367
  %v1410 = vpack.c.b16 %v1374, %v1371
  %v1411 = vpack.c.b16 %v1375, %v1372
  %v1412 = vpack.c.b16 %v1376, %v1373
  %v1413 = vpack.c.b16 %v1380, %v1377
  %v1414 = vpack.c.b16 %v1381, %v1378
  %v1415 = vpack.c.b16 %v1382, %v1379
  %v1416 = vpack.c.b16 %v1386, %v1383
  %v1417 = vpack.c.b16 %v1387, %v1384
  %v1418 = vpack.c.b16 %v1388, %v1385
  %v1419 = vpack.c.b16 %v1392, %v1389
  %v1420 = vpack.c.b16 %v1393, %v1390
  %v1421 = vpack.c.b16 %v1394, %v1391
  %v1422 = vpack.c.b16 %v1398, %v1395
  %v1423 = vpack.c.b16 %v1399, %v1396
  %v1424 = vpack.c.b16 %v1400, %v1397
  %v1442 = vsel %vm311, %v1403, 0
  %v1445 = vsel %vm311, %v1406, 0
  %v1448 = vsel %vm311, %v1409, 0
  %v1451 = vsel %vm311, %v1412, 0
  %v1454 = vsel %vm311, %v1415, 0
  %v1457 = vsel %vm311, %v1418, 0
  %v1460 = vsel %vm311, %v1421, 0
  %v1463 = vsel %vm311, %v1424, 0
  %1465 = vmatprep.subr.bf16.mxu0 0
  %1466 = vmatpush1.bf16.msra.mxu0 %v275
  %1467 = vmatprep.subr.bf16.mxu0 0
  %1468 = vmatpush1.bf16.msra.mxu0 %v276
  %1469 = vmatprep.subr.bf16.mxu0 0
  %1470 = vmatpush1.bf16.msra.mxu0 %v277
  %1471 = vmatprep.subr.bf16.mxu0 0
  %1472 = vmatpush1.bf16.msra.mxu0 %v278
  %1473 = vmatprep.subr.bf16.mxu0 0
  %1474 = vmatpush1.bf16.msra.mxu0 %v279
  %1475 = vmatprep.subr.bf16.mxu0 0
  %1476 = vmatpush1.bf16.msra.mxu0 %v280
  %1477 = vmatprep.subr.bf16.mxu0 0
  %1478 = vmatpush1.bf16.msra.mxu0 %v281
  %1479 = vmatprep.subr.bf16.mxu0 0
  %1480 = vmatpush1.bf16.msra.mxu0 %v282
  %1481 = vmatprep.subr.bf16.mxu0 0
  %1482 = vmatpush1.bf16.msra.mxu0 %v283
  %1483 = vmatprep.subr.bf16.mxu0 0
  %1484 = vmatpush1.bf16.msra.mxu0 %v284
  %1485 = vmatprep.subr.bf16.mxu0 0
  %1486 = vmatpush1.bf16.msra.mxu0 %v285
  %1487 = vmatprep.subr.bf16.mxu0 0
  %1488 = vmatpush1.bf16.msra.mxu0 %v286
  %1489 = vmatprep.subr.bf16.mxu0 0
  %1490 = vmatpush1.bf16.msra.mxu0 %v287
  %1491 = vmatprep.subr.bf16.mxu0 0
  %1492 = vmatpush1.bf16.msra.mxu0 %v288
  %1493 = vmatprep.subr.bf16.mxu0 0
  %1494 = vmatpush1.bf16.msra.mxu0 %v289
  %1495 = vmatprep.subr.bf16.mxu0 0
  %1496 = vmatpush1.bf16.msra.mxu0 %v290
  %1497 = vmatprep.mubr.bf16.mxu0 %v1402
  %1498 = vmatmul.mubr.bf16.gmra.mrb[0].mxu0 %v1401
  %v1499 = vpop.f32.mrb[0].mxu0
  %v1500 = vadd.f32 0.0, %v1499
  %v1501 = vpop.f32.mrb[0].mxu0
  %v1502 = vpop.f32.mrb[0].mxu0
  %v1503 = vadd.f32 0.0, %v1502
  %v1504 = vpop.f32.mrb[0].mxu0
  %1505 = vmatprep.mubr.bf16.mxu0 %v1405
  %1506 = vmatmul.mubr.bf16.gmra.mrb[0].mxu0 %v1404
  %v1507 = vpop.f32.mrb[0].mxu0
  %v1508 = vadd.f32 0.0, %v1507
  %v1509 = vpop.f32.mrb[0].mxu0
  %v1510 = vpop.f32.mrb[0].mxu0
  %v1511 = vadd.f32 0.0, %v1510
  %v1512 = vpop.f32.mrb[0].mxu0
  %1513 = vmatprep.mubr.bf16.mxu0 %v1408
  %1514 = vmatmul.mubr.bf16.gmra.mrb[0].mxu0 %v1407
  %v1515 = vpop.f32.mrb[0].mxu0
  %v1516 = vadd.f32 0.0, %v1515
  %v1517 = vpop.f32.mrb[0].mxu0
  %v1518 = vpop.f32.mrb[0].mxu0
  %v1519 = vadd.f32 0.0, %v1518
  %v1520 = vpop.f32.mrb[0].mxu0
  %1521 = vmatprep.mubr.bf16.mxu0 %v1411
  %1522 = vmatmul.mubr.bf16.gmra.mrb[0].mxu0 %v1410
  %v1523 = vpop.f32.mrb[0].mxu0
  %v1524 = vadd.f32 0.0, %v1523
  %v1525 = vpop.f32.mrb[0].mxu0
  %v1526 = vpop.f32.mrb[0].mxu0
  %v1527 = vadd.f32 0.0, %v1526
  %v1528 = vpop.f32.mrb[0].mxu0
  %1529 = vmatprep.mubr.bf16.mxu0 %v1414
  %1530 = vmatmul.mubr.bf16.gmra.mrb[0].mxu0 %v1413
  %v1531 = vpop.f32.mrb[0].mxu0
  %v1532 = vadd.f32 0.0, %v1531
  %v1533 = vpop.f32.mrb[0].mxu0
  %v1534 = vpop.f32.mrb[0].mxu0
  %v1535 = vadd.f32 0.0, %v1534
  %v1536 = vpop.f32.mrb[0].mxu0
  %1537 = vmatprep.mubr.bf16.mxu0 %v1417
  %1538 = vmatmul.mubr.bf16.gmra.mrb[0].mxu0 %v1416
  %v1539 = vpop.f32.mrb[0].mxu0
  %v1540 = vadd.f32 0.0, %v1539
  %v1541 = vpop.f32.mrb[0].mxu0
  %v1542 = vpop.f32.mrb[0].mxu0
  %v1543 = vadd.f32 0.0, %v1542
  %v1544 = vpop.f32.mrb[0].mxu0
  %1545 = vmatprep.mubr.bf16.mxu0 %v1420
  %1546 = vmatmul.mubr.bf16.gmra.mrb[0].mxu0 %v1419
  %v1547 = vpop.f32.mrb[0].mxu0
  %v1548 = vadd.f32 0.0, %v1547
  %v1549 = vpop.f32.mrb[0].mxu0
  %v1550 = vpop.f32.mrb[0].mxu0
  %v1551 = vadd.f32 0.0, %v1550
  %v1552 = vpop.f32.mrb[0].mxu0
  %1553 = vmatprep.mubr.bf16.mxu0 %v1423
  %1554 = vmatmul.mubr.bf16.gmra.mrb[0].mxu0 %v1422
  %v1555 = vpop.f32.mrb[0].mxu0
  %v1556 = vadd.f32 0.0, %v1555
  %v1557 = vpop.f32.mrb[0].mxu0
  %v1558 = vpop.f32.mrb[0].mxu0
  %v1559 = vadd.f32 0.0, %v1558
  %v1560 = vpop.f32.mrb[0].mxu0
  %1561 = vdwg.mxu0
  %1562 = vmatprep.subr.bf16.mxu0 0
  %1563 = vmatpush1.bf16.msra.mxu0 %v291
  %1564 = vmatprep.subr.bf16.mxu0 0
  %1565 = vmatpush1.bf16.msra.mxu0 %v292
  %1566 = vmatprep.subr.bf16.mxu0 0
  %1567 = vmatpush1.bf16.msra.mxu0 0
  %1568 = vmatprep.subr.bf16.mxu0 0
  %1569 = vmatpush1.bf16.msra.mxu0 0
  %1570 = vmatprep.subr.bf16.mxu0 0
  %1571 = vmatpush1.bf16.msra.mxu0 0
  %1572 = vmatprep.subr.bf16.mxu0 0
  %1573 = vmatpush1.bf16.msra.mxu0 0
  %1574 = vmatprep.subr.bf16.mxu0 0
  %1575 = vmatpush1.bf16.msra.mxu0 0
  %1576 = vmatprep.subr.bf16.mxu0 0
  %1577 = vmatpush1.bf16.msra.mxu0 0
  %1578 = vmatprep.subr.bf16.mxu0 0
  %1579 = vmatpush1.bf16.msra.mxu0 0
  %1580 = vmatprep.subr.bf16.mxu0 0
  %1581 = vmatpush1.bf16.msra.mxu0 0
  %1582 = vmatprep.subr.bf16.mxu0 0
  %1583 = vmatpush1.bf16.msra.mxu0 0
  %1584 = vmatprep.subr.bf16.mxu0 0
  %1585 = vmatpush1.bf16.msra.mxu0 0
  %1586 = vmatprep.subr.bf16.mxu0 0
  %1587 = vmatpush1.bf16.msra.mxu0 0
  %1588 = vmatprep.subr.bf16.mxu0 0
  %1589 = vmatpush1.bf16.msra.mxu0 0
  %1590 = vmatprep.subr.bf16.mxu0 0
  %1591 = vmatpush1.bf16.msra.mxu0 0
  %1592 = vmatprep.subr.bf16.mxu0 0
  %1593 = vmatpush1.bf16.msra.mxu0 0
  %1594 = vmatprep.mubr.bf16.mxu0 0
  %1595 = vmatmul.mubr.bf16.gmra.mrb[0].mxu0 %v1442
  %v1596 = vpop.f32.mrb[0].mxu0
  %v1597 = vadd.f32 %v1500, %v1596
  %v1598 = vpop.f32.mrb[0].mxu0
  %v1599 = vpop.f32.mrb[0].mxu0
  %v1600 = vadd.f32 %v1503, %v1599
  %v1601 = vpop.f32.mrb[0].mxu0
  %1602 = vmatprep.mubr.bf16.mxu0 0
  %1603 = vmatmul.mubr.bf16.gmra.mrb[0].mxu0 %v1445
  %v1604 = vpop.f32.mrb[0].mxu0
  %v1605 = vadd.f32 %v1508, %v1604
  %v1606 = vpop.f32.mrb[0].mxu0
  %v1607 = vpop.f32.mrb[0].mxu0
  %v1608 = vadd.f32 %v1511, %v1607
  %v1609 = vpop.f32.mrb[0].mxu0
  %1610 = vmatprep.mubr.bf16.mxu0 0
  %1611 = vmatmul.mubr.bf16.gmra.mrb[0].mxu0 %v1448
  %v1612 = vpop.f32.mrb[0].mxu0
  %v1613 = vadd.f32 %v1516, %v1612
  %v1614 = vpop.f32.mrb[0].mxu0
  %v1615 = vpop.f32.mrb[0].mxu0
  %v1616 = vadd.f32 %v1519, %v1615
  %v1617 = vpop.f32.mrb[0].mxu0
  %1618 = vmatprep.mubr.bf16.mxu0 0
  %1619 = vmatmul.mubr.bf16.gmra.mrb[0].mxu0 %v1451
  %v1620 = vpop.f32.mrb[0].mxu0
  %v1621 = vadd.f32 %v1524, %v1620
  %v1622 = vpop.f32.mrb[0].mxu0
  %v1623 = vpop.f32.mrb[0].mxu0
  %v1624 = vadd.f32 %v1527, %v1623
  %v1625 = vpop.f32.mrb[0].mxu0
  %1626 = vmatprep.mubr.bf16.mxu0 0
  %1627 = vmatmul.mubr.bf16.gmra.mrb[0].mxu0 %v1454
  %v1628 = vpop.f32.mrb[0].mxu0
  %v1629 = vadd.f32 %v1532, %v1628
  %v1630 = vpop.f32.mrb[0].mxu0
  %v1631 = vpop.f32.mrb[0].mxu0
  %v1632 = vadd.f32 %v1535, %v1631
  %v1633 = vpop.f32.mrb[0].mxu0
  %1634 = vmatprep.mubr.bf16.mxu0 0
  %1635 = vmatmul.mubr.bf16.gmra.mrb[0].mxu0 %v1457
  %v1636 = vpop.f32.mrb[0].mxu0
  %v1637 = vadd.f32 %v1540, %v1636
  %v1638 = vpop.f32.mrb[0].mxu0
  %v1639 = vpop.f32.mrb[0].mxu0
  %v1640 = vadd.f32 %v1543, %v1639
  %v1641 = vpop.f32.mrb[0].mxu0
  %1642 = vmatprep.mubr.bf16.mxu0 0
  %1643 = vmatmul.mubr.bf16.gmra.mrb[0].mxu0 %v1460
  %v1644 = vpop.f32.mrb[0].mxu0
  %v1645 = vadd.f32 %v1548, %v1644
  %v1646 = vpop.f32.mrb[0].mxu0
  %v1647 = vpop.f32.mrb[0].mxu0
  %v1648 = vadd.f32 %v1551, %v1647
  %v1649 = vpop.f32.mrb[0].mxu0
  %1650 = vmatprep.mubr.bf16.mxu0 0
  %1651 = vmatmul.mubr.bf16.gmra.mrb[0].mxu0 %v1463
  %v1652 = vpop.f32.mrb[0].mxu0
  %v1653 = vadd.f32 %v1556, %v1652
  %v1654 = vpop.f32.mrb[0].mxu0
  %v1655 = vpop.f32.mrb[0].mxu0
  %v1656 = vadd.f32 %v1559, %v1655
  %v1657 = vpop.f32.mrb[0].mxu0
  %1658 = vdwg.mxu0
  %v1659 = vmax.f32 %v1226, %v1597
  %v1660 = vmax.f32 %v1229, %v1600
  %v1661 = vmax.f32 %v1234, %v1605
  %v1662 = vmax.f32 %v1237, %v1608
  %v1663 = vmax.f32 %v1242, %v1613
  %v1664 = vmax.f32 %v1245, %v1616
  %v1665 = vmax.f32 %v1250, %v1621
  %v1666 = vmax.f32 %v1253, %v1624
  %v1667 = vmax.f32 %v1258, %v1629
  %v1668 = vmax.f32 %v1261, %v1632
  %v1669 = vmax.f32 %v1266, %v1637
  %v1670 = vmax.f32 %v1269, %v1640
  %v1671 = vmax.f32 %v1274, %v1645
  %v1672 = vmax.f32 %v1277, %v1648
  %v1673 = vmax.f32 %v1282, %v1653
  %v1674 = vmax.f32 %v1285, %v1656
  %v1675 = vmax.f32 %v901, %v1659
  %v1676 = vmax.f32 %v902, %v1660
  %v1677 = vmax.f32 %v903, %v1661
  %v1678 = vmax.f32 %v904, %v1662
  %v1679 = vmax.f32 %v905, %v1663
  %v1680 = vmax.f32 %v906, %v1664
  %v1681 = vmax.f32 %v907, %v1665
  %v1682 = vmax.f32 %v908, %v1666
  %v1683 = vmax.f32 %v909, %v1667
  %v1684 = vmax.f32 %v910, %v1668
  %v1685 = vmax.f32 %v911, %v1669
  %v1686 = vmax.f32 %v912, %v1670
  %v1687 = vmax.f32 %v913, %v1671
  %v1688 = vmax.f32 %v914, %v1672
  %v1689 = vmax.f32 %v915, %v1673
  %v1690 = vmax.f32 %v916, %v1674
  %v1691 = vld [vmem:[%s2] sm:$0x1]
  %v1693 = vlaneseq
  %v1694 = vshrl.u32 %v1693, 7
  %v1695 = vsub.s32 0, %v1694
  %v1696 = vrot.slane %v1691, %v1695
  %v1698 = vadd.f32 %v1675, %v1696
  %v1699 = vadd.f32 %v1676, %v1696
  %v1700 = vadd.f32 %v1677, %v1696
  %v1701 = vadd.f32 %v1678, %v1696
  %v1702 = vadd.f32 %v1679, %v1696
  %v1703 = vadd.f32 %v1680, %v1696
  %v1704 = vadd.f32 %v1681, %v1696
  %v1705 = vadd.f32 %v1682, %v1696
  %v1706 = vadd.f32 %v1683, %v1696
  %v1707 = vadd.f32 %v1684, %v1696
  %v1708 = vadd.f32 %v1685, %v1696
  %v1709 = vadd.f32 %v1686, %v1696
  %v1710 = vadd.f32 %v1687, %v1696
  %v1711 = vadd.f32 %v1688, %v1696
  %v1712 = vadd.f32 %v1689, %v1696
  %v1713 = vadd.f32 %v1690, %v1696
  %vm1714 = vcmp.ge.f32.partialorder %v1698, 0.0
  %vm1715 = vcmp.ge.f32.partialorder %v1699, 0.0
  %vm1716 = vcmp.ge.f32.partialorder %v1700, 0.0
  %vm1717 = vcmp.ge.f32.partialorder %v1701, 0.0
  %vm1718 = vcmp.ge.f32.partialorder %v1702, 0.0
  %vm1719 = vcmp.ge.f32.partialorder %v1703, 0.0
  %vm1720 = vcmp.ge.f32.partialorder %v1704, 0.0
  %vm1721 = vcmp.ge.f32.partialorder %v1705, 0.0
  %vm1722 = vcmp.ge.f32.partialorder %v1706, 0.0
  %vm1723 = vcmp.ge.f32.partialorder %v1707, 0.0
  %vm1724 = vcmp.ge.f32.partialorder %v1708, 0.0
  %vm1725 = vcmp.ge.f32.partialorder %v1709, 0.0
  %vm1726 = vcmp.ge.f32.partialorder %v1710, 0.0
  %vm1727 = vcmp.ge.f32.partialorder %v1711, 0.0
  %vm1728 = vcmp.ge.f32.partialorder %v1712, 0.0
  %vm1729 = vcmp.ge.f32.partialorder %v1713, 0.0
  %v1730 = vmul.f32 %v1698, 0.1
  %v1731 = vmul.f32 %v1699, 0.1
  %v1732 = vmul.f32 %v1700, 0.1
  %v1733 = vmul.f32 %v1701, 0.1
  %v1734 = vmul.f32 %v1702, 0.1
  %v1735 = vmul.f32 %v1703, 0.1
  %v1736 = vmul.f32 %v1704, 0.1
  %v1737 = vmul.f32 %v1705, 0.1
  %v1738 = vmul.f32 %v1706, 0.1
  %v1739 = vmul.f32 %v1707, 0.1
  %v1740 = vmul.f32 %v1708, 0.1
  %v1741 = vmul.f32 %v1709, 0.1
  %v1742 = vmul.f32 %v1710, 0.1
  %v1743 = vmul.f32 %v1711, 0.1
  %v1744 = vmul.f32 %v1712, 0.1
  %v1745 = vmul.f32 %v1713, 0.1
  %v1746 = vsel %vm1714, %v1698, %v1730
  %v1747 = vsel %vm1715, %v1699, %v1731
  %v1748 = vsel %vm1716, %v1700, %v1732
  %v1749 = vsel %vm1717, %v1701, %v1733
  %v1750 = vsel %vm1718, %v1702, %v1734
  %v1751 = vsel %vm1719, %v1703, %v1735
  %v1752 = vsel %vm1720, %v1704, %v1736
  %v1753 = vsel %vm1721, %v1705, %v1737
  %v1754 = vsel %vm1722, %v1706, %v1738
  %v1755 = vsel %vm1723, %v1707, %v1739
  %v1756 = vsel %vm1724, %v1708, %v1740
  %v1757 = vsel %vm1725, %v1709, %v1741
  %v1758 = vsel %vm1726, %v1710, %v1742
  %v1759 = vsel %vm1727, %v1711, %v1743
  %v1760 = vsel %vm1728, %v1712, %v1744
  %v1761 = vsel %vm1729, %v1713, %v1745
  %1762 = vst.msk [vmem:[%s3] sm:$0xff] %vm311, %v1746
  %1763 = vst.msk [vmem:[%s3 + $0x8] sm:$0xff] %vm311, %v1747
  %1764 = vst.msk [vmem:[%s3 + $0x10] sm:$0xff] %vm311, %v1748
  %1765 = vst.msk [vmem:[%s3 + $0x18] sm:$0xff] %vm311, %v1749
  %1766 = vst.msk [vmem:[%s3 + $0x20] sm:$0xff] %vm311, %v1750
  %1767 = vst.msk [vmem:[%s3 + $0x28] sm:$0xff] %vm311, %v1751
  %1768 = vst.msk [vmem:[%s3 + $0x30] sm:$0xff] %vm311, %v1752
  %1769 = vst.msk [vmem:[%s3 + $0x38] sm:$0xff] %vm311, %v1753
  %1770 = vst.msk [vmem:[%s3 + $0x40] sm:$0xff] %vm311, %v1754
  %1771 = vst.msk [vmem:[%s3 + $0x48] sm:$0xff] %vm311, %v1755
  %1772 = vst.msk [vmem:[%s3 + $0x50] sm:$0xff] %vm311, %v1756
  %1773 = vst.msk [vmem:[%s3 + $0x58] sm:$0xff] %vm311, %v1757
  %1774 = vst.msk [vmem:[%s3 + $0x60] sm:$0xff] %vm311, %v1758
  %1775 = vst.msk [vmem:[%s3 + $0x68] sm:$0xff] %vm311, %v1759
  %1776 = vst.msk [vmem:[%s3 + $0x70] sm:$0xff] %vm311, %v1760
  %1777 = vst.msk [vmem:[%s3 + $0x78] sm:$0xff] %vm311, %v1761
  // Predicated region
  $region14: #{unet_decoder.12} parent=0 // pred_check
    _
  $region15: #{unet_decoder.12} parent=0 // pred_check_branch
    %1779 = sbr.rel (0) target = $region17
  $region16: #{unet_decoder.12} parent=0 // pred_region
    _
  $region17: #{unet_decoder.12} parent=0 // pred_fallthru
    _
  // Predicated region
  $region18: #{unet_decoder.12} parent=0 // pred_check
    _
  $region19: #{unet_decoder.12} parent=0 // pred_check_branch
    %1781 = sbr.rel (0) target = $region21
  $region20: #{unet_decoder.12} parent=0 // pred_region
    _
  $region21: #{unet_decoder.12} parent=0 // pred_fallthru
    _

// kernel: unet_decoder.13
$region0: #{unet_decoder.13}
  #allocation0 [shape = 'u32[]', space=smem, size = 0x4, offset = 0x4, fixed_abs, tag = 'smem constant byte address 0x4 - core index']
  #allocation1 [shape = 'u32[144,128]{1,0:T(1,128)}', space=vmem, size = 0x12000, scoped, tag = 'internal scratch']
  %s0 = inlined_call_operand.vmem [shape: bf16[128,800], index: 0, kind: input, shape index: {}]
  %s1 = inlined_call_operand.vmem [shape: bf16[800,32], index: 1, kind: input, shape index: {}]
  %s2 = inlined_call_operand.vmem [shape: f32[1,32], index: 2, kind: input, shape index: {}]
  %s3 = inlined_call_operand.vmem [shape: f32[128,32], index: 3, kind: output, shape index: {}]
  %s4 = sld [smem:[#allocation0]]
  $region22: #{unet_decoder.13} parent=0
    _
  %s6 = ssub.s32 1, %s4
  %s7 = scalar_select 0, %s6, %s4
  // Predicated region
  $region2: #{unet_decoder.13} parent=0 // pred_check
    _
  $region3: #{unet_decoder.13} parent=0 // pred_check_branch
    %9 = sbr.rel (0) target = $region5
  $region4: #{unet_decoder.13} parent=0 // pred_region
    _
  $region5: #{unet_decoder.13} parent=0 // pred_fallthru
    _
  // Predicated region
  $region6: #{unet_decoder.13} parent=0 // pred_check
    _
  $region7: #{unet_decoder.13} parent=0 // pred_check_branch
    %11 = sbr.rel (0) target = $region9
  $region8: #{unet_decoder.13} parent=0 // pred_region
    _
  $region9: #{unet_decoder.13} parent=0 // pred_fallthru
    _
  // Predicated region
  $region10: #{unet_decoder.13} parent=0 // pred_check
    _
  $region11: #{unet_decoder.13} parent=0 // pred_check_branch
    %13 = sbr.rel (0) target = $region13
  $region12: #{unet_decoder.13} parent=0 // pred_region
    _
  $region13: #{unet_decoder.13} parent=0 // pred_fallthru
    _
  %v15 = vld [vmem:[%s0] sm:$0xff]
  %v16 = vld [vmem:[%s0 + $0x8] sm:$0xff]
  %v17 = vld [vmem:[%s0 + $0x10] sm:$0xff]
  %v18 = vld [vmem:[%s0 + $0x18] sm:$0xf]
  %v19 = vld [vmem:[%s0 + $0x1c] sm:$0xff]
  %v20 = vld [vmem:[%s0 + $0x24] sm:$0xff]
  %v21 = vld [vmem:[%s0 + $0x2c] sm:$0xff]
  %v22 = vld [vmem:[%s0 + $0x34] sm:$0xf]
  %v23 = vld [vmem:[%s0 + $0x38] sm:$0xff]
  %v24 = vld [vmem:[%s0 + $0x40] sm:$0xff]
  %v25 = vld [vmem:[%s0 + $0x48] sm:$0xff]
  %v26 = vld [vmem:[%s0 + $0x50] sm:$0xf]
  %v27 = vld [vmem:[%s0 + $0x54] sm:$0xff]
  %v28 = vld [vmem:[%s0 + $0x5c] sm:$0xff]
  %v29 = vld [vmem:[%s0 + $0x64] sm:$0xff]
  %v30 = vld [vmem:[%s0 + $0x6c] sm:$0xf]
  %v31 = vld [vmem:[%s0 + $0x70] sm:$0xff]
  %v32 = vld [vmem:[%s0 + $0x78] sm:$0xff]
  %v33 = vld [vmem:[%s0 + $0x80] sm:$0xff]
  %v34 = vld [vmem:[%s0 + $0x88] sm:$0xf]
  %v35 = vld [vmem:[%s0 + $0x8c] sm:$0xff]
  %v36 = vld [vmem:[%s0 + $0x94] sm:$0xff]
  %v37 = vld [vmem:[%s0 + $0x9c] sm:$0xff]
  %v38 = vld [vmem:[%s0 + $0xa4] sm:$0xf]
  %v39 = vld [vmem:[%s0 + $0xa8] sm:$0xff]
  %v40 = vld [vmem:[%s0 + $0xb0] sm:$0xff]
  %v41 = vld [vmem:[%s0 + $0xb8] sm:$0xff]
  %v42 = vld [vmem:[%s0 + $0xc0] sm:$0xf]
  %v43 = vld [vmem:[%s0 + $0xc4] sm:$0xff]
  %v44 = vld [vmem:[%s0 + $0xcc] sm:$0xff]
  %v45 = vld [vmem:[%s0 + $0xd4] sm:$0xff]
  %v46 = vld [vmem:[%s0 + $0xdc] sm:$0xf]
  %v47 = vld [vmem:[%s0 + $0xe0] sm:$0xff]
  %v48 = vld [vmem:[%s0 + $0xe8] sm:$0xff]
  %v49 = vld [vmem:[%s0 + $0xf0] sm:$0xff]
  %v50 = vld [vmem:[%s0 + $0xf8] sm:$0xf]
  %v51 = vld [vmem:[%s0 + $0xfc] sm:$0xff]
  %v52 = vld [vmem:[%s0 + $0x104] sm:$0xff]
  %v53 = vld [vmem:[%s0 + $0x10c] sm:$0xff]
  %v54 = vld [vmem:[%s0 + $0x114] sm:$0xf]
  %v55 = vld [vmem:[%s0 + $0x118] sm:$0xff]
  %v56 = vld [vmem:[%s0 + $0x120] sm:$0xff]
  %v57 = vld [vmem:[%s0 + $0x128] sm:$0xff]
  %v58 = vld [vmem:[%s0 + $0x130] sm:$0xf]
  %v59 = vld [vmem:[%s0 + $0x134] sm:$0xff]
  %v60 = vld [vmem:[%s0 + $0x13c] sm:$0xff]
  %v61 = vld [vmem:[%s0 + $0x144] sm:$0xff]
  %v62 = vld [vmem:[%s0 + $0x14c] sm:$0xf]
  %v63 = vld [vmem:[%s0 + $0x150] sm:$0xff]
  %v64 = vld [vmem:[%s0 + $0x158] sm:$0xff]
  %v65 = vld [vmem:[%s0 + $0x160] sm:$0xff]
  %v66 = vld [vmem:[%s0 + $0x168] sm:$0xf]
  %v67 = vld [vmem:[%s0 + $0x16c] sm:$0xff]
  %v68 = vld [vmem:[%s0 + $0x174] sm:$0xff]
  %v69 = vld [vmem:[%s0 + $0x17c] sm:$0xff]
  %v70 = vld [vmem:[%s0 + $0x184] sm:$0xf]
  %v71 = vld [vmem:[%s0 + $0x188] sm:$0xff]
  %v72 = vld [vmem:[%s0 + $0x190] sm:$0xff]
  %v73 = vld [vmem:[%s0 + $0x198] sm:$0xff]
  %v74 = vld [vmem:[%s0 + $0x1a0] sm:$0xf]
  %v75 = vld [vmem:[%s0 + $0x1a4] sm:$0xff]
  %v76 = vld [vmem:[%s0 + $0x1ac] sm:$0xff]
  %v77 = vld [vmem:[%s0 + $0x1b4] sm:$0xff]
  %v78 = vld [vmem:[%s0 + $0x1bc] sm:$0xf]
  %v79 = vld [vmem:[%s1] sm:$0xf]
  %v80 = vld [vmem:[%s1 + $0x4] sm:$0xf]
  %v81 = vld [vmem:[%s1 + $0x8] sm:$0xf]
  %v82 = vld [vmem:[%s1 + $0xc] sm:$0xf]
  %v83 = vld [vmem:[%s1 + $0x10] sm:$0xf]
  %v84 = vld [vmem:[%s1 + $0x14] sm:$0xf]
  %v85 = vld [vmem:[%s1 + $0x18] sm:$0xf]
  %v86 = vld [vmem:[%s1 + $0x1c] sm:$0xf]
  %v87 = vld [vmem:[%s1 + $0x20] sm:$0xf]
  %v88 = vld [vmem:[%s1 + $0x24] sm:$0xf]
  %v89 = vld [vmem:[%s1 + $0x28] sm:$0xf]
  %v90 = vld [vmem:[%s1 + $0x2c] sm:$0xf]
  %v91 = vld [vmem:[%s1 + $0x30] sm:$0xf]
  %v92 = vld [vmem:[%s1 + $0x34] sm:$0xf]
  %v93 = vld [vmem:[%s1 + $0x38] sm:$0xf]
  %v94 = vld [vmem:[%s1 + $0x3c] sm:$0xf]
  %v95 = vld [vmem:[%s1 + $0x40] sm:$0xf]
  %v96 = vld [vmem:[%s1 + $0x44] sm:$0xf]
  %v97 = vld [vmem:[%s1 + $0x48] sm:$0xf]
  %v98 = vld [vmem:[%s1 + $0x4c] sm:$0xf]
  %v99 = vld [vmem:[%s1 + $0x50] sm:$0xf]
  %v100 = vld [vmem:[%s1 + $0x54] sm:$0xf]
  %v101 = vld [vmem:[%s1 + $0x58] sm:$0xf]
  %v102 = vld [vmem:[%s1 + $0x5c] sm:$0xf]
  %v103 = vld [vmem:[%s1 + $0x60] sm:$0xf]
  %v104 = vld [vmem:[%s1 + $0x64] sm:$0xf]
  %v105 = vld [vmem:[%s1 + $0x68] sm:$0xf]
  %v106 = vld [vmem:[%s1 + $0x6c] sm:$0xf]
  %v107 = vld [vmem:[%s1 + $0x70] sm:$0xf]
  %v108 = vld [vmem:[%s1 + $0x74] sm:$0xf]
  %v109 = vld [vmem:[%s1 + $0x78] sm:$0xf]
  %v110 = vld [vmem:[%s1 + $0x7c] sm:$0xf]
  %v111 = vld [vmem:[%s1 + $0x80] sm:$0xf]
  %v112 = vld [vmem:[%s1 + $0x84] sm:$0xf]
  %v113 = vld [vmem:[%s1 + $0x88] sm:$0xf]
  %v114 = vld [vmem:[%s1 + $0x8c] sm:$0xf]
  %v115 = vld [vmem:[%s1 + $0x90] sm:$0xf]
  %v116 = vld [vmem:[%s1 + $0x94] sm:$0xf]
  %v117 = vld [vmem:[%s1 + $0x98] sm:$0xf]
  %v118 = vld [vmem:[%s1 + $0x9c] sm:$0xf]
  %v119 = vld [vmem:[%s1 + $0xa0] sm:$0xf]
  %v120 = vld [vmem:[%s1 + $0xa4] sm:$0xf]
  %v121 = vld [vmem:[%s1 + $0xa8] sm:$0xf]
  %v122 = vld [vmem:[%s1 + $0xac] sm:$0xf]
  %v123 = vld [vmem:[%s1 + $0xb0] sm:$0xf]
  %v124 = vld [vmem:[%s1 + $0xb4] sm:$0xf]
  %v125 = vld [vmem:[%s1 + $0xb8] sm:$0xf]
  %v126 = vld [vmem:[%s1 + $0xbc] sm:$0xf]
  %v127 = vld [vmem:[%s1 + $0xc0] sm:$0xf]
  %v128 = vld [vmem:[%s1 + $0xc4] sm:$0xf]
  %v129 = vld [vmem:[%s1 + $0xc8] sm:$0xf]
  %v130 = vld [vmem:[%s1 + $0xcc] sm:$0xf]
  %v131 = vld [vmem:[%s1 + $0xd0] sm:$0xf]
  %v132 = vld [vmem:[%s1 + $0xd4] sm:$0xf]
  %v133 = vld [vmem:[%s1 + $0xd8] sm:$0xf]
  %v134 = vld [vmem:[%s1 + $0xdc] sm:$0xf]
  %v135 = vld [vmem:[%s1 + $0xe0] sm:$0xf]
  %v136 = vld [vmem:[%s1 + $0xe4] sm:$0xf]
  %v137 = vld [vmem:[%s1 + $0xe8] sm:$0xf]
  %v138 = vld [vmem:[%s1 + $0xec] sm:$0xf]
  %v139 = vld [vmem:[%s1 + $0xf0] sm:$0xf]
  %v140 = vld [vmem:[%s1 + $0xf4] sm:$0xf]
  %v141 = vld [vmem:[%s1 + $0xf8] sm:$0xf]
  %v142 = vld [vmem:[%s1 + $0xfc] sm:$0xf]
  %v143 = vld [vmem:[%s1 + $0x100] sm:$0xf]
  %v144 = vld [vmem:[%s1 + $0x104] sm:$0xf]
  %v145 = vld [vmem:[%s1 + $0x108] sm:$0xf]
  %v146 = vld [vmem:[%s1 + $0x10c] sm:$0xf]
  %v147 = vld [vmem:[%s1 + $0x110] sm:$0xf]
  %v148 = vld [vmem:[%s1 + $0x114] sm:$0xf]
  %v149 = vld [vmem:[%s1 + $0x118] sm:$0xf]
  %v150 = vld [vmem:[%s1 + $0x11c] sm:$0xf]
  %v151 = vld [vmem:[%s1 + $0x120] sm:$0xf]
  %v152 = vld [vmem:[%s1 + $0x124] sm:$0xf]
  %v153 = vld [vmem:[%s1 + $0x128] sm:$0xf]
  %v154 = vld [vmem:[%s1 + $0x12c] sm:$0xf]
  %v155 = vld [vmem:[%s1 + $0x130] sm:$0xf]
  %v156 = vld [vmem:[%s1 + $0x134] sm:$0xf]
  %v157 = vld [vmem:[%s1 + $0x138] sm:$0xf]
  %v158 = vld [vmem:[%s1 + $0x13c] sm:$0xf]
  %v159 = vld [vmem:[%s1 + $0x140] sm:$0xf]
  %v160 = vld [vmem:[%s1 + $0x144] sm:$0xf]
  %v161 = vld [vmem:[%s1 + $0x148] sm:$0xf]
  %v162 = vld [vmem:[%s1 + $0x14c] sm:$0xf]
  %v163 = vld [vmem:[%s1 + $0x150] sm:$0xf]
  %v164 = vld [vmem:[%s1 + $0x154] sm:$0xf]
  %v165 = vld [vmem:[%s1 + $0x158] sm:$0xf]
  %v166 = vld [vmem:[%s1 + $0x15c] sm:$0xf]
  %v167 = vld [vmem:[%s1 + $0x160] sm:$0xf]
  %v168 = vld [vmem:[%s1 + $0x164] sm:$0xf]
  %v169 = vld [vmem:[%s1 + $0x168] sm:$0xf]
  %v170 = vld [vmem:[%s1 + $0x16c] sm:$0xf]
  %v171 = vld [vmem:[%s1 + $0x170] sm:$0xf]
  %v172 = vld [vmem:[%s1 + $0x174] sm:$0xf]
  %v173 = vld [vmem:[%s1 + $0x178] sm:$0xf]
  %v174 = vld [vmem:[%s1 + $0x17c] sm:$0xf]
  %v175 = vld [vmem:[%s1 + $0x180] sm:$0xf]
  %v176 = vld [vmem:[%s1 + $0x184] sm:$0xf]
  %v177 = vld [vmem:[%s1 + $0x188] sm:$0xf]
  %v178 = vld [vmem:[%s1 + $0x18c] sm:$0xf]
  %v179 = vld [vmem:[%s2] sm:$0x1]
  %v181 = vlaneseq
  %v182 = vshrl.u32 %v181, 7
  %v183 = vsub.s32 0, %v182
  %v184 = vrot.slane %v179, %v183
  %v250 = vunpack.c.l.b16 %v15
  %v251 = vunpack.c.h.b16 %v15
  %v252 = vunpack.c.l.b16 %v16
  %v253 = vunpack.c.h.b16 %v16
  %v254 = vunpack.c.l.b16 %v17
  %v255 = vunpack.c.h.b16 %v17
  %v256 = vunpack.c.l.b16 %v18
  %v257 = vunpack.c.l.b16 %v19
  %v258 = vunpack.c.h.b16 %v19
  %v259 = vunpack.c.l.b16 %v20
  %v260 = vunpack.c.h.b16 %v20
  %v261 = vunpack.c.l.b16 %v21
  %v262 = vunpack.c.h.b16 %v21
  %v263 = vunpack.c.l.b16 %v22
  %v264 = vunpack.c.l.b16 %v23
  %v265 = vunpack.c.h.b16 %v23
  %v266 = vunpack.c.l.b16 %v24
  %v267 = vunpack.c.h.b16 %v24
  %v268 = vunpack.c.l.b16 %v25
  %v269 = vunpack.c.h.b16 %v25
  %v270 = vunpack.c.l.b16 %v26
  %v271 = vunpack.c.l.b16 %v27
  %v272 = vunpack.c.h.b16 %v27
  %v273 = vunpack.c.l.b16 %v28
  %v274 = vunpack.c.h.b16 %v28
  %v275 = vunpack.c.l.b16 %v29
  %v276 = vunpack.c.h.b16 %v29
  %v277 = vunpack.c.l.b16 %v30
  %v278 = vunpack.c.l.b16 %v31
  %v279 = vunpack.c.h.b16 %v31
  %v280 = vunpack.c.l.b16 %v32
  %v281 = vunpack.c.h.b16 %v32
  %v282 = vunpack.c.l.b16 %v33
  %v283 = vunpack.c.h.b16 %v33
  %v284 = vunpack.c.l.b16 %v34
  %v285 = vunpack.c.l.b16 %v35
  %v286 = vunpack.c.h.b16 %v35
  %v287 = vunpack.c.l.b16 %v36
  %v288 = vunpack.c.h.b16 %v36
  %v289 = vunpack.c.l.b16 %v37
  %v290 = vunpack.c.h.b16 %v37
  %v291 = vunpack.c.l.b16 %v38
  %v292 = vunpack.c.l.b16 %v39
  %v293 = vunpack.c.h.b16 %v39
  %v294 = vunpack.c.l.b16 %v40
  %v295 = vunpack.c.h.b16 %v40
  %v296 = vunpack.c.l.b16 %v41
  %v297 = vunpack.c.h.b16 %v41
  %v298 = vunpack.c.l.b16 %v42
  %v299 = vunpack.c.l.b16 %v43
  %v300 = vunpack.c.h.b16 %v43
  %v301 = vunpack.c.l.b16 %v44
  %v302 = vunpack.c.h.b16 %v44
  %v303 = vunpack.c.l.b16 %v45
  %v304 = vunpack.c.h.b16 %v45
  %v305 = vunpack.c.l.b16 %v46
  %v306 = vunpack.c.l.b16 %v47
  %v307 = vunpack.c.h.b16 %v47
  %v308 = vunpack.c.l.b16 %v48
  %v309 = vunpack.c.h.b16 %v48
  %v310 = vunpack.c.l.b16 %v49
  %v311 = vunpack.c.h.b16 %v49
  %v312 = vunpack.c.l.b16 %v50
  %v313 = vunpack.c.l.b16 %v51
  %v314 = vunpack.c.h.b16 %v51
  %v315 = vunpack.c.l.b16 %v52
  %v316 = vunpack.c.h.b16 %v52
  %v317 = vunpack.c.l.b16 %v53
  %v318 = vunpack.c.h.b16 %v53
  %v319 = vunpack.c.l.b16 %v54
  %v320 = vunpack.c.l.b16 %v55
  %v321 = vunpack.c.h.b16 %v55
  %v322 = vunpack.c.l.b16 %v56
  %v323 = vunpack.c.h.b16 %v56
  %v324 = vunpack.c.l.b16 %v57
  %v325 = vunpack.c.h.b16 %v57
  %v326 = vunpack.c.l.b16 %v58
  %v327 = vunpack.c.l.b16 %v59
  %v328 = vunpack.c.h.b16 %v59
  %v329 = vunpack.c.l.b16 %v60
  %v330 = vunpack.c.h.b16 %v60
  %v331 = vunpack.c.l.b16 %v61
  %v332 = vunpack.c.h.b16 %v61
  %v333 = vunpack.c.l.b16 %v62
  %v334 = vunpack.c.l.b16 %v63
  %v335 = vunpack.c.h.b16 %v63
  %v336 = vunpack.c.l.b16 %v64
  %v337 = vunpack.c.h.b16 %v64
  %v338 = vunpack.c.l.b16 %v65
  %v339 = vunpack.c.h.b16 %v65
  %v340 = vunpack.c.l.b16 %v66
  %v341 = vunpack.c.l.b16 %v67
  %v342 = vunpack.c.h.b16 %v67
  %v343 = vunpack.c.l.b16 %v68
  %v344 = vunpack.c.h.b16 %v68
  %v345 = vunpack.c.l.b16 %v69
  %v346 = vunpack.c.h.b16 %v69
  %v347 = vunpack.c.l.b16 %v70
  %v348 = vunpack.c.l.b16 %v71
  %v349 = vunpack.c.h.b16 %v71
  %v350 = vunpack.c.l.b16 %v72
  %v351 = vunpack.c.h.b16 %v72
  %v352 = vunpack.c.l.b16 %v73
  %v353 = vunpack.c.h.b16 %v73
  %v354 = vunpack.c.l.b16 %v74
  %v355 = vunpack.c.l.b16 %v75
  %v356 = vunpack.c.h.b16 %v75
  %v357 = vunpack.c.l.b16 %v76
  %v358 = vunpack.c.h.b16 %v76
  %v359 = vunpack.c.l.b16 %v77
  %v360 = vunpack.c.h.b16 %v77
  %v361 = vunpack.c.l.b16 %v78
  %v362 = vpack.c.b16 %v257, %v250
  %v363 = vpack.c.b16 %v258, %v251
  %v364 = vpack.c.b16 %v259, %v252
  %v365 = vpack.c.b16 %v260, %v253
  %v366 = vpack.c.b16 %v261, %v254
  %v367 = vpack.c.b16 %v262, %v255
  %v368 = vpack.c.b16 %v263, %v256
  %v369 = vpack.c.b16 %v271, %v264
  %v370 = vpack.c.b16 %v272, %v265
  %v371 = vpack.c.b16 %v273, %v266
  %v372 = vpack.c.b16 %v274, %v267
  %v373 = vpack.c.b16 %v275, %v268
  %v374 = vpack.c.b16 %v276, %v269
  %v375 = vpack.c.b16 %v277, %v270
  %v376 = vpack.c.b16 %v285, %v278
  %v377 = vpack.c.b16 %v286, %v279
  %v378 = vpack.c.b16 %v287, %v280
  %v379 = vpack.c.b16 %v288, %v281
  %v380 = vpack.c.b16 %v289, %v282
  %v381 = vpack.c.b16 %v290, %v283
  %v382 = vpack.c.b16 %v291, %v284
  %v383 = vpack.c.b16 %v299, %v292
  %v384 = vpack.c.b16 %v300, %v293
  %v385 = vpack.c.b16 %v301, %v294
  %v386 = vpack.c.b16 %v302, %v295
  %v387 = vpack.c.b16 %v303, %v296
  %v388 = vpack.c.b16 %v304, %v297
  %v389 = vpack.c.b16 %v305, %v298
  %v390 = vpack.c.b16 %v313, %v306
  %v391 = vpack.c.b16 %v314, %v307
  %v392 = vpack.c.b16 %v315, %v308
  %v393 = vpack.c.b16 %v316, %v309
  %v394 = vpack.c.b16 %v317, %v310
  %v395 = vpack.c.b16 %v318, %v311
  %v396 = vpack.c.b16 %v319, %v312
  %v397 = vpack.c.b16 %v327, %v320
  %v398 = vpack.c.b16 %v328, %v321
  %v399 = vpack.c.b16 %v329, %v322
  %v400 = vpack.c.b16 %v330, %v323
  %v401 = vpack.c.b16 %v331, %v324
  %v402 = vpack.c.b16 %v332, %v325
  %v403 = vpack.c.b16 %v333, %v326
  %v404 = vpack.c.b16 %v341, %v334
  %v405 = vpack.c.b16 %v342, %v335
  %v406 = vpack.c.b16 %v343, %v336
  %v407 = vpack.c.b16 %v344, %v337
  %v408 = vpack.c.b16 %v345, %v338
  %v409 = vpack.c.b16 %v346, %v339
  %v410 = vpack.c.b16 %v347, %v340
  %v411 = vpack.c.b16 %v355, %v348
  %v412 = vpack.c.b16 %v356, %v349
  %v413 = vpack.c.b16 %v357, %v350
  %v414 = vpack.c.b16 %v358, %v351
  %v415 = vpack.c.b16 %v359, %v352
  %v416 = vpack.c.b16 %v360, %v353
  %v417 = vpack.c.b16 %v361, %v354
  %v566 = vunpack.c.l.b16 %v79
  %v567 = vunpack.c.l.b16 %v80
  %v568 = vunpack.c.l.b16 %v81
  %v569 = vunpack.c.l.b16 %v82
  %v570 = vunpack.c.l.b16 %v83
  %v571 = vunpack.c.l.b16 %v84
  %v572 = vunpack.c.l.b16 %v85
  %v573 = vunpack.c.l.b16 %v86
  %v574 = vunpack.c.l.b16 %v87
  %v575 = vunpack.c.l.b16 %v88
  %v576 = vunpack.c.l.b16 %v89
  %v577 = vunpack.c.l.b16 %v90
  %v578 = vunpack.c.l.b16 %v91
  %v579 = vunpack.c.l.b16 %v92
  %v580 = vunpack.c.l.b16 %v93
  %v581 = vunpack.c.l.b16 %v94
  %v582 = vunpack.c.l.b16 %v95
  %v583 = vunpack.c.l.b16 %v96
  %v584 = vunpack.c.l.b16 %v97
  %v585 = vunpack.c.l.b16 %v98
  %v586 = vunpack.c.l.b16 %v99
  %v587 = vunpack.c.l.b16 %v100
  %v588 = vunpack.c.l.b16 %v101
  %v589 = vunpack.c.l.b16 %v102
  %v590 = vunpack.c.l.b16 %v103
  %v591 = vunpack.c.l.b16 %v104
  %v592 = vunpack.c.l.b16 %v105
  %v593 = vunpack.c.l.b16 %v106
  %v594 = vunpack.c.l.b16 %v107
  %v595 = vunpack.c.l.b16 %v108
  %v596 = vunpack.c.l.b16 %v109
  %v597 = vunpack.c.l.b16 %v110
  %v598 = vunpack.c.l.b16 %v111
  %v599 = vunpack.c.l.b16 %v112
  %v600 = vunpack.c.l.b16 %v113
  %v601 = vunpack.c.l.b16 %v114
  %v602 = vunpack.c.l.b16 %v115
  %v603 = vunpack.c.l.b16 %v116
  %v604 = vunpack.c.l.b16 %v117
  %v605 = vunpack.c.l.b16 %v118
  %v606 = vunpack.c.l.b16 %v119
  %v607 = vunpack.c.l.b16 %v120
  %v608 = vunpack.c.l.b16 %v121
  %v609 = vunpack.c.l.b16 %v122
  %v610 = vunpack.c.l.b16 %v123
  %v611 = vunpack.c.l.b16 %v124
  %v612 = vunpack.c.l.b16 %v125
  %v613 = vunpack.c.l.b16 %v126
  %v614 = vunpack.c.l.b16 %v127
  %v615 = vunpack.c.l.b16 %v128
  %v616 = vunpack.c.l.b16 %v129
  %v617 = vunpack.c.l.b16 %v130
  %v618 = vunpack.c.l.b16 %v131
  %v619 = vunpack.c.l.b16 %v132
  %v620 = vunpack.c.l.b16 %v133
  %v621 = vunpack.c.l.b16 %v134
  %v622 = vunpack.c.l.b16 %v135
  %v623 = vunpack.c.l.b16 %v136
  %v624 = vunpack.c.l.b16 %v137
  %v625 = vunpack.c.l.b16 %v138
  %v626 = vunpack.c.l.b16 %v139
  %v627 = vunpack.c.l.b16 %v140
  %v628 = vunpack.c.l.b16 %v141
  %v629 = vunpack.c.l.b16 %v142
  %v630 = vunpack.c.l.b16 %v143
  %v631 = vunpack.c.l.b16 %v144
  %v632 = vunpack.c.l.b16 %v145
  %v633 = vunpack.c.l.b16 %v146
  %v634 = vunpack.c.l.b16 %v147
  %v635 = vunpack.c.l.b16 %v148
  %v636 = vunpack.c.l.b16 %v149
  %v637 = vunpack.c.l.b16 %v150
  %v638 = vunpack.c.l.b16 %v151
  %v639 = vunpack.c.l.b16 %v152
  %v640 = vunpack.c.l.b16 %v153
  %v641 = vunpack.c.l.b16 %v154
  %v642 = vunpack.c.l.b16 %v155
  %v643 = vunpack.c.l.b16 %v156
  %v644 = vunpack.c.l.b16 %v157
  %v645 = vunpack.c.l.b16 %v158
  %v646 = vunpack.c.l.b16 %v159
  %v647 = vunpack.c.l.b16 %v160
  %v648 = vunpack.c.l.b16 %v161
  %v649 = vunpack.c.l.b16 %v162
  %v650 = vunpack.c.l.b16 %v163
  %v651 = vunpack.c.l.b16 %v164
  %v652 = vunpack.c.l.b16 %v165
  %v653 = vunpack.c.l.b16 %v166
  %v654 = vunpack.c.l.b16 %v167
  %v655 = vunpack.c.l.b16 %v168
  %v656 = vunpack.c.l.b16 %v169
  %v657 = vunpack.c.l.b16 %v170
  %v658 = vunpack.c.l.b16 %v171
  %v659 = vunpack.c.l.b16 %v172
  %v660 = vunpack.c.l.b16 %v173
  %v661 = vunpack.c.l.b16 %v174
  %v662 = vunpack.c.l.b16 %v175
  %v663 = vunpack.c.l.b16 %v176
  %v664 = vunpack.c.l.b16 %v177
  %v665 = vunpack.c.l.b16 %v178
  %v666 = vpack.c.b16 %v567, %v566
  %v667 = vpack.c.b16 %v569, %v568
  %v668 = vpack.c.b16 %v571, %v570
  %v669 = vpack.c.b16 %v573, %v572
  %v670 = vpack.c.b16 %v575, %v574
  %v671 = vpack.c.b16 %v577, %v576
  %v672 = vpack.c.b16 %v579, %v578
  %v673 = vpack.c.b16 %v581, %v580
  %v674 = vpack.c.b16 %v583, %v582
  %v675 = vpack.c.b16 %v585, %v584
  %v676 = vpack.c.b16 %v587, %v586
  %v677 = vpack.c.b16 %v589, %v588
  %v678 = vpack.c.b16 %v591, %v590
  %v679 = vpack.c.b16 %v593, %v592
  %v680 = vpack.c.b16 %v595, %v594
  %v681 = vpack.c.b16 %v597, %v596
  %v682 = vpack.c.b16 %v599, %v598
  %v683 = vpack.c.b16 %v601, %v600
  %v684 = vpack.c.b16 %v603, %v602
  %v685 = vpack.c.b16 %v605, %v604
  %v686 = vpack.c.b16 %v607, %v606
  %v687 = vpack.c.b16 %v609, %v608
  %v688 = vpack.c.b16 %v611, %v610
  %v689 = vpack.c.b16 %v613, %v612
  %v690 = vpack.c.b16 %v615, %v614
  %v691 = vpack.c.b16 %v617, %v616
  %v692 = vpack.c.b16 %v619, %v618
  %v693 = vpack.c.b16 %v621, %v620
  %v694 = vpack.c.b16 %v623, %v622
  %v695 = vpack.c.b16 %v625, %v624
  %v696 = vpack.c.b16 %v627, %v626
  %v697 = vpack.c.b16 %v629, %v628
  %v698 = vpack.c.b16 %v631, %v630
  %v699 = vpack.c.b16 %v633, %v632
  %v700 = vpack.c.b16 %v635, %v634
  %v701 = vpack.c.b16 %v637, %v636
  %v702 = vpack.c.b16 %v639, %v638
  %v703 = vpack.c.b16 %v641, %v640
  %v704 = vpack.c.b16 %v643, %v642
  %v705 = vpack.c.b16 %v645, %v644
  %v706 = vpack.c.b16 %v647, %v646
  %v707 = vpack.c.b16 %v649, %v648
  %v708 = vpack.c.b16 %v651, %v650
  %v709 = vpack.c.b16 %v653, %v652
  %v710 = vpack.c.b16 %v655, %v654
  %v711 = vpack.c.b16 %v657, %v656
  %v712 = vpack.c.b16 %v659, %v658
  %v713 = vpack.c.b16 %v661, %v660
  %v714 = vpack.c.b16 %v663, %v662
  %v715 = vpack.c.b16 %v665, %v664
  %vm766 = vcmask 261120
  %v768 = vsel %vm766, %v368, 0
  %v771 = vsel %vm766, %v375, 0
  %v774 = vsel %vm766, %v382, 0
  %v777 = vsel %vm766, %v389, 0
  %v780 = vsel %vm766, %v396, 0
  %v783 = vsel %vm766, %v403, 0
  %v786 = vsel %vm766, %v410, 0
  %v789 = vsel %vm766, %v417, 0
  %791 = vmatprep.subr.bf16.mxu0 0
  %792 = vmatpush1.bf16.msra.mxu0 %v666
  %793 = vmatprep.subr.bf16.mxu0 0
  %794 = vmatpush1.bf16.msra.mxu0 %v667
  %795 = vmatprep.subr.bf16.mxu0 0
  %796 = vmatpush1.bf16.msra.mxu0 %v668
  %797 = vmatprep.subr.bf16.mxu0 0
  %798 = vmatpush1.bf16.msra.mxu0 %v669
  %799 = vmatprep.subr.bf16.mxu0 0
  %800 = vmatpush1.bf16.msra.mxu0 %v670
  %801 = vmatprep.subr.bf16.mxu0 0
  %802 = vmatpush1.bf16.msra.mxu0 %v671
  %803 = vmatprep.subr.bf16.mxu0 0
  %804 = vmatpush1.bf16.msra.mxu0 %v672
  %805 = vmatprep.subr.bf16.mxu0 0
  %806 = vmatpush1.bf16.msra.mxu0 %v673
  %807 = vmatprep.subr.bf16.mxu0 0
  %808 = vmatpush1.bf16.msra.mxu0 %v674
  %809 = vmatprep.subr.bf16.mxu0 0
  %810 = vmatpush1.bf16.msra.mxu0 %v675
  %811 = vmatprep.subr.bf16.mxu0 0
  %812 = vmatpush1.bf16.msra.mxu0 %v676
  %813 = vmatprep.subr.bf16.mxu0 0
  %814 = vmatpush1.bf16.msra.mxu0 %v677
  %815 = vmatprep.subr.bf16.mxu0 0
  %816 = vmatpush1.bf16.msra.mxu0 %v678
  %817 = vmatprep.subr.bf16.mxu0 0
  %818 = vmatpush1.bf16.msra.mxu0 %v679
  %819 = vmatprep.subr.bf16.mxu0 0
  %820 = vmatpush1.bf16.msra.mxu0 %v680
  %821 = vmatprep.subr.bf16.mxu0 0
  %822 = vmatpush1.bf16.msra.mxu0 %v681
  %823 = vmatprep.mubr.bf16.mxu0 %v363
  %824 = vmatmul.mubr.bf16.gmra.mrb[0].mxu0 %v362
  %v825 = vpop.f32.mrb[0].mxu0
  %v826 = vadd.f32 %v184, %v825
  %v827 = vpop.f32.mrb[0].mxu0
  %v828 = vpop.f32.mrb[0].mxu0
  %v829 = vadd.f32 %v184, %v828
  %v830 = vpop.f32.mrb[0].mxu0
  %831 = vmatprep.mubr.bf16.mxu0 %v370
  %832 = vmatmul.mubr.bf16.gmra.mrb[0].mxu0 %v369
  %v833 = vpop.f32.mrb[0].mxu0
  %v834 = vadd.f32 %v184, %v833
  %v835 = vpop.f32.mrb[0].mxu0
  %v836 = vpop.f32.mrb[0].mxu0
  %v837 = vadd.f32 %v184, %v836
  %v838 = vpop.f32.mrb[0].mxu0
  %839 = vmatprep.mubr.bf16.mxu0 %v377
  %840 = vmatmul.mubr.bf16.gmra.mrb[0].mxu0 %v376
  %v841 = vpop.f32.mrb[0].mxu0
  %v842 = vadd.f32 %v184, %v841
  %v843 = vpop.f32.mrb[0].mxu0
  %v844 = vpop.f32.mrb[0].mxu0
  %v845 = vadd.f32 %v184, %v844
  %v846 = vpop.f32.mrb[0].mxu0
  %847 = vmatprep.mubr.bf16.mxu0 %v384
  %848 = vmatmul.mubr.bf16.gmra.mrb[0].mxu0 %v383
  %v849 = vpop.f32.mrb[0].mxu0
  %v850 = vadd.f32 %v184, %v849
  %v851 = vpop.f32.mrb[0].mxu0
  %v852 = vpop.f32.mrb[0].mxu0
  %v853 = vadd.f32 %v184, %v852
  %v854 = vpop.f32.mrb[0].mxu0
  %855 = vmatprep.mubr.bf16.mxu0 %v391
  %856 = vmatmul.mubr.bf16.gmra.mrb[0].mxu0 %v390
  %v857 = vpop.f32.mrb[0].mxu0
  %v858 = vadd.f32 %v184, %v857
  %v859 = vpop.f32.mrb[0].mxu0
  %v860 = vpop.f32.mrb[0].mxu0
  %v861 = vadd.f32 %v184, %v860
  %v862 = vpop.f32.mrb[0].mxu0
  %863 = vmatprep.mubr.bf16.mxu0 %v398
  %864 = vmatmul.mubr.bf16.gmra.mrb[0].mxu0 %v397
  %v865 = vpop.f32.mrb[0].mxu0
  %v866 = vadd.f32 %v184, %v865
  %v867 = vpop.f32.mrb[0].mxu0
  %v868 = vpop.f32.mrb[0].mxu0
  %v869 = vadd.f32 %v184, %v868
  %v870 = vpop.f32.mrb[0].mxu0
  %871 = vmatprep.mubr.bf16.mxu0 %v405
  %872 = vmatmul.mubr.bf16.gmra.mrb[0].mxu0 %v404
  %v873 = vpop.f32.mrb[0].mxu0
  %v874 = vadd.f32 %v184, %v873
  %v875 = vpop.f32.mrb[0].mxu0
  %v876 = vpop.f32.mrb[0].mxu0
  %v877 = vadd.f32 %v184, %v876
  %v878 = vpop.f32.mrb[0].mxu0
  %879 = vmatprep.mubr.bf16.mxu0 %v412
  %880 = vmatmul.mubr.bf16.gmra.mrb[0].mxu0 %v411
  %v881 = vpop.f32.mrb[0].mxu0
  %v882 = vadd.f32 %v184, %v881
  %v883 = vpop.f32.mrb[0].mxu0
  %v884 = vpop.f32.mrb[0].mxu0
  %v885 = vadd.f32 %v184, %v884
  %v886 = vpop.f32.mrb[0].mxu0
  %887 = vdwg.mxu0
  %888 = vmatprep.subr.bf16.mxu0 0
  %889 = vmatpush1.bf16.msra.mxu0 %v682
  %890 = vmatprep.subr.bf16.mxu0 0
  %891 = vmatpush1.bf16.msra.mxu0 %v683
  %892 = vmatprep.subr.bf16.mxu0 0
  %893 = vmatpush1.bf16.msra.mxu0 %v684
  %894 = vmatprep.subr.bf16.mxu0 0
  %895 = vmatpush1.bf16.msra.mxu0 %v685
  %896 = vmatprep.subr.bf16.mxu0 0
  %897 = vmatpush1.bf16.msra.mxu0 %v686
  %898 = vmatprep.subr.bf16.mxu0 0
  %899 = vmatpush1.bf16.msra.mxu0 %v687
  %900 = vmatprep.subr.bf16.mxu0 0
  %901 = vmatpush1.bf16.msra.mxu0 %v688
  %902 = vmatprep.subr.bf16.mxu0 0
  %903 = vmatpush1.bf16.msra.mxu0 %v689
  %904 = vmatprep.subr.bf16.mxu0 0
  %905 = vmatpush1.bf16.msra.mxu0 %v690
  %906 = vmatprep.subr.bf16.mxu0 0
  %907 = vmatpush1.bf16.msra.mxu0 %v691
  %908 = vmatprep.subr.bf16.mxu0 0
  %909 = vmatpush1.bf16.msra.mxu0 %v692
  %910 = vmatprep.subr.bf16.mxu0 0
  %911 = vmatpush1.bf16.msra.mxu0 %v693
  %912 = vmatprep.subr.bf16.mxu0 0
  %913 = vmatpush1.bf16.msra.mxu0 %v694
  %914 = vmatprep.subr.bf16.mxu0 0
  %915 = vmatpush1.bf16.msra.mxu0 %v695
  %916 = vmatprep.subr.bf16.mxu0 0
  %917 = vmatpush1.bf16.msra.mxu0 %v696
  %918 = vmatprep.subr.bf16.mxu0 0
  %919 = vmatpush1.bf16.msra.mxu0 %v697
  %920 = vmatprep.mubr.bf16.mxu0 %v365
  %921 = vmatmul.mubr.bf16.gmra.mrb[0].mxu0 %v364
  %v922 = vpop.f32.mrb[0].mxu0
  %v923 = vadd.f32 %v826, %v922
  %v924 = vpop.f32.mrb[0].mxu0
  %v925 = vpop.f32.mrb[0].mxu0
  %v926 = vadd.f32 %v829, %v925
  %v927 = vpop.f32.mrb[0].mxu0
  %928 = vmatprep.mubr.bf16.mxu0 %v372
  %929 = vmatmul.mubr.bf16.gmra.mrb[0].mxu0 %v371
  %v930 = vpop.f32.mrb[0].mxu0
  %v931 = vadd.f32 %v834, %v930
  %v932 = vpop.f32.mrb[0].mxu0
  %v933 = vpop.f32.mrb[0].mxu0
  %v934 = vadd.f32 %v837, %v933
  %v935 = vpop.f32.mrb[0].mxu0
  %936 = vmatprep.mubr.bf16.mxu0 %v379
  %937 = vmatmul.mubr.bf16.gmra.mrb[0].mxu0 %v378
  %v938 = vpop.f32.mrb[0].mxu0
  %v939 = vadd.f32 %v842, %v938
  %v940 = vpop.f32.mrb[0].mxu0
  %v941 = vpop.f32.mrb[0].mxu0
  %v942 = vadd.f32 %v845, %v941
  %v943 = vpop.f32.mrb[0].mxu0
  %944 = vmatprep.mubr.bf16.mxu0 %v386
  %945 = vmatmul.mubr.bf16.gmra.mrb[0].mxu0 %v385
  %v946 = vpop.f32.mrb[0].mxu0
  %v947 = vadd.f32 %v850, %v946
  %v948 = vpop.f32.mrb[0].mxu0
  %v949 = vpop.f32.mrb[0].mxu0
  %v950 = vadd.f32 %v853, %v949
  %v951 = vpop.f32.mrb[0].mxu0
  %952 = vmatprep.mubr.bf16.mxu0 %v393
  %953 = vmatmul.mubr.bf16.gmra.mrb[0].mxu0 %v392
  %v954 = vpop.f32.mrb[0].mxu0
  %v955 = vadd.f32 %v858, %v954
  %v956 = vpop.f32.mrb[0].mxu0
  %v957 = vpop.f32.mrb[0].mxu0
  %v958 = vadd.f32 %v861, %v957
  %v959 = vpop.f32.mrb[0].mxu0
  %960 = vmatprep.mubr.bf16.mxu0 %v400
  %961 = vmatmul.mubr.bf16.gmra.mrb[0].mxu0 %v399
  %v962 = vpop.f32.mrb[0].mxu0
  %v963 = vadd.f32 %v866, %v962
  %v964 = vpop.f32.mrb[0].mxu0
  %v965 = vpop.f32.mrb[0].mxu0
  %v966 = vadd.f32 %v869, %v965
  %v967 = vpop.f32.mrb[0].mxu0
  %968 = vmatprep.mubr.bf16.mxu0 %v407
  %969 = vmatmul.mubr.bf16.gmra.mrb[0].mxu0 %v406
  %v970 = vpop.f32.mrb[0].mxu0
  %v971 = vadd.f32 %v874, %v970
  %v972 = vpop.f32.mrb[0].mxu0
  %v973 = vpop.f32.mrb[0].mxu0
  %v974 = vadd.f32 %v877, %v973
  %v975 = vpop.f32.mrb[0].mxu0
  %976 = vmatprep.mubr.bf16.mxu0 %v414
  %977 = vmatmul.mubr.bf16.gmra.mrb[0].mxu0 %v413
  %v978 = vpop.f32.mrb[0].mxu0
  %v979 = vadd.f32 %v882, %v978
  %v980 = vpop.f32.mrb[0].mxu0
  %v981 = vpop.f32.mrb[0].mxu0
  %v982 = vadd.f32 %v885, %v981
  %v983 = vpop.f32.mrb[0].mxu0
  %984 = vdwg.mxu0
  %985 = vmatprep.subr.bf16.mxu0 0
  %986 = vmatpush1.bf16.msra.mxu0 %v698
  %987 = vmatprep.subr.bf16.mxu0 0
  %988 = vmatpush1.bf16.msra.mxu0 %v699
  %989 = vmatprep.subr.bf16.mxu0 0
  %990 = vmatpush1.bf16.msra.mxu0 %v700
  %991 = vmatprep.subr.bf16.mxu0 0
  %992 = vmatpush1.bf16.msra.mxu0 %v701
  %993 = vmatprep.subr.bf16.mxu0 0
  %994 = vmatpush1.bf16.msra.mxu0 %v702
  %995 = vmatprep.subr.bf16.mxu0 0
  %996 = vmatpush1.bf16.msra.mxu0 %v703
  %997 = vmatprep.subr.bf16.mxu0 0
  %998 = vmatpush1.bf16.msra.mxu0 %v704
  %999 = vmatprep.subr.bf16.mxu0 0
  %1000 = vmatpush1.bf16.msra.mxu0 %v705
  %1001 = vmatprep.subr.bf16.mxu0 0
  %1002 = vmatpush1.bf16.msra.mxu0 %v706
  %1003 = vmatprep.subr.bf16.mxu0 0
  %1004 = vmatpush1.bf16.msra.mxu0 %v707
  %1005 = vmatprep.subr.bf16.mxu0 0
  %1006 = vmatpush1.bf16.msra.mxu0 %v708
  %1007 = vmatprep.subr.bf16.mxu0 0
  %1008 = vmatpush1.bf16.msra.mxu0 %v709
  %1009 = vmatprep.subr.bf16.mxu0 0
  %1010 = vmatpush1.bf16.msra.mxu0 %v710
  %1011 = vmatprep.subr.bf16.mxu0 0
  %1012 = vmatpush1.bf16.msra.mxu0 %v711
  %1013 = vmatprep.subr.bf16.mxu0 0
  %1014 = vmatpush1.bf16.msra.mxu0 %v712
  %1015 = vmatprep.subr.bf16.mxu0 0
  %1016 = vmatpush1.bf16.msra.mxu0 %v713
  %1017 = vmatprep.mubr.bf16.mxu0 %v367
  %1018 = vmatmul.mubr.bf16.gmra.mrb[0].mxu0 %v366
  %v1019 = vpop.f32.mrb[0].mxu0
  %v1020 = vadd.f32 %v923, %v1019
  %v1021 = vpop.f32.mrb[0].mxu0
  %v1022 = vpop.f32.mrb[0].mxu0
  %v1023 = vadd.f32 %v926, %v1022
  %v1024 = vpop.f32.mrb[0].mxu0
  %1025 = vmatprep.mubr.bf16.mxu0 %v374
  %1026 = vmatmul.mubr.bf16.gmra.mrb[0].mxu0 %v373
  %v1027 = vpop.f32.mrb[0].mxu0
  %v1028 = vadd.f32 %v931, %v1027
  %v1029 = vpop.f32.mrb[0].mxu0
  %v1030 = vpop.f32.mrb[0].mxu0
  %v1031 = vadd.f32 %v934, %v1030
  %v1032 = vpop.f32.mrb[0].mxu0
  %1033 = vmatprep.mubr.bf16.mxu0 %v381
  %1034 = vmatmul.mubr.bf16.gmra.mrb[0].mxu0 %v380
  %v1035 = vpop.f32.mrb[0].mxu0
  %v1036 = vadd.f32 %v939, %v1035
  %v1037 = vpop.f32.mrb[0].mxu0
  %v1038 = vpop.f32.mrb[0].mxu0
  %v1039 = vadd.f32 %v942, %v1038
  %v1040 = vpop.f32.mrb[0].mxu0
  %1041 = vmatprep.mubr.bf16.mxu0 %v388
  %1042 = vmatmul.mubr.bf16.gmra.mrb[0].mxu0 %v387
  %v1043 = vpop.f32.mrb[0].mxu0
  %v1044 = vadd.f32 %v947, %v1043
  %v1045 = vpop.f32.mrb[0].mxu0
  %v1046 = vpop.f32.mrb[0].mxu0
  %v1047 = vadd.f32 %v950, %v1046
  %v1048 = vpop.f32.mrb[0].mxu0
  %1049 = vmatprep.mubr.bf16.mxu0 %v395
  %1050 = vmatmul.mubr.bf16.gmra.mrb[0].mxu0 %v394
  %v1051 = vpop.f32.mrb[0].mxu0
  %v1052 = vadd.f32 %v955, %v1051
  %v1053 = vpop.f32.mrb[0].mxu0
  %v1054 = vpop.f32.mrb[0].mxu0
  %v1055 = vadd.f32 %v958, %v1054
  %v1056 = vpop.f32.mrb[0].mxu0
  %1057 = vmatprep.mubr.bf16.mxu0 %v402
  %1058 = vmatmul.mubr.bf16.gmra.mrb[0].mxu0 %v401
  %v1059 = vpop.f32.mrb[0].mxu0
  %v1060 = vadd.f32 %v963, %v1059
  %v1061 = vpop.f32.mrb[0].mxu0
  %v1062 = vpop.f32.mrb[0].mxu0
  %v1063 = vadd.f32 %v966, %v1062
  %v1064 = vpop.f32.mrb[0].mxu0
  %1065 = vmatprep.mubr.bf16.mxu0 %v409
  %1066 = vmatmul.mubr.bf16.gmra.mrb[0].mxu0 %v408
  %v1067 = vpop.f32.mrb[0].mxu0
  %v1068 = vadd.f32 %v971, %v1067
  %v1069 = vpop.f32.mrb[0].mxu0
  %v1070 = vpop.f32.mrb[0].mxu0
  %v1071 = vadd.f32 %v974, %v1070
  %v1072 = vpop.f32.mrb[0].mxu0
  %1073 = vmatprep.mubr.bf16.mxu0 %v416
  %1074 = vmatmul.mubr.bf16.gmra.mrb[0].mxu0 %v415
  %v1075 = vpop.f32.mrb[0].mxu0
  %v1076 = vadd.f32 %v979, %v1075
  %v1077 = vpop.f32.mrb[0].mxu0
  %v1078 = vpop.f32.mrb[0].mxu0
  %v1079 = vadd.f32 %v982, %v1078
  %v1080 = vpop.f32.mrb[0].mxu0
  %1081 = vdwg.mxu0
  %1082 = vmatprep.subr.bf16.mxu0 0
  %1083 = vmatpush1.bf16.msra.mxu0 %v714
  %1084 = vmatprep.subr.bf16.mxu0 0
  %1085 = vmatpush1.bf16.msra.mxu0 %v715
  %1086 = vmatprep.subr.bf16.mxu0 0
  %1087 = vmatpush1.bf16.msra.mxu0 0
  %1088 = vmatprep.subr.bf16.mxu0 0
  %1089 = vmatpush1.bf16.msra.mxu0 0
  %1090 = vmatprep.subr.bf16.mxu0 0
  %1091 = vmatpush1.bf16.msra.mxu0 0
  %1092 = vmatprep.subr.bf16.mxu0 0
  %1093 = vmatpush1.bf16.msra.mxu0 0
  %1094 = vmatprep.subr.bf16.mxu0 0
  %1095 = vmatpush1.bf16.msra.mxu0 0
  %1096 = vmatprep.subr.bf16.mxu0 0
  %1097 = vmatpush1.bf16.msra.mxu0 0
  %1098 = vmatprep.subr.bf16.mxu0 0
  %1099 = vmatpush1.bf16.msra.mxu0 0
  %1100 = vmatprep.subr.bf16.mxu0 0
  %1101 = vmatpush1.bf16.msra.mxu0 0
  %1102 = vmatprep.subr.bf16.mxu0 0
  %1103 = vmatpush1.bf16.msra.mxu0 0
  %1104 = vmatprep.subr.bf16.mxu0 0
  %1105 = vmatpush1.bf16.msra.mxu0 0
  %1106 = vmatprep.subr.bf16.mxu0 0
  %1107 = vmatpush1.bf16.msra.mxu0 0
  %1108 = vmatprep.subr.bf16.mxu0 0
  %1109 = vmatpush1.bf16.msra.mxu0 0
  %1110 = vmatprep.subr.bf16.mxu0 0
  %1111 = vmatpush1.bf16.msra.mxu0 0
  %1112 = vmatprep.subr.bf16.mxu0 0
  %1113 = vmatpush1.bf16.msra.mxu0 0
  %1114 = vmatprep.mubr.bf16.mxu0 0
  %1115 = vmatmul.mubr.bf16.gmra.mrb[0].mxu0 %v768
  %v1116 = vpop.f32.mrb[0].mxu0
  %v1117 = vadd.f32 %v1020, %v1116
  %v1118 = vpop.f32.mrb[0].mxu0
  %v1119 = vpop.f32.mrb[0].mxu0
  %v1120 = vadd.f32 %v1023, %v1119
  %v1121 = vpop.f32.mrb[0].mxu0
  %1122 = vmatprep.mubr.bf16.mxu0 0
  %1123 = vmatmul.mubr.bf16.gmra.mrb[0].mxu0 %v771
  %v1124 = vpop.f32.mrb[0].mxu0
  %v1125 = vadd.f32 %v1028, %v1124
  %v1126 = vpop.f32.mrb[0].mxu0
  %v1127 = vpop.f32.mrb[0].mxu0
  %v1128 = vadd.f32 %v1031, %v1127
  %v1129 = vpop.f32.mrb[0].mxu0
  %1130 = vmatprep.mubr.bf16.mxu0 0
  %1131 = vmatmul.mubr.bf16.gmra.mrb[0].mxu0 %v774
  %v1132 = vpop.f32.mrb[0].mxu0
  %v1133 = vadd.f32 %v1036, %v1132
  %v1134 = vpop.f32.mrb[0].mxu0
  %v1135 = vpop.f32.mrb[0].mxu0
  %v1136 = vadd.f32 %v1039, %v1135
  %v1137 = vpop.f32.mrb[0].mxu0
  %1138 = vmatprep.mubr.bf16.mxu0 0
  %1139 = vmatmul.mubr.bf16.gmra.mrb[0].mxu0 %v777
  %v1140 = vpop.f32.mrb[0].mxu0
  %v1141 = vadd.f32 %v1044, %v1140
  %v1142 = vpop.f32.mrb[0].mxu0
  %v1143 = vpop.f32.mrb[0].mxu0
  %v1144 = vadd.f32 %v1047, %v1143
  %v1145 = vpop.f32.mrb[0].mxu0
  %1146 = vmatprep.mubr.bf16.mxu0 0
  %1147 = vmatmul.mubr.bf16.gmra.mrb[0].mxu0 %v780
  %v1148 = vpop.f32.mrb[0].mxu0
  %v1149 = vadd.f32 %v1052, %v1148
  %v1150 = vpop.f32.mrb[0].mxu0
  %v1151 = vpop.f32.mrb[0].mxu0
  %v1152 = vadd.f32 %v1055, %v1151
  %v1153 = vpop.f32.mrb[0].mxu0
  %1154 = vmatprep.mubr.bf16.mxu0 0
  %1155 = vmatmul.mubr.bf16.gmra.mrb[0].mxu0 %v783
  %v1156 = vpop.f32.mrb[0].mxu0
  %v1157 = vadd.f32 %v1060, %v1156
  %v1158 = vpop.f32.mrb[0].mxu0
  %v1159 = vpop.f32.mrb[0].mxu0
  %v1160 = vadd.f32 %v1063, %v1159
  %v1161 = vpop.f32.mrb[0].mxu0
  %1162 = vmatprep.mubr.bf16.mxu0 0
  %1163 = vmatmul.mubr.bf16.gmra.mrb[0].mxu0 %v786
  %v1164 = vpop.f32.mrb[0].mxu0
  %v1165 = vadd.f32 %v1068, %v1164
  %v1166 = vpop.f32.mrb[0].mxu0
  %v1167 = vpop.f32.mrb[0].mxu0
  %v1168 = vadd.f32 %v1071, %v1167
  %v1169 = vpop.f32.mrb[0].mxu0
  %1170 = vmatprep.mubr.bf16.mxu0 0
  %1171 = vmatmul.mubr.bf16.gmra.mrb[0].mxu0 %v789
  %v1172 = vpop.f32.mrb[0].mxu0
  %v1173 = vadd.f32 %v1076, %v1172
  %v1174 = vpop.f32.mrb[0].mxu0
  %v1175 = vpop.f32.mrb[0].mxu0
  %v1176 = vadd.f32 %v1079, %v1175
  %v1177 = vpop.f32.mrb[0].mxu0
  %1178 = vdwg.mxu0
  %1179 = vst.msk [vmem:[%s3] sm:$0xff] %vm766, %v1117
  %1180 = vst.msk [vmem:[%s3 + $0x8] sm:$0xff] %vm766, %v1120
  %1181 = vst.msk [vmem:[%s3 + $0x10] sm:$0xff] %vm766, %v1125
  %1182 = vst.msk [vmem:[%s3 + $0x18] sm:$0xff] %vm766, %v1128
  %1183 = vst.msk [vmem:[%s3 + $0x20] sm:$0xff] %vm766, %v1133
  %1184 = vst.msk [vmem:[%s3 + $0x28] sm:$0xff] %vm766, %v1136
  %1185 = vst.msk [vmem:[%s3 + $0x30] sm:$0xff] %vm766, %v1141
  %1186 = vst.msk [vmem:[%s3 + $0x38] sm:$0xff] %vm766, %v1144
  %1187 = vst.msk [vmem:[%s3 + $0x40] sm:$0xff] %vm766, %v1149
  %1188 = vst.msk [vmem:[%s3 + $0x48] sm:$0xff] %vm766, %v1152
  %1189 = vst.msk [vmem:[%s3 + $0x50] sm:$0xff] %vm766, %v1157
  %1190 = vst.msk [vmem:[%s3 + $0x58] sm:$0xff] %vm766, %v1160
  %1191 = vst.msk [vmem:[%s3 + $0x60] sm:$0xff] %vm766, %v1165
  %1192 = vst.msk [vmem:[%s3 + $0x68] sm:$0xff] %vm766, %v1168
  %1193 = vst.msk [vmem:[%s3 + $0x70] sm:$0xff] %vm766, %v1173
  %1194 = vst.msk [vmem:[%s3 + $0x78] sm:$0xff] %vm766, %v1176
  // Predicated region
  $region14: #{unet_decoder.13} parent=0 // pred_check
    _
  $region15: #{unet_decoder.13} parent=0 // pred_check_branch
    %1196 = sbr.rel (0) target = $region17
  $region16: #{unet_decoder.13} parent=0 // pred_region
    _
  $region17: #{unet_decoder.13} parent=0 // pred_fallthru
    _
  // Predicated region
  $region18: #{unet_decoder.13} parent=0 // pred_check
    _
  $region19: #{unet_decoder.13} parent=0 // pred_check_branch
    %1198 = sbr.rel (0) target = $region21
  $region20: #{unet_decoder.13} parent=0 // pred_region
    _
  $region21: #{unet_decoder.13} parent=0 // pred_fallthru
    _

// kernel: unet_decoder.14
$region0: #{unet_decoder.14}
  #allocation0 [shape = 'u32[]', space=smem, size = 0x4, offset = 0x4, fixed_abs, tag = 'smem constant byte address 0x4 - core index']
  #allocation1 [shape = 'u32[144,128]{1,0:T(1,128)}', space=vmem, size = 0x12000, scoped, tag = 'internal scratch']
  %s0 = inlined_call_operand.vmem [shape: bf16[4,32,288], index: 0, kind: input, shape index: {}]
  %s1 = inlined_call_operand.vmem [shape: bf16[288,32], index: 1, kind: input, shape index: {}]
  %s2 = inlined_call_operand.vmem [shape: f32[1,32], index: 2, kind: input, shape index: {}]
  %s3 = inlined_call_operand.vmem [shape: f32[32,32], index: 3, kind: output, shape index: {}]
  %s4 = sld [smem:[#allocation0]]
  $region22: #{unet_decoder.14} parent=0
    _
  %s6 = ssub.s32 1, %s4
  %s7 = scalar_select 0, %s6, %s4
  // Predicated region
  $region2: #{unet_decoder.14} parent=0 // pred_check
    _
  $region3: #{unet_decoder.14} parent=0 // pred_check_branch
    %9 = sbr.rel (0) target = $region5
  $region4: #{unet_decoder.14} parent=0 // pred_region
    _
  $region5: #{unet_decoder.14} parent=0 // pred_fallthru
    _
  // Predicated region
  $region6: #{unet_decoder.14} parent=0 // pred_check
    _
  $region7: #{unet_decoder.14} parent=0 // pred_check_branch
    %11 = sbr.rel (0) target = $region9
  $region8: #{unet_decoder.14} parent=0 // pred_region
    _
  $region9: #{unet_decoder.14} parent=0 // pred_fallthru
    _
  // Predicated region
  $region10: #{unet_decoder.14} parent=0 // pred_check
    _
  $region11: #{unet_decoder.14} parent=0 // pred_check_branch
    %13 = sbr.rel (0) target = $region13
  $region12: #{unet_decoder.14} parent=0 // pred_region
    _
  $region13: #{unet_decoder.14} parent=0 // pred_fallthru
    _
  %v15 = vld [vmem:[%s1] sm:$0xf]
  %v16 = vld [vmem:[%s1 + $0x4] sm:$0xf]
  %v17 = vld [vmem:[%s1 + $0x8] sm:$0xf]
  %v18 = vld [vmem:[%s1 + $0xc] sm:$0xf]
  %v19 = vld [vmem:[%s1 + $0x10] sm:$0xf]
  %v20 = vld [vmem:[%s1 + $0x14] sm:$0xf]
  %v21 = vld [vmem:[%s1 + $0x18] sm:$0xf]
  %v22 = vld [vmem:[%s1 + $0x1c] sm:$0xf]
  %v23 = vld [vmem:[%s1 + $0x20] sm:$0xf]
  %v24 = vld [vmem:[%s1 + $0x24] sm:$0xf]
  %v25 = vld [vmem:[%s1 + $0x28] sm:$0xf]
  %v26 = vld [vmem:[%s1 + $0x2c] sm:$0xf]
  %v27 = vld [vmem:[%s1 + $0x30] sm:$0xf]
  %v28 = vld [vmem:[%s1 + $0x34] sm:$0xf]
  %v29 = vld [vmem:[%s1 + $0x38] sm:$0xf]
  %v30 = vld [vmem:[%s1 + $0x3c] sm:$0xf]
  %v31 = vld [vmem:[%s1 + $0x40] sm:$0xf]
  %v32 = vld [vmem:[%s1 + $0x44] sm:$0xf]
  %v33 = vld [vmem:[%s1 + $0x48] sm:$0xf]
  %v34 = vld [vmem:[%s1 + $0x4c] sm:$0xf]
  %v35 = vld [vmem:[%s1 + $0x50] sm:$0xf]
  %v36 = vld [vmem:[%s1 + $0x54] sm:$0xf]
  %v37 = vld [vmem:[%s1 + $0x58] sm:$0xf]
  %v38 = vld [vmem:[%s1 + $0x5c] sm:$0xf]
  %v39 = vld [vmem:[%s1 + $0x60] sm:$0xf]
  %v40 = vld [vmem:[%s1 + $0x64] sm:$0xf]
  %v41 = vld [vmem:[%s1 + $0x68] sm:$0xf]
  %v42 = vld [vmem:[%s1 + $0x6c] sm:$0xf]
  %v43 = vld [vmem:[%s1 + $0x70] sm:$0xf]
  %v44 = vld [vmem:[%s1 + $0x74] sm:$0xf]
  %v45 = vld [vmem:[%s1 + $0x78] sm:$0xf]
  %v46 = vld [vmem:[%s1 + $0x7c] sm:$0xf]
  %v47 = vld [vmem:[%s1 + $0x80] sm:$0xf]
  %v48 = vld [vmem:[%s1 + $0x84] sm:$0xf]
  %v49 = vld [vmem:[%s1 + $0x88] sm:$0xf]
  %v50 = vld [vmem:[%s1 + $0x8c] sm:$0xf]
  %v51 = vld [vmem:[%s0] sm:$0xff]
  %v52 = vld [vmem:[%s0 + $0x8] sm:$0xf]
  %v53 = vld [vmem:[%s0 + $0xc] sm:$0xff]
  %v54 = vld [vmem:[%s0 + $0x14] sm:$0xf]
  %v55 = vld [vmem:[%s0 + $0x18] sm:$0xff]
  %v56 = vld [vmem:[%s0 + $0x20] sm:$0xf]
  %v57 = vld [vmem:[%s0 + $0x24] sm:$0xff]
  %v58 = vld [vmem:[%s0 + $0x2c] sm:$0xf]
  %v67 = vunpack.c.l.b16 %v51
  %v68 = vunpack.c.h.b16 %v51
  %v69 = vunpack.c.l.b16 %v52
  %v70 = vunpack.c.l.b16 %v53
  %v71 = vunpack.c.h.b16 %v53
  %v72 = vunpack.c.l.b16 %v54
  %v73 = vunpack.c.l.b16 %v55
  %v74 = vunpack.c.h.b16 %v55
  %v75 = vunpack.c.l.b16 %v56
  %v76 = vunpack.c.l.b16 %v57
  %v77 = vunpack.c.h.b16 %v57
  %v78 = vunpack.c.l.b16 %v58
  %v79 = vpack.c.b16 %v70, %v67
  %v80 = vpack.c.b16 %v71, %v68
  %v81 = vpack.c.b16 %v72, %v69
  %v82 = vpack.c.b16 %v76, %v73
  %v83 = vpack.c.b16 %v77, %v74
  %v84 = vpack.c.b16 %v78, %v75
  %v125 = vunpack.c.l.b16 %v15
  %v126 = vunpack.c.l.b16 %v16
  %v127 = vunpack.c.l.b16 %v17
  %v128 = vunpack.c.l.b16 %v18
  %v129 = vunpack.c.l.b16 %v19
  %v130 = vunpack.c.l.b16 %v20
  %v131 = vunpack.c.l.b16 %v21
  %v132 = vunpack.c.l.b16 %v22
  %v133 = vunpack.c.l.b16 %v23
  %v134 = vunpack.c.l.b16 %v24
  %v135 = vunpack.c.l.b16 %v25
  %v136 = vunpack.c.l.b16 %v26
  %v137 = vunpack.c.l.b16 %v27
  %v138 = vunpack.c.l.b16 %v28
  %v139 = vunpack.c.l.b16 %v29
  %v140 = vunpack.c.l.b16 %v30
  %v141 = vunpack.c.l.b16 %v31
  %v142 = vunpack.c.l.b16 %v32
  %v143 = vunpack.c.l.b16 %v33
  %v144 = vunpack.c.l.b16 %v34
  %v145 = vunpack.c.l.b16 %v35
  %v146 = vunpack.c.l.b16 %v36
  %v147 = vunpack.c.l.b16 %v37
  %v148 = vunpack.c.l.b16 %v38
  %v149 = vunpack.c.l.b16 %v39
  %v150 = vunpack.c.l.b16 %v40
  %v151 = vunpack.c.l.b16 %v41
  %v152 = vunpack.c.l.b16 %v42
  %v153 = vunpack.c.l.b16 %v43
  %v154 = vunpack.c.l.b16 %v44
  %v155 = vunpack.c.l.b16 %v45
  %v156 = vunpack.c.l.b16 %v46
  %v157 = vunpack.c.l.b16 %v47
  %v158 = vunpack.c.l.b16 %v48
  %v159 = vunpack.c.l.b16 %v49
  %v160 = vunpack.c.l.b16 %v50
  %v161 = vpack.c.b16 %v126, %v125
  %v162 = vpack.c.b16 %v128, %v127
  %v163 = vpack.c.b16 %v130, %v129
  %v164 = vpack.c.b16 %v132, %v131
  %v165 = vpack.c.b16 %v134, %v133
  %v166 = vpack.c.b16 %v136, %v135
  %v167 = vpack.c.b16 %v138, %v137
  %v168 = vpack.c.b16 %v140, %v139
  %v169 = vpack.c.b16 %v142, %v141
  %v170 = vpack.c.b16 %v144, %v143
  %v171 = vpack.c.b16 %v146, %v145
  %v172 = vpack.c.b16 %v148, %v147
  %v173 = vpack.c.b16 %v150, %v149
  %v174 = vpack.c.b16 %v152, %v151
  %v175 = vpack.c.b16 %v154, %v153
  %v176 = vpack.c.b16 %v156, %v155
  %v177 = vpack.c.b16 %v158, %v157
  %v178 = vpack.c.b16 %v160, %v159
  %vm197 = vcmask 261120
  %v199 = vsel %vm197, %v81, 0
  %v202 = vsel %vm197, %v84, 0
  %204 = vmatprep.subr.bf16.mxu0 0
  %205 = vmatpush1.bf16.msra.mxu0 %v161
  %206 = vmatprep.subr.bf16.mxu0 0
  %207 = vmatpush1.bf16.msra.mxu0 %v162
  %208 = vmatprep.subr.bf16.mxu0 0
  %209 = vmatpush1.bf16.msra.mxu0 %v163
  %210 = vmatprep.subr.bf16.mxu0 0
  %211 = vmatpush1.bf16.msra.mxu0 %v164
  %212 = vmatprep.subr.bf16.mxu0 0
  %213 = vmatpush1.bf16.msra.mxu0 %v165
  %214 = vmatprep.subr.bf16.mxu0 0
  %215 = vmatpush1.bf16.msra.mxu0 %v166
  %216 = vmatprep.subr.bf16.mxu0 0
  %217 = vmatpush1.bf16.msra.mxu0 %v167
  %218 = vmatprep.subr.bf16.mxu0 0
  %219 = vmatpush1.bf16.msra.mxu0 %v168
  %220 = vmatprep.subr.bf16.mxu0 0
  %221 = vmatpush1.bf16.msra.mxu0 %v169
  %222 = vmatprep.subr.bf16.mxu0 0
  %223 = vmatpush1.bf16.msra.mxu0 %v170
  %224 = vmatprep.subr.bf16.mxu0 0
  %225 = vmatpush1.bf16.msra.mxu0 %v171
  %226 = vmatprep.subr.bf16.mxu0 0
  %227 = vmatpush1.bf16.msra.mxu0 %v172
  %228 = vmatprep.subr.bf16.mxu0 0
  %229 = vmatpush1.bf16.msra.mxu0 %v173
  %230 = vmatprep.subr.bf16.mxu0 0
  %231 = vmatpush1.bf16.msra.mxu0 %v174
  %232 = vmatprep.subr.bf16.mxu0 0
  %233 = vmatpush1.bf16.msra.mxu0 %v175
  %234 = vmatprep.subr.bf16.mxu0 0
  %235 = vmatpush1.bf16.msra.mxu0 %v176
  %236 = vmatprep.mubr.bf16.mxu0 %v80
  %237 = vmatmul.mubr.bf16.gmra.mrb[0].mxu0 %v79
  %v238 = vpop.f32.mrb[0].mxu0
  %v239 = vadd.f32 0.0, %v238
  %v240 = vpop.f32.mrb[0].mxu0
  %v241 = vpop.f32.mrb[0].mxu0
  %v242 = vadd.f32 0.0, %v241
  %v243 = vpop.f32.mrb[0].mxu0
  %244 = vmatprep.mubr.bf16.mxu0 %v83
  %245 = vmatmul.mubr.bf16.gmra.mrb[0].mxu0 %v82
  %v246 = vpop.f32.mrb[0].mxu0
  %v247 = vadd.f32 0.0, %v246
  %v248 = vpop.f32.mrb[0].mxu0
  %v249 = vpop.f32.mrb[0].mxu0
  %v250 = vadd.f32 0.0, %v249
  %v251 = vpop.f32.mrb[0].mxu0
  %252 = vdwg.mxu0
  %253 = vmatprep.subr.bf16.mxu0 0
  %254 = vmatpush1.bf16.msra.mxu0 %v177
  %255 = vmatprep.subr.bf16.mxu0 0
  %256 = vmatpush1.bf16.msra.mxu0 %v178
  %257 = vmatprep.subr.bf16.mxu0 0
  %258 = vmatpush1.bf16.msra.mxu0 0
  %259 = vmatprep.subr.bf16.mxu0 0
  %260 = vmatpush1.bf16.msra.mxu0 0
  %261 = vmatprep.subr.bf16.mxu0 0
  %262 = vmatpush1.bf16.msra.mxu0 0
  %263 = vmatprep.subr.bf16.mxu0 0
  %264 = vmatpush1.bf16.msra.mxu0 0
  %265 = vmatprep.subr.bf16.mxu0 0
  %266 = vmatpush1.bf16.msra.mxu0 0
  %267 = vmatprep.subr.bf16.mxu0 0
  %268 = vmatpush1.bf16.msra.mxu0 0
  %269 = vmatprep.subr.bf16.mxu0 0
  %270 = vmatpush1.bf16.msra.mxu0 0
  %271 = vmatprep.subr.bf16.mxu0 0
  %272 = vmatpush1.bf16.msra.mxu0 0
  %273 = vmatprep.subr.bf16.mxu0 0
  %274 = vmatpush1.bf16.msra.mxu0 0
  %275 = vmatprep.subr.bf16.mxu0 0
  %276 = vmatpush1.bf16.msra.mxu0 0
  %277 = vmatprep.subr.bf16.mxu0 0
  %278 = vmatpush1.bf16.msra.mxu0 0
  %279 = vmatprep.subr.bf16.mxu0 0
  %280 = vmatpush1.bf16.msra.mxu0 0
  %281 = vmatprep.subr.bf16.mxu0 0
  %282 = vmatpush1.bf16.msra.mxu0 0
  %283 = vmatprep.subr.bf16.mxu0 0
  %284 = vmatpush1.bf16.msra.mxu0 0
  %285 = vmatprep.mubr.bf16.mxu0 0
  %286 = vmatmul.mubr.bf16.gmra.mrb[0].mxu0 %v199
  %v287 = vpop.f32.mrb[0].mxu0
  %v288 = vadd.f32 %v239, %v287
  %v289 = vpop.f32.mrb[0].mxu0
  %v290 = vpop.f32.mrb[0].mxu0
  %v291 = vadd.f32 %v242, %v290
  %v292 = vpop.f32.mrb[0].mxu0
  %293 = vmatprep.mubr.bf16.mxu0 0
  %294 = vmatmul.mubr.bf16.gmra.mrb[0].mxu0 %v202
  %v295 = vpop.f32.mrb[0].mxu0
  %v296 = vadd.f32 %v247, %v295
  %v297 = vpop.f32.mrb[0].mxu0
  %v298 = vpop.f32.mrb[0].mxu0
  %v299 = vadd.f32 %v250, %v298
  %v300 = vpop.f32.mrb[0].mxu0
  %301 = vdwg.mxu0
  %s302 = scalar_lea.vmem %s0, 48
  %v303 = vld [vmem:[%s302] sm:$0xff]
  %v304 = vld [vmem:[%s302 + $0x8] sm:$0xf]
  %v305 = vld [vmem:[%s302 + $0xc] sm:$0xff]
  %v306 = vld [vmem:[%s302 + $0x14] sm:$0xf]
  %v307 = vld [vmem:[%s302 + $0x18] sm:$0xff]
  %v308 = vld [vmem:[%s302 + $0x20] sm:$0xf]
  %v309 = vld [vmem:[%s302 + $0x24] sm:$0xff]
  %v310 = vld [vmem:[%s302 + $0x2c] sm:$0xf]
  %v319 = vunpack.c.l.b16 %v303
  %v320 = vunpack.c.h.b16 %v303
  %v321 = vunpack.c.l.b16 %v304
  %v322 = vunpack.c.l.b16 %v305
  %v323 = vunpack.c.h.b16 %v305
  %v324 = vunpack.c.l.b16 %v306
  %v325 = vunpack.c.l.b16 %v307
  %v326 = vunpack.c.h.b16 %v307
  %v327 = vunpack.c.l.b16 %v308
  %v328 = vunpack.c.l.b16 %v309
  %v329 = vunpack.c.h.b16 %v309
  %v330 = vunpack.c.l.b16 %v310
  %v331 = vpack.c.b16 %v322, %v319
  %v332 = vpack.c.b16 %v323, %v320
  %v333 = vpack.c.b16 %v324, %v321
  %v334 = vpack.c.b16 %v328, %v325
  %v335 = vpack.c.b16 %v329, %v326
  %v336 = vpack.c.b16 %v330, %v327
  %v342 = vsel %vm197, %v333, 0
  %v345 = vsel %vm197, %v336, 0
  %347 = vmatprep.subr.bf16.mxu0 0
  %348 = vmatpush1.bf16.msra.mxu0 %v161
  %349 = vmatprep.subr.bf16.mxu0 0
  %350 = vmatpush1.bf16.msra.mxu0 %v162
  %351 = vmatprep.subr.bf16.mxu0 0
  %352 = vmatpush1.bf16.msra.mxu0 %v163
  %353 = vmatprep.subr.bf16.mxu0 0
  %354 = vmatpush1.bf16.msra.mxu0 %v164
  %355 = vmatprep.subr.bf16.mxu0 0
  %356 = vmatpush1.bf16.msra.mxu0 %v165
  %357 = vmatprep.subr.bf16.mxu0 0
  %358 = vmatpush1.bf16.msra.mxu0 %v166
  %359 = vmatprep.subr.bf16.mxu0 0
  %360 = vmatpush1.bf16.msra.mxu0 %v167
  %361 = vmatprep.subr.bf16.mxu0 0
  %362 = vmatpush1.bf16.msra.mxu0 %v168
  %363 = vmatprep.subr.bf16.mxu0 0
  %364 = vmatpush1.bf16.msra.mxu0 %v169
  %365 = vmatprep.subr.bf16.mxu0 0
  %366 = vmatpush1.bf16.msra.mxu0 %v170
  %367 = vmatprep.subr.bf16.mxu0 0
  %368 = vmatpush1.bf16.msra.mxu0 %v171
  %369 = vmatprep.subr.bf16.mxu0 0
  %370 = vmatpush1.bf16.msra.mxu0 %v172
  %371 = vmatprep.subr.bf16.mxu0 0
  %372 = vmatpush1.bf16.msra.mxu0 %v173
  %373 = vmatprep.subr.bf16.mxu0 0
  %374 = vmatpush1.bf16.msra.mxu0 %v174
  %375 = vmatprep.subr.bf16.mxu0 0
  %376 = vmatpush1.bf16.msra.mxu0 %v175
  %377 = vmatprep.subr.bf16.mxu0 0
  %378 = vmatpush1.bf16.msra.mxu0 %v176
  %379 = vmatprep.mubr.bf16.mxu0 %v332
  %380 = vmatmul.mubr.bf16.gmra.mrb[0].mxu0 %v331
  %v381 = vpop.f32.mrb[0].mxu0
  %v382 = vadd.f32 0.0, %v381
  %v383 = vpop.f32.mrb[0].mxu0
  %v384 = vpop.f32.mrb[0].mxu0
  %v385 = vadd.f32 0.0, %v384
  %v386 = vpop.f32.mrb[0].mxu0
  %387 = vmatprep.mubr.bf16.mxu0 %v335
  %388 = vmatmul.mubr.bf16.gmra.mrb[0].mxu0 %v334
  %v389 = vpop.f32.mrb[0].mxu0
  %v390 = vadd.f32 0.0, %v389
  %v391 = vpop.f32.mrb[0].mxu0
  %v392 = vpop.f32.mrb[0].mxu0
  %v393 = vadd.f32 0.0, %v392
  %v394 = vpop.f32.mrb[0].mxu0
  %395 = vdwg.mxu0
  %396 = vmatprep.subr.bf16.mxu0 0
  %397 = vmatpush1.bf16.msra.mxu0 %v177
  %398 = vmatprep.subr.bf16.mxu0 0
  %399 = vmatpush1.bf16.msra.mxu0 %v178
  %400 = vmatprep.subr.bf16.mxu0 0
  %401 = vmatpush1.bf16.msra.mxu0 0
  %402 = vmatprep.subr.bf16.mxu0 0
  %403 = vmatpush1.bf16.msra.mxu0 0
  %404 = vmatprep.subr.bf16.mxu0 0
  %405 = vmatpush1.bf16.msra.mxu0 0
  %406 = vmatprep.subr.bf16.mxu0 0
  %407 = vmatpush1.bf16.msra.mxu0 0
  %408 = vmatprep.subr.bf16.mxu0 0
  %409 = vmatpush1.bf16.msra.mxu0 0
  %410 = vmatprep.subr.bf16.mxu0 0
  %411 = vmatpush1.bf16.msra.mxu0 0
  %412 = vmatprep.subr.bf16.mxu0 0
  %413 = vmatpush1.bf16.msra.mxu0 0
  %414 = vmatprep.subr.bf16.mxu0 0
  %415 = vmatpush1.bf16.msra.mxu0 0
  %416 = vmatprep.subr.bf16.mxu0 0
  %417 = vmatpush1.bf16.msra.mxu0 0
  %418 = vmatprep.subr.bf16.mxu0 0
  %419 = vmatpush1.bf16.msra.mxu0 0
  %420 = vmatprep.subr.bf16.mxu0 0
  %421 = vmatpush1.bf16.msra.mxu0 0
  %422 = vmatprep.subr.bf16.mxu0 0
  %423 = vmatpush1.bf16.msra.mxu0 0
  %424 = vmatprep.subr.bf16.mxu0 0
  %425 = vmatpush1.bf16.msra.mxu0 0
  %426 = vmatprep.subr.bf16.mxu0 0
  %427 = vmatpush1.bf16.msra.mxu0 0
  %428 = vmatprep.mubr.bf16.mxu0 0
  %429 = vmatmul.mubr.bf16.gmra.mrb[0].mxu0 %v342
  %v430 = vpop.f32.mrb[0].mxu0
  %v431 = vadd.f32 %v382, %v430
  %v432 = vpop.f32.mrb[0].mxu0
  %v433 = vpop.f32.mrb[0].mxu0
  %v434 = vadd.f32 %v385, %v433
  %v435 = vpop.f32.mrb[0].mxu0
  %436 = vmatprep.mubr.bf16.mxu0 0
  %437 = vmatmul.mubr.bf16.gmra.mrb[0].mxu0 %v345
  %v438 = vpop.f32.mrb[0].mxu0
  %v439 = vadd.f32 %v390, %v438
  %v440 = vpop.f32.mrb[0].mxu0
  %v441 = vpop.f32.mrb[0].mxu0
  %v442 = vadd.f32 %v393, %v441
  %v443 = vpop.f32.mrb[0].mxu0
  %444 = vdwg.mxu0
  %v445 = vmax.f32 %v288, %v431
  %v446 = vmax.f32 %v291, %v434
  %v447 = vmax.f32 %v296, %v439
  %v448 = vmax.f32 %v299, %v442
  %s449 = scalar_lea.vmem %s0, 96
  %v450 = vld [vmem:[%s449] sm:$0xff]
  %v451 = vld [vmem:[%s449 + $0x8] sm:$0xf]
  %v452 = vld [vmem:[%s449 + $0xc] sm:$0xff]
  %v453 = vld [vmem:[%s449 + $0x14] sm:$0xf]
  %v454 = vld [vmem:[%s449 + $0x18] sm:$0xff]
  %v455 = vld [vmem:[%s449 + $0x20] sm:$0xf]
  %v456 = vld [vmem:[%s449 + $0x24] sm:$0xff]
  %v457 = vld [vmem:[%s449 + $0x2c] sm:$0xf]
  %v466 = vunpack.c.l.b16 %v450
  %v467 = vunpack.c.h.b16 %v450
  %v468 = vunpack.c.l.b16 %v451
  %v469 = vunpack.c.l.b16 %v452
  %v470 = vunpack.c.h.b16 %v452
  %v471 = vunpack.c.l.b16 %v453
  %v472 = vunpack.c.l.b16 %v454
  %v473 = vunpack.c.h.b16 %v454
  %v474 = vunpack.c.l.b16 %v455
  %v475 = vunpack.c.l.b16 %v456
  %v476 = vunpack.c.h.b16 %v456
  %v477 = vunpack.c.l.b16 %v457
  %v478 = vpack.c.b16 %v469, %v466
  %v479 = vpack.c.b16 %v470, %v467
  %v480 = vpack.c.b16 %v471, %v468
  %v481 = vpack.c.b16 %v475, %v472
  %v482 = vpack.c.b16 %v476, %v473
  %v483 = vpack.c.b16 %v477, %v474
  %v489 = vsel %vm197, %v480, 0
  %v492 = vsel %vm197, %v483, 0
  %494 = vmatprep.subr.bf16.mxu0 0
  %495 = vmatpush1.bf16.msra.mxu0 %v161
  %496 = vmatprep.subr.bf16.mxu0 0
  %497 = vmatpush1.bf16.msra.mxu0 %v162
  %498 = vmatprep.subr.bf16.mxu0 0
  %499 = vmatpush1.bf16.msra.mxu0 %v163
  %500 = vmatprep.subr.bf16.mxu0 0
  %501 = vmatpush1.bf16.msra.mxu0 %v164
  %502 = vmatprep.subr.bf16.mxu0 0
  %503 = vmatpush1.bf16.msra.mxu0 %v165
  %504 = vmatprep.subr.bf16.mxu0 0
  %505 = vmatpush1.bf16.msra.mxu0 %v166
  %506 = vmatprep.subr.bf16.mxu0 0
  %507 = vmatpush1.bf16.msra.mxu0 %v167
  %508 = vmatprep.subr.bf16.mxu0 0
  %509 = vmatpush1.bf16.msra.mxu0 %v168
  %510 = vmatprep.subr.bf16.mxu0 0
  %511 = vmatpush1.bf16.msra.mxu0 %v169
  %512 = vmatprep.subr.bf16.mxu0 0
  %513 = vmatpush1.bf16.msra.mxu0 %v170
  %514 = vmatprep.subr.bf16.mxu0 0
  %515 = vmatpush1.bf16.msra.mxu0 %v171
  %516 = vmatprep.subr.bf16.mxu0 0
  %517 = vmatpush1.bf16.msra.mxu0 %v172
  %518 = vmatprep.subr.bf16.mxu0 0
  %519 = vmatpush1.bf16.msra.mxu0 %v173
  %520 = vmatprep.subr.bf16.mxu0 0
  %521 = vmatpush1.bf16.msra.mxu0 %v174
  %522 = vmatprep.subr.bf16.mxu0 0
  %523 = vmatpush1.bf16.msra.mxu0 %v175
  %524 = vmatprep.subr.bf16.mxu0 0
  %525 = vmatpush1.bf16.msra.mxu0 %v176
  %526 = vmatprep.mubr.bf16.mxu0 %v479
  %527 = vmatmul.mubr.bf16.gmra.mrb[0].mxu0 %v478
  %v528 = vpop.f32.mrb[0].mxu0
  %v529 = vadd.f32 0.0, %v528
  %v530 = vpop.f32.mrb[0].mxu0
  %v531 = vpop.f32.mrb[0].mxu0
  %v532 = vadd.f32 0.0, %v531
  %v533 = vpop.f32.mrb[0].mxu0
  %534 = vmatprep.mubr.bf16.mxu0 %v482
  %535 = vmatmul.mubr.bf16.gmra.mrb[0].mxu0 %v481
  %v536 = vpop.f32.mrb[0].mxu0
  %v537 = vadd.f32 0.0, %v536
  %v538 = vpop.f32.mrb[0].mxu0
  %v539 = vpop.f32.mrb[0].mxu0
  %v540 = vadd.f32 0.0, %v539
  %v541 = vpop.f32.mrb[0].mxu0
  %542 = vdwg.mxu0
  %543 = vmatprep.subr.bf16.mxu0 0
  %544 = vmatpush1.bf16.msra.mxu0 %v177
  %545 = vmatprep.subr.bf16.mxu0 0
  %546 = vmatpush1.bf16.msra.mxu0 %v178
  %547 = vmatprep.subr.bf16.mxu0 0
  %548 = vmatpush1.bf16.msra.mxu0 0
  %549 = vmatprep.subr.bf16.mxu0 0
  %550 = vmatpush1.bf16.msra.mxu0 0
  %551 = vmatprep.subr.bf16.mxu0 0
  %552 = vmatpush1.bf16.msra.mxu0 0
  %553 = vmatprep.subr.bf16.mxu0 0
  %554 = vmatpush1.bf16.msra.mxu0 0
  %555 = vmatprep.subr.bf16.mxu0 0
  %556 = vmatpush1.bf16.msra.mxu0 0
  %557 = vmatprep.subr.bf16.mxu0 0
  %558 = vmatpush1.bf16.msra.mxu0 0
  %559 = vmatprep.subr.bf16.mxu0 0
  %560 = vmatpush1.bf16.msra.mxu0 0
  %561 = vmatprep.subr.bf16.mxu0 0
  %562 = vmatpush1.bf16.msra.mxu0 0
  %563 = vmatprep.subr.bf16.mxu0 0
  %564 = vmatpush1.bf16.msra.mxu0 0
  %565 = vmatprep.subr.bf16.mxu0 0
  %566 = vmatpush1.bf16.msra.mxu0 0
  %567 = vmatprep.subr.bf16.mxu0 0
  %568 = vmatpush1.bf16.msra.mxu0 0
  %569 = vmatprep.subr.bf16.mxu0 0
  %570 = vmatpush1.bf16.msra.mxu0 0
  %571 = vmatprep.subr.bf16.mxu0 0
  %572 = vmatpush1.bf16.msra.mxu0 0
  %573 = vmatprep.subr.bf16.mxu0 0
  %574 = vmatpush1.bf16.msra.mxu0 0
  %575 = vmatprep.mubr.bf16.mxu0 0
  %576 = vmatmul.mubr.bf16.gmra.mrb[0].mxu0 %v489
  %v577 = vpop.f32.mrb[0].mxu0
  %v578 = vadd.f32 %v529, %v577
  %v579 = vpop.f32.mrb[0].mxu0
  %v580 = vpop.f32.mrb[0].mxu0
  %v581 = vadd.f32 %v532, %v580
  %v582 = vpop.f32.mrb[0].mxu0
  %583 = vmatprep.mubr.bf16.mxu0 0
  %584 = vmatmul.mubr.bf16.gmra.mrb[0].mxu0 %v492
  %v585 = vpop.f32.mrb[0].mxu0
  %v586 = vadd.f32 %v537, %v585
  %v587 = vpop.f32.mrb[0].mxu0
  %v588 = vpop.f32.mrb[0].mxu0
  %v589 = vadd.f32 %v540, %v588
  %v590 = vpop.f32.mrb[0].mxu0
  %591 = vdwg.mxu0
  %s592 = scalar_lea.vmem %s0, 144
  %v593 = vld [vmem:[%s592] sm:$0xff]
  %v594 = vld [vmem:[%s592 + $0x8] sm:$0xf]
  %v595 = vld [vmem:[%s592 + $0xc] sm:$0xff]
  %v596 = vld [vmem:[%s592 + $0x14] sm:$0xf]
  %v597 = vld [vmem:[%s592 + $0x18] sm:$0xff]
  %v598 = vld [vmem:[%s592 + $0x20] sm:$0xf]
  %v599 = vld [vmem:[%s592 + $0x24] sm:$0xff]
  %v600 = vld [vmem:[%s592 + $0x2c] sm:$0xf]
  %v609 = vunpack.c.l.b16 %v593
  %v610 = vunpack.c.h.b16 %v593
  %v611 = vunpack.c.l.b16 %v594
  %v612 = vunpack.c.l.b16 %v595
  %v613 = vunpack.c.h.b16 %v595
  %v614 = vunpack.c.l.b16 %v596
  %v615 = vunpack.c.l.b16 %v597
  %v616 = vunpack.c.h.b16 %v597
  %v617 = vunpack.c.l.b16 %v598
  %v618 = vunpack.c.l.b16 %v599
  %v619 = vunpack.c.h.b16 %v599
  %v620 = vunpack.c.l.b16 %v600
  %v621 = vpack.c.b16 %v612, %v609
  %v622 = vpack.c.b16 %v613, %v610
  %v623 = vpack.c.b16 %v614, %v611
  %v624 = vpack.c.b16 %v618, %v615
  %v625 = vpack.c.b16 %v619, %v616
  %v626 = vpack.c.b16 %v620, %v617
  %v632 = vsel %vm197, %v623, 0
  %v635 = vsel %vm197, %v626, 0
  %637 = vmatprep.subr.bf16.mxu0 0
  %638 = vmatpush1.bf16.msra.mxu0 %v161
  %639 = vmatprep.subr.bf16.mxu0 0
  %640 = vmatpush1.bf16.msra.mxu0 %v162
  %641 = vmatprep.subr.bf16.mxu0 0
  %642 = vmatpush1.bf16.msra.mxu0 %v163
  %643 = vmatprep.subr.bf16.mxu0 0
  %644 = vmatpush1.bf16.msra.mxu0 %v164
  %645 = vmatprep.subr.bf16.mxu0 0
  %646 = vmatpush1.bf16.msra.mxu0 %v165
  %647 = vmatprep.subr.bf16.mxu0 0
  %648 = vmatpush1.bf16.msra.mxu0 %v166
  %649 = vmatprep.subr.bf16.mxu0 0
  %650 = vmatpush1.bf16.msra.mxu0 %v167
  %651 = vmatprep.subr.bf16.mxu0 0
  %652 = vmatpush1.bf16.msra.mxu0 %v168
  %653 = vmatprep.subr.bf16.mxu0 0
  %654 = vmatpush1.bf16.msra.mxu0 %v169
  %655 = vmatprep.subr.bf16.mxu0 0
  %656 = vmatpush1.bf16.msra.mxu0 %v170
  %657 = vmatprep.subr.bf16.mxu0 0
  %658 = vmatpush1.bf16.msra.mxu0 %v171
  %659 = vmatprep.subr.bf16.mxu0 0
  %660 = vmatpush1.bf16.msra.mxu0 %v172
  %661 = vmatprep.subr.bf16.mxu0 0
  %662 = vmatpush1.bf16.msra.mxu0 %v173
  %663 = vmatprep.subr.bf16.mxu0 0
  %664 = vmatpush1.bf16.msra.mxu0 %v174
  %665 = vmatprep.subr.bf16.mxu0 0
  %666 = vmatpush1.bf16.msra.mxu0 %v175
  %667 = vmatprep.subr.bf16.mxu0 0
  %668 = vmatpush1.bf16.msra.mxu0 %v176
  %669 = vmatprep.mubr.bf16.mxu0 %v622
  %670 = vmatmul.mubr.bf16.gmra.mrb[0].mxu0 %v621
  %v671 = vpop.f32.mrb[0].mxu0
  %v672 = vadd.f32 0.0, %v671
  %v673 = vpop.f32.mrb[0].mxu0
  %v674 = vpop.f32.mrb[0].mxu0
  %v675 = vadd.f32 0.0, %v674
  %v676 = vpop.f32.mrb[0].mxu0
  %677 = vmatprep.mubr.bf16.mxu0 %v625
  %678 = vmatmul.mubr.bf16.gmra.mrb[0].mxu0 %v624
  %v679 = vpop.f32.mrb[0].mxu0
  %v680 = vadd.f32 0.0, %v679
  %v681 = vpop.f32.mrb[0].mxu0
  %v682 = vpop.f32.mrb[0].mxu0
  %v683 = vadd.f32 0.0, %v682
  %v684 = vpop.f32.mrb[0].mxu0
  %685 = vdwg.mxu0
  %686 = vmatprep.subr.bf16.mxu0 0
  %687 = vmatpush1.bf16.msra.mxu0 %v177
  %688 = vmatprep.subr.bf16.mxu0 0
  %689 = vmatpush1.bf16.msra.mxu0 %v178
  %690 = vmatprep.subr.bf16.mxu0 0
  %691 = vmatpush1.bf16.msra.mxu0 0
  %692 = vmatprep.subr.bf16.mxu0 0
  %693 = vmatpush1.bf16.msra.mxu0 0
  %694 = vmatprep.subr.bf16.mxu0 0
  %695 = vmatpush1.bf16.msra.mxu0 0
  %696 = vmatprep.subr.bf16.mxu0 0
  %697 = vmatpush1.bf16.msra.mxu0 0
  %698 = vmatprep.subr.bf16.mxu0 0
  %699 = vmatpush1.bf16.msra.mxu0 0
  %700 = vmatprep.subr.bf16.mxu0 0
  %701 = vmatpush1.bf16.msra.mxu0 0
  %702 = vmatprep.subr.bf16.mxu0 0
  %703 = vmatpush1.bf16.msra.mxu0 0
  %704 = vmatprep.subr.bf16.mxu0 0
  %705 = vmatpush1.bf16.msra.mxu0 0
  %706 = vmatprep.subr.bf16.mxu0 0
  %707 = vmatpush1.bf16.msra.mxu0 0
  %708 = vmatprep.subr.bf16.mxu0 0
  %709 = vmatpush1.bf16.msra.mxu0 0
  %710 = vmatprep.subr.bf16.mxu0 0
  %711 = vmatpush1.bf16.msra.mxu0 0
  %712 = vmatprep.subr.bf16.mxu0 0
  %713 = vmatpush1.bf16.msra.mxu0 0
  %714 = vmatprep.subr.bf16.mxu0 0
  %715 = vmatpush1.bf16.msra.mxu0 0
  %716 = vmatprep.subr.bf16.mxu0 0
  %717 = vmatpush1.bf16.msra.mxu0 0
  %718 = vmatprep.mubr.bf16.mxu0 0
  %719 = vmatmul.mubr.bf16.gmra.mrb[0].mxu0 %v632
  %v720 = vpop.f32.mrb[0].mxu0
  %v721 = vadd.f32 %v672, %v720
  %v722 = vpop.f32.mrb[0].mxu0
  %v723 = vpop.f32.mrb[0].mxu0
  %v724 = vadd.f32 %v675, %v723
  %v725 = vpop.f32.mrb[0].mxu0
  %726 = vmatprep.mubr.bf16.mxu0 0
  %727 = vmatmul.mubr.bf16.gmra.mrb[0].mxu0 %v635
  %v728 = vpop.f32.mrb[0].mxu0
  %v729 = vadd.f32 %v680, %v728
  %v730 = vpop.f32.mrb[0].mxu0
  %v731 = vpop.f32.mrb[0].mxu0
  %v732 = vadd.f32 %v683, %v731
  %v733 = vpop.f32.mrb[0].mxu0
  %734 = vdwg.mxu0
  %v735 = vmax.f32 %v578, %v721
  %v736 = vmax.f32 %v581, %v724
  %v737 = vmax.f32 %v586, %v729
  %v738 = vmax.f32 %v589, %v732
  %v739 = vmax.f32 %v445, %v735
  %v740 = vmax.f32 %v446, %v736
  %v741 = vmax.f32 %v447, %v737
  %v742 = vmax.f32 %v448, %v738
  %v743 = vld [vmem:[%s2] sm:$0x1]
  %v745 = vlaneseq
  %v746 = vshrl.u32 %v745, 7
  %v747 = vsub.s32 0, %v746
  %v748 = vrot.slane %v743, %v747
  %v750 = vadd.f32 %v739, %v748
  %v751 = vadd.f32 %v740, %v748
  %v752 = vadd.f32 %v741, %v748
  %v753 = vadd.f32 %v742, %v748
  %vm754 = vcmp.ge.f32.partialorder %v750, 0.0
  %vm755 = vcmp.ge.f32.partialorder %v751, 0.0
  %vm756 = vcmp.ge.f32.partialorder %v752, 0.0
  %vm757 = vcmp.ge.f32.partialorder %v753, 0.0
  %v758 = vmul.f32 %v750, 0.1
  %v759 = vmul.f32 %v751, 0.1
  %v760 = vmul.f32 %v752, 0.1
  %v761 = vmul.f32 %v753, 0.1
  %v762 = vsel %vm754, %v750, %v758
  %v763 = vsel %vm755, %v751, %v759
  %v764 = vsel %vm756, %v752, %v760
  %v765 = vsel %vm757, %v753, %v761
  %766 = vst.msk [vmem:[%s3] sm:$0xff] %vm197, %v762
  %767 = vst.msk [vmem:[%s3 + $0x8] sm:$0xff] %vm197, %v763
  %768 = vst.msk [vmem:[%s3 + $0x10] sm:$0xff] %vm197, %v764
  %769 = vst.msk [vmem:[%s3 + $0x18] sm:$0xff] %vm197, %v765
  // Predicated region
  $region14: #{unet_decoder.14} parent=0 // pred_check
    _
  $region15: #{unet_decoder.14} parent=0 // pred_check_branch
    %771 = sbr.rel (0) target = $region17
  $region16: #{unet_decoder.14} parent=0 // pred_region
    _
  $region17: #{unet_decoder.14} parent=0 // pred_fallthru
    _
  // Predicated region
  $region18: #{unet_decoder.14} parent=0 // pred_check
    _
  $region19: #{unet_decoder.14} parent=0 // pred_check_branch
    %773 = sbr.rel (0) target = $region21
  $region20: #{unet_decoder.14} parent=0 // pred_region
    _
  $region21: #{unet_decoder.14} parent=0 // pred_fallthru
    _

// kernel: unet_decoder.15
$region0: #{unet_decoder.15}
  #allocation0 [shape = 'u32[]', space=smem, size = 0x4, offset = 0x4, fixed_abs, tag = 'smem constant byte address 0x4 - core index']
  #allocation1 [shape = 'u32[144,128]{1,0:T(1,128)}', space=vmem, size = 0x12000, scoped, tag = 'internal scratch']
  %s0 = inlined_call_operand.vmem [shape: bf16[32,800], index: 0, kind: input, shape index: {}]
  %s1 = inlined_call_operand.vmem [shape: bf16[800,64], index: 1, kind: input, shape index: {}]
  %s2 = inlined_call_operand.vmem [shape: f32[1,64], index: 2, kind: input, shape index: {}]
  %s3 = inlined_call_operand.vmem [shape: f32[32,64], index: 3, kind: output, shape index: {}]
  %s4 = sld [smem:[#allocation0]]
  $region22: #{unet_decoder.15} parent=0
    _
  %s6 = ssub.s32 1, %s4
  %s7 = scalar_select 0, %s6, %s4
  // Predicated region
  $region2: #{unet_decoder.15} parent=0 // pred_check
    _
  $region3: #{unet_decoder.15} parent=0 // pred_check_branch
    %9 = sbr.rel (0) target = $region5
  $region4: #{unet_decoder.15} parent=0 // pred_region
    _
  $region5: #{unet_decoder.15} parent=0 // pred_fallthru
    _
  // Predicated region
  $region6: #{unet_decoder.15} parent=0 // pred_check
    _
  $region7: #{unet_decoder.15} parent=0 // pred_check_branch
    %11 = sbr.rel (0) target = $region9
  $region8: #{unet_decoder.15} parent=0 // pred_region
    _
  $region9: #{unet_decoder.15} parent=0 // pred_fallthru
    _
  // Predicated region
  $region10: #{unet_decoder.15} parent=0 // pred_check
    _
  $region11: #{unet_decoder.15} parent=0 // pred_check_branch
    %13 = sbr.rel (0) target = $region13
  $region12: #{unet_decoder.15} parent=0 // pred_region
    _
  $region13: #{unet_decoder.15} parent=0 // pred_fallthru
    _
  %v15 = vld [vmem:[%s0] sm:$0xff]
  %v16 = vld [vmem:[%s0 + $0x8] sm:$0xff]
  %v17 = vld [vmem:[%s0 + $0x10] sm:$0xff]
  %v18 = vld [vmem:[%s0 + $0x18] sm:$0xf]
  %v19 = vld [vmem:[%s0 + $0x1c] sm:$0xff]
  %v20 = vld [vmem:[%s0 + $0x24] sm:$0xff]
  %v21 = vld [vmem:[%s0 + $0x2c] sm:$0xff]
  %v22 = vld [vmem:[%s0 + $0x34] sm:$0xf]
  %v23 = vld [vmem:[%s0 + $0x38] sm:$0xff]
  %v24 = vld [vmem:[%s0 + $0x40] sm:$0xff]
  %v25 = vld [vmem:[%s0 + $0x48] sm:$0xff]
  %v26 = vld [vmem:[%s0 + $0x50] sm:$0xf]
  %v27 = vld [vmem:[%s0 + $0x54] sm:$0xff]
  %v28 = vld [vmem:[%s0 + $0x5c] sm:$0xff]
  %v29 = vld [vmem:[%s0 + $0x64] sm:$0xff]
  %v30 = vld [vmem:[%s0 + $0x6c] sm:$0xf]
  %v31 = vld [vmem:[%s1] sm:$0xf]
  %v32 = vld [vmem:[%s1 + $0x4] sm:$0xf]
  %v33 = vld [vmem:[%s1 + $0x8] sm:$0xf]
  %v34 = vld [vmem:[%s1 + $0xc] sm:$0xf]
  %v35 = vld [vmem:[%s1 + $0x10] sm:$0xf]
  %v36 = vld [vmem:[%s1 + $0x14] sm:$0xf]
  %v37 = vld [vmem:[%s1 + $0x18] sm:$0xf]
  %v38 = vld [vmem:[%s1 + $0x1c] sm:$0xf]
  %v39 = vld [vmem:[%s1 + $0x20] sm:$0xf]
  %v40 = vld [vmem:[%s1 + $0x24] sm:$0xf]
  %v41 = vld [vmem:[%s1 + $0x28] sm:$0xf]
  %v42 = vld [vmem:[%s1 + $0x2c] sm:$0xf]
  %v43 = vld [vmem:[%s1 + $0x30] sm:$0xf]
  %v44 = vld [vmem:[%s1 + $0x34] sm:$0xf]
  %v45 = vld [vmem:[%s1 + $0x38] sm:$0xf]
  %v46 = vld [vmem:[%s1 + $0x3c] sm:$0xf]
  %v47 = vld [vmem:[%s1 + $0x40] sm:$0xf]
  %v48 = vld [vmem:[%s1 + $0x44] sm:$0xf]
  %v49 = vld [vmem:[%s1 + $0x48] sm:$0xf]
  %v50 = vld [vmem:[%s1 + $0x4c] sm:$0xf]
  %v51 = vld [vmem:[%s1 + $0x50] sm:$0xf]
  %v52 = vld [vmem:[%s1 + $0x54] sm:$0xf]
  %v53 = vld [vmem:[%s1 + $0x58] sm:$0xf]
  %v54 = vld [vmem:[%s1 + $0x5c] sm:$0xf]
  %v55 = vld [vmem:[%s1 + $0x60] sm:$0xf]
  %v56 = vld [vmem:[%s1 + $0x64] sm:$0xf]
  %v57 = vld [vmem:[%s1 + $0x68] sm:$0xf]
  %v58 = vld [vmem:[%s1 + $0x6c] sm:$0xf]
  %v59 = vld [vmem:[%s1 + $0x70] sm:$0xf]
  %v60 = vld [vmem:[%s1 + $0x74] sm:$0xf]
  %v61 = vld [vmem:[%s1 + $0x78] sm:$0xf]
  %v62 = vld [vmem:[%s1 + $0x7c] sm:$0xf]
  %v63 = vld [vmem:[%s1 + $0x80] sm:$0xf]
  %v64 = vld [vmem:[%s1 + $0x84] sm:$0xf]
  %v65 = vld [vmem:[%s1 + $0x88] sm:$0xf]
  %v66 = vld [vmem:[%s1 + $0x8c] sm:$0xf]
  %v67 = vld [vmem:[%s1 + $0x90] sm:$0xf]
  %v68 = vld [vmem:[%s1 + $0x94] sm:$0xf]
  %v69 = vld [vmem:[%s1 + $0x98] sm:$0xf]
  %v70 = vld [vmem:[%s1 + $0x9c] sm:$0xf]
  %v71 = vld [vmem:[%s1 + $0xa0] sm:$0xf]
  %v72 = vld [vmem:[%s1 + $0xa4] sm:$0xf]
  %v73 = vld [vmem:[%s1 + $0xa8] sm:$0xf]
  %v74 = vld [vmem:[%s1 + $0xac] sm:$0xf]
  %v75 = vld [vmem:[%s1 + $0xb0] sm:$0xf]
  %v76 = vld [vmem:[%s1 + $0xb4] sm:$0xf]
  %v77 = vld [vmem:[%s1 + $0xb8] sm:$0xf]
  %v78 = vld [vmem:[%s1 + $0xbc] sm:$0xf]
  %v79 = vld [vmem:[%s1 + $0xc0] sm:$0xf]
  %v80 = vld [vmem:[%s1 + $0xc4] sm:$0xf]
  %v81 = vld [vmem:[%s1 + $0xc8] sm:$0xf]
  %v82 = vld [vmem:[%s1 + $0xcc] sm:$0xf]
  %v83 = vld [vmem:[%s1 + $0xd0] sm:$0xf]
  %v84 = vld [vmem:[%s1 + $0xd4] sm:$0xf]
  %v85 = vld [vmem:[%s1 + $0xd8] sm:$0xf]
  %v86 = vld [vmem:[%s1 + $0xdc] sm:$0xf]
  %v87 = vld [vmem:[%s1 + $0xe0] sm:$0xf]
  %v88 = vld [vmem:[%s1 + $0xe4] sm:$0xf]
  %v89 = vld [vmem:[%s1 + $0xe8] sm:$0xf]
  %v90 = vld [vmem:[%s1 + $0xec] sm:$0xf]
  %v91 = vld [vmem:[%s1 + $0xf0] sm:$0xf]
  %v92 = vld [vmem:[%s1 + $0xf4] sm:$0xf]
  %v93 = vld [vmem:[%s1 + $0xf8] sm:$0xf]
  %v94 = vld [vmem:[%s1 + $0xfc] sm:$0xf]
  %v95 = vld [vmem:[%s1 + $0x100] sm:$0xf]
  %v96 = vld [vmem:[%s1 + $0x104] sm:$0xf]
  %v97 = vld [vmem:[%s1 + $0x108] sm:$0xf]
  %v98 = vld [vmem:[%s1 + $0x10c] sm:$0xf]
  %v99 = vld [vmem:[%s1 + $0x110] sm:$0xf]
  %v100 = vld [vmem:[%s1 + $0x114] sm:$0xf]
  %v101 = vld [vmem:[%s1 + $0x118] sm:$0xf]
  %v102 = vld [vmem:[%s1 + $0x11c] sm:$0xf]
  %v103 = vld [vmem:[%s1 + $0x120] sm:$0xf]
  %v104 = vld [vmem:[%s1 + $0x124] sm:$0xf]
  %v105 = vld [vmem:[%s1 + $0x128] sm:$0xf]
  %v106 = vld [vmem:[%s1 + $0x12c] sm:$0xf]
  %v107 = vld [vmem:[%s1 + $0x130] sm:$0xf]
  %v108 = vld [vmem:[%s1 + $0x134] sm:$0xf]
  %v109 = vld [vmem:[%s1 + $0x138] sm:$0xf]
  %v110 = vld [vmem:[%s1 + $0x13c] sm:$0xf]
  %v111 = vld [vmem:[%s1 + $0x140] sm:$0xf]
  %v112 = vld [vmem:[%s1 + $0x144] sm:$0xf]
  %v113 = vld [vmem:[%s1 + $0x148] sm:$0xf]
  %v114 = vld [vmem:[%s1 + $0x14c] sm:$0xf]
  %v115 = vld [vmem:[%s1 + $0x150] sm:$0xf]
  %v116 = vld [vmem:[%s1 + $0x154] sm:$0xf]
  %v117 = vld [vmem:[%s1 + $0x158] sm:$0xf]
  %v118 = vld [vmem:[%s1 + $0x15c] sm:$0xf]
  %v119 = vld [vmem:[%s1 + $0x160] sm:$0xf]
  %v120 = vld [vmem:[%s1 + $0x164] sm:$0xf]
  %v121 = vld [vmem:[%s1 + $0x168] sm:$0xf]
  %v122 = vld [vmem:[%s1 + $0x16c] sm:$0xf]
  %v123 = vld [vmem:[%s1 + $0x170] sm:$0xf]
  %v124 = vld [vmem:[%s1 + $0x174] sm:$0xf]
  %v125 = vld [vmem:[%s1 + $0x178] sm:$0xf]
  %v126 = vld [vmem:[%s1 + $0x17c] sm:$0xf]
  %v127 = vld [vmem:[%s1 + $0x180] sm:$0xf]
  %v128 = vld [vmem:[%s1 + $0x184] sm:$0xf]
  %v129 = vld [vmem:[%s1 + $0x188] sm:$0xf]
  %v130 = vld [vmem:[%s1 + $0x18c] sm:$0xf]
  %v131 = vld [vmem:[%s2] sm:$0x1]
  %v133 = vlaneseq
  %v134 = vshrl.u32 %v133, 7
  %v135 = vsub.s32 0, %v134
  %v136 = vrot.slane %v131, %v135
  %v154 = vunpack.c.l.b16 %v15
  %v155 = vunpack.c.h.b16 %v15
  %v156 = vunpack.c.l.b16 %v16
  %v157 = vunpack.c.h.b16 %v16
  %v158 = vunpack.c.l.b16 %v17
  %v159 = vunpack.c.h.b16 %v17
  %v160 = vunpack.c.l.b16 %v18
  %v161 = vunpack.c.l.b16 %v19
  %v162 = vunpack.c.h.b16 %v19
  %v163 = vunpack.c.l.b16 %v20
  %v164 = vunpack.c.h.b16 %v20
  %v165 = vunpack.c.l.b16 %v21
  %v166 = vunpack.c.h.b16 %v21
  %v167 = vunpack.c.l.b16 %v22
  %v168 = vunpack.c.l.b16 %v23
  %v169 = vunpack.c.h.b16 %v23
  %v170 = vunpack.c.l.b16 %v24
  %v171 = vunpack.c.h.b16 %v24
  %v172 = vunpack.c.l.b16 %v25
  %v173 = vunpack.c.h.b16 %v25
  %v174 = vunpack.c.l.b16 %v26
  %v175 = vunpack.c.l.b16 %v27
  %v176 = vunpack.c.h.b16 %v27
  %v177 = vunpack.c.l.b16 %v28
  %v178 = vunpack.c.h.b16 %v28
  %v179 = vunpack.c.l.b16 %v29
  %v180 = vunpack.c.h.b16 %v29
  %v181 = vunpack.c.l.b16 %v30
  %v182 = vpack.c.b16 %v161, %v154
  %v183 = vpack.c.b16 %v162, %v155
  %v184 = vpack.c.b16 %v163, %v156
  %v185 = vpack.c.b16 %v164, %v157
  %v186 = vpack.c.b16 %v165, %v158
  %v187 = vpack.c.b16 %v166, %v159
  %v188 = vpack.c.b16 %v167, %v160
  %v189 = vpack.c.b16 %v175, %v168
  %v190 = vpack.c.b16 %v176, %v169
  %v191 = vpack.c.b16 %v177, %v170
  %v192 = vpack.c.b16 %v178, %v171
  %v193 = vpack.c.b16 %v179, %v172
  %v194 = vpack.c.b16 %v180, %v173
  %v195 = vpack.c.b16 %v181, %v174
  %v308 = vunpack.c.l.b16 %v31
  %v309 = vunpack.c.l.b16 %v32
  %v310 = vunpack.c.l.b16 %v33
  %v311 = vunpack.c.l.b16 %v34
  %v312 = vunpack.c.l.b16 %v35
  %v313 = vunpack.c.l.b16 %v36
  %v314 = vunpack.c.l.b16 %v37
  %v315 = vunpack.c.l.b16 %v38
  %v316 = vunpack.c.l.b16 %v39
  %v317 = vunpack.c.l.b16 %v40
  %v318 = vunpack.c.l.b16 %v41
  %v319 = vunpack.c.l.b16 %v42
  %v320 = vunpack.c.l.b16 %v43
  %v321 = vunpack.c.l.b16 %v44
  %v322 = vunpack.c.l.b16 %v45
  %v323 = vunpack.c.l.b16 %v46
  %v324 = vunpack.c.l.b16 %v47
  %v325 = vunpack.c.l.b16 %v48
  %v326 = vunpack.c.l.b16 %v49
  %v327 = vunpack.c.l.b16 %v50
  %v328 = vunpack.c.l.b16 %v51
  %v329 = vunpack.c.l.b16 %v52
  %v330 = vunpack.c.l.b16 %v53
  %v331 = vunpack.c.l.b16 %v54
  %v332 = vunpack.c.l.b16 %v55
  %v333 = vunpack.c.l.b16 %v56
  %v334 = vunpack.c.l.b16 %v57
  %v335 = vunpack.c.l.b16 %v58
  %v336 = vunpack.c.l.b16 %v59
  %v337 = vunpack.c.l.b16 %v60
  %v338 = vunpack.c.l.b16 %v61
  %v339 = vunpack.c.l.b16 %v62
  %v340 = vunpack.c.l.b16 %v63
  %v341 = vunpack.c.l.b16 %v64
  %v342 = vunpack.c.l.b16 %v65
  %v343 = vunpack.c.l.b16 %v66
  %v344 = vunpack.c.l.b16 %v67
  %v345 = vunpack.c.l.b16 %v68
  %v346 = vunpack.c.l.b16 %v69
  %v347 = vunpack.c.l.b16 %v70
  %v348 = vunpack.c.l.b16 %v71
  %v349 = vunpack.c.l.b16 %v72
  %v350 = vunpack.c.l.b16 %v73
  %v351 = vunpack.c.l.b16 %v74
  %v352 = vunpack.c.l.b16 %v75
  %v353 = vunpack.c.l.b16 %v76
  %v354 = vunpack.c.l.b16 %v77
  %v355 = vunpack.c.l.b16 %v78
  %v356 = vunpack.c.l.b16 %v79
  %v357 = vunpack.c.l.b16 %v80
  %v358 = vunpack.c.l.b16 %v81
  %v359 = vunpack.c.l.b16 %v82
  %v360 = vunpack.c.l.b16 %v83
  %v361 = vunpack.c.l.b16 %v84
  %v362 = vunpack.c.l.b16 %v85
  %v363 = vunpack.c.l.b16 %v86
  %v364 = vunpack.c.l.b16 %v87
  %v365 = vunpack.c.l.b16 %v88
  %v366 = vunpack.c.l.b16 %v89
  %v367 = vunpack.c.l.b16 %v90
  %v368 = vunpack.c.l.b16 %v91
  %v369 = vunpack.c.l.b16 %v92
  %v370 = vunpack.c.l.b16 %v93
  %v371 = vunpack.c.l.b16 %v94
  %v372 = vunpack.c.l.b16 %v95
  %v373 = vunpack.c.l.b16 %v96
  %v374 = vunpack.c.l.b16 %v97
  %v375 = vunpack.c.l.b16 %v98
  %v376 = vunpack.c.l.b16 %v99
  %v377 = vunpack.c.l.b16 %v100
  %v378 = vunpack.c.l.b16 %v101
  %v379 = vunpack.c.l.b16 %v102
  %v380 = vunpack.c.l.b16 %v103
  %v381 = vunpack.c.l.b16 %v104
  %v382 = vunpack.c.l.b16 %v105
  %v383 = vunpack.c.l.b16 %v106
  %v384 = vunpack.c.l.b16 %v107
  %v385 = vunpack.c.l.b16 %v108
  %v386 = vunpack.c.l.b16 %v109
  %v387 = vunpack.c.l.b16 %v110
  %v388 = vunpack.c.l.b16 %v111
  %v389 = vunpack.c.l.b16 %v112
  %v390 = vunpack.c.l.b16 %v113
  %v391 = vunpack.c.l.b16 %v114
  %v392 = vunpack.c.l.b16 %v115
  %v393 = vunpack.c.l.b16 %v116
  %v394 = vunpack.c.l.b16 %v117
  %v395 = vunpack.c.l.b16 %v118
  %v396 = vunpack.c.l.b16 %v119
  %v397 = vunpack.c.l.b16 %v120
  %v398 = vunpack.c.l.b16 %v121
  %v399 = vunpack.c.l.b16 %v122
  %v400 = vunpack.c.l.b16 %v123
  %v401 = vunpack.c.l.b16 %v124
  %v402 = vunpack.c.l.b16 %v125
  %v403 = vunpack.c.l.b16 %v126
  %v404 = vunpack.c.l.b16 %v127
  %v405 = vunpack.c.l.b16 %v128
  %v406 = vunpack.c.l.b16 %v129
  %v407 = vunpack.c.l.b16 %v130
  %v408 = vpack.c.b16 %v309, %v308
  %v409 = vpack.c.b16 %v311, %v310
  %v410 = vpack.c.b16 %v313, %v312
  %v411 = vpack.c.b16 %v315, %v314
  %v412 = vpack.c.b16 %v317, %v316
  %v413 = vpack.c.b16 %v319, %v318
  %v414 = vpack.c.b16 %v321, %v320
  %v415 = vpack.c.b16 %v323, %v322
  %v416 = vpack.c.b16 %v325, %v324
  %v417 = vpack.c.b16 %v327, %v326
  %v418 = vpack.c.b16 %v329, %v328
  %v419 = vpack.c.b16 %v331, %v330
  %v420 = vpack.c.b16 %v333, %v332
  %v421 = vpack.c.b16 %v335, %v334
  %v422 = vpack.c.b16 %v337, %v336
  %v423 = vpack.c.b16 %v339, %v338
  %v424 = vpack.c.b16 %v341, %v340
  %v425 = vpack.c.b16 %v343, %v342
  %v426 = vpack.c.b16 %v345, %v344
  %v427 = vpack.c.b16 %v347, %v346
  %v428 = vpack.c.b16 %v349, %v348
  %v429 = vpack.c.b16 %v351, %v350
  %v430 = vpack.c.b16 %v353, %v352
  %v431 = vpack.c.b16 %v355, %v354
  %v432 = vpack.c.b16 %v357, %v356
  %v433 = vpack.c.b16 %v359, %v358
  %v434 = vpack.c.b16 %v361, %v360
  %v435 = vpack.c.b16 %v363, %v362
  %v436 = vpack.c.b16 %v365, %v364
  %v437 = vpack.c.b16 %v367, %v366
  %v438 = vpack.c.b16 %v369, %v368
  %v439 = vpack.c.b16 %v371, %v370
  %v440 = vpack.c.b16 %v373, %v372
  %v441 = vpack.c.b16 %v375, %v374
  %v442 = vpack.c.b16 %v377, %v376
  %v443 = vpack.c.b16 %v379, %v378
  %v444 = vpack.c.b16 %v381, %v380
  %v445 = vpack.c.b16 %v383, %v382
  %v446 = vpack.c.b16 %v385, %v384
  %v447 = vpack.c.b16 %v387, %v386
  %v448 = vpack.c.b16 %v389, %v388
  %v449 = vpack.c.b16 %v391, %v390
  %v450 = vpack.c.b16 %v393, %v392
  %v451 = vpack.c.b16 %v395, %v394
  %v452 = vpack.c.b16 %v397, %v396
  %v453 = vpack.c.b16 %v399, %v398
  %v454 = vpack.c.b16 %v401, %v400
  %v455 = vpack.c.b16 %v403, %v402
  %v456 = vpack.c.b16 %v405, %v404
  %v457 = vpack.c.b16 %v407, %v406
  %vm508 = vcmask 261120
  %v510 = vsel %vm508, %v188, 0
  %v513 = vsel %vm508, %v195, 0
  %515 = vmatprep.subr.bf16.mxu0 0
  %516 = vmatpush1.bf16.msra.mxu0 %v408
  %517 = vmatprep.subr.bf16.mxu0 0
  %518 = vmatpush1.bf16.msra.mxu0 %v409
  %519 = vmatprep.subr.bf16.mxu0 0
  %520 = vmatpush1.bf16.msra.mxu0 %v410
  %521 = vmatprep.subr.bf16.mxu0 0
  %522 = vmatpush1.bf16.msra.mxu0 %v411
  %523 = vmatprep.subr.bf16.mxu0 0
  %524 = vmatpush1.bf16.msra.mxu0 %v412
  %525 = vmatprep.subr.bf16.mxu0 0
  %526 = vmatpush1.bf16.msra.mxu0 %v413
  %527 = vmatprep.subr.bf16.mxu0 0
  %528 = vmatpush1.bf16.msra.mxu0 %v414
  %529 = vmatprep.subr.bf16.mxu0 0
  %530 = vmatpush1.bf16.msra.mxu0 %v415
  %531 = vmatprep.subr.bf16.mxu0 0
  %532 = vmatpush1.bf16.msra.mxu0 %v416
  %533 = vmatprep.subr.bf16.mxu0 0
  %534 = vmatpush1.bf16.msra.mxu0 %v417
  %535 = vmatprep.subr.bf16.mxu0 0
  %536 = vmatpush1.bf16.msra.mxu0 %v418
  %537 = vmatprep.subr.bf16.mxu0 0
  %538 = vmatpush1.bf16.msra.mxu0 %v419
  %539 = vmatprep.subr.bf16.mxu0 0
  %540 = vmatpush1.bf16.msra.mxu0 %v420
  %541 = vmatprep.subr.bf16.mxu0 0
  %542 = vmatpush1.bf16.msra.mxu0 %v421
  %543 = vmatprep.subr.bf16.mxu0 0
  %544 = vmatpush1.bf16.msra.mxu0 %v422
  %545 = vmatprep.subr.bf16.mxu0 0
  %546 = vmatpush1.bf16.msra.mxu0 %v423
  %547 = vmatprep.mubr.bf16.mxu0 %v183
  %548 = vmatmul.mubr.bf16.gmra.mrb[0].mxu0 %v182
  %v549 = vpop.f32.mrb[0].mxu0
  %v550 = vadd.f32 %v136, %v549
  %v551 = vpop.f32.mrb[0].mxu0
  %v552 = vpop.f32.mrb[0].mxu0
  %v553 = vadd.f32 %v136, %v552
  %v554 = vpop.f32.mrb[0].mxu0
  %555 = vmatprep.mubr.bf16.mxu0 %v190
  %556 = vmatmul.mubr.bf16.gmra.mrb[0].mxu0 %v189
  %v557 = vpop.f32.mrb[0].mxu0
  %v558 = vadd.f32 %v136, %v557
  %v559 = vpop.f32.mrb[0].mxu0
  %v560 = vpop.f32.mrb[0].mxu0
  %v561 = vadd.f32 %v136, %v560
  %v562 = vpop.f32.mrb[0].mxu0
  %563 = vdwg.mxu0
  %564 = vmatprep.subr.bf16.mxu0 0
  %565 = vmatpush1.bf16.msra.mxu0 %v424
  %566 = vmatprep.subr.bf16.mxu0 0
  %567 = vmatpush1.bf16.msra.mxu0 %v425
  %568 = vmatprep.subr.bf16.mxu0 0
  %569 = vmatpush1.bf16.msra.mxu0 %v426
  %570 = vmatprep.subr.bf16.mxu0 0
  %571 = vmatpush1.bf16.msra.mxu0 %v427
  %572 = vmatprep.subr.bf16.mxu0 0
  %573 = vmatpush1.bf16.msra.mxu0 %v428
  %574 = vmatprep.subr.bf16.mxu0 0
  %575 = vmatpush1.bf16.msra.mxu0 %v429
  %576 = vmatprep.subr.bf16.mxu0 0
  %577 = vmatpush1.bf16.msra.mxu0 %v430
  %578 = vmatprep.subr.bf16.mxu0 0
  %579 = vmatpush1.bf16.msra.mxu0 %v431
  %580 = vmatprep.subr.bf16.mxu0 0
  %581 = vmatpush1.bf16.msra.mxu0 %v432
  %582 = vmatprep.subr.bf16.mxu0 0
  %583 = vmatpush1.bf16.msra.mxu0 %v433
  %584 = vmatprep.subr.bf16.mxu0 0
  %585 = vmatpush1.bf16.msra.mxu0 %v434
  %586 = vmatprep.subr.bf16.mxu0 0
  %587 = vmatpush1.bf16.msra.mxu0 %v435
  %588 = vmatprep.subr.bf16.mxu0 0
  %589 = vmatpush1.bf16.msra.mxu0 %v436
  %590 = vmatprep.subr.bf16.mxu0 0
  %591 = vmatpush1.bf16.msra.mxu0 %v437
  %592 = vmatprep.subr.bf16.mxu0 0
  %593 = vmatpush1.bf16.msra.mxu0 %v438
  %594 = vmatprep.subr.bf16.mxu0 0
  %595 = vmatpush1.bf16.msra.mxu0 %v439
  %596 = vmatprep.mubr.bf16.mxu0 %v185
  %597 = vmatmul.mubr.bf16.gmra.mrb[0].mxu0 %v184
  %v598 = vpop.f32.mrb[0].mxu0
  %v599 = vadd.f32 %v550, %v598
  %v600 = vpop.f32.mrb[0].mxu0
  %v601 = vpop.f32.mrb[0].mxu0
  %v602 = vadd.f32 %v553, %v601
  %v603 = vpop.f32.mrb[0].mxu0
  %604 = vmatprep.mubr.bf16.mxu0 %v192
  %605 = vmatmul.mubr.bf16.gmra.mrb[0].mxu0 %v191
  %v606 = vpop.f32.mrb[0].mxu0
  %v607 = vadd.f32 %v558, %v606
  %v608 = vpop.f32.mrb[0].mxu0
  %v609 = vpop.f32.mrb[0].mxu0
  %v610 = vadd.f32 %v561, %v609
  %v611 = vpop.f32.mrb[0].mxu0
  %612 = vdwg.mxu0
  %613 = vmatprep.subr.bf16.mxu0 0
  %614 = vmatpush1.bf16.msra.mxu0 %v440
  %615 = vmatprep.subr.bf16.mxu0 0
  %616 = vmatpush1.bf16.msra.mxu0 %v441
  %617 = vmatprep.subr.bf16.mxu0 0
  %618 = vmatpush1.bf16.msra.mxu0 %v442
  %619 = vmatprep.subr.bf16.mxu0 0
  %620 = vmatpush1.bf16.msra.mxu0 %v443
  %621 = vmatprep.subr.bf16.mxu0 0
  %622 = vmatpush1.bf16.msra.mxu0 %v444
  %623 = vmatprep.subr.bf16.mxu0 0
  %624 = vmatpush1.bf16.msra.mxu0 %v445
  %625 = vmatprep.subr.bf16.mxu0 0
  %626 = vmatpush1.bf16.msra.mxu0 %v446
  %627 = vmatprep.subr.bf16.mxu0 0
  %628 = vmatpush1.bf16.msra.mxu0 %v447
  %629 = vmatprep.subr.bf16.mxu0 0
  %630 = vmatpush1.bf16.msra.mxu0 %v448
  %631 = vmatprep.subr.bf16.mxu0 0
  %632 = vmatpush1.bf16.msra.mxu0 %v449
  %633 = vmatprep.subr.bf16.mxu0 0
  %634 = vmatpush1.bf16.msra.mxu0 %v450
  %635 = vmatprep.subr.bf16.mxu0 0
  %636 = vmatpush1.bf16.msra.mxu0 %v451
  %637 = vmatprep.subr.bf16.mxu0 0
  %638 = vmatpush1.bf16.msra.mxu0 %v452
  %639 = vmatprep.subr.bf16.mxu0 0
  %640 = vmatpush1.bf16.msra.mxu0 %v453
  %641 = vmatprep.subr.bf16.mxu0 0
  %642 = vmatpush1.bf16.msra.mxu0 %v454
  %643 = vmatprep.subr.bf16.mxu0 0
  %644 = vmatpush1.bf16.msra.mxu0 %v455
  %645 = vmatprep.mubr.bf16.mxu0 %v187
  %646 = vmatmul.mubr.bf16.gmra.mrb[0].mxu0 %v186
  %v647 = vpop.f32.mrb[0].mxu0
  %v648 = vadd.f32 %v599, %v647
  %v649 = vpop.f32.mrb[0].mxu0
  %v650 = vpop.f32.mrb[0].mxu0
  %v651 = vadd.f32 %v602, %v650
  %v652 = vpop.f32.mrb[0].mxu0
  %653 = vmatprep.mubr.bf16.mxu0 %v194
  %654 = vmatmul.mubr.bf16.gmra.mrb[0].mxu0 %v193
  %v655 = vpop.f32.mrb[0].mxu0
  %v656 = vadd.f32 %v607, %v655
  %v657 = vpop.f32.mrb[0].mxu0
  %v658 = vpop.f32.mrb[0].mxu0
  %v659 = vadd.f32 %v610, %v658
  %v660 = vpop.f32.mrb[0].mxu0
  %661 = vdwg.mxu0
  %662 = vmatprep.subr.bf16.mxu0 0
  %663 = vmatpush1.bf16.msra.mxu0 %v456
  %664 = vmatprep.subr.bf16.mxu0 0
  %665 = vmatpush1.bf16.msra.mxu0 %v457
  %666 = vmatprep.subr.bf16.mxu0 0
  %667 = vmatpush1.bf16.msra.mxu0 0
  %668 = vmatprep.subr.bf16.mxu0 0
  %669 = vmatpush1.bf16.msra.mxu0 0
  %670 = vmatprep.subr.bf16.mxu0 0
  %671 = vmatpush1.bf16.msra.mxu0 0
  %672 = vmatprep.subr.bf16.mxu0 0
  %673 = vmatpush1.bf16.msra.mxu0 0
  %674 = vmatprep.subr.bf16.mxu0 0
  %675 = vmatpush1.bf16.msra.mxu0 0
  %676 = vmatprep.subr.bf16.mxu0 0
  %677 = vmatpush1.bf16.msra.mxu0 0
  %678 = vmatprep.subr.bf16.mxu0 0
  %679 = vmatpush1.bf16.msra.mxu0 0
  %680 = vmatprep.subr.bf16.mxu0 0
  %681 = vmatpush1.bf16.msra.mxu0 0
  %682 = vmatprep.subr.bf16.mxu0 0
  %683 = vmatpush1.bf16.msra.mxu0 0
  %684 = vmatprep.subr.bf16.mxu0 0
  %685 = vmatpush1.bf16.msra.mxu0 0
  %686 = vmatprep.subr.bf16.mxu0 0
  %687 = vmatpush1.bf16.msra.mxu0 0
  %688 = vmatprep.subr.bf16.mxu0 0
  %689 = vmatpush1.bf16.msra.mxu0 0
  %690 = vmatprep.subr.bf16.mxu0 0
  %691 = vmatpush1.bf16.msra.mxu0 0
  %692 = vmatprep.subr.bf16.mxu0 0
  %693 = vmatpush1.bf16.msra.mxu0 0
  %694 = vmatprep.mubr.bf16.mxu0 0
  %695 = vmatmul.mubr.bf16.gmra.mrb[0].mxu0 %v510
  %v696 = vpop.f32.mrb[0].mxu0
  %v697 = vadd.f32 %v648, %v696
  %v698 = vpop.f32.mrb[0].mxu0
  %v699 = vpop.f32.mrb[0].mxu0
  %v700 = vadd.f32 %v651, %v699
  %v701 = vpop.f32.mrb[0].mxu0
  %702 = vmatprep.mubr.bf16.mxu0 0
  %703 = vmatmul.mubr.bf16.gmra.mrb[0].mxu0 %v513
  %v704 = vpop.f32.mrb[0].mxu0
  %v705 = vadd.f32 %v656, %v704
  %v706 = vpop.f32.mrb[0].mxu0
  %v707 = vpop.f32.mrb[0].mxu0
  %v708 = vadd.f32 %v659, %v707
  %v709 = vpop.f32.mrb[0].mxu0
  %710 = vdwg.mxu0
  %vm711 = vcmask 523264
  %712 = vst.msk [vmem:[%s3] sm:$0xff] %vm711, %v697
  %713 = vst.msk [vmem:[%s3 + $0x8] sm:$0xff] %vm711, %v700
  %714 = vst.msk [vmem:[%s3 + $0x10] sm:$0xff] %vm711, %v705
  %715 = vst.msk [vmem:[%s3 + $0x18] sm:$0xff] %vm711, %v708
  // Predicated region
  $region14: #{unet_decoder.15} parent=0 // pred_check
    _
  $region15: #{unet_decoder.15} parent=0 // pred_check_branch
    %717 = sbr.rel (0) target = $region17
  $region16: #{unet_decoder.15} parent=0 // pred_region
    _
  $region17: #{unet_decoder.15} parent=0 // pred_fallthru
    _
  // Predicated region
  $region18: #{unet_decoder.15} parent=0 // pred_check
    _
  $region19: #{unet_decoder.15} parent=0 // pred_check_branch
    %719 = sbr.rel (0) target = $region21
  $region20: #{unet_decoder.15} parent=0 // pred_region
    _
  $region21: #{unet_decoder.15} parent=0 // pred_fallthru
    _

// kernel: unet_decoder.16
$region0: #{unet_decoder.16}
  #allocation0 [shape = 'u32[]', space=smem, size = 0x4, offset = 0x4, fixed_abs, tag = 'smem constant byte address 0x4 - core index']
  #allocation1 [shape = 'u32[144,128]{1,0:T(1,128)}', space=vmem, size = 0x12000, scoped, tag = 'internal scratch']
  %s0 = inlined_call_operand.vmem [shape: bf16[4,8,576], index: 0, kind: input, shape index: {}]
  %s1 = inlined_call_operand.vmem [shape: bf16[576,64], index: 1, kind: input, shape index: {}]
  %s2 = inlined_call_operand.vmem [shape: f32[1,64], index: 2, kind: input, shape index: {}]
  %s3 = inlined_call_operand.vmem [shape: f32[8,64], index: 3, kind: output, shape index: {}]
  %s4 = sld [smem:[#allocation0]]
  $region22: #{unet_decoder.16} parent=0
    _
  %s6 = ssub.s32 1, %s4
  %s7 = scalar_select 0, %s6, %s4
  // Predicated region
  $region2: #{unet_decoder.16} parent=0 // pred_check
    _
  $region3: #{unet_decoder.16} parent=0 // pred_check_branch
    %9 = sbr.rel (0) target = $region5
  $region4: #{unet_decoder.16} parent=0 // pred_region
    _
  $region5: #{unet_decoder.16} parent=0 // pred_fallthru
    _
  // Predicated region
  $region6: #{unet_decoder.16} parent=0 // pred_check
    _
  $region7: #{unet_decoder.16} parent=0 // pred_check_branch
    %11 = sbr.rel (0) target = $region9
  $region8: #{unet_decoder.16} parent=0 // pred_region
    _
  $region9: #{unet_decoder.16} parent=0 // pred_fallthru
    _
  // Predicated region
  $region10: #{unet_decoder.16} parent=0 // pred_check
    _
  $region11: #{unet_decoder.16} parent=0 // pred_check_branch
    %13 = sbr.rel (0) target = $region13
  $region12: #{unet_decoder.16} parent=0 // pred_region
    _
  $region13: #{unet_decoder.16} parent=0 // pred_fallthru
    _
  %v15 = vld [vmem:[%s1] sm:$0xf]
  %v16 = vld [vmem:[%s1 + $0x4] sm:$0xf]
  %v17 = vld [vmem:[%s1 + $0x8] sm:$0xf]
  %v18 = vld [vmem:[%s1 + $0xc] sm:$0xf]
  %v19 = vld [vmem:[%s1 + $0x10] sm:$0xf]
  %v20 = vld [vmem:[%s1 + $0x14] sm:$0xf]
  %v21 = vld [vmem:[%s1 + $0x18] sm:$0xf]
  %v22 = vld [vmem:[%s1 + $0x1c] sm:$0xf]
  %v23 = vld [vmem:[%s1 + $0x20] sm:$0xf]
  %v24 = vld [vmem:[%s1 + $0x24] sm:$0xf]
  %v25 = vld [vmem:[%s1 + $0x28] sm:$0xf]
  %v26 = vld [vmem:[%s1 + $0x2c] sm:$0xf]
  %v27 = vld [vmem:[%s1 + $0x30] sm:$0xf]
  %v28 = vld [vmem:[%s1 + $0x34] sm:$0xf]
  %v29 = vld [vmem:[%s1 + $0x38] sm:$0xf]
  %v30 = vld [vmem:[%s1 + $0x3c] sm:$0xf]
  %v31 = vld [vmem:[%s1 + $0x40] sm:$0xf]
  %v32 = vld [vmem:[%s1 + $0x44] sm:$0xf]
  %v33 = vld [vmem:[%s1 + $0x48] sm:$0xf]
  %v34 = vld [vmem:[%s1 + $0x4c] sm:$0xf]
  %v35 = vld [vmem:[%s1 + $0x50] sm:$0xf]
  %v36 = vld [vmem:[%s1 + $0x54] sm:$0xf]
  %v37 = vld [vmem:[%s1 + $0x58] sm:$0xf]
  %v38 = vld [vmem:[%s1 + $0x5c] sm:$0xf]
  %v39 = vld [vmem:[%s1 + $0x60] sm:$0xf]
  %v40 = vld [vmem:[%s1 + $0x64] sm:$0xf]
  %v41 = vld [vmem:[%s1 + $0x68] sm:$0xf]
  %v42 = vld [vmem:[%s1 + $0x6c] sm:$0xf]
  %v43 = vld [vmem:[%s1 + $0x70] sm:$0xf]
  %v44 = vld [vmem:[%s1 + $0x74] sm:$0xf]
  %v45 = vld [vmem:[%s1 + $0x78] sm:$0xf]
  %v46 = vld [vmem:[%s1 + $0x7c] sm:$0xf]
  %v47 = vld [vmem:[%s1 + $0x80] sm:$0xf]
  %v48 = vld [vmem:[%s1 + $0x84] sm:$0xf]
  %v49 = vld [vmem:[%s1 + $0x88] sm:$0xf]
  %v50 = vld [vmem:[%s1 + $0x8c] sm:$0xf]
  %v51 = vld [vmem:[%s1 + $0x90] sm:$0xf]
  %v52 = vld [vmem:[%s1 + $0x94] sm:$0xf]
  %v53 = vld [vmem:[%s1 + $0x98] sm:$0xf]
  %v54 = vld [vmem:[%s1 + $0x9c] sm:$0xf]
  %v55 = vld [vmem:[%s1 + $0xa0] sm:$0xf]
  %v56 = vld [vmem:[%s1 + $0xa4] sm:$0xf]
  %v57 = vld [vmem:[%s1 + $0xa8] sm:$0xf]
  %v58 = vld [vmem:[%s1 + $0xac] sm:$0xf]
  %v59 = vld [vmem:[%s1 + $0xb0] sm:$0xf]
  %v60 = vld [vmem:[%s1 + $0xb4] sm:$0xf]
  %v61 = vld [vmem:[%s1 + $0xb8] sm:$0xf]
  %v62 = vld [vmem:[%s1 + $0xbc] sm:$0xf]
  %v63 = vld [vmem:[%s1 + $0xc0] sm:$0xf]
  %v64 = vld [vmem:[%s1 + $0xc4] sm:$0xf]
  %v65 = vld [vmem:[%s1 + $0xc8] sm:$0xf]
  %v66 = vld [vmem:[%s1 + $0xcc] sm:$0xf]
  %v67 = vld [vmem:[%s1 + $0xd0] sm:$0xf]
  %v68 = vld [vmem:[%s1 + $0xd4] sm:$0xf]
  %v69 = vld [vmem:[%s1 + $0xd8] sm:$0xf]
  %v70 = vld [vmem:[%s1 + $0xdc] sm:$0xf]
  %v71 = vld [vmem:[%s1 + $0xe0] sm:$0xf]
  %v72 = vld [vmem:[%s1 + $0xe4] sm:$0xf]
  %v73 = vld [vmem:[%s1 + $0xe8] sm:$0xf]
  %v74 = vld [vmem:[%s1 + $0xec] sm:$0xf]
  %v75 = vld [vmem:[%s1 + $0xf0] sm:$0xf]
  %v76 = vld [vmem:[%s1 + $0xf4] sm:$0xf]
  %v77 = vld [vmem:[%s1 + $0xf8] sm:$0xf]
  %v78 = vld [vmem:[%s1 + $0xfc] sm:$0xf]
  %v79 = vld [vmem:[%s1 + $0x100] sm:$0xf]
  %v80 = vld [vmem:[%s1 + $0x104] sm:$0xf]
  %v81 = vld [vmem:[%s1 + $0x108] sm:$0xf]
  %v82 = vld [vmem:[%s1 + $0x10c] sm:$0xf]
  %v83 = vld [vmem:[%s1 + $0x110] sm:$0xf]
  %v84 = vld [vmem:[%s1 + $0x114] sm:$0xf]
  %v85 = vld [vmem:[%s1 + $0x118] sm:$0xf]
  %v86 = vld [vmem:[%s1 + $0x11c] sm:$0xf]
  %v87 = vld [vmem:[%s0] sm:$0xff]
  %v88 = vld [vmem:[%s0 + $0x8] sm:$0xff]
  %v89 = vld [vmem:[%s0 + $0x10] sm:$0xf]
  %v93 = vunpack.c.l.b16 %v87
  %v94 = vunpack.c.h.b16 %v87
  %v95 = vunpack.c.l.b16 %v88
  %v96 = vunpack.c.h.b16 %v88
  %v97 = vunpack.c.l.b16 %v89
  %v98 = vpack.c.b16 %v93, %v93
  %v99 = vpack.c.b16 %v94, %v94
  %v100 = vpack.c.b16 %v95, %v95
  %v101 = vpack.c.b16 %v96, %v96
  %v102 = vpack.c.b16 %v97, %v97
  %v179 = vunpack.c.l.b16 %v15
  %v180 = vunpack.c.l.b16 %v16
  %v181 = vunpack.c.l.b16 %v17
  %v182 = vunpack.c.l.b16 %v18
  %v183 = vunpack.c.l.b16 %v19
  %v184 = vunpack.c.l.b16 %v20
  %v185 = vunpack.c.l.b16 %v21
  %v186 = vunpack.c.l.b16 %v22
  %v187 = vunpack.c.l.b16 %v23
  %v188 = vunpack.c.l.b16 %v24
  %v189 = vunpack.c.l.b16 %v25
  %v190 = vunpack.c.l.b16 %v26
  %v191 = vunpack.c.l.b16 %v27
  %v192 = vunpack.c.l.b16 %v28
  %v193 = vunpack.c.l.b16 %v29
  %v194 = vunpack.c.l.b16 %v30
  %v195 = vunpack.c.l.b16 %v31
  %v196 = vunpack.c.l.b16 %v32
  %v197 = vunpack.c.l.b16 %v33
  %v198 = vunpack.c.l.b16 %v34
  %v199 = vunpack.c.l.b16 %v35
  %v200 = vunpack.c.l.b16 %v36
  %v201 = vunpack.c.l.b16 %v37
  %v202 = vunpack.c.l.b16 %v38
  %v203 = vunpack.c.l.b16 %v39
  %v204 = vunpack.c.l.b16 %v40
  %v205 = vunpack.c.l.b16 %v41
  %v206 = vunpack.c.l.b16 %v42
  %v207 = vunpack.c.l.b16 %v43
  %v208 = vunpack.c.l.b16 %v44
  %v209 = vunpack.c.l.b16 %v45
  %v210 = vunpack.c.l.b16 %v46
  %v211 = vunpack.c.l.b16 %v47
  %v212 = vunpack.c.l.b16 %v48
  %v213 = vunpack.c.l.b16 %v49
  %v214 = vunpack.c.l.b16 %v50
  %v215 = vunpack.c.l.b16 %v51
  %v216 = vunpack.c.l.b16 %v52
  %v217 = vunpack.c.l.b16 %v53
  %v218 = vunpack.c.l.b16 %v54
  %v219 = vunpack.c.l.b16 %v55
  %v220 = vunpack.c.l.b16 %v56
  %v221 = vunpack.c.l.b16 %v57
  %v222 = vunpack.c.l.b16 %v58
  %v223 = vunpack.c.l.b16 %v59
  %v224 = vunpack.c.l.b16 %v60
  %v225 = vunpack.c.l.b16 %v61
  %v226 = vunpack.c.l.b16 %v62
  %v227 = vunpack.c.l.b16 %v63
  %v228 = vunpack.c.l.b16 %v64
  %v229 = vunpack.c.l.b16 %v65
  %v230 = vunpack.c.l.b16 %v66
  %v231 = vunpack.c.l.b16 %v67
  %v232 = vunpack.c.l.b16 %v68
  %v233 = vunpack.c.l.b16 %v69
  %v234 = vunpack.c.l.b16 %v70
  %v235 = vunpack.c.l.b16 %v71
  %v236 = vunpack.c.l.b16 %v72
  %v237 = vunpack.c.l.b16 %v73
  %v238 = vunpack.c.l.b16 %v74
  %v239 = vunpack.c.l.b16 %v75
  %v240 = vunpack.c.l.b16 %v76
  %v241 = vunpack.c.l.b16 %v77
  %v242 = vunpack.c.l.b16 %v78
  %v243 = vunpack.c.l.b16 %v79
  %v244 = vunpack.c.l.b16 %v80
  %v245 = vunpack.c.l.b16 %v81
  %v246 = vunpack.c.l.b16 %v82
  %v247 = vunpack.c.l.b16 %v83
  %v248 = vunpack.c.l.b16 %v84
  %v249 = vunpack.c.l.b16 %v85
  %v250 = vunpack.c.l.b16 %v86
  %v251 = vpack.c.b16 %v180, %v179
  %v252 = vpack.c.b16 %v182, %v181
  %v253 = vpack.c.b16 %v184, %v183
  %v254 = vpack.c.b16 %v186, %v185
  %v255 = vpack.c.b16 %v188, %v187
  %v256 = vpack.c.b16 %v190, %v189
  %v257 = vpack.c.b16 %v192, %v191
  %v258 = vpack.c.b16 %v194, %v193
  %v259 = vpack.c.b16 %v196, %v195
  %v260 = vpack.c.b16 %v198, %v197
  %v261 = vpack.c.b16 %v200, %v199
  %v262 = vpack.c.b16 %v202, %v201
  %v263 = vpack.c.b16 %v204, %v203
  %v264 = vpack.c.b16 %v206, %v205
  %v265 = vpack.c.b16 %v208, %v207
  %v266 = vpack.c.b16 %v210, %v209
  %v267 = vpack.c.b16 %v212, %v211
  %v268 = vpack.c.b16 %v214, %v213
  %v269 = vpack.c.b16 %v216, %v215
  %v270 = vpack.c.b16 %v218, %v217
  %v271 = vpack.c.b16 %v220, %v219
  %v272 = vpack.c.b16 %v222, %v221
  %v273 = vpack.c.b16 %v224, %v223
  %v274 = vpack.c.b16 %v226, %v225
  %v275 = vpack.c.b16 %v228, %v227
  %v276 = vpack.c.b16 %v230, %v229
  %v277 = vpack.c.b16 %v232, %v231
  %v278 = vpack.c.b16 %v234, %v233
  %v279 = vpack.c.b16 %v236, %v235
  %v280 = vpack.c.b16 %v238, %v237
  %v281 = vpack.c.b16 %v240, %v239
  %v282 = vpack.c.b16 %v242, %v241
  %v283 = vpack.c.b16 %v244, %v243
  %v284 = vpack.c.b16 %v246, %v245
  %v285 = vpack.c.b16 %v248, %v247
  %v286 = vpack.c.b16 %v250, %v249
  %vm323 = vcmask 523264
  %v325 = vsel %vm323, %v102, 0
  %327 = vmatprep.subr.bf16.mxu0 0
  %328 = vmatpush1.bf16.msra.mxu0 %v251
  %329 = vmatprep.subr.bf16.mxu0 0
  %330 = vmatpush1.bf16.msra.mxu0 %v252
  %331 = vmatprep.subr.bf16.mxu0 0
  %332 = vmatpush1.bf16.msra.mxu0 %v253
  %333 = vmatprep.subr.bf16.mxu0 0
  %334 = vmatpush1.bf16.msra.mxu0 %v254
  %335 = vmatprep.subr.bf16.mxu0 0
  %336 = vmatpush1.bf16.msra.mxu0 %v255
  %337 = vmatprep.subr.bf16.mxu0 0
  %338 = vmatpush1.bf16.msra.mxu0 %v256
  %339 = vmatprep.subr.bf16.mxu0 0
  %340 = vmatpush1.bf16.msra.mxu0 %v257
  %341 = vmatprep.subr.bf16.mxu0 0
  %342 = vmatpush1.bf16.msra.mxu0 %v258
  %343 = vmatprep.subr.bf16.mxu0 0
  %344 = vmatpush1.bf16.msra.mxu0 %v259
  %345 = vmatprep.subr.bf16.mxu0 0
  %346 = vmatpush1.bf16.msra.mxu0 %v260
  %347 = vmatprep.subr.bf16.mxu0 0
  %348 = vmatpush1.bf16.msra.mxu0 %v261
  %349 = vmatprep.subr.bf16.mxu0 0
  %350 = vmatpush1.bf16.msra.mxu0 %v262
  %351 = vmatprep.subr.bf16.mxu0 0
  %352 = vmatpush1.bf16.msra.mxu0 %v263
  %353 = vmatprep.subr.bf16.mxu0 0
  %354 = vmatpush1.bf16.msra.mxu0 %v264
  %355 = vmatprep.subr.bf16.mxu0 0
  %356 = vmatpush1.bf16.msra.mxu0 %v265
  %357 = vmatprep.subr.bf16.mxu0 0
  %358 = vmatpush1.bf16.msra.mxu0 %v266
  %359 = vmatprep.mubr.bf16.mxu0 %v99
  %360 = vmatmul.mubr.bf16.gmra.mrb[0].mxu0 %v98
  %v361 = vpop.f32.mrb[0].mxu0
  %v362 = vadd.f32 0.0, %v361
  %v363 = vpop.f32.mrb[0].mxu0
  %v364 = vpop.f32.mrb[0].mxu0
  %v365 = vpop.f32.mrb[0].mxu0
  %366 = vdwg.mxu0
  %367 = vmatprep.subr.bf16.mxu0 0
  %368 = vmatpush1.bf16.msra.mxu0 %v267
  %369 = vmatprep.subr.bf16.mxu0 0
  %370 = vmatpush1.bf16.msra.mxu0 %v268
  %371 = vmatprep.subr.bf16.mxu0 0
  %372 = vmatpush1.bf16.msra.mxu0 %v269
  %373 = vmatprep.subr.bf16.mxu0 0
  %374 = vmatpush1.bf16.msra.mxu0 %v270
  %375 = vmatprep.subr.bf16.mxu0 0
  %376 = vmatpush1.bf16.msra.mxu0 %v271
  %377 = vmatprep.subr.bf16.mxu0 0
  %378 = vmatpush1.bf16.msra.mxu0 %v272
  %379 = vmatprep.subr.bf16.mxu0 0
  %380 = vmatpush1.bf16.msra.mxu0 %v273
  %381 = vmatprep.subr.bf16.mxu0 0
  %382 = vmatpush1.bf16.msra.mxu0 %v274
  %383 = vmatprep.subr.bf16.mxu0 0
  %384 = vmatpush1.bf16.msra.mxu0 %v275
  %385 = vmatprep.subr.bf16.mxu0 0
  %386 = vmatpush1.bf16.msra.mxu0 %v276
  %387 = vmatprep.subr.bf16.mxu0 0
  %388 = vmatpush1.bf16.msra.mxu0 %v277
  %389 = vmatprep.subr.bf16.mxu0 0
  %390 = vmatpush1.bf16.msra.mxu0 %v278
  %391 = vmatprep.subr.bf16.mxu0 0
  %392 = vmatpush1.bf16.msra.mxu0 %v279
  %393 = vmatprep.subr.bf16.mxu0 0
  %394 = vmatpush1.bf16.msra.mxu0 %v280
  %395 = vmatprep.subr.bf16.mxu0 0
  %396 = vmatpush1.bf16.msra.mxu0 %v281
  %397 = vmatprep.subr.bf16.mxu0 0
  %398 = vmatpush1.bf16.msra.mxu0 %v282
  %399 = vmatprep.mubr.bf16.mxu0 %v101
  %400 = vmatmul.mubr.bf16.gmra.mrb[0].mxu0 %v100
  %v401 = vpop.f32.mrb[0].mxu0
  %v402 = vadd.f32 %v362, %v401
  %v403 = vpop.f32.mrb[0].mxu0
  %v404 = vpop.f32.mrb[0].mxu0
  %v405 = vpop.f32.mrb[0].mxu0
  %406 = vdwg.mxu0
  %407 = vmatprep.subr.bf16.mxu0 0
  %408 = vmatpush1.bf16.msra.mxu0 %v283
  %409 = vmatprep.subr.bf16.mxu0 0
  %410 = vmatpush1.bf16.msra.mxu0 %v284
  %411 = vmatprep.subr.bf16.mxu0 0
  %412 = vmatpush1.bf16.msra.mxu0 %v285
  %413 = vmatprep.subr.bf16.mxu0 0
  %414 = vmatpush1.bf16.msra.mxu0 %v286
  %415 = vmatprep.subr.bf16.mxu0 0
  %416 = vmatpush1.bf16.msra.mxu0 0
  %417 = vmatprep.subr.bf16.mxu0 0
  %418 = vmatpush1.bf16.msra.mxu0 0
  %419 = vmatprep.subr.bf16.mxu0 0
  %420 = vmatpush1.bf16.msra.mxu0 0
  %421 = vmatprep.subr.bf16.mxu0 0
  %422 = vmatpush1.bf16.msra.mxu0 0
  %423 = vmatprep.subr.bf16.mxu0 0
  %424 = vmatpush1.bf16.msra.mxu0 0
  %425 = vmatprep.subr.bf16.mxu0 0
  %426 = vmatpush1.bf16.msra.mxu0 0
  %427 = vmatprep.subr.bf16.mxu0 0
  %428 = vmatpush1.bf16.msra.mxu0 0
  %429 = vmatprep.subr.bf16.mxu0 0
  %430 = vmatpush1.bf16.msra.mxu0 0
  %431 = vmatprep.subr.bf16.mxu0 0
  %432 = vmatpush1.bf16.msra.mxu0 0
  %433 = vmatprep.subr.bf16.mxu0 0
  %434 = vmatpush1.bf16.msra.mxu0 0
  %435 = vmatprep.subr.bf16.mxu0 0
  %436 = vmatpush1.bf16.msra.mxu0 0
  %437 = vmatprep.subr.bf16.mxu0 0
  %438 = vmatpush1.bf16.msra.mxu0 0
  %439 = vmatprep.mubr.bf16.mxu0 0
  %440 = vmatmul.mubr.bf16.gmra.mrb[0].mxu0 %v325
  %v441 = vpop.f32.mrb[0].mxu0
  %v442 = vadd.f32 %v402, %v441
  %v443 = vpop.f32.mrb[0].mxu0
  %v444 = vpop.f32.mrb[0].mxu0
  %v445 = vpop.f32.mrb[0].mxu0
  %446 = vdwg.mxu0
  %s447 = scalar_lea.vmem %s0, 20
  %v448 = vld [vmem:[%s447] sm:$0xff]
  %v449 = vld [vmem:[%s447 + $0x8] sm:$0xff]
  %v450 = vld [vmem:[%s447 + $0x10] sm:$0xf]
  %v454 = vunpack.c.l.b16 %v448
  %v455 = vunpack.c.h.b16 %v448
  %v456 = vunpack.c.l.b16 %v449
  %v457 = vunpack.c.h.b16 %v449
  %v458 = vunpack.c.l.b16 %v450
  %v459 = vpack.c.b16 %v454, %v454
  %v460 = vpack.c.b16 %v455, %v455
  %v461 = vpack.c.b16 %v456, %v456
  %v462 = vpack.c.b16 %v457, %v457
  %v463 = vpack.c.b16 %v458, %v458
  %v469 = vsel %vm323, %v463, 0
  %471 = vmatprep.subr.bf16.mxu0 0
  %472 = vmatpush1.bf16.msra.mxu0 %v251
  %473 = vmatprep.subr.bf16.mxu0 0
  %474 = vmatpush1.bf16.msra.mxu0 %v252
  %475 = vmatprep.subr.bf16.mxu0 0
  %476 = vmatpush1.bf16.msra.mxu0 %v253
  %477 = vmatprep.subr.bf16.mxu0 0
  %478 = vmatpush1.bf16.msra.mxu0 %v254
  %479 = vmatprep.subr.bf16.mxu0 0
  %480 = vmatpush1.bf16.msra.mxu0 %v255
  %481 = vmatprep.subr.bf16.mxu0 0
  %482 = vmatpush1.bf16.msra.mxu0 %v256
  %483 = vmatprep.subr.bf16.mxu0 0
  %484 = vmatpush1.bf16.msra.mxu0 %v257
  %485 = vmatprep.subr.bf16.mxu0 0
  %486 = vmatpush1.bf16.msra.mxu0 %v258
  %487 = vmatprep.subr.bf16.mxu0 0
  %488 = vmatpush1.bf16.msra.mxu0 %v259
  %489 = vmatprep.subr.bf16.mxu0 0
  %490 = vmatpush1.bf16.msra.mxu0 %v260
  %491 = vmatprep.subr.bf16.mxu0 0
  %492 = vmatpush1.bf16.msra.mxu0 %v261
  %493 = vmatprep.subr.bf16.mxu0 0
  %494 = vmatpush1.bf16.msra.mxu0 %v262
  %495 = vmatprep.subr.bf16.mxu0 0
  %496 = vmatpush1.bf16.msra.mxu0 %v263
  %497 = vmatprep.subr.bf16.mxu0 0
  %498 = vmatpush1.bf16.msra.mxu0 %v264
  %499 = vmatprep.subr.bf16.mxu0 0
  %500 = vmatpush1.bf16.msra.mxu0 %v265
  %501 = vmatprep.subr.bf16.mxu0 0
  %502 = vmatpush1.bf16.msra.mxu0 %v266
  %503 = vmatprep.mubr.bf16.mxu0 %v460
  %504 = vmatmul.mubr.bf16.gmra.mrb[0].mxu0 %v459
  %v505 = vpop.f32.mrb[0].mxu0
  %v506 = vadd.f32 0.0, %v505
  %v507 = vpop.f32.mrb[0].mxu0
  %v508 = vpop.f32.mrb[0].mxu0
  %v509 = vpop.f32.mrb[0].mxu0
  %510 = vdwg.mxu0
  %511 = vmatprep.subr.bf16.mxu0 0
  %512 = vmatpush1.bf16.msra.mxu0 %v267
  %513 = vmatprep.subr.bf16.mxu0 0
  %514 = vmatpush1.bf16.msra.mxu0 %v268
  %515 = vmatprep.subr.bf16.mxu0 0
  %516 = vmatpush1.bf16.msra.mxu0 %v269
  %517 = vmatprep.subr.bf16.mxu0 0
  %518 = vmatpush1.bf16.msra.mxu0 %v270
  %519 = vmatprep.subr.bf16.mxu0 0
  %520 = vmatpush1.bf16.msra.mxu0 %v271
  %521 = vmatprep.subr.bf16.mxu0 0
  %522 = vmatpush1.bf16.msra.mxu0 %v272
  %523 = vmatprep.subr.bf16.mxu0 0
  %524 = vmatpush1.bf16.msra.mxu0 %v273
  %525 = vmatprep.subr.bf16.mxu0 0
  %526 = vmatpush1.bf16.msra.mxu0 %v274
  %527 = vmatprep.subr.bf16.mxu0 0
  %528 = vmatpush1.bf16.msra.mxu0 %v275
  %529 = vmatprep.subr.bf16.mxu0 0
  %530 = vmatpush1.bf16.msra.mxu0 %v276
  %531 = vmatprep.subr.bf16.mxu0 0
  %532 = vmatpush1.bf16.msra.mxu0 %v277
  %533 = vmatprep.subr.bf16.mxu0 0
  %534 = vmatpush1.bf16.msra.mxu0 %v278
  %535 = vmatprep.subr.bf16.mxu0 0
  %536 = vmatpush1.bf16.msra.mxu0 %v279
  %537 = vmatprep.subr.bf16.mxu0 0
  %538 = vmatpush1.bf16.msra.mxu0 %v280
  %539 = vmatprep.subr.bf16.mxu0 0
  %540 = vmatpush1.bf16.msra.mxu0 %v281
  %541 = vmatprep.subr.bf16.mxu0 0
  %542 = vmatpush1.bf16.msra.mxu0 %v282
  %543 = vmatprep.mubr.bf16.mxu0 %v462
  %544 = vmatmul.mubr.bf16.gmra.mrb[0].mxu0 %v461
  %v545 = vpop.f32.mrb[0].mxu0
  %v546 = vadd.f32 %v506, %v545
  %v547 = vpop.f32.mrb[0].mxu0
  %v548 = vpop.f32.mrb[0].mxu0
  %v549 = vpop.f32.mrb[0].mxu0
  %550 = vdwg.mxu0
  %551 = vmatprep.subr.bf16.mxu0 0
  %552 = vmatpush1.bf16.msra.mxu0 %v283
  %553 = vmatprep.subr.bf16.mxu0 0
  %554 = vmatpush1.bf16.msra.mxu0 %v284
  %555 = vmatprep.subr.bf16.mxu0 0
  %556 = vmatpush1.bf16.msra.mxu0 %v285
  %557 = vmatprep.subr.bf16.mxu0 0
  %558 = vmatpush1.bf16.msra.mxu0 %v286
  %559 = vmatprep.subr.bf16.mxu0 0
  %560 = vmatpush1.bf16.msra.mxu0 0
  %561 = vmatprep.subr.bf16.mxu0 0
  %562 = vmatpush1.bf16.msra.mxu0 0
  %563 = vmatprep.subr.bf16.mxu0 0
  %564 = vmatpush1.bf16.msra.mxu0 0
  %565 = vmatprep.subr.bf16.mxu0 0
  %566 = vmatpush1.bf16.msra.mxu0 0
  %567 = vmatprep.subr.bf16.mxu0 0
  %568 = vmatpush1.bf16.msra.mxu0 0
  %569 = vmatprep.subr.bf16.mxu0 0
  %570 = vmatpush1.bf16.msra.mxu0 0
  %571 = vmatprep.subr.bf16.mxu0 0
  %572 = vmatpush1.bf16.msra.mxu0 0
  %573 = vmatprep.subr.bf16.mxu0 0
  %574 = vmatpush1.bf16.msra.mxu0 0
  %575 = vmatprep.subr.bf16.mxu0 0
  %576 = vmatpush1.bf16.msra.mxu0 0
  %577 = vmatprep.subr.bf16.mxu0 0
  %578 = vmatpush1.bf16.msra.mxu0 0
  %579 = vmatprep.subr.bf16.mxu0 0
  %580 = vmatpush1.bf16.msra.mxu0 0
  %581 = vmatprep.subr.bf16.mxu0 0
  %582 = vmatpush1.bf16.msra.mxu0 0
  %583 = vmatprep.mubr.bf16.mxu0 0
  %584 = vmatmul.mubr.bf16.gmra.mrb[0].mxu0 %v469
  %v585 = vpop.f32.mrb[0].mxu0
  %v586 = vadd.f32 %v546, %v585
  %v587 = vpop.f32.mrb[0].mxu0
  %v588 = vpop.f32.mrb[0].mxu0
  %v589 = vpop.f32.mrb[0].mxu0
  %590 = vdwg.mxu0
  %v591 = vmax.f32 %v442, %v586
  %s592 = scalar_lea.vmem %s0, 40
  %v593 = vld [vmem:[%s592] sm:$0xff]
  %v594 = vld [vmem:[%s592 + $0x8] sm:$0xff]
  %v595 = vld [vmem:[%s592 + $0x10] sm:$0xf]
  %v599 = vunpack.c.l.b16 %v593
  %v600 = vunpack.c.h.b16 %v593
  %v601 = vunpack.c.l.b16 %v594
  %v602 = vunpack.c.h.b16 %v594
  %v603 = vunpack.c.l.b16 %v595
  %v604 = vpack.c.b16 %v599, %v599
  %v605 = vpack.c.b16 %v600, %v600
  %v606 = vpack.c.b16 %v601, %v601
  %v607 = vpack.c.b16 %v602, %v602
  %v608 = vpack.c.b16 %v603, %v603
  %v614 = vsel %vm323, %v608, 0
  %616 = vmatprep.subr.bf16.mxu0 0
  %617 = vmatpush1.bf16.msra.mxu0 %v251
  %618 = vmatprep.subr.bf16.mxu0 0
  %619 = vmatpush1.bf16.msra.mxu0 %v252
  %620 = vmatprep.subr.bf16.mxu0 0
  %621 = vmatpush1.bf16.msra.mxu0 %v253
  %622 = vmatprep.subr.bf16.mxu0 0
  %623 = vmatpush1.bf16.msra.mxu0 %v254
  %624 = vmatprep.subr.bf16.mxu0 0
  %625 = vmatpush1.bf16.msra.mxu0 %v255
  %626 = vmatprep.subr.bf16.mxu0 0
  %627 = vmatpush1.bf16.msra.mxu0 %v256
  %628 = vmatprep.subr.bf16.mxu0 0
  %629 = vmatpush1.bf16.msra.mxu0 %v257
  %630 = vmatprep.subr.bf16.mxu0 0
  %631 = vmatpush1.bf16.msra.mxu0 %v258
  %632 = vmatprep.subr.bf16.mxu0 0
  %633 = vmatpush1.bf16.msra.mxu0 %v259
  %634 = vmatprep.subr.bf16.mxu0 0
  %635 = vmatpush1.bf16.msra.mxu0 %v260
  %636 = vmatprep.subr.bf16.mxu0 0
  %637 = vmatpush1.bf16.msra.mxu0 %v261
  %638 = vmatprep.subr.bf16.mxu0 0
  %639 = vmatpush1.bf16.msra.mxu0 %v262
  %640 = vmatprep.subr.bf16.mxu0 0
  %641 = vmatpush1.bf16.msra.mxu0 %v263
  %642 = vmatprep.subr.bf16.mxu0 0
  %643 = vmatpush1.bf16.msra.mxu0 %v264
  %644 = vmatprep.subr.bf16.mxu0 0
  %645 = vmatpush1.bf16.msra.mxu0 %v265
  %646 = vmatprep.subr.bf16.mxu0 0
  %647 = vmatpush1.bf16.msra.mxu0 %v266
  %648 = vmatprep.mubr.bf16.mxu0 %v605
  %649 = vmatmul.mubr.bf16.gmra.mrb[0].mxu0 %v604
  %v650 = vpop.f32.mrb[0].mxu0
  %v651 = vadd.f32 0.0, %v650
  %v652 = vpop.f32.mrb[0].mxu0
  %v653 = vpop.f32.mrb[0].mxu0
  %v654 = vpop.f32.mrb[0].mxu0
  %655 = vdwg.mxu0
  %656 = vmatprep.subr.bf16.mxu0 0
  %657 = vmatpush1.bf16.msra.mxu0 %v267
  %658 = vmatprep.subr.bf16.mxu0 0
  %659 = vmatpush1.bf16.msra.mxu0 %v268
  %660 = vmatprep.subr.bf16.mxu0 0
  %661 = vmatpush1.bf16.msra.mxu0 %v269
  %662 = vmatprep.subr.bf16.mxu0 0
  %663 = vmatpush1.bf16.msra.mxu0 %v270
  %664 = vmatprep.subr.bf16.mxu0 0
  %665 = vmatpush1.bf16.msra.mxu0 %v271
  %666 = vmatprep.subr.bf16.mxu0 0
  %667 = vmatpush1.bf16.msra.mxu0 %v272
  %668 = vmatprep.subr.bf16.mxu0 0
  %669 = vmatpush1.bf16.msra.mxu0 %v273
  %670 = vmatprep.subr.bf16.mxu0 0
  %671 = vmatpush1.bf16.msra.mxu0 %v274
  %672 = vmatprep.subr.bf16.mxu0 0
  %673 = vmatpush1.bf16.msra.mxu0 %v275
  %674 = vmatprep.subr.bf16.mxu0 0
  %675 = vmatpush1.bf16.msra.mxu0 %v276
  %676 = vmatprep.subr.bf16.mxu0 0
  %677 = vmatpush1.bf16.msra.mxu0 %v277
  %678 = vmatprep.subr.bf16.mxu0 0
  %679 = vmatpush1.bf16.msra.mxu0 %v278
  %680 = vmatprep.subr.bf16.mxu0 0
  %681 = vmatpush1.bf16.msra.mxu0 %v279
  %682 = vmatprep.subr.bf16.mxu0 0
  %683 = vmatpush1.bf16.msra.mxu0 %v280
  %684 = vmatprep.subr.bf16.mxu0 0
  %685 = vmatpush1.bf16.msra.mxu0 %v281
  %686 = vmatprep.subr.bf16.mxu0 0
  %687 = vmatpush1.bf16.msra.mxu0 %v282
  %688 = vmatprep.mubr.bf16.mxu0 %v607
  %689 = vmatmul.mubr.bf16.gmra.mrb[0].mxu0 %v606
  %v690 = vpop.f32.mrb[0].mxu0
  %v691 = vadd.f32 %v651, %v690
  %v692 = vpop.f32.mrb[0].mxu0
  %v693 = vpop.f32.mrb[0].mxu0
  %v694 = vpop.f32.mrb[0].mxu0
  %695 = vdwg.mxu0
  %696 = vmatprep.subr.bf16.mxu0 0
  %697 = vmatpush1.bf16.msra.mxu0 %v283
  %698 = vmatprep.subr.bf16.mxu0 0
  %699 = vmatpush1.bf16.msra.mxu0 %v284
  %700 = vmatprep.subr.bf16.mxu0 0
  %701 = vmatpush1.bf16.msra.mxu0 %v285
  %702 = vmatprep.subr.bf16.mxu0 0
  %703 = vmatpush1.bf16.msra.mxu0 %v286
  %704 = vmatprep.subr.bf16.mxu0 0
  %705 = vmatpush1.bf16.msra.mxu0 0
  %706 = vmatprep.subr.bf16.mxu0 0
  %707 = vmatpush1.bf16.msra.mxu0 0
  %708 = vmatprep.subr.bf16.mxu0 0
  %709 = vmatpush1.bf16.msra.mxu0 0
  %710 = vmatprep.subr.bf16.mxu0 0
  %711 = vmatpush1.bf16.msra.mxu0 0
  %712 = vmatprep.subr.bf16.mxu0 0
  %713 = vmatpush1.bf16.msra.mxu0 0
  %714 = vmatprep.subr.bf16.mxu0 0
  %715 = vmatpush1.bf16.msra.mxu0 0
  %716 = vmatprep.subr.bf16.mxu0 0
  %717 = vmatpush1.bf16.msra.mxu0 0
  %718 = vmatprep.subr.bf16.mxu0 0
  %719 = vmatpush1.bf16.msra.mxu0 0
  %720 = vmatprep.subr.bf16.mxu0 0
  %721 = vmatpush1.bf16.msra.mxu0 0
  %722 = vmatprep.subr.bf16.mxu0 0
  %723 = vmatpush1.bf16.msra.mxu0 0
  %724 = vmatprep.subr.bf16.mxu0 0
  %725 = vmatpush1.bf16.msra.mxu0 0
  %726 = vmatprep.subr.bf16.mxu0 0
  %727 = vmatpush1.bf16.msra.mxu0 0
  %728 = vmatprep.mubr.bf16.mxu0 0
  %729 = vmatmul.mubr.bf16.gmra.mrb[0].mxu0 %v614
  %v730 = vpop.f32.mrb[0].mxu0
  %v731 = vadd.f32 %v691, %v730
  %v732 = vpop.f32.mrb[0].mxu0
  %v733 = vpop.f32.mrb[0].mxu0
  %v734 = vpop.f32.mrb[0].mxu0
  %735 = vdwg.mxu0
  %s736 = scalar_lea.vmem %s0, 60
  %v737 = vld [vmem:[%s736] sm:$0xff]
  %v738 = vld [vmem:[%s736 + $0x8] sm:$0xff]
  %v739 = vld [vmem:[%s736 + $0x10] sm:$0xf]
  %v743 = vunpack.c.l.b16 %v737
  %v744 = vunpack.c.h.b16 %v737
  %v745 = vunpack.c.l.b16 %v738
  %v746 = vunpack.c.h.b16 %v738
  %v747 = vunpack.c.l.b16 %v739
  %v748 = vpack.c.b16 %v743, %v743
  %v749 = vpack.c.b16 %v744, %v744
  %v750 = vpack.c.b16 %v745, %v745
  %v751 = vpack.c.b16 %v746, %v746
  %v752 = vpack.c.b16 %v747, %v747
  %v758 = vsel %vm323, %v752, 0
  %760 = vmatprep.subr.bf16.mxu0 0
  %761 = vmatpush1.bf16.msra.mxu0 %v251
  %762 = vmatprep.subr.bf16.mxu0 0
  %763 = vmatpush1.bf16.msra.mxu0 %v252
  %764 = vmatprep.subr.bf16.mxu0 0
  %765 = vmatpush1.bf16.msra.mxu0 %v253
  %766 = vmatprep.subr.bf16.mxu0 0
  %767 = vmatpush1.bf16.msra.mxu0 %v254
  %768 = vmatprep.subr.bf16.mxu0 0
  %769 = vmatpush1.bf16.msra.mxu0 %v255
  %770 = vmatprep.subr.bf16.mxu0 0
  %771 = vmatpush1.bf16.msra.mxu0 %v256
  %772 = vmatprep.subr.bf16.mxu0 0
  %773 = vmatpush1.bf16.msra.mxu0 %v257
  %774 = vmatprep.subr.bf16.mxu0 0
  %775 = vmatpush1.bf16.msra.mxu0 %v258
  %776 = vmatprep.subr.bf16.mxu0 0
  %777 = vmatpush1.bf16.msra.mxu0 %v259
  %778 = vmatprep.subr.bf16.mxu0 0
  %779 = vmatpush1.bf16.msra.mxu0 %v260
  %780 = vmatprep.subr.bf16.mxu0 0
  %781 = vmatpush1.bf16.msra.mxu0 %v261
  %782 = vmatprep.subr.bf16.mxu0 0
  %783 = vmatpush1.bf16.msra.mxu0 %v262
  %784 = vmatprep.subr.bf16.mxu0 0
  %785 = vmatpush1.bf16.msra.mxu0 %v263
  %786 = vmatprep.subr.bf16.mxu0 0
  %787 = vmatpush1.bf16.msra.mxu0 %v264
  %788 = vmatprep.subr.bf16.mxu0 0
  %789 = vmatpush1.bf16.msra.mxu0 %v265
  %790 = vmatprep.subr.bf16.mxu0 0
  %791 = vmatpush1.bf16.msra.mxu0 %v266
  %792 = vmatprep.mubr.bf16.mxu0 %v749
  %793 = vmatmul.mubr.bf16.gmra.mrb[0].mxu0 %v748
  %v794 = vpop.f32.mrb[0].mxu0
  %v795 = vadd.f32 0.0, %v794
  %v796 = vpop.f32.mrb[0].mxu0
  %v797 = vpop.f32.mrb[0].mxu0
  %v798 = vpop.f32.mrb[0].mxu0
  %799 = vdwg.mxu0
  %800 = vmatprep.subr.bf16.mxu0 0
  %801 = vmatpush1.bf16.msra.mxu0 %v267
  %802 = vmatprep.subr.bf16.mxu0 0
  %803 = vmatpush1.bf16.msra.mxu0 %v268
  %804 = vmatprep.subr.bf16.mxu0 0
  %805 = vmatpush1.bf16.msra.mxu0 %v269
  %806 = vmatprep.subr.bf16.mxu0 0
  %807 = vmatpush1.bf16.msra.mxu0 %v270
  %808 = vmatprep.subr.bf16.mxu0 0
  %809 = vmatpush1.bf16.msra.mxu0 %v271
  %810 = vmatprep.subr.bf16.mxu0 0
  %811 = vmatpush1.bf16.msra.mxu0 %v272
  %812 = vmatprep.subr.bf16.mxu0 0
  %813 = vmatpush1.bf16.msra.mxu0 %v273
  %814 = vmatprep.subr.bf16.mxu0 0
  %815 = vmatpush1.bf16.msra.mxu0 %v274
  %816 = vmatprep.subr.bf16.mxu0 0
  %817 = vmatpush1.bf16.msra.mxu0 %v275
  %818 = vmatprep.subr.bf16.mxu0 0
  %819 = vmatpush1.bf16.msra.mxu0 %v276
  %820 = vmatprep.subr.bf16.mxu0 0
  %821 = vmatpush1.bf16.msra.mxu0 %v277
  %822 = vmatprep.subr.bf16.mxu0 0
  %823 = vmatpush1.bf16.msra.mxu0 %v278
  %824 = vmatprep.subr.bf16.mxu0 0
  %825 = vmatpush1.bf16.msra.mxu0 %v279
  %826 = vmatprep.subr.bf16.mxu0 0
  %827 = vmatpush1.bf16.msra.mxu0 %v280
  %828 = vmatprep.subr.bf16.mxu0 0
  %829 = vmatpush1.bf16.msra.mxu0 %v281
  %830 = vmatprep.subr.bf16.mxu0 0
  %831 = vmatpush1.bf16.msra.mxu0 %v282
  %832 = vmatprep.mubr.bf16.mxu0 %v751
  %833 = vmatmul.mubr.bf16.gmra.mrb[0].mxu0 %v750
  %v834 = vpop.f32.mrb[0].mxu0
  %v835 = vadd.f32 %v795, %v834
  %v836 = vpop.f32.mrb[0].mxu0
  %v837 = vpop.f32.mrb[0].mxu0
  %v838 = vpop.f32.mrb[0].mxu0
  %839 = vdwg.mxu0
  %840 = vmatprep.subr.bf16.mxu0 0
  %841 = vmatpush1.bf16.msra.mxu0 %v283
  %842 = vmatprep.subr.bf16.mxu0 0
  %843 = vmatpush1.bf16.msra.mxu0 %v284
  %844 = vmatprep.subr.bf16.mxu0 0
  %845 = vmatpush1.bf16.msra.mxu0 %v285
  %846 = vmatprep.subr.bf16.mxu0 0
  %847 = vmatpush1.bf16.msra.mxu0 %v286
  %848 = vmatprep.subr.bf16.mxu0 0
  %849 = vmatpush1.bf16.msra.mxu0 0
  %850 = vmatprep.subr.bf16.mxu0 0
  %851 = vmatpush1.bf16.msra.mxu0 0
  %852 = vmatprep.subr.bf16.mxu0 0
  %853 = vmatpush1.bf16.msra.mxu0 0
  %854 = vmatprep.subr.bf16.mxu0 0
  %855 = vmatpush1.bf16.msra.mxu0 0
  %856 = vmatprep.subr.bf16.mxu0 0
  %857 = vmatpush1.bf16.msra.mxu0 0
  %858 = vmatprep.subr.bf16.mxu0 0
  %859 = vmatpush1.bf16.msra.mxu0 0
  %860 = vmatprep.subr.bf16.mxu0 0
  %861 = vmatpush1.bf16.msra.mxu0 0
  %862 = vmatprep.subr.bf16.mxu0 0
  %863 = vmatpush1.bf16.msra.mxu0 0
  %864 = vmatprep.subr.bf16.mxu0 0
  %865 = vmatpush1.bf16.msra.mxu0 0
  %866 = vmatprep.subr.bf16.mxu0 0
  %867 = vmatpush1.bf16.msra.mxu0 0
  %868 = vmatprep.subr.bf16.mxu0 0
  %869 = vmatpush1.bf16.msra.mxu0 0
  %870 = vmatprep.subr.bf16.mxu0 0
  %871 = vmatpush1.bf16.msra.mxu0 0
  %872 = vmatprep.mubr.bf16.mxu0 0
  %873 = vmatmul.mubr.bf16.gmra.mrb[0].mxu0 %v758
  %v874 = vpop.f32.mrb[0].mxu0
  %v875 = vadd.f32 %v835, %v874
  %v876 = vpop.f32.mrb[0].mxu0
  %v877 = vpop.f32.mrb[0].mxu0
  %v878 = vpop.f32.mrb[0].mxu0
  %879 = vdwg.mxu0
  %v880 = vmax.f32 %v731, %v875
  %v881 = vmax.f32 %v591, %v880
  %v882 = vld [vmem:[%s2] sm:$0x1]
  %v884 = vlaneseq
  %v885 = vshrl.u32 %v884, 7
  %v886 = vsub.s32 0, %v885
  %v887 = vrot.slane %v882, %v886
  %v889 = vadd.f32 %v881, %v887
  %vm890 = vcmp.ge.f32.partialorder %v889, 0.0
  %v891 = vmul.f32 %v889, 0.1
  %v892 = vsel %vm890, %v889, %v891
  %893 = vst.msk [vmem:[%s3] sm:$0xff] %vm323, %v892
  // Predicated region
  $region14: #{unet_decoder.16} parent=0 // pred_check
    _
  $region15: #{unet_decoder.16} parent=0 // pred_check_branch
    %895 = sbr.rel (0) target = $region17
  $region16: #{unet_decoder.16} parent=0 // pred_region
    _
  $region17: #{unet_decoder.16} parent=0 // pred_fallthru
    _
  // Predicated region
  $region18: #{unet_decoder.16} parent=0 // pred_check
    _
  $region19: #{unet_decoder.16} parent=0 // pred_check_branch
    %897 = sbr.rel (0) target = $region21
  $region20: #{unet_decoder.16} parent=0 // pred_region
    _
  $region21: #{unet_decoder.16} parent=0 // pred_fallthru
    _

// kernel: tile.34
$region0: #{tile.34}
  #allocation0 [shape = 's32[1]{0}', space=sflag, size = 0x4, scoped, tag = 'scoped memory for tile.34']
  %s0 = inlined_call_operand.vmem [shape: f32[32], index: 0, kind: input, shape index: {}]
  %s1 = inlined_call_operand.vmem [shape: f32[4,32], index: 1, kind: output, shape index: {}]
  // Predicated region
  $region2: #{tile.34} parent=0 // pred_check
    _
  $region3: #{tile.34} parent=0 // pred_check_branch
    %3 = sbr.rel (0) target = $region5
  $region4: #{tile.34} parent=0 // pred_region
    _
  $region5: #{tile.34} parent=0 // pred_fallthru
    _
  %v4 = vld [vmem:[%s0] ss:$0 sm:$0xff]
  %5 = vst [vmem:[%s1] sm:$0xf] %v4

// kernel: tile.35
$region0: #{tile.35}
  %s0 = inlined_call_operand.vmem [shape: f32[4,32], index: 0, kind: input, shape index: {}]
  %s1 = inlined_call_operand.vmem [shape: f32[1,128], index: 1, kind: output, shape index: {}]
  $region1: #{tile.35} parent=0
    #allocation0 [shape = 'u8[4096]{0}', space=vmem, size = 0x1000, scoped, tag = 'scoped mem for output reshape']
    #allocation1 [shape = 'u8[4096]{0}', space=vmem, size = 0x1000, scoped, tag = 'scoped mem for input reshape']
    %s3 = sshllo.u32 0, 4
    %v4 = vld [vmem:[%s0] sm:%s3]
    %5 = vst [vmem:[#allocation1] sm:%s3] %v4
    %v6 = vld [vmem:[#allocation1] sm:$0x1]
    %vm7 = vcmask 261120
    %8 = vst.msk [vmem:[#allocation0] sm:$0x1] %vm7, %v6
    %s9 = scalar_lea.vmem [#allocation1], 3
    %v10 = vld [vmem:[%s9] sm:$0x1]
    %11 = vrot.lane.b32.xlu0 %v10, 96
    %v12 = vpop.permute.xlu0 %11
    %vm13 = vcmask 1048320
    %14 = vst.msk [vmem:[#allocation0] sm:$0x1] %vm13, %v12
    %s15 = scalar_lea.vmem [#allocation1], 2
    %v16 = vld [vmem:[%s15] sm:$0x1]
    %17 = vrot.lane.b32.xlu0 %v16, 64
    %v18 = vpop.permute.xlu0 %17
    %vm19 = vcmask 785920
    %20 = vst.msk [vmem:[#allocation0] sm:$0x1] %vm19, %v18
    %s21 = scalar_lea.vmem [#allocation1], 1
    %v22 = vld [vmem:[%s21] sm:$0x1]
    %23 = vrot.lane.b32.xlu0 %v22, 32
    %v24 = vpop.permute.xlu0 %23
    %vm25 = vcmask 523520
    %26 = vst.msk [vmem:[#allocation0] sm:$0x1] %vm25, %v24
    %s28 = sshllo.u32 0, 1
    %v30 = vld [vmem:[#allocation0] sm:%s28]
    %s31 = sshllo.u32 0, 1
    %32 = vst [vmem:[%s1] sm:%s31] %v30

// kernel: unet_decoder.17
$region0: #{unet_decoder.17}
  #allocation0 [shape = 'u32[]', space=smem, size = 0x4, offset = 0x4, fixed_abs, tag = 'smem constant byte address 0x4 - core index']
  #allocation1 [shape = 'u32[144,128]{1,0:T(1,128)}', space=vmem, size = 0x12000, scoped, tag = 'internal scratch']
  %s0 = inlined_call_operand.vmem [shape: bf16[8,1600], index: 0, kind: input, shape index: {}]
  %s1 = inlined_call_operand.vmem [shape: bf16[1600,32], index: 1, kind: input, shape index: {}]
  %s2 = inlined_call_operand.vmem [shape: f32[8,32], index: 2, kind: input, shape index: {}]
  %s3 = inlined_call_operand.vmem [shape: bf16[32,128], index: 3, kind: input, shape index: {}]
  %s4 = inlined_call_operand.vmem [shape: f32[1,128], index: 4, kind: input, shape index: {}]
  %s5 = inlined_call_operand.vmem [shape: f32[8,128], index: 5, kind: output, shape index: {}]
  %s6 = sld [smem:[#allocation0]]
  $region30: #{unet_decoder.17} parent=0
    _
  %s8 = ssub.s32 1, %s6
  %s9 = scalar_select 0, %s8, %s6
  // Predicated region
  $region2: #{unet_decoder.17} parent=0 // pred_check
    _
  $region3: #{unet_decoder.17} parent=0 // pred_check_branch
    %11 = sbr.rel (0) target = $region5
  $region4: #{unet_decoder.17} parent=0 // pred_region
    _
  $region5: #{unet_decoder.17} parent=0 // pred_fallthru
    _
  // Predicated region
  $region6: #{unet_decoder.17} parent=0 // pred_check
    _
  $region7: #{unet_decoder.17} parent=0 // pred_check_branch
    %13 = sbr.rel (0) target = $region9
  $region8: #{unet_decoder.17} parent=0 // pred_region
    _
  $region9: #{unet_decoder.17} parent=0 // pred_fallthru
    _
  // Predicated region
  $region10: #{unet_decoder.17} parent=0 // pred_check
    _
  $region11: #{unet_decoder.17} parent=0 // pred_check_branch
    %15 = sbr.rel (0) target = $region13
  $region12: #{unet_decoder.17} parent=0 // pred_region
    _
  $region13: #{unet_decoder.17} parent=0 // pred_fallthru
    _
  // Predicated region
  $region14: #{unet_decoder.17} parent=0 // pred_check
    _
  $region15: #{unet_decoder.17} parent=0 // pred_check_branch
    %17 = sbr.rel (0) target = $region17
  $region16: #{unet_decoder.17} parent=0 // pred_region
    _
  $region17: #{unet_decoder.17} parent=0 // pred_fallthru
    _
  // Predicated region
  $region18: #{unet_decoder.17} parent=0 // pred_check
    _
  $region19: #{unet_decoder.17} parent=0 // pred_check_branch
    %19 = sbr.rel (0) target = $region21
  $region20: #{unet_decoder.17} parent=0 // pred_region
    _
  $region21: #{unet_decoder.17} parent=0 // pred_fallthru
    _
  %v21 = vld [vmem:[%s0] sm:$0xff]
  %v22 = vld [vmem:[%s0 + $0x8] sm:$0xff]
  %v23 = vld [vmem:[%s0 + $0x10] sm:$0xff]
  %v24 = vld [vmem:[%s0 + $0x18] sm:$0xff]
  %v25 = vld [vmem:[%s0 + $0x20] sm:$0xff]
  %v26 = vld [vmem:[%s0 + $0x28] sm:$0xff]
  %v27 = vld [vmem:[%s0 + $0x30] sm:$0xf]
  %v28 = vld [vmem:[%s1] sm:$0xf]
  %v29 = vld [vmem:[%s1 + $0x4] sm:$0xf]
  %v30 = vld [vmem:[%s1 + $0x8] sm:$0xf]
  %v31 = vld [vmem:[%s1 + $0xc] sm:$0xf]
  %v32 = vld [vmem:[%s1 + $0x10] sm:$0xf]
  %v33 = vld [vmem:[%s1 + $0x14] sm:$0xf]
  %v34 = vld [vmem:[%s1 + $0x18] sm:$0xf]
  %v35 = vld [vmem:[%s1 + $0x1c] sm:$0xf]
  %v36 = vld [vmem:[%s1 + $0x20] sm:$0xf]
  %v37 = vld [vmem:[%s1 + $0x24] sm:$0xf]
  %v38 = vld [vmem:[%s1 + $0x28] sm:$0xf]
  %v39 = vld [vmem:[%s1 + $0x2c] sm:$0xf]
  %v40 = vld [vmem:[%s1 + $0x30] sm:$0xf]
  %v41 = vld [vmem:[%s1 + $0x34] sm:$0xf]
  %v42 = vld [vmem:[%s1 + $0x38] sm:$0xf]
  %v43 = vld [vmem:[%s1 + $0x3c] sm:$0xf]
  %v44 = vld [vmem:[%s1 + $0x40] sm:$0xf]
  %v45 = vld [vmem:[%s1 + $0x44] sm:$0xf]
  %v46 = vld [vmem:[%s1 + $0x48] sm:$0xf]
  %v47 = vld [vmem:[%s1 + $0x4c] sm:$0xf]
  %v48 = vld [vmem:[%s1 + $0x50] sm:$0xf]
  %v49 = vld [vmem:[%s1 + $0x54] sm:$0xf]
  %v50 = vld [vmem:[%s1 + $0x58] sm:$0xf]
  %v51 = vld [vmem:[%s1 + $0x5c] sm:$0xf]
  %v52 = vld [vmem:[%s1 + $0x60] sm:$0xf]
  %v53 = vld [vmem:[%s1 + $0x64] sm:$0xf]
  %v54 = vld [vmem:[%s1 + $0x68] sm:$0xf]
  %v55 = vld [vmem:[%s1 + $0x6c] sm:$0xf]
  %v56 = vld [vmem:[%s1 + $0x70] sm:$0xf]
  %v57 = vld [vmem:[%s1 + $0x74] sm:$0xf]
  %v58 = vld [vmem:[%s1 + $0x78] sm:$0xf]
  %v59 = vld [vmem:[%s1 + $0x7c] sm:$0xf]
  %v60 = vld [vmem:[%s1 + $0x80] sm:$0xf]
  %v61 = vld [vmem:[%s1 + $0x84] sm:$0xf]
  %v62 = vld [vmem:[%s1 + $0x88] sm:$0xf]
  %v63 = vld [vmem:[%s1 + $0x8c] sm:$0xf]
  %v64 = vld [vmem:[%s1 + $0x90] sm:$0xf]
  %v65 = vld [vmem:[%s1 + $0x94] sm:$0xf]
  %v66 = vld [vmem:[%s1 + $0x98] sm:$0xf]
  %v67 = vld [vmem:[%s1 + $0x9c] sm:$0xf]
  %v68 = vld [vmem:[%s1 + $0xa0] sm:$0xf]
  %v69 = vld [vmem:[%s1 + $0xa4] sm:$0xf]
  %v70 = vld [vmem:[%s1 + $0xa8] sm:$0xf]
  %v71 = vld [vmem:[%s1 + $0xac] sm:$0xf]
  %v72 = vld [vmem:[%s1 + $0xb0] sm:$0xf]
  %v73 = vld [vmem:[%s1 + $0xb4] sm:$0xf]
  %v74 = vld [vmem:[%s1 + $0xb8] sm:$0xf]
  %v75 = vld [vmem:[%s1 + $0xbc] sm:$0xf]
  %v76 = vld [vmem:[%s1 + $0xc0] sm:$0xf]
  %v77 = vld [vmem:[%s1 + $0xc4] sm:$0xf]
  %v78 = vld [vmem:[%s1 + $0xc8] sm:$0xf]
  %v79 = vld [vmem:[%s1 + $0xcc] sm:$0xf]
  %v80 = vld [vmem:[%s1 + $0xd0] sm:$0xf]
  %v81 = vld [vmem:[%s1 + $0xd4] sm:$0xf]
  %v82 = vld [vmem:[%s1 + $0xd8] sm:$0xf]
  %v83 = vld [vmem:[%s1 + $0xdc] sm:$0xf]
  %v84 = vld [vmem:[%s1 + $0xe0] sm:$0xf]
  %v85 = vld [vmem:[%s1 + $0xe4] sm:$0xf]
  %v86 = vld [vmem:[%s1 + $0xe8] sm:$0xf]
  %v87 = vld [vmem:[%s1 + $0xec] sm:$0xf]
  %v88 = vld [vmem:[%s1 + $0xf0] sm:$0xf]
  %v89 = vld [vmem:[%s1 + $0xf4] sm:$0xf]
  %v90 = vld [vmem:[%s1 + $0xf8] sm:$0xf]
  %v91 = vld [vmem:[%s1 + $0xfc] sm:$0xf]
  %v92 = vld [vmem:[%s1 + $0x100] sm:$0xf]
  %v93 = vld [vmem:[%s1 + $0x104] sm:$0xf]
  %v94 = vld [vmem:[%s1 + $0x108] sm:$0xf]
  %v95 = vld [vmem:[%s1 + $0x10c] sm:$0xf]
  %v96 = vld [vmem:[%s1 + $0x110] sm:$0xf]
  %v97 = vld [vmem:[%s1 + $0x114] sm:$0xf]
  %v98 = vld [vmem:[%s1 + $0x118] sm:$0xf]
  %v99 = vld [vmem:[%s1 + $0x11c] sm:$0xf]
  %v100 = vld [vmem:[%s1 + $0x120] sm:$0xf]
  %v101 = vld [vmem:[%s1 + $0x124] sm:$0xf]
  %v102 = vld [vmem:[%s1 + $0x128] sm:$0xf]
  %v103 = vld [vmem:[%s1 + $0x12c] sm:$0xf]
  %v104 = vld [vmem:[%s1 + $0x130] sm:$0xf]
  %v105 = vld [vmem:[%s1 + $0x134] sm:$0xf]
  %v106 = vld [vmem:[%s1 + $0x138] sm:$0xf]
  %v107 = vld [vmem:[%s1 + $0x13c] sm:$0xf]
  %v108 = vld [vmem:[%s1 + $0x140] sm:$0xf]
  %v109 = vld [vmem:[%s1 + $0x144] sm:$0xf]
  %v110 = vld [vmem:[%s1 + $0x148] sm:$0xf]
  %v111 = vld [vmem:[%s1 + $0x14c] sm:$0xf]
  %v112 = vld [vmem:[%s1 + $0x150] sm:$0xf]
  %v113 = vld [vmem:[%s1 + $0x154] sm:$0xf]
  %v114 = vld [vmem:[%s1 + $0x158] sm:$0xf]
  %v115 = vld [vmem:[%s1 + $0x15c] sm:$0xf]
  %v116 = vld [vmem:[%s1 + $0x160] sm:$0xf]
  %v117 = vld [vmem:[%s1 + $0x164] sm:$0xf]
  %v118 = vld [vmem:[%s1 + $0x168] sm:$0xf]
  %v119 = vld [vmem:[%s1 + $0x16c] sm:$0xf]
  %v120 = vld [vmem:[%s1 + $0x170] sm:$0xf]
  %v121 = vld [vmem:[%s1 + $0x174] sm:$0xf]
  %v122 = vld [vmem:[%s1 + $0x178] sm:$0xf]
  %v123 = vld [vmem:[%s1 + $0x17c] sm:$0xf]
  %v124 = vld [vmem:[%s1 + $0x180] sm:$0xf]
  %v125 = vld [vmem:[%s1 + $0x184] sm:$0xf]
  %v126 = vld [vmem:[%s1 + $0x188] sm:$0xf]
  %v127 = vld [vmem:[%s1 + $0x18c] sm:$0xf]
  %v128 = vld [vmem:[%s1 + $0x190] sm:$0xf]
  %v129 = vld [vmem:[%s1 + $0x194] sm:$0xf]
  %v130 = vld [vmem:[%s1 + $0x198] sm:$0xf]
  %v131 = vld [vmem:[%s1 + $0x19c] sm:$0xf]
  %v132 = vld [vmem:[%s1 + $0x1a0] sm:$0xf]
  %v133 = vld [vmem:[%s1 + $0x1a4] sm:$0xf]
  %v134 = vld [vmem:[%s1 + $0x1a8] sm:$0xf]
  %v135 = vld [vmem:[%s1 + $0x1ac] sm:$0xf]
  %v136 = vld [vmem:[%s1 + $0x1b0] sm:$0xf]
  %v137 = vld [vmem:[%s1 + $0x1b4] sm:$0xf]
  %v138 = vld [vmem:[%s1 + $0x1b8] sm:$0xf]
  %v139 = vld [vmem:[%s1 + $0x1bc] sm:$0xf]
  %v140 = vld [vmem:[%s1 + $0x1c0] sm:$0xf]
  %v141 = vld [vmem:[%s1 + $0x1c4] sm:$0xf]
  %v142 = vld [vmem:[%s1 + $0x1c8] sm:$0xf]
  %v143 = vld [vmem:[%s1 + $0x1cc] sm:$0xf]
  %v144 = vld [vmem:[%s1 + $0x1d0] sm:$0xf]
  %v145 = vld [vmem:[%s1 + $0x1d4] sm:$0xf]
  %v146 = vld [vmem:[%s1 + $0x1d8] sm:$0xf]
  %v147 = vld [vmem:[%s1 + $0x1dc] sm:$0xf]
  %v148 = vld [vmem:[%s1 + $0x1e0] sm:$0xf]
  %v149 = vld [vmem:[%s1 + $0x1e4] sm:$0xf]
  %v150 = vld [vmem:[%s1 + $0x1e8] sm:$0xf]
  %v151 = vld [vmem:[%s1 + $0x1ec] sm:$0xf]
  %v152 = vld [vmem:[%s1 + $0x1f0] sm:$0xf]
  %v153 = vld [vmem:[%s1 + $0x1f4] sm:$0xf]
  %v154 = vld [vmem:[%s1 + $0x1f8] sm:$0xf]
  %v155 = vld [vmem:[%s1 + $0x1fc] sm:$0xf]
  %v156 = vld [vmem:[%s1 + $0x200] sm:$0xf]
  %v157 = vld [vmem:[%s1 + $0x204] sm:$0xf]
  %v158 = vld [vmem:[%s1 + $0x208] sm:$0xf]
  %v159 = vld [vmem:[%s1 + $0x20c] sm:$0xf]
  %v160 = vld [vmem:[%s1 + $0x210] sm:$0xf]
  %v161 = vld [vmem:[%s1 + $0x214] sm:$0xf]
  %v162 = vld [vmem:[%s1 + $0x218] sm:$0xf]
  %v163 = vld [vmem:[%s1 + $0x21c] sm:$0xf]
  %v164 = vld [vmem:[%s1 + $0x220] sm:$0xf]
  %v165 = vld [vmem:[%s1 + $0x224] sm:$0xf]
  %v166 = vld [vmem:[%s1 + $0x228] sm:$0xf]
  %v167 = vld [vmem:[%s1 + $0x22c] sm:$0xf]
  %v168 = vld [vmem:[%s1 + $0x230] sm:$0xf]
  %v169 = vld [vmem:[%s1 + $0x234] sm:$0xf]
  %v170 = vld [vmem:[%s1 + $0x238] sm:$0xf]
  %v171 = vld [vmem:[%s1 + $0x23c] sm:$0xf]
  %v172 = vld [vmem:[%s1 + $0x240] sm:$0xf]
  %v173 = vld [vmem:[%s1 + $0x244] sm:$0xf]
  %v174 = vld [vmem:[%s1 + $0x248] sm:$0xf]
  %v175 = vld [vmem:[%s1 + $0x24c] sm:$0xf]
  %v176 = vld [vmem:[%s1 + $0x250] sm:$0xf]
  %v177 = vld [vmem:[%s1 + $0x254] sm:$0xf]
  %v178 = vld [vmem:[%s1 + $0x258] sm:$0xf]
  %v179 = vld [vmem:[%s1 + $0x25c] sm:$0xf]
  %v180 = vld [vmem:[%s1 + $0x260] sm:$0xf]
  %v181 = vld [vmem:[%s1 + $0x264] sm:$0xf]
  %v182 = vld [vmem:[%s1 + $0x268] sm:$0xf]
  %v183 = vld [vmem:[%s1 + $0x26c] sm:$0xf]
  %v184 = vld [vmem:[%s1 + $0x270] sm:$0xf]
  %v185 = vld [vmem:[%s1 + $0x274] sm:$0xf]
  %v186 = vld [vmem:[%s1 + $0x278] sm:$0xf]
  %v187 = vld [vmem:[%s1 + $0x27c] sm:$0xf]
  %v188 = vld [vmem:[%s1 + $0x280] sm:$0xf]
  %v189 = vld [vmem:[%s1 + $0x284] sm:$0xf]
  %v190 = vld [vmem:[%s1 + $0x288] sm:$0xf]
  %v191 = vld [vmem:[%s1 + $0x28c] sm:$0xf]
  %v192 = vld [vmem:[%s1 + $0x290] sm:$0xf]
  %v193 = vld [vmem:[%s1 + $0x294] sm:$0xf]
  %v194 = vld [vmem:[%s1 + $0x298] sm:$0xf]
  %v195 = vld [vmem:[%s1 + $0x29c] sm:$0xf]
  %v196 = vld [vmem:[%s1 + $0x2a0] sm:$0xf]
  %v197 = vld [vmem:[%s1 + $0x2a4] sm:$0xf]
  %v198 = vld [vmem:[%s1 + $0x2a8] sm:$0xf]
  %v199 = vld [vmem:[%s1 + $0x2ac] sm:$0xf]
  %v200 = vld [vmem:[%s1 + $0x2b0] sm:$0xf]
  %v201 = vld [vmem:[%s1 + $0x2b4] sm:$0xf]
  %v202 = vld [vmem:[%s1 + $0x2b8] sm:$0xf]
  %v203 = vld [vmem:[%s1 + $0x2bc] sm:$0xf]
  %v204 = vld [vmem:[%s1 + $0x2c0] sm:$0xf]
  %v205 = vld [vmem:[%s1 + $0x2c4] sm:$0xf]
  %v206 = vld [vmem:[%s1 + $0x2c8] sm:$0xf]
  %v207 = vld [vmem:[%s1 + $0x2cc] sm:$0xf]
  %v208 = vld [vmem:[%s1 + $0x2d0] sm:$0xf]
  %v209 = vld [vmem:[%s1 + $0x2d4] sm:$0xf]
  %v210 = vld [vmem:[%s1 + $0x2d8] sm:$0xf]
  %v211 = vld [vmem:[%s1 + $0x2dc] sm:$0xf]
  %v212 = vld [vmem:[%s1 + $0x2e0] sm:$0xf]
  %v213 = vld [vmem:[%s1 + $0x2e4] sm:$0xf]
  %v214 = vld [vmem:[%s1 + $0x2e8] sm:$0xf]
  %v215 = vld [vmem:[%s1 + $0x2ec] sm:$0xf]
  %v216 = vld [vmem:[%s1 + $0x2f0] sm:$0xf]
  %v217 = vld [vmem:[%s1 + $0x2f4] sm:$0xf]
  %v218 = vld [vmem:[%s1 + $0x2f8] sm:$0xf]
  %v219 = vld [vmem:[%s1 + $0x2fc] sm:$0xf]
  %v220 = vld [vmem:[%s1 + $0x300] sm:$0xf]
  %v221 = vld [vmem:[%s1 + $0x304] sm:$0xf]
  %v222 = vld [vmem:[%s1 + $0x308] sm:$0xf]
  %v223 = vld [vmem:[%s1 + $0x30c] sm:$0xf]
  %v224 = vld [vmem:[%s1 + $0x310] sm:$0xf]
  %v225 = vld [vmem:[%s1 + $0x314] sm:$0xf]
  %v226 = vld [vmem:[%s1 + $0x318] sm:$0xf]
  %v227 = vld [vmem:[%s1 + $0x31c] sm:$0xf]
  %v228 = vld [vmem:[%s2] sm:$0xff]
  %v236 = vunpack.c.l.b16 %v21
  %v237 = vunpack.c.h.b16 %v21
  %v238 = vunpack.c.l.b16 %v22
  %v239 = vunpack.c.h.b16 %v22
  %v240 = vunpack.c.l.b16 %v23
  %v241 = vunpack.c.h.b16 %v23
  %v242 = vunpack.c.l.b16 %v24
  %v243 = vunpack.c.h.b16 %v24
  %v244 = vunpack.c.l.b16 %v25
  %v245 = vunpack.c.h.b16 %v25
  %v246 = vunpack.c.l.b16 %v26
  %v247 = vunpack.c.h.b16 %v26
  %v248 = vunpack.c.l.b16 %v27
  %v249 = vpack.c.b16 %v236, %v236
  %v250 = vpack.c.b16 %v237, %v237
  %v251 = vpack.c.b16 %v238, %v238
  %v252 = vpack.c.b16 %v239, %v239
  %v253 = vpack.c.b16 %v240, %v240
  %v254 = vpack.c.b16 %v241, %v241
  %v255 = vpack.c.b16 %v242, %v242
  %v256 = vpack.c.b16 %v243, %v243
  %v257 = vpack.c.b16 %v244, %v244
  %v258 = vpack.c.b16 %v245, %v245
  %v259 = vpack.c.b16 %v246, %v246
  %v260 = vpack.c.b16 %v247, %v247
  %v261 = vpack.c.b16 %v248, %v248
  %v474 = vunpack.c.l.b16 %v28
  %v475 = vunpack.c.l.b16 %v29
  %v476 = vunpack.c.l.b16 %v30
  %v477 = vunpack.c.l.b16 %v31
  %v478 = vunpack.c.l.b16 %v32
  %v479 = vunpack.c.l.b16 %v33
  %v480 = vunpack.c.l.b16 %v34
  %v481 = vunpack.c.l.b16 %v35
  %v482 = vunpack.c.l.b16 %v36
  %v483 = vunpack.c.l.b16 %v37
  %v484 = vunpack.c.l.b16 %v38
  %v485 = vunpack.c.l.b16 %v39
  %v486 = vunpack.c.l.b16 %v40
  %v487 = vunpack.c.l.b16 %v41
  %v488 = vunpack.c.l.b16 %v42
  %v489 = vunpack.c.l.b16 %v43
  %v490 = vunpack.c.l.b16 %v44
  %v491 = vunpack.c.l.b16 %v45
  %v492 = vunpack.c.l.b16 %v46
  %v493 = vunpack.c.l.b16 %v47
  %v494 = vunpack.c.l.b16 %v48
  %v495 = vunpack.c.l.b16 %v49
  %v496 = vunpack.c.l.b16 %v50
  %v497 = vunpack.c.l.b16 %v51
  %v498 = vunpack.c.l.b16 %v52
  %v499 = vunpack.c.l.b16 %v53
  %v500 = vunpack.c.l.b16 %v54
  %v501 = vunpack.c.l.b16 %v55
  %v502 = vunpack.c.l.b16 %v56
  %v503 = vunpack.c.l.b16 %v57
  %v504 = vunpack.c.l.b16 %v58
  %v505 = vunpack.c.l.b16 %v59
  %v506 = vunpack.c.l.b16 %v60
  %v507 = vunpack.c.l.b16 %v61
  %v508 = vunpack.c.l.b16 %v62
  %v509 = vunpack.c.l.b16 %v63
  %v510 = vunpack.c.l.b16 %v64
  %v511 = vunpack.c.l.b16 %v65
  %v512 = vunpack.c.l.b16 %v66
  %v513 = vunpack.c.l.b16 %v67
  %v514 = vunpack.c.l.b16 %v68
  %v515 = vunpack.c.l.b16 %v69
  %v516 = vunpack.c.l.b16 %v70
  %v517 = vunpack.c.l.b16 %v71
  %v518 = vunpack.c.l.b16 %v72
  %v519 = vunpack.c.l.b16 %v73
  %v520 = vunpack.c.l.b16 %v74
  %v521 = vunpack.c.l.b16 %v75
  %v522 = vunpack.c.l.b16 %v76
  %v523 = vunpack.c.l.b16 %v77
  %v524 = vunpack.c.l.b16 %v78
  %v525 = vunpack.c.l.b16 %v79
  %v526 = vunpack.c.l.b16 %v80
  %v527 = vunpack.c.l.b16 %v81
  %v528 = vunpack.c.l.b16 %v82
  %v529 = vunpack.c.l.b16 %v83
  %v530 = vunpack.c.l.b16 %v84
  %v531 = vunpack.c.l.b16 %v85
  %v532 = vunpack.c.l.b16 %v86
  %v533 = vunpack.c.l.b16 %v87
  %v534 = vunpack.c.l.b16 %v88
  %v535 = vunpack.c.l.b16 %v89
  %v536 = vunpack.c.l.b16 %v90
  %v537 = vunpack.c.l.b16 %v91
  %v538 = vunpack.c.l.b16 %v92
  %v539 = vunpack.c.l.b16 %v93
  %v540 = vunpack.c.l.b16 %v94
  %v541 = vunpack.c.l.b16 %v95
  %v542 = vunpack.c.l.b16 %v96
  %v543 = vunpack.c.l.b16 %v97
  %v544 = vunpack.c.l.b16 %v98
  %v545 = vunpack.c.l.b16 %v99
  %v546 = vunpack.c.l.b16 %v100
  %v547 = vunpack.c.l.b16 %v101
  %v548 = vunpack.c.l.b16 %v102
  %v549 = vunpack.c.l.b16 %v103
  %v550 = vunpack.c.l.b16 %v104
  %v551 = vunpack.c.l.b16 %v105
  %v552 = vunpack.c.l.b16 %v106
  %v553 = vunpack.c.l.b16 %v107
  %v554 = vunpack.c.l.b16 %v108
  %v555 = vunpack.c.l.b16 %v109
  %v556 = vunpack.c.l.b16 %v110
  %v557 = vunpack.c.l.b16 %v111
  %v558 = vunpack.c.l.b16 %v112
  %v559 = vunpack.c.l.b16 %v113
  %v560 = vunpack.c.l.b16 %v114
  %v561 = vunpack.c.l.b16 %v115
  %v562 = vunpack.c.l.b16 %v116
  %v563 = vunpack.c.l.b16 %v117
  %v564 = vunpack.c.l.b16 %v118
  %v565 = vunpack.c.l.b16 %v119
  %v566 = vunpack.c.l.b16 %v120
  %v567 = vunpack.c.l.b16 %v121
  %v568 = vunpack.c.l.b16 %v122
  %v569 = vunpack.c.l.b16 %v123
  %v570 = vunpack.c.l.b16 %v124
  %v571 = vunpack.c.l.b16 %v125
  %v572 = vunpack.c.l.b16 %v126
  %v573 = vunpack.c.l.b16 %v127
  %v574 = vunpack.c.l.b16 %v128
  %v575 = vunpack.c.l.b16 %v129
  %v576 = vunpack.c.l.b16 %v130
  %v577 = vunpack.c.l.b16 %v131
  %v578 = vunpack.c.l.b16 %v132
  %v579 = vunpack.c.l.b16 %v133
  %v580 = vunpack.c.l.b16 %v134
  %v581 = vunpack.c.l.b16 %v135
  %v582 = vunpack.c.l.b16 %v136
  %v583 = vunpack.c.l.b16 %v137
  %v584 = vunpack.c.l.b16 %v138
  %v585 = vunpack.c.l.b16 %v139
  %v586 = vunpack.c.l.b16 %v140
  %v587 = vunpack.c.l.b16 %v141
  %v588 = vunpack.c.l.b16 %v142
  %v589 = vunpack.c.l.b16 %v143
  %v590 = vunpack.c.l.b16 %v144
  %v591 = vunpack.c.l.b16 %v145
  %v592 = vunpack.c.l.b16 %v146
  %v593 = vunpack.c.l.b16 %v147
  %v594 = vunpack.c.l.b16 %v148
  %v595 = vunpack.c.l.b16 %v149
  %v596 = vunpack.c.l.b16 %v150
  %v597 = vunpack.c.l.b16 %v151
  %v598 = vunpack.c.l.b16 %v152
  %v599 = vunpack.c.l.b16 %v153
  %v600 = vunpack.c.l.b16 %v154
  %v601 = vunpack.c.l.b16 %v155
  %v602 = vunpack.c.l.b16 %v156
  %v603 = vunpack.c.l.b16 %v157
  %v604 = vunpack.c.l.b16 %v158
  %v605 = vunpack.c.l.b16 %v159
  %v606 = vunpack.c.l.b16 %v160
  %v607 = vunpack.c.l.b16 %v161
  %v608 = vunpack.c.l.b16 %v162
  %v609 = vunpack.c.l.b16 %v163
  %v610 = vunpack.c.l.b16 %v164
  %v611 = vunpack.c.l.b16 %v165
  %v612 = vunpack.c.l.b16 %v166
  %v613 = vunpack.c.l.b16 %v167
  %v614 = vunpack.c.l.b16 %v168
  %v615 = vunpack.c.l.b16 %v169
  %v616 = vunpack.c.l.b16 %v170
  %v617 = vunpack.c.l.b16 %v171
  %v618 = vunpack.c.l.b16 %v172
  %v619 = vunpack.c.l.b16 %v173
  %v620 = vunpack.c.l.b16 %v174
  %v621 = vunpack.c.l.b16 %v175
  %v622 = vunpack.c.l.b16 %v176
  %v623 = vunpack.c.l.b16 %v177
  %v624 = vunpack.c.l.b16 %v178
  %v625 = vunpack.c.l.b16 %v179
  %v626 = vunpack.c.l.b16 %v180
  %v627 = vunpack.c.l.b16 %v181
  %v628 = vunpack.c.l.b16 %v182
  %v629 = vunpack.c.l.b16 %v183
  %v630 = vunpack.c.l.b16 %v184
  %v631 = vunpack.c.l.b16 %v185
  %v632 = vunpack.c.l.b16 %v186
  %v633 = vunpack.c.l.b16 %v187
  %v634 = vunpack.c.l.b16 %v188
  %v635 = vunpack.c.l.b16 %v189
  %v636 = vunpack.c.l.b16 %v190
  %v637 = vunpack.c.l.b16 %v191
  %v638 = vunpack.c.l.b16 %v192
  %v639 = vunpack.c.l.b16 %v193
  %v640 = vunpack.c.l.b16 %v194
  %v641 = vunpack.c.l.b16 %v195
  %v642 = vunpack.c.l.b16 %v196
  %v643 = vunpack.c.l.b16 %v197
  %v644 = vunpack.c.l.b16 %v198
  %v645 = vunpack.c.l.b16 %v199
  %v646 = vunpack.c.l.b16 %v200
  %v647 = vunpack.c.l.b16 %v201
  %v648 = vunpack.c.l.b16 %v202
  %v649 = vunpack.c.l.b16 %v203
  %v650 = vunpack.c.l.b16 %v204
  %v651 = vunpack.c.l.b16 %v205
  %v652 = vunpack.c.l.b16 %v206
  %v653 = vunpack.c.l.b16 %v207
  %v654 = vunpack.c.l.b16 %v208
  %v655 = vunpack.c.l.b16 %v209
  %v656 = vunpack.c.l.b16 %v210
  %v657 = vunpack.c.l.b16 %v211
  %v658 = vunpack.c.l.b16 %v212
  %v659 = vunpack.c.l.b16 %v213
  %v660 = vunpack.c.l.b16 %v214
  %v661 = vunpack.c.l.b16 %v215
  %v662 = vunpack.c.l.b16 %v216
  %v663 = vunpack.c.l.b16 %v217
  %v664 = vunpack.c.l.b16 %v218
  %v665 = vunpack.c.l.b16 %v219
  %v666 = vunpack.c.l.b16 %v220
  %v667 = vunpack.c.l.b16 %v221
  %v668 = vunpack.c.l.b16 %v222
  %v669 = vunpack.c.l.b16 %v223
  %v670 = vunpack.c.l.b16 %v224
  %v671 = vunpack.c.l.b16 %v225
  %v672 = vunpack.c.l.b16 %v226
  %v673 = vunpack.c.l.b16 %v227
  %v674 = vpack.c.b16 %v475, %v474
  %v675 = vpack.c.b16 %v477, %v476
  %v676 = vpack.c.b16 %v479, %v478
  %v677 = vpack.c.b16 %v481, %v480
  %v678 = vpack.c.b16 %v483, %v482
  %v679 = vpack.c.b16 %v485, %v484
  %v680 = vpack.c.b16 %v487, %v486
  %v681 = vpack.c.b16 %v489, %v488
  %v682 = vpack.c.b16 %v491, %v490
  %v683 = vpack.c.b16 %v493, %v492
  %v684 = vpack.c.b16 %v495, %v494
  %v685 = vpack.c.b16 %v497, %v496
  %v686 = vpack.c.b16 %v499, %v498
  %v687 = vpack.c.b16 %v501, %v500
  %v688 = vpack.c.b16 %v503, %v502
  %v689 = vpack.c.b16 %v505, %v504
  %v690 = vpack.c.b16 %v507, %v506
  %v691 = vpack.c.b16 %v509, %v508
  %v692 = vpack.c.b16 %v511, %v510
  %v693 = vpack.c.b16 %v513, %v512
  %v694 = vpack.c.b16 %v515, %v514
  %v695 = vpack.c.b16 %v517, %v516
  %v696 = vpack.c.b16 %v519, %v518
  %v697 = vpack.c.b16 %v521, %v520
  %v698 = vpack.c.b16 %v523, %v522
  %v699 = vpack.c.b16 %v525, %v524
  %v700 = vpack.c.b16 %v527, %v526
  %v701 = vpack.c.b16 %v529, %v528
  %v702 = vpack.c.b16 %v531, %v530
  %v703 = vpack.c.b16 %v533, %v532
  %v704 = vpack.c.b16 %v535, %v534
  %v705 = vpack.c.b16 %v537, %v536
  %v706 = vpack.c.b16 %v539, %v538
  %v707 = vpack.c.b16 %v541, %v540
  %v708 = vpack.c.b16 %v543, %v542
  %v709 = vpack.c.b16 %v545, %v544
  %v710 = vpack.c.b16 %v547, %v546
  %v711 = vpack.c.b16 %v549, %v548
  %v712 = vpack.c.b16 %v551, %v550
  %v713 = vpack.c.b16 %v553, %v552
  %v714 = vpack.c.b16 %v555, %v554
  %v715 = vpack.c.b16 %v557, %v556
  %v716 = vpack.c.b16 %v559, %v558
  %v717 = vpack.c.b16 %v561, %v560
  %v718 = vpack.c.b16 %v563, %v562
  %v719 = vpack.c.b16 %v565, %v564
  %v720 = vpack.c.b16 %v567, %v566
  %v721 = vpack.c.b16 %v569, %v568
  %v722 = vpack.c.b16 %v571, %v570
  %v723 = vpack.c.b16 %v573, %v572
  %v724 = vpack.c.b16 %v575, %v574
  %v725 = vpack.c.b16 %v577, %v576
  %v726 = vpack.c.b16 %v579, %v578
  %v727 = vpack.c.b16 %v581, %v580
  %v728 = vpack.c.b16 %v583, %v582
  %v729 = vpack.c.b16 %v585, %v584
  %v730 = vpack.c.b16 %v587, %v586
  %v731 = vpack.c.b16 %v589, %v588
  %v732 = vpack.c.b16 %v591, %v590
  %v733 = vpack.c.b16 %v593, %v592
  %v734 = vpack.c.b16 %v595, %v594
  %v735 = vpack.c.b16 %v597, %v596
  %v736 = vpack.c.b16 %v599, %v598
  %v737 = vpack.c.b16 %v601, %v600
  %v738 = vpack.c.b16 %v603, %v602
  %v739 = vpack.c.b16 %v605, %v604
  %v740 = vpack.c.b16 %v607, %v606
  %v741 = vpack.c.b16 %v609, %v608
  %v742 = vpack.c.b16 %v611, %v610
  %v743 = vpack.c.b16 %v613, %v612
  %v744 = vpack.c.b16 %v615, %v614
  %v745 = vpack.c.b16 %v617, %v616
  %v746 = vpack.c.b16 %v619, %v618
  %v747 = vpack.c.b16 %v621, %v620
  %v748 = vpack.c.b16 %v623, %v622
  %v749 = vpack.c.b16 %v625, %v624
  %v750 = vpack.c.b16 %v627, %v626
  %v751 = vpack.c.b16 %v629, %v628
  %v752 = vpack.c.b16 %v631, %v630
  %v753 = vpack.c.b16 %v633, %v632
  %v754 = vpack.c.b16 %v635, %v634
  %v755 = vpack.c.b16 %v637, %v636
  %v756 = vpack.c.b16 %v639, %v638
  %v757 = vpack.c.b16 %v641, %v640
  %v758 = vpack.c.b16 %v643, %v642
  %v759 = vpack.c.b16 %v645, %v644
  %v760 = vpack.c.b16 %v647, %v646
  %v761 = vpack.c.b16 %v649, %v648
  %v762 = vpack.c.b16 %v651, %v650
  %v763 = vpack.c.b16 %v653, %v652
  %v764 = vpack.c.b16 %v655, %v654
  %v765 = vpack.c.b16 %v657, %v656
  %v766 = vpack.c.b16 %v659, %v658
  %v767 = vpack.c.b16 %v661, %v660
  %v768 = vpack.c.b16 %v663, %v662
  %v769 = vpack.c.b16 %v665, %v664
  %v770 = vpack.c.b16 %v667, %v666
  %v771 = vpack.c.b16 %v669, %v668
  %v772 = vpack.c.b16 %v671, %v670
  %v773 = vpack.c.b16 %v673, %v672
  %vm874 = vcmask 523264
  %v876 = vsel %vm874, %v261, 0
  %878 = vmatprep.subr.bf16.mxu0 0
  %879 = vmatpush1.bf16.msra.mxu0 %v674
  %880 = vmatprep.subr.bf16.mxu0 0
  %881 = vmatpush1.bf16.msra.mxu0 %v675
  %882 = vmatprep.subr.bf16.mxu0 0
  %883 = vmatpush1.bf16.msra.mxu0 %v676
  %884 = vmatprep.subr.bf16.mxu0 0
  %885 = vmatpush1.bf16.msra.mxu0 %v677
  %886 = vmatprep.subr.bf16.mxu0 0
  %887 = vmatpush1.bf16.msra.mxu0 %v678
  %888 = vmatprep.subr.bf16.mxu0 0
  %889 = vmatpush1.bf16.msra.mxu0 %v679
  %890 = vmatprep.subr.bf16.mxu0 0
  %891 = vmatpush1.bf16.msra.mxu0 %v680
  %892 = vmatprep.subr.bf16.mxu0 0
  %893 = vmatpush1.bf16.msra.mxu0 %v681
  %894 = vmatprep.subr.bf16.mxu0 0
  %895 = vmatpush1.bf16.msra.mxu0 %v682
  %896 = vmatprep.subr.bf16.mxu0 0
  %897 = vmatpush1.bf16.msra.mxu0 %v683
  %898 = vmatprep.subr.bf16.mxu0 0
  %899 = vmatpush1.bf16.msra.mxu0 %v684
  %900 = vmatprep.subr.bf16.mxu0 0
  %901 = vmatpush1.bf16.msra.mxu0 %v685
  %902 = vmatprep.subr.bf16.mxu0 0
  %903 = vmatpush1.bf16.msra.mxu0 %v686
  %904 = vmatprep.subr.bf16.mxu0 0
  %905 = vmatpush1.bf16.msra.mxu0 %v687
  %906 = vmatprep.subr.bf16.mxu0 0
  %907 = vmatpush1.bf16.msra.mxu0 %v688
  %908 = vmatprep.subr.bf16.mxu0 0
  %909 = vmatpush1.bf16.msra.mxu0 %v689
  %910 = vmatprep.mubr.bf16.mxu0 %v250
  %911 = vmatmul.mubr.bf16.gmra.mrb[0].mxu0 %v249
  %v912 = vpop.f32.mrb[0].mxu0
  %v913 = vadd.f32 %v228, %v912
  %v914 = vpop.f32.mrb[0].mxu0
  %v915 = vpop.f32.mrb[0].mxu0
  %v916 = vpop.f32.mrb[0].mxu0
  %917 = vdwg.mxu0
  %918 = vmatprep.subr.bf16.mxu0 0
  %919 = vmatpush1.bf16.msra.mxu0 %v690
  %920 = vmatprep.subr.bf16.mxu0 0
  %921 = vmatpush1.bf16.msra.mxu0 %v691
  %922 = vmatprep.subr.bf16.mxu0 0
  %923 = vmatpush1.bf16.msra.mxu0 %v692
  %924 = vmatprep.subr.bf16.mxu0 0
  %925 = vmatpush1.bf16.msra.mxu0 %v693
  %926 = vmatprep.subr.bf16.mxu0 0
  %927 = vmatpush1.bf16.msra.mxu0 %v694
  %928 = vmatprep.subr.bf16.mxu0 0
  %929 = vmatpush1.bf16.msra.mxu0 %v695
  %930 = vmatprep.subr.bf16.mxu0 0
  %931 = vmatpush1.bf16.msra.mxu0 %v696
  %932 = vmatprep.subr.bf16.mxu0 0
  %933 = vmatpush1.bf16.msra.mxu0 %v697
  %934 = vmatprep.subr.bf16.mxu0 0
  %935 = vmatpush1.bf16.msra.mxu0 %v698
  %936 = vmatprep.subr.bf16.mxu0 0
  %937 = vmatpush1.bf16.msra.mxu0 %v699
  %938 = vmatprep.subr.bf16.mxu0 0
  %939 = vmatpush1.bf16.msra.mxu0 %v700
  %940 = vmatprep.subr.bf16.mxu0 0
  %941 = vmatpush1.bf16.msra.mxu0 %v701
  %942 = vmatprep.subr.bf16.mxu0 0
  %943 = vmatpush1.bf16.msra.mxu0 %v702
  %944 = vmatprep.subr.bf16.mxu0 0
  %945 = vmatpush1.bf16.msra.mxu0 %v703
  %946 = vmatprep.subr.bf16.mxu0 0
  %947 = vmatpush1.bf16.msra.mxu0 %v704
  %948 = vmatprep.subr.bf16.mxu0 0
  %949 = vmatpush1.bf16.msra.mxu0 %v705
  %950 = vmatprep.mubr.bf16.mxu0 %v252
  %951 = vmatmul.mubr.bf16.gmra.mrb[0].mxu0 %v251
  %v952 = vpop.f32.mrb[0].mxu0
  %v953 = vadd.f32 %v913, %v952
  %v954 = vpop.f32.mrb[0].mxu0
  %v955 = vpop.f32.mrb[0].mxu0
  %v956 = vpop.f32.mrb[0].mxu0
  %957 = vdwg.mxu0
  %958 = vmatprep.subr.bf16.mxu0 0
  %959 = vmatpush1.bf16.msra.mxu0 %v706
  %960 = vmatprep.subr.bf16.mxu0 0
  %961 = vmatpush1.bf16.msra.mxu0 %v707
  %962 = vmatprep.subr.bf16.mxu0 0
  %963 = vmatpush1.bf16.msra.mxu0 %v708
  %964 = vmatprep.subr.bf16.mxu0 0
  %965 = vmatpush1.bf16.msra.mxu0 %v709
  %966 = vmatprep.subr.bf16.mxu0 0
  %967 = vmatpush1.bf16.msra.mxu0 %v710
  %968 = vmatprep.subr.bf16.mxu0 0
  %969 = vmatpush1.bf16.msra.mxu0 %v711
  %970 = vmatprep.subr.bf16.mxu0 0
  %971 = vmatpush1.bf16.msra.mxu0 %v712
  %972 = vmatprep.subr.bf16.mxu0 0
  %973 = vmatpush1.bf16.msra.mxu0 %v713
  %974 = vmatprep.subr.bf16.mxu0 0
  %975 = vmatpush1.bf16.msra.mxu0 %v714
  %976 = vmatprep.subr.bf16.mxu0 0
  %977 = vmatpush1.bf16.msra.mxu0 %v715
  %978 = vmatprep.subr.bf16.mxu0 0
  %979 = vmatpush1.bf16.msra.mxu0 %v716
  %980 = vmatprep.subr.bf16.mxu0 0
  %981 = vmatpush1.bf16.msra.mxu0 %v717
  %982 = vmatprep.subr.bf16.mxu0 0
  %983 = vmatpush1.bf16.msra.mxu0 %v718
  %984 = vmatprep.subr.bf16.mxu0 0
  %985 = vmatpush1.bf16.msra.mxu0 %v719
  %986 = vmatprep.subr.bf16.mxu0 0
  %987 = vmatpush1.bf16.msra.mxu0 %v720
  %988 = vmatprep.subr.bf16.mxu0 0
  %989 = vmatpush1.bf16.msra.mxu0 %v721
  %990 = vmatprep.mubr.bf16.mxu0 %v254
  %991 = vmatmul.mubr.bf16.gmra.mrb[0].mxu0 %v253
  %v992 = vpop.f32.mrb[0].mxu0
  %v993 = vadd.f32 %v953, %v992
  %v994 = vpop.f32.mrb[0].mxu0
  %v995 = vpop.f32.mrb[0].mxu0
  %v996 = vpop.f32.mrb[0].mxu0
  %997 = vdwg.mxu0
  %998 = vmatprep.subr.bf16.mxu0 0
  %999 = vmatpush1.bf16.msra.mxu0 %v722
  %1000 = vmatprep.subr.bf16.mxu0 0
  %1001 = vmatpush1.bf16.msra.mxu0 %v723
  %1002 = vmatprep.subr.bf16.mxu0 0
  %1003 = vmatpush1.bf16.msra.mxu0 %v724
  %1004 = vmatprep.subr.bf16.mxu0 0
  %1005 = vmatpush1.bf16.msra.mxu0 %v725
  %1006 = vmatprep.subr.bf16.mxu0 0
  %1007 = vmatpush1.bf16.msra.mxu0 %v726
  %1008 = vmatprep.subr.bf16.mxu0 0
  %1009 = vmatpush1.bf16.msra.mxu0 %v727
  %1010 = vmatprep.subr.bf16.mxu0 0
  %1011 = vmatpush1.bf16.msra.mxu0 %v728
  %1012 = vmatprep.subr.bf16.mxu0 0
  %1013 = vmatpush1.bf16.msra.mxu0 %v729
  %1014 = vmatprep.subr.bf16.mxu0 0
  %1015 = vmatpush1.bf16.msra.mxu0 %v730
  %1016 = vmatprep.subr.bf16.mxu0 0
  %1017 = vmatpush1.bf16.msra.mxu0 %v731
  %1018 = vmatprep.subr.bf16.mxu0 0
  %1019 = vmatpush1.bf16.msra.mxu0 %v732
  %1020 = vmatprep.subr.bf16.mxu0 0
  %1021 = vmatpush1.bf16.msra.mxu0 %v733
  %1022 = vmatprep.subr.bf16.mxu0 0
  %1023 = vmatpush1.bf16.msra.mxu0 %v734
  %1024 = vmatprep.subr.bf16.mxu0 0
  %1025 = vmatpush1.bf16.msra.mxu0 %v735
  %1026 = vmatprep.subr.bf16.mxu0 0
  %1027 = vmatpush1.bf16.msra.mxu0 %v736
  %1028 = vmatprep.subr.bf16.mxu0 0
  %1029 = vmatpush1.bf16.msra.mxu0 %v737
  %1030 = vmatprep.mubr.bf16.mxu0 %v256
  %1031 = vmatmul.mubr.bf16.gmra.mrb[0].mxu0 %v255
  %v1032 = vpop.f32.mrb[0].mxu0
  %v1033 = vadd.f32 %v993, %v1032
  %v1034 = vpop.f32.mrb[0].mxu0
  %v1035 = vpop.f32.mrb[0].mxu0
  %v1036 = vpop.f32.mrb[0].mxu0
  %1037 = vdwg.mxu0
  %1038 = vmatprep.subr.bf16.mxu0 0
  %1039 = vmatpush1.bf16.msra.mxu0 %v738
  %1040 = vmatprep.subr.bf16.mxu0 0
  %1041 = vmatpush1.bf16.msra.mxu0 %v739
  %1042 = vmatprep.subr.bf16.mxu0 0
  %1043 = vmatpush1.bf16.msra.mxu0 %v740
  %1044 = vmatprep.subr.bf16.mxu0 0
  %1045 = vmatpush1.bf16.msra.mxu0 %v741
  %1046 = vmatprep.subr.bf16.mxu0 0
  %1047 = vmatpush1.bf16.msra.mxu0 %v742
  %1048 = vmatprep.subr.bf16.mxu0 0
  %1049 = vmatpush1.bf16.msra.mxu0 %v743
  %1050 = vmatprep.subr.bf16.mxu0 0
  %1051 = vmatpush1.bf16.msra.mxu0 %v744
  %1052 = vmatprep.subr.bf16.mxu0 0
  %1053 = vmatpush1.bf16.msra.mxu0 %v745
  %1054 = vmatprep.subr.bf16.mxu0 0
  %1055 = vmatpush1.bf16.msra.mxu0 %v746
  %1056 = vmatprep.subr.bf16.mxu0 0
  %1057 = vmatpush1.bf16.msra.mxu0 %v747
  %1058 = vmatprep.subr.bf16.mxu0 0
  %1059 = vmatpush1.bf16.msra.mxu0 %v748
  %1060 = vmatprep.subr.bf16.mxu0 0
  %1061 = vmatpush1.bf16.msra.mxu0 %v749
  %1062 = vmatprep.subr.bf16.mxu0 0
  %1063 = vmatpush1.bf16.msra.mxu0 %v750
  %1064 = vmatprep.subr.bf16.mxu0 0
  %1065 = vmatpush1.bf16.msra.mxu0 %v751
  %1066 = vmatprep.subr.bf16.mxu0 0
  %1067 = vmatpush1.bf16.msra.mxu0 %v752
  %1068 = vmatprep.subr.bf16.mxu0 0
  %1069 = vmatpush1.bf16.msra.mxu0 %v753
  %1070 = vmatprep.mubr.bf16.mxu0 %v258
  %1071 = vmatmul.mubr.bf16.gmra.mrb[0].mxu0 %v257
  %v1072 = vpop.f32.mrb[0].mxu0
  %v1073 = vadd.f32 %v1033, %v1072
  %v1074 = vpop.f32.mrb[0].mxu0
  %v1075 = vpop.f32.mrb[0].mxu0
  %v1076 = vpop.f32.mrb[0].mxu0
  %1077 = vdwg.mxu0
  %1078 = vmatprep.subr.bf16.mxu0 0
  %1079 = vmatpush1.bf16.msra.mxu0 %v754
  %1080 = vmatprep.subr.bf16.mxu0 0
  %1081 = vmatpush1.bf16.msra.mxu0 %v755
  %1082 = vmatprep.subr.bf16.mxu0 0
  %1083 = vmatpush1.bf16.msra.mxu0 %v756
  %1084 = vmatprep.subr.bf16.mxu0 0
  %1085 = vmatpush1.bf16.msra.mxu0 %v757
  %1086 = vmatprep.subr.bf16.mxu0 0
  %1087 = vmatpush1.bf16.msra.mxu0 %v758
  %1088 = vmatprep.subr.bf16.mxu0 0
  %1089 = vmatpush1.bf16.msra.mxu0 %v759
  %1090 = vmatprep.subr.bf16.mxu0 0
  %1091 = vmatpush1.bf16.msra.mxu0 %v760
  %1092 = vmatprep.subr.bf16.mxu0 0
  %1093 = vmatpush1.bf16.msra.mxu0 %v761
  %1094 = vmatprep.subr.bf16.mxu0 0
  %1095 = vmatpush1.bf16.msra.mxu0 %v762
  %1096 = vmatprep.subr.bf16.mxu0 0
  %1097 = vmatpush1.bf16.msra.mxu0 %v763
  %1098 = vmatprep.subr.bf16.mxu0 0
  %1099 = vmatpush1.bf16.msra.mxu0 %v764
  %1100 = vmatprep.subr.bf16.mxu0 0
  %1101 = vmatpush1.bf16.msra.mxu0 %v765
  %1102 = vmatprep.subr.bf16.mxu0 0
  %1103 = vmatpush1.bf16.msra.mxu0 %v766
  %1104 = vmatprep.subr.bf16.mxu0 0
  %1105 = vmatpush1.bf16.msra.mxu0 %v767
  %1106 = vmatprep.subr.bf16.mxu0 0
  %1107 = vmatpush1.bf16.msra.mxu0 %v768
  %1108 = vmatprep.subr.bf16.mxu0 0
  %1109 = vmatpush1.bf16.msra.mxu0 %v769
  %1110 = vmatprep.mubr.bf16.mxu0 %v260
  %1111 = vmatmul.mubr.bf16.gmra.mrb[0].mxu0 %v259
  %v1112 = vpop.f32.mrb[0].mxu0
  %v1113 = vadd.f32 %v1073, %v1112
  %v1114 = vpop.f32.mrb[0].mxu0
  %v1115 = vpop.f32.mrb[0].mxu0
  %v1116 = vpop.f32.mrb[0].mxu0
  %1117 = vdwg.mxu0
  %1118 = vmatprep.subr.bf16.mxu0 0
  %1119 = vmatpush1.bf16.msra.mxu0 %v770
  %1120 = vmatprep.subr.bf16.mxu0 0
  %1121 = vmatpush1.bf16.msra.mxu0 %v771
  %1122 = vmatprep.subr.bf16.mxu0 0
  %1123 = vmatpush1.bf16.msra.mxu0 %v772
  %1124 = vmatprep.subr.bf16.mxu0 0
  %1125 = vmatpush1.bf16.msra.mxu0 %v773
  %1126 = vmatprep.subr.bf16.mxu0 0
  %1127 = vmatpush1.bf16.msra.mxu0 0
  %1128 = vmatprep.subr.bf16.mxu0 0
  %1129 = vmatpush1.bf16.msra.mxu0 0
  %1130 = vmatprep.subr.bf16.mxu0 0
  %1131 = vmatpush1.bf16.msra.mxu0 0
  %1132 = vmatprep.subr.bf16.mxu0 0
  %1133 = vmatpush1.bf16.msra.mxu0 0
  %1134 = vmatprep.subr.bf16.mxu0 0
  %1135 = vmatpush1.bf16.msra.mxu0 0
  %1136 = vmatprep.subr.bf16.mxu0 0
  %1137 = vmatpush1.bf16.msra.mxu0 0
  %1138 = vmatprep.subr.bf16.mxu0 0
  %1139 = vmatpush1.bf16.msra.mxu0 0
  %1140 = vmatprep.subr.bf16.mxu0 0
  %1141 = vmatpush1.bf16.msra.mxu0 0
  %1142 = vmatprep.subr.bf16.mxu0 0
  %1143 = vmatpush1.bf16.msra.mxu0 0
  %1144 = vmatprep.subr.bf16.mxu0 0
  %1145 = vmatpush1.bf16.msra.mxu0 0
  %1146 = vmatprep.subr.bf16.mxu0 0
  %1147 = vmatpush1.bf16.msra.mxu0 0
  %1148 = vmatprep.subr.bf16.mxu0 0
  %1149 = vmatpush1.bf16.msra.mxu0 0
  %1150 = vmatprep.mubr.bf16.mxu0 0
  %1151 = vmatmul.mubr.bf16.gmra.mrb[0].mxu0 %v876
  %v1152 = vpop.f32.mrb[0].mxu0
  %v1153 = vadd.f32 %v1113, %v1152
  %v1154 = vpop.f32.mrb[0].mxu0
  %v1155 = vpop.f32.mrb[0].mxu0
  %v1156 = vpop.f32.mrb[0].mxu0
  %1157 = vdwg.mxu0
  %v1158 = vpack.c.bf16 %v1153, %v1153
  %v1159 = vld [vmem:[%s3] sm:$0xf]
  %v1160 = vld [vmem:[%s3 + $0x4] sm:$0xf]
  %v1161 = vld [vmem:[%s3 + $0x8] sm:$0xf]
  %v1162 = vld [vmem:[%s3 + $0xc] sm:$0xf]
  %v1163 = vld [vmem:[%s4] sm:$0x1]
  %v1165 = vlaneseq
  %v1166 = vshrl.u32 %v1165, 7
  %v1167 = vsub.s32 0, %v1166
  %v1168 = vrot.slane %v1163, %v1167
  %v1174 = vunpack.c.l.b16 %v1159
  %v1175 = vunpack.c.l.b16 %v1160
  %v1176 = vunpack.c.l.b16 %v1161
  %v1177 = vunpack.c.l.b16 %v1162
  %v1178 = vpack.c.b16 %v1175, %v1174
  %v1179 = vpack.c.b16 %v1177, %v1176
  %vm1182 = vcmask 261120
  %v1184 = vsel %vm1182, %v1158, 0
  %1186 = vmatprep.subr.bf16.mxu0 0
  %1187 = vmatpush1.bf16.msra.mxu0 %v1178
  %1188 = vmatprep.subr.bf16.mxu0 0
  %1189 = vmatpush1.bf16.msra.mxu0 %v1179
  %1190 = vmatprep.subr.bf16.mxu0 0
  %1191 = vmatpush1.bf16.msra.mxu0 0
  %1192 = vmatprep.subr.bf16.mxu0 0
  %1193 = vmatpush1.bf16.msra.mxu0 0
  %1194 = vmatprep.subr.bf16.mxu0 0
  %1195 = vmatpush1.bf16.msra.mxu0 0
  %1196 = vmatprep.subr.bf16.mxu0 0
  %1197 = vmatpush1.bf16.msra.mxu0 0
  %1198 = vmatprep.subr.bf16.mxu0 0
  %1199 = vmatpush1.bf16.msra.mxu0 0
  %1200 = vmatprep.subr.bf16.mxu0 0
  %1201 = vmatpush1.bf16.msra.mxu0 0
  %1202 = vmatprep.subr.bf16.mxu0 0
  %1203 = vmatpush1.bf16.msra.mxu0 0
  %1204 = vmatprep.subr.bf16.mxu0 0
  %1205 = vmatpush1.bf16.msra.mxu0 0
  %1206 = vmatprep.subr.bf16.mxu0 0
  %1207 = vmatpush1.bf16.msra.mxu0 0
  %1208 = vmatprep.subr.bf16.mxu0 0
  %1209 = vmatpush1.bf16.msra.mxu0 0
  %1210 = vmatprep.subr.bf16.mxu0 0
  %1211 = vmatpush1.bf16.msra.mxu0 0
  %1212 = vmatprep.subr.bf16.mxu0 0
  %1213 = vmatpush1.bf16.msra.mxu0 0
  %1214 = vmatprep.subr.bf16.mxu0 0
  %1215 = vmatpush1.bf16.msra.mxu0 0
  %1216 = vmatprep.subr.bf16.mxu0 0
  %1217 = vmatpush1.bf16.msra.mxu0 0
  %1218 = vmatprep.mubr.bf16.mxu0 0
  %1219 = vmatmul.mubr.bf16.gmra.mrb[0].mxu0 %v1184
  %v1220 = vpop.f32.mrb[0].mxu0
  %v1221 = vadd.f32 %v1168, %v1220
  %v1222 = vpop.f32.mrb[0].mxu0
  %v1223 = vpop.f32.mrb[0].mxu0
  %v1224 = vpop.f32.mrb[0].mxu0
  %1225 = vdwg.mxu0
  %vm1226 = vcmp.ge.f32.partialorder %v1221, 0.0
  %v1227 = vmul.f32 %v1221, 0.1
  %v1228 = vsel %vm1226, %v1221, %v1227
  %1229 = vst [vmem:[%s5] sm:$0xff] %v1228
  // Predicated region
  $region22: #{unet_decoder.17} parent=0 // pred_check
    _
  $region23: #{unet_decoder.17} parent=0 // pred_check_branch
    %1231 = sbr.rel (0) target = $region25
  $region24: #{unet_decoder.17} parent=0 // pred_region
    _
  $region25: #{unet_decoder.17} parent=0 // pred_fallthru
    _
  // Predicated region
  $region26: #{unet_decoder.17} parent=0 // pred_check
    _
  $region27: #{unet_decoder.17} parent=0 // pred_check_branch
    %1233 = sbr.rel (0) target = $region29
  $region28: #{unet_decoder.17} parent=0 // pred_region
    _
  $region29: #{unet_decoder.17} parent=0 // pred_fallthru
    _

// kernel: unet_decoder.18
$region0: #{unet_decoder.18}
  #allocation0 [shape = 'u32[]', space=smem, size = 0x4, offset = 0x4, fixed_abs, tag = 'smem constant byte address 0x4 - core index']
  #allocation1 [shape = 'u32[144,128]{1,0:T(1,128)}', space=vmem, size = 0x12000, scoped, tag = 'internal scratch']
  %s0 = inlined_call_operand.vmem [shape: bf16[32,1600], index: 0, kind: input, shape index: {}]
  %s1 = inlined_call_operand.vmem [shape: bf16[1600,32], index: 1, kind: input, shape index: {}]
  %s2 = inlined_call_operand.vmem [shape: f32[32,32], index: 2, kind: input, shape index: {}]
  %s3 = inlined_call_operand.vmem [shape: bf16[32,128], index: 3, kind: input, shape index: {}]
  %s4 = inlined_call_operand.vmem [shape: f32[1,128], index: 4, kind: input, shape index: {}]
  %s5 = inlined_call_operand.vmem [shape: f32[32,128], index: 5, kind: output, shape index: {}]
  %s6 = sld [smem:[#allocation0]]
  $region30: #{unet_decoder.18} parent=0
    _
  %s8 = ssub.s32 1, %s6
  %s9 = scalar_select 0, %s8, %s6
  // Predicated region
  $region2: #{unet_decoder.18} parent=0 // pred_check
    _
  $region3: #{unet_decoder.18} parent=0 // pred_check_branch
    %11 = sbr.rel (0) target = $region5
  $region4: #{unet_decoder.18} parent=0 // pred_region
    _
  $region5: #{unet_decoder.18} parent=0 // pred_fallthru
    _
  // Predicated region
  $region6: #{unet_decoder.18} parent=0 // pred_check
    _
  $region7: #{unet_decoder.18} parent=0 // pred_check_branch
    %13 = sbr.rel (0) target = $region9
  $region8: #{unet_decoder.18} parent=0 // pred_region
    _
  $region9: #{unet_decoder.18} parent=0 // pred_fallthru
    _
  // Predicated region
  $region10: #{unet_decoder.18} parent=0 // pred_check
    _
  $region11: #{unet_decoder.18} parent=0 // pred_check_branch
    %15 = sbr.rel (0) target = $region13
  $region12: #{unet_decoder.18} parent=0 // pred_region
    _
  $region13: #{unet_decoder.18} parent=0 // pred_fallthru
    _
  // Predicated region
  $region14: #{unet_decoder.18} parent=0 // pred_check
    _
  $region15: #{unet_decoder.18} parent=0 // pred_check_branch
    %17 = sbr.rel (0) target = $region17
  $region16: #{unet_decoder.18} parent=0 // pred_region
    _
  $region17: #{unet_decoder.18} parent=0 // pred_fallthru
    _
  // Predicated region
  $region18: #{unet_decoder.18} parent=0 // pred_check
    _
  $region19: #{unet_decoder.18} parent=0 // pred_check_branch
    %19 = sbr.rel (0) target = $region21
  $region20: #{unet_decoder.18} parent=0 // pred_region
    _
  $region21: #{unet_decoder.18} parent=0 // pred_fallthru
    _
  %v21 = vld [vmem:[%s0] sm:$0xff]
  %v22 = vld [vmem:[%s0 + $0x8] sm:$0xff]
  %v23 = vld [vmem:[%s0 + $0x10] sm:$0xff]
  %v24 = vld [vmem:[%s0 + $0x18] sm:$0xff]
  %v25 = vld [vmem:[%s0 + $0x20] sm:$0xff]
  %v26 = vld [vmem:[%s0 + $0x28] sm:$0xff]
  %v27 = vld [vmem:[%s0 + $0x30] sm:$0xf]
  %v28 = vld [vmem:[%s0 + $0x34] sm:$0xff]
  %v29 = vld [vmem:[%s0 + $0x3c] sm:$0xff]
  %v30 = vld [vmem:[%s0 + $0x44] sm:$0xff]
  %v31 = vld [vmem:[%s0 + $0x4c] sm:$0xff]
  %v32 = vld [vmem:[%s0 + $0x54] sm:$0xff]
  %v33 = vld [vmem:[%s0 + $0x5c] sm:$0xff]
  %v34 = vld [vmem:[%s0 + $0x64] sm:$0xf]
  %v35 = vld [vmem:[%s0 + $0x68] sm:$0xff]
  %v36 = vld [vmem:[%s0 + $0x70] sm:$0xff]
  %v37 = vld [vmem:[%s0 + $0x78] sm:$0xff]
  %v38 = vld [vmem:[%s0 + $0x80] sm:$0xff]
  %v39 = vld [vmem:[%s0 + $0x88] sm:$0xff]
  %v40 = vld [vmem:[%s0 + $0x90] sm:$0xff]
  %v41 = vld [vmem:[%s0 + $0x98] sm:$0xf]
  %v42 = vld [vmem:[%s0 + $0x9c] sm:$0xff]
  %v43 = vld [vmem:[%s0 + $0xa4] sm:$0xff]
  %v44 = vld [vmem:[%s0 + $0xac] sm:$0xff]
  %v45 = vld [vmem:[%s0 + $0xb4] sm:$0xff]
  %v46 = vld [vmem:[%s0 + $0xbc] sm:$0xff]
  %v47 = vld [vmem:[%s0 + $0xc4] sm:$0xff]
  %v48 = vld [vmem:[%s0 + $0xcc] sm:$0xf]
  %v49 = vld [vmem:[%s1] sm:$0xf]
  %v50 = vld [vmem:[%s1 + $0x4] sm:$0xf]
  %v51 = vld [vmem:[%s1 + $0x8] sm:$0xf]
  %v52 = vld [vmem:[%s1 + $0xc] sm:$0xf]
  %v53 = vld [vmem:[%s1 + $0x10] sm:$0xf]
  %v54 = vld [vmem:[%s1 + $0x14] sm:$0xf]
  %v55 = vld [vmem:[%s1 + $0x18] sm:$0xf]
  %v56 = vld [vmem:[%s1 + $0x1c] sm:$0xf]
  %v57 = vld [vmem:[%s1 + $0x20] sm:$0xf]
  %v58 = vld [vmem:[%s1 + $0x24] sm:$0xf]
  %v59 = vld [vmem:[%s1 + $0x28] sm:$0xf]
  %v60 = vld [vmem:[%s1 + $0x2c] sm:$0xf]
  %v61 = vld [vmem:[%s1 + $0x30] sm:$0xf]
  %v62 = vld [vmem:[%s1 + $0x34] sm:$0xf]
  %v63 = vld [vmem:[%s1 + $0x38] sm:$0xf]
  %v64 = vld [vmem:[%s1 + $0x3c] sm:$0xf]
  %v65 = vld [vmem:[%s1 + $0x40] sm:$0xf]
  %v66 = vld [vmem:[%s1 + $0x44] sm:$0xf]
  %v67 = vld [vmem:[%s1 + $0x48] sm:$0xf]
  %v68 = vld [vmem:[%s1 + $0x4c] sm:$0xf]
  %v69 = vld [vmem:[%s1 + $0x50] sm:$0xf]
  %v70 = vld [vmem:[%s1 + $0x54] sm:$0xf]
  %v71 = vld [vmem:[%s1 + $0x58] sm:$0xf]
  %v72 = vld [vmem:[%s1 + $0x5c] sm:$0xf]
  %v73 = vld [vmem:[%s1 + $0x60] sm:$0xf]
  %v74 = vld [vmem:[%s1 + $0x64] sm:$0xf]
  %v75 = vld [vmem:[%s1 + $0x68] sm:$0xf]
  %v76 = vld [vmem:[%s1 + $0x6c] sm:$0xf]
  %v77 = vld [vmem:[%s1 + $0x70] sm:$0xf]
  %v78 = vld [vmem:[%s1 + $0x74] sm:$0xf]
  %v79 = vld [vmem:[%s1 + $0x78] sm:$0xf]
  %v80 = vld [vmem:[%s1 + $0x7c] sm:$0xf]
  %v81 = vld [vmem:[%s1 + $0x80] sm:$0xf]
  %v82 = vld [vmem:[%s1 + $0x84] sm:$0xf]
  %v83 = vld [vmem:[%s1 + $0x88] sm:$0xf]
  %v84 = vld [vmem:[%s1 + $0x8c] sm:$0xf]
  %v85 = vld [vmem:[%s1 + $0x90] sm:$0xf]
  %v86 = vld [vmem:[%s1 + $0x94] sm:$0xf]
  %v87 = vld [vmem:[%s1 + $0x98] sm:$0xf]
  %v88 = vld [vmem:[%s1 + $0x9c] sm:$0xf]
  %v89 = vld [vmem:[%s1 + $0xa0] sm:$0xf]
  %v90 = vld [vmem:[%s1 + $0xa4] sm:$0xf]
  %v91 = vld [vmem:[%s1 + $0xa8] sm:$0xf]
  %v92 = vld [vmem:[%s1 + $0xac] sm:$0xf]
  %v93 = vld [vmem:[%s1 + $0xb0] sm:$0xf]
  %v94 = vld [vmem:[%s1 + $0xb4] sm:$0xf]
  %v95 = vld [vmem:[%s1 + $0xb8] sm:$0xf]
  %v96 = vld [vmem:[%s1 + $0xbc] sm:$0xf]
  %v97 = vld [vmem:[%s1 + $0xc0] sm:$0xf]
  %v98 = vld [vmem:[%s1 + $0xc4] sm:$0xf]
  %v99 = vld [vmem:[%s1 + $0xc8] sm:$0xf]
  %v100 = vld [vmem:[%s1 + $0xcc] sm:$0xf]
  %v101 = vld [vmem:[%s1 + $0xd0] sm:$0xf]
  %v102 = vld [vmem:[%s1 + $0xd4] sm:$0xf]
  %v103 = vld [vmem:[%s1 + $0xd8] sm:$0xf]
  %v104 = vld [vmem:[%s1 + $0xdc] sm:$0xf]
  %v105 = vld [vmem:[%s1 + $0xe0] sm:$0xf]
  %v106 = vld [vmem:[%s1 + $0xe4] sm:$0xf]
  %v107 = vld [vmem:[%s1 + $0xe8] sm:$0xf]
  %v108 = vld [vmem:[%s1 + $0xec] sm:$0xf]
  %v109 = vld [vmem:[%s1 + $0xf0] sm:$0xf]
  %v110 = vld [vmem:[%s1 + $0xf4] sm:$0xf]
  %v111 = vld [vmem:[%s1 + $0xf8] sm:$0xf]
  %v112 = vld [vmem:[%s1 + $0xfc] sm:$0xf]
  %v113 = vld [vmem:[%s1 + $0x100] sm:$0xf]
  %v114 = vld [vmem:[%s1 + $0x104] sm:$0xf]
  %v115 = vld [vmem:[%s1 + $0x108] sm:$0xf]
  %v116 = vld [vmem:[%s1 + $0x10c] sm:$0xf]
  %v117 = vld [vmem:[%s1 + $0x110] sm:$0xf]
  %v118 = vld [vmem:[%s1 + $0x114] sm:$0xf]
  %v119 = vld [vmem:[%s1 + $0x118] sm:$0xf]
  %v120 = vld [vmem:[%s1 + $0x11c] sm:$0xf]
  %v121 = vld [vmem:[%s1 + $0x120] sm:$0xf]
  %v122 = vld [vmem:[%s1 + $0x124] sm:$0xf]
  %v123 = vld [vmem:[%s1 + $0x128] sm:$0xf]
  %v124 = vld [vmem:[%s1 + $0x12c] sm:$0xf]
  %v125 = vld [vmem:[%s1 + $0x130] sm:$0xf]
  %v126 = vld [vmem:[%s1 + $0x134] sm:$0xf]
  %v127 = vld [vmem:[%s1 + $0x138] sm:$0xf]
  %v128 = vld [vmem:[%s1 + $0x13c] sm:$0xf]
  %v129 = vld [vmem:[%s1 + $0x140] sm:$0xf]
  %v130 = vld [vmem:[%s1 + $0x144] sm:$0xf]
  %v131 = vld [vmem:[%s1 + $0x148] sm:$0xf]
  %v132 = vld [vmem:[%s1 + $0x14c] sm:$0xf]
  %v133 = vld [vmem:[%s1 + $0x150] sm:$0xf]
  %v134 = vld [vmem:[%s1 + $0x154] sm:$0xf]
  %v135 = vld [vmem:[%s1 + $0x158] sm:$0xf]
  %v136 = vld [vmem:[%s1 + $0x15c] sm:$0xf]
  %v137 = vld [vmem:[%s1 + $0x160] sm:$0xf]
  %v138 = vld [vmem:[%s1 + $0x164] sm:$0xf]
  %v139 = vld [vmem:[%s1 + $0x168] sm:$0xf]
  %v140 = vld [vmem:[%s1 + $0x16c] sm:$0xf]
  %v141 = vld [vmem:[%s1 + $0x170] sm:$0xf]
  %v142 = vld [vmem:[%s1 + $0x174] sm:$0xf]
  %v143 = vld [vmem:[%s1 + $0x178] sm:$0xf]
  %v144 = vld [vmem:[%s1 + $0x17c] sm:$0xf]
  %v145 = vld [vmem:[%s1 + $0x180] sm:$0xf]
  %v146 = vld [vmem:[%s1 + $0x184] sm:$0xf]
  %v147 = vld [vmem:[%s1 + $0x188] sm:$0xf]
  %v148 = vld [vmem:[%s1 + $0x18c] sm:$0xf]
  %v149 = vld [vmem:[%s1 + $0x190] sm:$0xf]
  %v150 = vld [vmem:[%s1 + $0x194] sm:$0xf]
  %v151 = vld [vmem:[%s1 + $0x198] sm:$0xf]
  %v152 = vld [vmem:[%s1 + $0x19c] sm:$0xf]
  %v153 = vld [vmem:[%s1 + $0x1a0] sm:$0xf]
  %v154 = vld [vmem:[%s1 + $0x1a4] sm:$0xf]
  %v155 = vld [vmem:[%s1 + $0x1a8] sm:$0xf]
  %v156 = vld [vmem:[%s1 + $0x1ac] sm:$0xf]
  %v157 = vld [vmem:[%s1 + $0x1b0] sm:$0xf]
  %v158 = vld [vmem:[%s1 + $0x1b4] sm:$0xf]
  %v159 = vld [vmem:[%s1 + $0x1b8] sm:$0xf]
  %v160 = vld [vmem:[%s1 + $0x1bc] sm:$0xf]
  %v161 = vld [vmem:[%s1 + $0x1c0] sm:$0xf]
  %v162 = vld [vmem:[%s1 + $0x1c4] sm:$0xf]
  %v163 = vld [vmem:[%s1 + $0x1c8] sm:$0xf]
  %v164 = vld [vmem:[%s1 + $0x1cc] sm:$0xf]
  %v165 = vld [vmem:[%s1 + $0x1d0] sm:$0xf]
  %v166 = vld [vmem:[%s1 + $0x1d4] sm:$0xf]
  %v167 = vld [vmem:[%s1 + $0x1d8] sm:$0xf]
  %v168 = vld [vmem:[%s1 + $0x1dc] sm:$0xf]
  %v169 = vld [vmem:[%s1 + $0x1e0] sm:$0xf]
  %v170 = vld [vmem:[%s1 + $0x1e4] sm:$0xf]
  %v171 = vld [vmem:[%s1 + $0x1e8] sm:$0xf]
  %v172 = vld [vmem:[%s1 + $0x1ec] sm:$0xf]
  %v173 = vld [vmem:[%s1 + $0x1f0] sm:$0xf]
  %v174 = vld [vmem:[%s1 + $0x1f4] sm:$0xf]
  %v175 = vld [vmem:[%s1 + $0x1f8] sm:$0xf]
  %v176 = vld [vmem:[%s1 + $0x1fc] sm:$0xf]
  %v177 = vld [vmem:[%s1 + $0x200] sm:$0xf]
  %v178 = vld [vmem:[%s1 + $0x204] sm:$0xf]
  %v179 = vld [vmem:[%s1 + $0x208] sm:$0xf]
  %v180 = vld [vmem:[%s1 + $0x20c] sm:$0xf]
  %v181 = vld [vmem:[%s1 + $0x210] sm:$0xf]
  %v182 = vld [vmem:[%s1 + $0x214] sm:$0xf]
  %v183 = vld [vmem:[%s1 + $0x218] sm:$0xf]
  %v184 = vld [vmem:[%s1 + $0x21c] sm:$0xf]
  %v185 = vld [vmem:[%s1 + $0x220] sm:$0xf]
  %v186 = vld [vmem:[%s1 + $0x224] sm:$0xf]
  %v187 = vld [vmem:[%s1 + $0x228] sm:$0xf]
  %v188 = vld [vmem:[%s1 + $0x22c] sm:$0xf]
  %v189 = vld [vmem:[%s1 + $0x230] sm:$0xf]
  %v190 = vld [vmem:[%s1 + $0x234] sm:$0xf]
  %v191 = vld [vmem:[%s1 + $0x238] sm:$0xf]
  %v192 = vld [vmem:[%s1 + $0x23c] sm:$0xf]
  %v193 = vld [vmem:[%s1 + $0x240] sm:$0xf]
  %v194 = vld [vmem:[%s1 + $0x244] sm:$0xf]
  %v195 = vld [vmem:[%s1 + $0x248] sm:$0xf]
  %v196 = vld [vmem:[%s1 + $0x24c] sm:$0xf]
  %v197 = vld [vmem:[%s1 + $0x250] sm:$0xf]
  %v198 = vld [vmem:[%s1 + $0x254] sm:$0xf]
  %v199 = vld [vmem:[%s1 + $0x258] sm:$0xf]
  %v200 = vld [vmem:[%s1 + $0x25c] sm:$0xf]
  %v201 = vld [vmem:[%s1 + $0x260] sm:$0xf]
  %v202 = vld [vmem:[%s1 + $0x264] sm:$0xf]
  %v203 = vld [vmem:[%s1 + $0x268] sm:$0xf]
  %v204 = vld [vmem:[%s1 + $0x26c] sm:$0xf]
  %v205 = vld [vmem:[%s1 + $0x270] sm:$0xf]
  %v206 = vld [vmem:[%s1 + $0x274] sm:$0xf]
  %v207 = vld [vmem:[%s1 + $0x278] sm:$0xf]
  %v208 = vld [vmem:[%s1 + $0x27c] sm:$0xf]
  %v209 = vld [vmem:[%s1 + $0x280] sm:$0xf]
  %v210 = vld [vmem:[%s1 + $0x284] sm:$0xf]
  %v211 = vld [vmem:[%s1 + $0x288] sm:$0xf]
  %v212 = vld [vmem:[%s1 + $0x28c] sm:$0xf]
  %v213 = vld [vmem:[%s1 + $0x290] sm:$0xf]
  %v214 = vld [vmem:[%s1 + $0x294] sm:$0xf]
  %v215 = vld [vmem:[%s1 + $0x298] sm:$0xf]
  %v216 = vld [vmem:[%s1 + $0x29c] sm:$0xf]
  %v217 = vld [vmem:[%s1 + $0x2a0] sm:$0xf]
  %v218 = vld [vmem:[%s1 + $0x2a4] sm:$0xf]
  %v219 = vld [vmem:[%s1 + $0x2a8] sm:$0xf]
  %v220 = vld [vmem:[%s1 + $0x2ac] sm:$0xf]
  %v221 = vld [vmem:[%s1 + $0x2b0] sm:$0xf]
  %v222 = vld [vmem:[%s1 + $0x2b4] sm:$0xf]
  %v223 = vld [vmem:[%s1 + $0x2b8] sm:$0xf]
  %v224 = vld [vmem:[%s1 + $0x2bc] sm:$0xf]
  %v225 = vld [vmem:[%s1 + $0x2c0] sm:$0xf]
  %v226 = vld [vmem:[%s1 + $0x2c4] sm:$0xf]
  %v227 = vld [vmem:[%s1 + $0x2c8] sm:$0xf]
  %v228 = vld [vmem:[%s1 + $0x2cc] sm:$0xf]
  %v229 = vld [vmem:[%s1 + $0x2d0] sm:$0xf]
  %v230 = vld [vmem:[%s1 + $0x2d4] sm:$0xf]
  %v231 = vld [vmem:[%s1 + $0x2d8] sm:$0xf]
  %v232 = vld [vmem:[%s1 + $0x2dc] sm:$0xf]
  %v233 = vld [vmem:[%s1 + $0x2e0] sm:$0xf]
  %v234 = vld [vmem:[%s1 + $0x2e4] sm:$0xf]
  %v235 = vld [vmem:[%s1 + $0x2e8] sm:$0xf]
  %v236 = vld [vmem:[%s1 + $0x2ec] sm:$0xf]
  %v237 = vld [vmem:[%s1 + $0x2f0] sm:$0xf]
  %v238 = vld [vmem:[%s1 + $0x2f4] sm:$0xf]
  %v239 = vld [vmem:[%s1 + $0x2f8] sm:$0xf]
  %v240 = vld [vmem:[%s1 + $0x2fc] sm:$0xf]
  %v241 = vld [vmem:[%s1 + $0x300] sm:$0xf]
  %v242 = vld [vmem:[%s1 + $0x304] sm:$0xf]
  %v243 = vld [vmem:[%s1 + $0x308] sm:$0xf]
  %v244 = vld [vmem:[%s1 + $0x30c] sm:$0xf]
  %v245 = vld [vmem:[%s1 + $0x310] sm:$0xf]
  %v246 = vld [vmem:[%s1 + $0x314] sm:$0xf]
  %v247 = vld [vmem:[%s1 + $0x318] sm:$0xf]
  %v248 = vld [vmem:[%s1 + $0x31c] sm:$0xf]
  %v249 = vld [vmem:[%s2] sm:$0xff]
  %v250 = vld [vmem:[%s2 + $0x8] sm:$0xff]
  %v251 = vld [vmem:[%s2 + $0x10] sm:$0xff]
  %v252 = vld [vmem:[%s2 + $0x18] sm:$0xff]
  %v281 = vunpack.c.l.b16 %v21
  %v282 = vunpack.c.h.b16 %v21
  %v283 = vunpack.c.l.b16 %v22
  %v284 = vunpack.c.h.b16 %v22
  %v285 = vunpack.c.l.b16 %v23
  %v286 = vunpack.c.h.b16 %v23
  %v287 = vunpack.c.l.b16 %v24
  %v288 = vunpack.c.h.b16 %v24
  %v289 = vunpack.c.l.b16 %v25
  %v290 = vunpack.c.h.b16 %v25
  %v291 = vunpack.c.l.b16 %v26
  %v292 = vunpack.c.h.b16 %v26
  %v293 = vunpack.c.l.b16 %v27
  %v294 = vunpack.c.l.b16 %v28
  %v295 = vunpack.c.h.b16 %v28
  %v296 = vunpack.c.l.b16 %v29
  %v297 = vunpack.c.h.b16 %v29
  %v298 = vunpack.c.l.b16 %v30
  %v299 = vunpack.c.h.b16 %v30
  %v300 = vunpack.c.l.b16 %v31
  %v301 = vunpack.c.h.b16 %v31
  %v302 = vunpack.c.l.b16 %v32
  %v303 = vunpack.c.h.b16 %v32
  %v304 = vunpack.c.l.b16 %v33
  %v305 = vunpack.c.h.b16 %v33
  %v306 = vunpack.c.l.b16 %v34
  %v307 = vunpack.c.l.b16 %v35
  %v308 = vunpack.c.h.b16 %v35
  %v309 = vunpack.c.l.b16 %v36
  %v310 = vunpack.c.h.b16 %v36
  %v311 = vunpack.c.l.b16 %v37
  %v312 = vunpack.c.h.b16 %v37
  %v313 = vunpack.c.l.b16 %v38
  %v314 = vunpack.c.h.b16 %v38
  %v315 = vunpack.c.l.b16 %v39
  %v316 = vunpack.c.h.b16 %v39
  %v317 = vunpack.c.l.b16 %v40
  %v318 = vunpack.c.h.b16 %v40
  %v319 = vunpack.c.l.b16 %v41
  %v320 = vunpack.c.l.b16 %v42
  %v321 = vunpack.c.h.b16 %v42
  %v322 = vunpack.c.l.b16 %v43
  %v323 = vunpack.c.h.b16 %v43
  %v324 = vunpack.c.l.b16 %v44
  %v325 = vunpack.c.h.b16 %v44
  %v326 = vunpack.c.l.b16 %v45
  %v327 = vunpack.c.h.b16 %v45
  %v328 = vunpack.c.l.b16 %v46
  %v329 = vunpack.c.h.b16 %v46
  %v330 = vunpack.c.l.b16 %v47
  %v331 = vunpack.c.h.b16 %v47
  %v332 = vunpack.c.l.b16 %v48
  %v333 = vpack.c.b16 %v294, %v281
  %v334 = vpack.c.b16 %v295, %v282
  %v335 = vpack.c.b16 %v296, %v283
  %v336 = vpack.c.b16 %v297, %v284
  %v337 = vpack.c.b16 %v298, %v285
  %v338 = vpack.c.b16 %v299, %v286
  %v339 = vpack.c.b16 %v300, %v287
  %v340 = vpack.c.b16 %v301, %v288
  %v341 = vpack.c.b16 %v302, %v289
  %v342 = vpack.c.b16 %v303, %v290
  %v343 = vpack.c.b16 %v304, %v291
  %v344 = vpack.c.b16 %v305, %v292
  %v345 = vpack.c.b16 %v306, %v293
  %v346 = vpack.c.b16 %v320, %v307
  %v347 = vpack.c.b16 %v321, %v308
  %v348 = vpack.c.b16 %v322, %v309
  %v349 = vpack.c.b16 %v323, %v310
  %v350 = vpack.c.b16 %v324, %v311
  %v351 = vpack.c.b16 %v325, %v312
  %v352 = vpack.c.b16 %v326, %v313
  %v353 = vpack.c.b16 %v327, %v314
  %v354 = vpack.c.b16 %v328, %v315
  %v355 = vpack.c.b16 %v329, %v316
  %v356 = vpack.c.b16 %v330, %v317
  %v357 = vpack.c.b16 %v331, %v318
  %v358 = vpack.c.b16 %v332, %v319
  %v583 = vunpack.c.l.b16 %v49
  %v584 = vunpack.c.l.b16 %v50
  %v585 = vunpack.c.l.b16 %v51
  %v586 = vunpack.c.l.b16 %v52
  %v587 = vunpack.c.l.b16 %v53
  %v588 = vunpack.c.l.b16 %v54
  %v589 = vunpack.c.l.b16 %v55
  %v590 = vunpack.c.l.b16 %v56
  %v591 = vunpack.c.l.b16 %v57
  %v592 = vunpack.c.l.b16 %v58
  %v593 = vunpack.c.l.b16 %v59
  %v594 = vunpack.c.l.b16 %v60
  %v595 = vunpack.c.l.b16 %v61
  %v596 = vunpack.c.l.b16 %v62
  %v597 = vunpack.c.l.b16 %v63
  %v598 = vunpack.c.l.b16 %v64
  %v599 = vunpack.c.l.b16 %v65
  %v600 = vunpack.c.l.b16 %v66
  %v601 = vunpack.c.l.b16 %v67
  %v602 = vunpack.c.l.b16 %v68
  %v603 = vunpack.c.l.b16 %v69
  %v604 = vunpack.c.l.b16 %v70
  %v605 = vunpack.c.l.b16 %v71
  %v606 = vunpack.c.l.b16 %v72
  %v607 = vunpack.c.l.b16 %v73
  %v608 = vunpack.c.l.b16 %v74
  %v609 = vunpack.c.l.b16 %v75
  %v610 = vunpack.c.l.b16 %v76
  %v611 = vunpack.c.l.b16 %v77
  %v612 = vunpack.c.l.b16 %v78
  %v613 = vunpack.c.l.b16 %v79
  %v614 = vunpack.c.l.b16 %v80
  %v615 = vunpack.c.l.b16 %v81
  %v616 = vunpack.c.l.b16 %v82
  %v617 = vunpack.c.l.b16 %v83
  %v618 = vunpack.c.l.b16 %v84
  %v619 = vunpack.c.l.b16 %v85
  %v620 = vunpack.c.l.b16 %v86
  %v621 = vunpack.c.l.b16 %v87
  %v622 = vunpack.c.l.b16 %v88
  %v623 = vunpack.c.l.b16 %v89
  %v624 = vunpack.c.l.b16 %v90
  %v625 = vunpack.c.l.b16 %v91
  %v626 = vunpack.c.l.b16 %v92
  %v627 = vunpack.c.l.b16 %v93
  %v628 = vunpack.c.l.b16 %v94
  %v629 = vunpack.c.l.b16 %v95
  %v630 = vunpack.c.l.b16 %v96
  %v631 = vunpack.c.l.b16 %v97
  %v632 = vunpack.c.l.b16 %v98
  %v633 = vunpack.c.l.b16 %v99
  %v634 = vunpack.c.l.b16 %v100
  %v635 = vunpack.c.l.b16 %v101
  %v636 = vunpack.c.l.b16 %v102
  %v637 = vunpack.c.l.b16 %v103
  %v638 = vunpack.c.l.b16 %v104
  %v639 = vunpack.c.l.b16 %v105
  %v640 = vunpack.c.l.b16 %v106
  %v641 = vunpack.c.l.b16 %v107
  %v642 = vunpack.c.l.b16 %v108
  %v643 = vunpack.c.l.b16 %v109
  %v644 = vunpack.c.l.b16 %v110
  %v645 = vunpack.c.l.b16 %v111
  %v646 = vunpack.c.l.b16 %v112
  %v647 = vunpack.c.l.b16 %v113
  %v648 = vunpack.c.l.b16 %v114
  %v649 = vunpack.c.l.b16 %v115
  %v650 = vunpack.c.l.b16 %v116
  %v651 = vunpack.c.l.b16 %v117
  %v652 = vunpack.c.l.b16 %v118
  %v653 = vunpack.c.l.b16 %v119
  %v654 = vunpack.c.l.b16 %v120
  %v655 = vunpack.c.l.b16 %v121
  %v656 = vunpack.c.l.b16 %v122
  %v657 = vunpack.c.l.b16 %v123
  %v658 = vunpack.c.l.b16 %v124
  %v659 = vunpack.c.l.b16 %v125
  %v660 = vunpack.c.l.b16 %v126
  %v661 = vunpack.c.l.b16 %v127
  %v662 = vunpack.c.l.b16 %v128
  %v663 = vunpack.c.l.b16 %v129
  %v664 = vunpack.c.l.b16 %v130
  %v665 = vunpack.c.l.b16 %v131
  %v666 = vunpack.c.l.b16 %v132
  %v667 = vunpack.c.l.b16 %v133
  %v668 = vunpack.c.l.b16 %v134
  %v669 = vunpack.c.l.b16 %v135
  %v670 = vunpack.c.l.b16 %v136
  %v671 = vunpack.c.l.b16 %v137
  %v672 = vunpack.c.l.b16 %v138
  %v673 = vunpack.c.l.b16 %v139
  %v674 = vunpack.c.l.b16 %v140
  %v675 = vunpack.c.l.b16 %v141
  %v676 = vunpack.c.l.b16 %v142
  %v677 = vunpack.c.l.b16 %v143
  %v678 = vunpack.c.l.b16 %v144
  %v679 = vunpack.c.l.b16 %v145
  %v680 = vunpack.c.l.b16 %v146
  %v681 = vunpack.c.l.b16 %v147
  %v682 = vunpack.c.l.b16 %v148
  %v683 = vunpack.c.l.b16 %v149
  %v684 = vunpack.c.l.b16 %v150
  %v685 = vunpack.c.l.b16 %v151
  %v686 = vunpack.c.l.b16 %v152
  %v687 = vunpack.c.l.b16 %v153
  %v688 = vunpack.c.l.b16 %v154
  %v689 = vunpack.c.l.b16 %v155
  %v690 = vunpack.c.l.b16 %v156
  %v691 = vunpack.c.l.b16 %v157
  %v692 = vunpack.c.l.b16 %v158
  %v693 = vunpack.c.l.b16 %v159
  %v694 = vunpack.c.l.b16 %v160
  %v695 = vunpack.c.l.b16 %v161
  %v696 = vunpack.c.l.b16 %v162
  %v697 = vunpack.c.l.b16 %v163
  %v698 = vunpack.c.l.b16 %v164
  %v699 = vunpack.c.l.b16 %v165
  %v700 = vunpack.c.l.b16 %v166
  %v701 = vunpack.c.l.b16 %v167
  %v702 = vunpack.c.l.b16 %v168
  %v703 = vunpack.c.l.b16 %v169
  %v704 = vunpack.c.l.b16 %v170
  %v705 = vunpack.c.l.b16 %v171
  %v706 = vunpack.c.l.b16 %v172
  %v707 = vunpack.c.l.b16 %v173
  %v708 = vunpack.c.l.b16 %v174
  %v709 = vunpack.c.l.b16 %v175
  %v710 = vunpack.c.l.b16 %v176
  %v711 = vunpack.c.l.b16 %v177
  %v712 = vunpack.c.l.b16 %v178
  %v713 = vunpack.c.l.b16 %v179
  %v714 = vunpack.c.l.b16 %v180
  %v715 = vunpack.c.l.b16 %v181
  %v716 = vunpack.c.l.b16 %v182
  %v717 = vunpack.c.l.b16 %v183
  %v718 = vunpack.c.l.b16 %v184
  %v719 = vunpack.c.l.b16 %v185
  %v720 = vunpack.c.l.b16 %v186
  %v721 = vunpack.c.l.b16 %v187
  %v722 = vunpack.c.l.b16 %v188
  %v723 = vunpack.c.l.b16 %v189
  %v724 = vunpack.c.l.b16 %v190
  %v725 = vunpack.c.l.b16 %v191
  %v726 = vunpack.c.l.b16 %v192
  %v727 = vunpack.c.l.b16 %v193
  %v728 = vunpack.c.l.b16 %v194
  %v729 = vunpack.c.l.b16 %v195
  %v730 = vunpack.c.l.b16 %v196
  %v731 = vunpack.c.l.b16 %v197
  %v732 = vunpack.c.l.b16 %v198
  %v733 = vunpack.c.l.b16 %v199
  %v734 = vunpack.c.l.b16 %v200
  %v735 = vunpack.c.l.b16 %v201
  %v736 = vunpack.c.l.b16 %v202
  %v737 = vunpack.c.l.b16 %v203
  %v738 = vunpack.c.l.b16 %v204
  %v739 = vunpack.c.l.b16 %v205
  %v740 = vunpack.c.l.b16 %v206
  %v741 = vunpack.c.l.b16 %v207
  %v742 = vunpack.c.l.b16 %v208
  %v743 = vunpack.c.l.b16 %v209
  %v744 = vunpack.c.l.b16 %v210
  %v745 = vunpack.c.l.b16 %v211
  %v746 = vunpack.c.l.b16 %v212
  %v747 = vunpack.c.l.b16 %v213
  %v748 = vunpack.c.l.b16 %v214
  %v749 = vunpack.c.l.b16 %v215
  %v750 = vunpack.c.l.b16 %v216
  %v751 = vunpack.c.l.b16 %v217
  %v752 = vunpack.c.l.b16 %v218
  %v753 = vunpack.c.l.b16 %v219
  %v754 = vunpack.c.l.b16 %v220
  %v755 = vunpack.c.l.b16 %v221
  %v756 = vunpack.c.l.b16 %v222
  %v757 = vunpack.c.l.b16 %v223
  %v758 = vunpack.c.l.b16 %v224
  %v759 = vunpack.c.l.b16 %v225
  %v760 = vunpack.c.l.b16 %v226
  %v761 = vunpack.c.l.b16 %v227
  %v762 = vunpack.c.l.b16 %v228
  %v763 = vunpack.c.l.b16 %v229
  %v764 = vunpack.c.l.b16 %v230
  %v765 = vunpack.c.l.b16 %v231
  %v766 = vunpack.c.l.b16 %v232
  %v767 = vunpack.c.l.b16 %v233
  %v768 = vunpack.c.l.b16 %v234
  %v769 = vunpack.c.l.b16 %v235
  %v770 = vunpack.c.l.b16 %v236
  %v771 = vunpack.c.l.b16 %v237
  %v772 = vunpack.c.l.b16 %v238
  %v773 = vunpack.c.l.b16 %v239
  %v774 = vunpack.c.l.b16 %v240
  %v775 = vunpack.c.l.b16 %v241
  %v776 = vunpack.c.l.b16 %v242
  %v777 = vunpack.c.l.b16 %v243
  %v778 = vunpack.c.l.b16 %v244
  %v779 = vunpack.c.l.b16 %v245
  %v780 = vunpack.c.l.b16 %v246
  %v781 = vunpack.c.l.b16 %v247
  %v782 = vunpack.c.l.b16 %v248
  %v783 = vpack.c.b16 %v584, %v583
  %v784 = vpack.c.b16 %v586, %v585
  %v785 = vpack.c.b16 %v588, %v587
  %v786 = vpack.c.b16 %v590, %v589
  %v787 = vpack.c.b16 %v592, %v591
  %v788 = vpack.c.b16 %v594, %v593
  %v789 = vpack.c.b16 %v596, %v595
  %v790 = vpack.c.b16 %v598, %v597
  %v791 = vpack.c.b16 %v600, %v599
  %v792 = vpack.c.b16 %v602, %v601
  %v793 = vpack.c.b16 %v604, %v603
  %v794 = vpack.c.b16 %v606, %v605
  %v795 = vpack.c.b16 %v608, %v607
  %v796 = vpack.c.b16 %v610, %v609
  %v797 = vpack.c.b16 %v612, %v611
  %v798 = vpack.c.b16 %v614, %v613
  %v799 = vpack.c.b16 %v616, %v615
  %v800 = vpack.c.b16 %v618, %v617
  %v801 = vpack.c.b16 %v620, %v619
  %v802 = vpack.c.b16 %v622, %v621
  %v803 = vpack.c.b16 %v624, %v623
  %v804 = vpack.c.b16 %v626, %v625
  %v805 = vpack.c.b16 %v628, %v627
  %v806 = vpack.c.b16 %v630, %v629
  %v807 = vpack.c.b16 %v632, %v631
  %v808 = vpack.c.b16 %v634, %v633
  %v809 = vpack.c.b16 %v636, %v635
  %v810 = vpack.c.b16 %v638, %v637
  %v811 = vpack.c.b16 %v640, %v639
  %v812 = vpack.c.b16 %v642, %v641
  %v813 = vpack.c.b16 %v644, %v643
  %v814 = vpack.c.b16 %v646, %v645
  %v815 = vpack.c.b16 %v648, %v647
  %v816 = vpack.c.b16 %v650, %v649
  %v817 = vpack.c.b16 %v652, %v651
  %v818 = vpack.c.b16 %v654, %v653
  %v819 = vpack.c.b16 %v656, %v655
  %v820 = vpack.c.b16 %v658, %v657
  %v821 = vpack.c.b16 %v660, %v659
  %v822 = vpack.c.b16 %v662, %v661
  %v823 = vpack.c.b16 %v664, %v663
  %v824 = vpack.c.b16 %v666, %v665
  %v825 = vpack.c.b16 %v668, %v667
  %v826 = vpack.c.b16 %v670, %v669
  %v827 = vpack.c.b16 %v672, %v671
  %v828 = vpack.c.b16 %v674, %v673
  %v829 = vpack.c.b16 %v676, %v675
  %v830 = vpack.c.b16 %v678, %v677
  %v831 = vpack.c.b16 %v680, %v679
  %v832 = vpack.c.b16 %v682, %v681
  %v833 = vpack.c.b16 %v684, %v683
  %v834 = vpack.c.b16 %v686, %v685
  %v835 = vpack.c.b16 %v688, %v687
  %v836 = vpack.c.b16 %v690, %v689
  %v837 = vpack.c.b16 %v692, %v691
  %v838 = vpack.c.b16 %v694, %v693
  %v839 = vpack.c.b16 %v696, %v695
  %v840 = vpack.c.b16 %v698, %v697
  %v841 = vpack.c.b16 %v700, %v699
  %v842 = vpack.c.b16 %v702, %v701
  %v843 = vpack.c.b16 %v704, %v703
  %v844 = vpack.c.b16 %v706, %v705
  %v845 = vpack.c.b16 %v708, %v707
  %v846 = vpack.c.b16 %v710, %v709
  %v847 = vpack.c.b16 %v712, %v711
  %v848 = vpack.c.b16 %v714, %v713
  %v849 = vpack.c.b16 %v716, %v715
  %v850 = vpack.c.b16 %v718, %v717
  %v851 = vpack.c.b16 %v720, %v719
  %v852 = vpack.c.b16 %v722, %v721
  %v853 = vpack.c.b16 %v724, %v723
  %v854 = vpack.c.b16 %v726, %v725
  %v855 = vpack.c.b16 %v728, %v727
  %v856 = vpack.c.b16 %v730, %v729
  %v857 = vpack.c.b16 %v732, %v731
  %v858 = vpack.c.b16 %v734, %v733
  %v859 = vpack.c.b16 %v736, %v735
  %v860 = vpack.c.b16 %v738, %v737
  %v861 = vpack.c.b16 %v740, %v739
  %v862 = vpack.c.b16 %v742, %v741
  %v863 = vpack.c.b16 %v744, %v743
  %v864 = vpack.c.b16 %v746, %v745
  %v865 = vpack.c.b16 %v748, %v747
  %v866 = vpack.c.b16 %v750, %v749
  %v867 = vpack.c.b16 %v752, %v751
  %v868 = vpack.c.b16 %v754, %v753
  %v869 = vpack.c.b16 %v756, %v755
  %v870 = vpack.c.b16 %v758, %v757
  %v871 = vpack.c.b16 %v760, %v759
  %v872 = vpack.c.b16 %v762, %v761
  %v873 = vpack.c.b16 %v764, %v763
  %v874 = vpack.c.b16 %v766, %v765
  %v875 = vpack.c.b16 %v768, %v767
  %v876 = vpack.c.b16 %v770, %v769
  %v877 = vpack.c.b16 %v772, %v771
  %v878 = vpack.c.b16 %v774, %v773
  %v879 = vpack.c.b16 %v776, %v775
  %v880 = vpack.c.b16 %v778, %v777
  %v881 = vpack.c.b16 %v780, %v779
  %v882 = vpack.c.b16 %v782, %v781
  %vm983 = vcmask 523264
  %v985 = vsel %vm983, %v345, 0
  %v988 = vsel %vm983, %v358, 0
  %990 = vmatprep.subr.bf16.mxu0 0
  %991 = vmatpush1.bf16.msra.mxu0 %v783
  %992 = vmatprep.subr.bf16.mxu0 0
  %993 = vmatpush1.bf16.msra.mxu0 %v784
  %994 = vmatprep.subr.bf16.mxu0 0
  %995 = vmatpush1.bf16.msra.mxu0 %v785
  %996 = vmatprep.subr.bf16.mxu0 0
  %997 = vmatpush1.bf16.msra.mxu0 %v786
  %998 = vmatprep.subr.bf16.mxu0 0
  %999 = vmatpush1.bf16.msra.mxu0 %v787
  %1000 = vmatprep.subr.bf16.mxu0 0
  %1001 = vmatpush1.bf16.msra.mxu0 %v788
  %1002 = vmatprep.subr.bf16.mxu0 0
  %1003 = vmatpush1.bf16.msra.mxu0 %v789
  %1004 = vmatprep.subr.bf16.mxu0 0
  %1005 = vmatpush1.bf16.msra.mxu0 %v790
  %1006 = vmatprep.subr.bf16.mxu0 0
  %1007 = vmatpush1.bf16.msra.mxu0 %v791
  %1008 = vmatprep.subr.bf16.mxu0 0
  %1009 = vmatpush1.bf16.msra.mxu0 %v792
  %1010 = vmatprep.subr.bf16.mxu0 0
  %1011 = vmatpush1.bf16.msra.mxu0 %v793
  %1012 = vmatprep.subr.bf16.mxu0 0
  %1013 = vmatpush1.bf16.msra.mxu0 %v794
  %1014 = vmatprep.subr.bf16.mxu0 0
  %1015 = vmatpush1.bf16.msra.mxu0 %v795
  %1016 = vmatprep.subr.bf16.mxu0 0
  %1017 = vmatpush1.bf16.msra.mxu0 %v796
  %1018 = vmatprep.subr.bf16.mxu0 0
  %1019 = vmatpush1.bf16.msra.mxu0 %v797
  %1020 = vmatprep.subr.bf16.mxu0 0
  %1021 = vmatpush1.bf16.msra.mxu0 %v798
  %1022 = vmatprep.mubr.bf16.mxu0 %v334
  %1023 = vmatmul.mubr.bf16.gmra.mrb[0].mxu0 %v333
  %v1024 = vpop.f32.mrb[0].mxu0
  %v1025 = vadd.f32 %v249, %v1024
  %v1026 = vpop.f32.mrb[0].mxu0
  %v1027 = vpop.f32.mrb[0].mxu0
  %v1028 = vadd.f32 %v250, %v1027
  %v1029 = vpop.f32.mrb[0].mxu0
  %1030 = vmatprep.mubr.bf16.mxu0 %v347
  %1031 = vmatmul.mubr.bf16.gmra.mrb[0].mxu0 %v346
  %v1032 = vpop.f32.mrb[0].mxu0
  %v1033 = vadd.f32 %v251, %v1032
  %v1034 = vpop.f32.mrb[0].mxu0
  %v1035 = vpop.f32.mrb[0].mxu0
  %v1036 = vadd.f32 %v252, %v1035
  %v1037 = vpop.f32.mrb[0].mxu0
  %1038 = vdwg.mxu0
  %1039 = vmatprep.subr.bf16.mxu0 0
  %1040 = vmatpush1.bf16.msra.mxu0 %v799
  %1041 = vmatprep.subr.bf16.mxu0 0
  %1042 = vmatpush1.bf16.msra.mxu0 %v800
  %1043 = vmatprep.subr.bf16.mxu0 0
  %1044 = vmatpush1.bf16.msra.mxu0 %v801
  %1045 = vmatprep.subr.bf16.mxu0 0
  %1046 = vmatpush1.bf16.msra.mxu0 %v802
  %1047 = vmatprep.subr.bf16.mxu0 0
  %1048 = vmatpush1.bf16.msra.mxu0 %v803
  %1049 = vmatprep.subr.bf16.mxu0 0
  %1050 = vmatpush1.bf16.msra.mxu0 %v804
  %1051 = vmatprep.subr.bf16.mxu0 0
  %1052 = vmatpush1.bf16.msra.mxu0 %v805
  %1053 = vmatprep.subr.bf16.mxu0 0
  %1054 = vmatpush1.bf16.msra.mxu0 %v806
  %1055 = vmatprep.subr.bf16.mxu0 0
  %1056 = vmatpush1.bf16.msra.mxu0 %v807
  %1057 = vmatprep.subr.bf16.mxu0 0
  %1058 = vmatpush1.bf16.msra.mxu0 %v808
  %1059 = vmatprep.subr.bf16.mxu0 0
  %1060 = vmatpush1.bf16.msra.mxu0 %v809
  %1061 = vmatprep.subr.bf16.mxu0 0
  %1062 = vmatpush1.bf16.msra.mxu0 %v810
  %1063 = vmatprep.subr.bf16.mxu0 0
  %1064 = vmatpush1.bf16.msra.mxu0 %v811
  %1065 = vmatprep.subr.bf16.mxu0 0
  %1066 = vmatpush1.bf16.msra.mxu0 %v812
  %1067 = vmatprep.subr.bf16.mxu0 0
  %1068 = vmatpush1.bf16.msra.mxu0 %v813
  %1069 = vmatprep.subr.bf16.mxu0 0
  %1070 = vmatpush1.bf16.msra.mxu0 %v814
  %1071 = vmatprep.mubr.bf16.mxu0 %v336
  %1072 = vmatmul.mubr.bf16.gmra.mrb[0].mxu0 %v335
  %v1073 = vpop.f32.mrb[0].mxu0
  %v1074 = vadd.f32 %v1025, %v1073
  %v1075 = vpop.f32.mrb[0].mxu0
  %v1076 = vpop.f32.mrb[0].mxu0
  %v1077 = vadd.f32 %v1028, %v1076
  %v1078 = vpop.f32.mrb[0].mxu0
  %1079 = vmatprep.mubr.bf16.mxu0 %v349
  %1080 = vmatmul.mubr.bf16.gmra.mrb[0].mxu0 %v348
  %v1081 = vpop.f32.mrb[0].mxu0
  %v1082 = vadd.f32 %v1033, %v1081
  %v1083 = vpop.f32.mrb[0].mxu0
  %v1084 = vpop.f32.mrb[0].mxu0
  %v1085 = vadd.f32 %v1036, %v1084
  %v1086 = vpop.f32.mrb[0].mxu0
  %1087 = vdwg.mxu0
  %1088 = vmatprep.subr.bf16.mxu0 0
  %1089 = vmatpush1.bf16.msra.mxu0 %v815
  %1090 = vmatprep.subr.bf16.mxu0 0
  %1091 = vmatpush1.bf16.msra.mxu0 %v816
  %1092 = vmatprep.subr.bf16.mxu0 0
  %1093 = vmatpush1.bf16.msra.mxu0 %v817
  %1094 = vmatprep.subr.bf16.mxu0 0
  %1095 = vmatpush1.bf16.msra.mxu0 %v818
  %1096 = vmatprep.subr.bf16.mxu0 0
  %1097 = vmatpush1.bf16.msra.mxu0 %v819
  %1098 = vmatprep.subr.bf16.mxu0 0
  %1099 = vmatpush1.bf16.msra.mxu0 %v820
  %1100 = vmatprep.subr.bf16.mxu0 0
  %1101 = vmatpush1.bf16.msra.mxu0 %v821
  %1102 = vmatprep.subr.bf16.mxu0 0
  %1103 = vmatpush1.bf16.msra.mxu0 %v822
  %1104 = vmatprep.subr.bf16.mxu0 0
  %1105 = vmatpush1.bf16.msra.mxu0 %v823
  %1106 = vmatprep.subr.bf16.mxu0 0
  %1107 = vmatpush1.bf16.msra.mxu0 %v824
  %1108 = vmatprep.subr.bf16.mxu0 0
  %1109 = vmatpush1.bf16.msra.mxu0 %v825
  %1110 = vmatprep.subr.bf16.mxu0 0
  %1111 = vmatpush1.bf16.msra.mxu0 %v826
  %1112 = vmatprep.subr.bf16.mxu0 0
  %1113 = vmatpush1.bf16.msra.mxu0 %v827
  %1114 = vmatprep.subr.bf16.mxu0 0
  %1115 = vmatpush1.bf16.msra.mxu0 %v828
  %1116 = vmatprep.subr.bf16.mxu0 0
  %1117 = vmatpush1.bf16.msra.mxu0 %v829
  %1118 = vmatprep.subr.bf16.mxu0 0
  %1119 = vmatpush1.bf16.msra.mxu0 %v830
  %1120 = vmatprep.mubr.bf16.mxu0 %v338
  %1121 = vmatmul.mubr.bf16.gmra.mrb[0].mxu0 %v337
  %v1122 = vpop.f32.mrb[0].mxu0
  %v1123 = vadd.f32 %v1074, %v1122
  %v1124 = vpop.f32.mrb[0].mxu0
  %v1125 = vpop.f32.mrb[0].mxu0
  %v1126 = vadd.f32 %v1077, %v1125
  %v1127 = vpop.f32.mrb[0].mxu0
  %1128 = vmatprep.mubr.bf16.mxu0 %v351
  %1129 = vmatmul.mubr.bf16.gmra.mrb[0].mxu0 %v350
  %v1130 = vpop.f32.mrb[0].mxu0
  %v1131 = vadd.f32 %v1082, %v1130
  %v1132 = vpop.f32.mrb[0].mxu0
  %v1133 = vpop.f32.mrb[0].mxu0
  %v1134 = vadd.f32 %v1085, %v1133
  %v1135 = vpop.f32.mrb[0].mxu0
  %1136 = vdwg.mxu0
  %1137 = vmatprep.subr.bf16.mxu0 0
  %1138 = vmatpush1.bf16.msra.mxu0 %v831
  %1139 = vmatprep.subr.bf16.mxu0 0
  %1140 = vmatpush1.bf16.msra.mxu0 %v832
  %1141 = vmatprep.subr.bf16.mxu0 0
  %1142 = vmatpush1.bf16.msra.mxu0 %v833
  %1143 = vmatprep.subr.bf16.mxu0 0
  %1144 = vmatpush1.bf16.msra.mxu0 %v834
  %1145 = vmatprep.subr.bf16.mxu0 0
  %1146 = vmatpush1.bf16.msra.mxu0 %v835
  %1147 = vmatprep.subr.bf16.mxu0 0
  %1148 = vmatpush1.bf16.msra.mxu0 %v836
  %1149 = vmatprep.subr.bf16.mxu0 0
  %1150 = vmatpush1.bf16.msra.mxu0 %v837
  %1151 = vmatprep.subr.bf16.mxu0 0
  %1152 = vmatpush1.bf16.msra.mxu0 %v838
  %1153 = vmatprep.subr.bf16.mxu0 0
  %1154 = vmatpush1.bf16.msra.mxu0 %v839
  %1155 = vmatprep.subr.bf16.mxu0 0
  %1156 = vmatpush1.bf16.msra.mxu0 %v840
  %1157 = vmatprep.subr.bf16.mxu0 0
  %1158 = vmatpush1.bf16.msra.mxu0 %v841
  %1159 = vmatprep.subr.bf16.mxu0 0
  %1160 = vmatpush1.bf16.msra.mxu0 %v842
  %1161 = vmatprep.subr.bf16.mxu0 0
  %1162 = vmatpush1.bf16.msra.mxu0 %v843
  %1163 = vmatprep.subr.bf16.mxu0 0
  %1164 = vmatpush1.bf16.msra.mxu0 %v844
  %1165 = vmatprep.subr.bf16.mxu0 0
  %1166 = vmatpush1.bf16.msra.mxu0 %v845
  %1167 = vmatprep.subr.bf16.mxu0 0
  %1168 = vmatpush1.bf16.msra.mxu0 %v846
  %1169 = vmatprep.mubr.bf16.mxu0 %v340
  %1170 = vmatmul.mubr.bf16.gmra.mrb[0].mxu0 %v339
  %v1171 = vpop.f32.mrb[0].mxu0
  %v1172 = vadd.f32 %v1123, %v1171
  %v1173 = vpop.f32.mrb[0].mxu0
  %v1174 = vpop.f32.mrb[0].mxu0
  %v1175 = vadd.f32 %v1126, %v1174
  %v1176 = vpop.f32.mrb[0].mxu0
  %1177 = vmatprep.mubr.bf16.mxu0 %v353
  %1178 = vmatmul.mubr.bf16.gmra.mrb[0].mxu0 %v352
  %v1179 = vpop.f32.mrb[0].mxu0
  %v1180 = vadd.f32 %v1131, %v1179
  %v1181 = vpop.f32.mrb[0].mxu0
  %v1182 = vpop.f32.mrb[0].mxu0
  %v1183 = vadd.f32 %v1134, %v1182
  %v1184 = vpop.f32.mrb[0].mxu0
  %1185 = vdwg.mxu0
  %1186 = vmatprep.subr.bf16.mxu0 0
  %1187 = vmatpush1.bf16.msra.mxu0 %v847
  %1188 = vmatprep.subr.bf16.mxu0 0
  %1189 = vmatpush1.bf16.msra.mxu0 %v848
  %1190 = vmatprep.subr.bf16.mxu0 0
  %1191 = vmatpush1.bf16.msra.mxu0 %v849
  %1192 = vmatprep.subr.bf16.mxu0 0
  %1193 = vmatpush1.bf16.msra.mxu0 %v850
  %1194 = vmatprep.subr.bf16.mxu0 0
  %1195 = vmatpush1.bf16.msra.mxu0 %v851
  %1196 = vmatprep.subr.bf16.mxu0 0
  %1197 = vmatpush1.bf16.msra.mxu0 %v852
  %1198 = vmatprep.subr.bf16.mxu0 0
  %1199 = vmatpush1.bf16.msra.mxu0 %v853
  %1200 = vmatprep.subr.bf16.mxu0 0
  %1201 = vmatpush1.bf16.msra.mxu0 %v854
  %1202 = vmatprep.subr.bf16.mxu0 0
  %1203 = vmatpush1.bf16.msra.mxu0 %v855
  %1204 = vmatprep.subr.bf16.mxu0 0
  %1205 = vmatpush1.bf16.msra.mxu0 %v856
  %1206 = vmatprep.subr.bf16.mxu0 0
  %1207 = vmatpush1.bf16.msra.mxu0 %v857
  %1208 = vmatprep.subr.bf16.mxu0 0
  %1209 = vmatpush1.bf16.msra.mxu0 %v858
  %1210 = vmatprep.subr.bf16.mxu0 0
  %1211 = vmatpush1.bf16.msra.mxu0 %v859
  %1212 = vmatprep.subr.bf16.mxu0 0
  %1213 = vmatpush1.bf16.msra.mxu0 %v860
  %1214 = vmatprep.subr.bf16.mxu0 0
  %1215 = vmatpush1.bf16.msra.mxu0 %v861
  %1216 = vmatprep.subr.bf16.mxu0 0
  %1217 = vmatpush1.bf16.msra.mxu0 %v862
  %1218 = vmatprep.mubr.bf16.mxu0 %v342
  %1219 = vmatmul.mubr.bf16.gmra.mrb[0].mxu0 %v341
  %v1220 = vpop.f32.mrb[0].mxu0
  %v1221 = vadd.f32 %v1172, %v1220
  %v1222 = vpop.f32.mrb[0].mxu0
  %v1223 = vpop.f32.mrb[0].mxu0
  %v1224 = vadd.f32 %v1175, %v1223
  %v1225 = vpop.f32.mrb[0].mxu0
  %1226 = vmatprep.mubr.bf16.mxu0 %v355
  %1227 = vmatmul.mubr.bf16.gmra.mrb[0].mxu0 %v354
  %v1228 = vpop.f32.mrb[0].mxu0
  %v1229 = vadd.f32 %v1180, %v1228
  %v1230 = vpop.f32.mrb[0].mxu0
  %v1231 = vpop.f32.mrb[0].mxu0
  %v1232 = vadd.f32 %v1183, %v1231
  %v1233 = vpop.f32.mrb[0].mxu0
  %1234 = vdwg.mxu0
  %1235 = vmatprep.subr.bf16.mxu0 0
  %1236 = vmatpush1.bf16.msra.mxu0 %v863
  %1237 = vmatprep.subr.bf16.mxu0 0
  %1238 = vmatpush1.bf16.msra.mxu0 %v864
  %1239 = vmatprep.subr.bf16.mxu0 0
  %1240 = vmatpush1.bf16.msra.mxu0 %v865
  %1241 = vmatprep.subr.bf16.mxu0 0
  %1242 = vmatpush1.bf16.msra.mxu0 %v866
  %1243 = vmatprep.subr.bf16.mxu0 0
  %1244 = vmatpush1.bf16.msra.mxu0 %v867
  %1245 = vmatprep.subr.bf16.mxu0 0
  %1246 = vmatpush1.bf16.msra.mxu0 %v868
  %1247 = vmatprep.subr.bf16.mxu0 0
  %1248 = vmatpush1.bf16.msra.mxu0 %v869
  %1249 = vmatprep.subr.bf16.mxu0 0
  %1250 = vmatpush1.bf16.msra.mxu0 %v870
  %1251 = vmatprep.subr.bf16.mxu0 0
  %1252 = vmatpush1.bf16.msra.mxu0 %v871
  %1253 = vmatprep.subr.bf16.mxu0 0
  %1254 = vmatpush1.bf16.msra.mxu0 %v872
  %1255 = vmatprep.subr.bf16.mxu0 0
  %1256 = vmatpush1.bf16.msra.mxu0 %v873
  %1257 = vmatprep.subr.bf16.mxu0 0
  %1258 = vmatpush1.bf16.msra.mxu0 %v874
  %1259 = vmatprep.subr.bf16.mxu0 0
  %1260 = vmatpush1.bf16.msra.mxu0 %v875
  %1261 = vmatprep.subr.bf16.mxu0 0
  %1262 = vmatpush1.bf16.msra.mxu0 %v876
  %1263 = vmatprep.subr.bf16.mxu0 0
  %1264 = vmatpush1.bf16.msra.mxu0 %v877
  %1265 = vmatprep.subr.bf16.mxu0 0
  %1266 = vmatpush1.bf16.msra.mxu0 %v878
  %1267 = vmatprep.mubr.bf16.mxu0 %v344
  %1268 = vmatmul.mubr.bf16.gmra.mrb[0].mxu0 %v343
  %v1269 = vpop.f32.mrb[0].mxu0
  %v1270 = vadd.f32 %v1221, %v1269
  %v1271 = vpop.f32.mrb[0].mxu0
  %v1272 = vpop.f32.mrb[0].mxu0
  %v1273 = vadd.f32 %v1224, %v1272
  %v1274 = vpop.f32.mrb[0].mxu0
  %1275 = vmatprep.mubr.bf16.mxu0 %v357
  %1276 = vmatmul.mubr.bf16.gmra.mrb[0].mxu0 %v356
  %v1277 = vpop.f32.mrb[0].mxu0
  %v1278 = vadd.f32 %v1229, %v1277
  %v1279 = vpop.f32.mrb[0].mxu0
  %v1280 = vpop.f32.mrb[0].mxu0
  %v1281 = vadd.f32 %v1232, %v1280
  %v1282 = vpop.f32.mrb[0].mxu0
  %1283 = vdwg.mxu0
  %1284 = vmatprep.subr.bf16.mxu0 0
  %1285 = vmatpush1.bf16.msra.mxu0 %v879
  %1286 = vmatprep.subr.bf16.mxu0 0
  %1287 = vmatpush1.bf16.msra.mxu0 %v880
  %1288 = vmatprep.subr.bf16.mxu0 0
  %1289 = vmatpush1.bf16.msra.mxu0 %v881
  %1290 = vmatprep.subr.bf16.mxu0 0
  %1291 = vmatpush1.bf16.msra.mxu0 %v882
  %1292 = vmatprep.subr.bf16.mxu0 0
  %1293 = vmatpush1.bf16.msra.mxu0 0
  %1294 = vmatprep.subr.bf16.mxu0 0
  %1295 = vmatpush1.bf16.msra.mxu0 0
  %1296 = vmatprep.subr.bf16.mxu0 0
  %1297 = vmatpush1.bf16.msra.mxu0 0
  %1298 = vmatprep.subr.bf16.mxu0 0
  %1299 = vmatpush1.bf16.msra.mxu0 0
  %1300 = vmatprep.subr.bf16.mxu0 0
  %1301 = vmatpush1.bf16.msra.mxu0 0
  %1302 = vmatprep.subr.bf16.mxu0 0
  %1303 = vmatpush1.bf16.msra.mxu0 0
  %1304 = vmatprep.subr.bf16.mxu0 0
  %1305 = vmatpush1.bf16.msra.mxu0 0
  %1306 = vmatprep.subr.bf16.mxu0 0
  %1307 = vmatpush1.bf16.msra.mxu0 0
  %1308 = vmatprep.subr.bf16.mxu0 0
  %1309 = vmatpush1.bf16.msra.mxu0 0
  %1310 = vmatprep.subr.bf16.mxu0 0
  %1311 = vmatpush1.bf16.msra.mxu0 0
  %1312 = vmatprep.subr.bf16.mxu0 0
  %1313 = vmatpush1.bf16.msra.mxu0 0
  %1314 = vmatprep.subr.bf16.mxu0 0
  %1315 = vmatpush1.bf16.msra.mxu0 0
  %1316 = vmatprep.mubr.bf16.mxu0 0
  %1317 = vmatmul.mubr.bf16.gmra.mrb[0].mxu0 %v985
  %v1318 = vpop.f32.mrb[0].mxu0
  %v1319 = vadd.f32 %v1270, %v1318
  %v1320 = vpop.f32.mrb[0].mxu0
  %v1321 = vpop.f32.mrb[0].mxu0
  %v1322 = vadd.f32 %v1273, %v1321
  %v1323 = vpop.f32.mrb[0].mxu0
  %1324 = vmatprep.mubr.bf16.mxu0 0
  %1325 = vmatmul.mubr.bf16.gmra.mrb[0].mxu0 %v988
  %v1326 = vpop.f32.mrb[0].mxu0
  %v1327 = vadd.f32 %v1278, %v1326
  %v1328 = vpop.f32.mrb[0].mxu0
  %v1329 = vpop.f32.mrb[0].mxu0
  %v1330 = vadd.f32 %v1281, %v1329
  %v1331 = vpop.f32.mrb[0].mxu0
  %1332 = vdwg.mxu0
  %v1333 = vpack.c.bf16 %v1322, %v1319
  %v1334 = vpack.c.bf16 %v1330, %v1327
  %v1335 = vld [vmem:[%s3] sm:$0xf]
  %v1336 = vld [vmem:[%s3 + $0x4] sm:$0xf]
  %v1337 = vld [vmem:[%s3 + $0x8] sm:$0xf]
  %v1338 = vld [vmem:[%s3 + $0xc] sm:$0xf]
  %v1339 = vld [vmem:[%s4] sm:$0x1]
  %v1341 = vlaneseq
  %v1342 = vshrl.u32 %v1341, 7
  %v1343 = vsub.s32 0, %v1342
  %v1344 = vrot.slane %v1339, %v1343
  %v1350 = vunpack.c.l.b16 %v1335
  %v1351 = vunpack.c.l.b16 %v1336
  %v1352 = vunpack.c.l.b16 %v1337
  %v1353 = vunpack.c.l.b16 %v1338
  %v1354 = vpack.c.b16 %v1351, %v1350
  %v1355 = vpack.c.b16 %v1353, %v1352
  %vm1358 = vcmask 261120
  %v1360 = vsel %vm1358, %v1333, 0
  %v1363 = vsel %vm1358, %v1334, 0
  %1365 = vmatprep.subr.bf16.mxu0 0
  %1366 = vmatpush1.bf16.msra.mxu0 %v1354
  %1367 = vmatprep.subr.bf16.mxu0 0
  %1368 = vmatpush1.bf16.msra.mxu0 %v1355
  %1369 = vmatprep.subr.bf16.mxu0 0
  %1370 = vmatpush1.bf16.msra.mxu0 0
  %1371 = vmatprep.subr.bf16.mxu0 0
  %1372 = vmatpush1.bf16.msra.mxu0 0
  %1373 = vmatprep.subr.bf16.mxu0 0
  %1374 = vmatpush1.bf16.msra.mxu0 0
  %1375 = vmatprep.subr.bf16.mxu0 0
  %1376 = vmatpush1.bf16.msra.mxu0 0
  %1377 = vmatprep.subr.bf16.mxu0 0
  %1378 = vmatpush1.bf16.msra.mxu0 0
  %1379 = vmatprep.subr.bf16.mxu0 0
  %1380 = vmatpush1.bf16.msra.mxu0 0
  %1381 = vmatprep.subr.bf16.mxu0 0
  %1382 = vmatpush1.bf16.msra.mxu0 0
  %1383 = vmatprep.subr.bf16.mxu0 0
  %1384 = vmatpush1.bf16.msra.mxu0 0
  %1385 = vmatprep.subr.bf16.mxu0 0
  %1386 = vmatpush1.bf16.msra.mxu0 0
  %1387 = vmatprep.subr.bf16.mxu0 0
  %1388 = vmatpush1.bf16.msra.mxu0 0
  %1389 = vmatprep.subr.bf16.mxu0 0
  %1390 = vmatpush1.bf16.msra.mxu0 0
  %1391 = vmatprep.subr.bf16.mxu0 0
  %1392 = vmatpush1.bf16.msra.mxu0 0
  %1393 = vmatprep.subr.bf16.mxu0 0
  %1394 = vmatpush1.bf16.msra.mxu0 0
  %1395 = vmatprep.subr.bf16.mxu0 0
  %1396 = vmatpush1.bf16.msra.mxu0 0
  %1397 = vmatprep.mubr.bf16.mxu0 0
  %1398 = vmatmul.mubr.bf16.gmra.mrb[0].mxu0 %v1360
  %v1399 = vpop.f32.mrb[0].mxu0
  %v1400 = vadd.f32 %v1344, %v1399
  %v1401 = vpop.f32.mrb[0].mxu0
  %v1402 = vpop.f32.mrb[0].mxu0
  %v1403 = vadd.f32 %v1344, %v1402
  %v1404 = vpop.f32.mrb[0].mxu0
  %1405 = vmatprep.mubr.bf16.mxu0 0
  %1406 = vmatmul.mubr.bf16.gmra.mrb[0].mxu0 %v1363
  %v1407 = vpop.f32.mrb[0].mxu0
  %v1408 = vadd.f32 %v1344, %v1407
  %v1409 = vpop.f32.mrb[0].mxu0
  %v1410 = vpop.f32.mrb[0].mxu0
  %v1411 = vadd.f32 %v1344, %v1410
  %v1412 = vpop.f32.mrb[0].mxu0
  %1413 = vdwg.mxu0
  %vm1414 = vcmp.ge.f32.partialorder %v1400, 0.0
  %vm1415 = vcmp.ge.f32.partialorder %v1403, 0.0
  %vm1416 = vcmp.ge.f32.partialorder %v1408, 0.0
  %vm1417 = vcmp.ge.f32.partialorder %v1411, 0.0
  %v1418 = vmul.f32 %v1400, 0.1
  %v1419 = vmul.f32 %v1403, 0.1
  %v1420 = vmul.f32 %v1408, 0.1
  %v1421 = vmul.f32 %v1411, 0.1
  %v1422 = vsel %vm1414, %v1400, %v1418
  %v1423 = vsel %vm1415, %v1403, %v1419
  %v1424 = vsel %vm1416, %v1408, %v1420
  %v1425 = vsel %vm1417, %v1411, %v1421
  %1426 = vst [vmem:[%s5] sm:$0xff] %v1422
  %1427 = vst [vmem:[%s5 + $0x8] sm:$0xff] %v1423
  %1428 = vst [vmem:[%s5 + $0x10] sm:$0xff] %v1424
  %1429 = vst [vmem:[%s5 + $0x18] sm:$0xff] %v1425
  // Predicated region
  $region22: #{unet_decoder.18} parent=0 // pred_check
    _
  $region23: #{unet_decoder.18} parent=0 // pred_check_branch
    %1431 = sbr.rel (0) target = $region25
  $region24: #{unet_decoder.18} parent=0 // pred_region
    _
  $region25: #{unet_decoder.18} parent=0 // pred_fallthru
    _
  // Predicated region
  $region26: #{unet_decoder.18} parent=0 // pred_check
    _
  $region27: #{unet_decoder.18} parent=0 // pred_check_branch
    %1433 = sbr.rel (0) target = $region29
  $region28: #{unet_decoder.18} parent=0 // pred_region
    _
  $region29: #{unet_decoder.18} parent=0 // pred_fallthru
    _

// kernel: unet_decoder.19
$region0: #{unet_decoder.19}
  #allocation0 [shape = 'u32[]', space=smem, size = 0x4, offset = 0x4, fixed_abs, tag = 'smem constant byte address 0x4 - core index']
  #allocation1 [shape = 'u32[144,128]{1,0:T(1,128)}', space=vmem, size = 0x12000, scoped, tag = 'internal scratch']
  %s0 = inlined_call_operand.vmem [shape: bf16[128,1600], index: 0, kind: input, shape index: {}]
  %s1 = inlined_call_operand.vmem [shape: bf16[1600,32], index: 1, kind: input, shape index: {}]
  %s2 = inlined_call_operand.vmem [shape: f32[128,32], index: 2, kind: input, shape index: {}]
  %s3 = inlined_call_operand.vmem [shape: bf16[32,128], index: 3, kind: input, shape index: {}]
  %s4 = inlined_call_operand.vmem [shape: f32[1,128], index: 4, kind: input, shape index: {}]
  %s5 = inlined_call_operand.vmem [shape: f32[128,128], index: 5, kind: output, shape index: {}]
  %s6 = sld [smem:[#allocation0]]
  $region30: #{unet_decoder.19} parent=0
    _
  %s8 = ssub.s32 1, %s6
  %s9 = scalar_select 0, %s8, %s6
  // Predicated region
  $region2: #{unet_decoder.19} parent=0 // pred_check
    _
  $region3: #{unet_decoder.19} parent=0 // pred_check_branch
    %11 = sbr.rel (0) target = $region5
  $region4: #{unet_decoder.19} parent=0 // pred_region
    _
  $region5: #{unet_decoder.19} parent=0 // pred_fallthru
    _
  // Predicated region
  $region6: #{unet_decoder.19} parent=0 // pred_check
    _
  $region7: #{unet_decoder.19} parent=0 // pred_check_branch
    %13 = sbr.rel (0) target = $region9
  $region8: #{unet_decoder.19} parent=0 // pred_region
    _
  $region9: #{unet_decoder.19} parent=0 // pred_fallthru
    _
  // Predicated region
  $region10: #{unet_decoder.19} parent=0 // pred_check
    _
  $region11: #{unet_decoder.19} parent=0 // pred_check_branch
    %15 = sbr.rel (0) target = $region13
  $region12: #{unet_decoder.19} parent=0 // pred_region
    _
  $region13: #{unet_decoder.19} parent=0 // pred_fallthru
    _
  // Predicated region
  $region14: #{unet_decoder.19} parent=0 // pred_check
    _
  $region15: #{unet_decoder.19} parent=0 // pred_check_branch
    %17 = sbr.rel (0) target = $region17
  $region16: #{unet_decoder.19} parent=0 // pred_region
    _
  $region17: #{unet_decoder.19} parent=0 // pred_fallthru
    _
  // Predicated region
  $region18: #{unet_decoder.19} parent=0 // pred_check
    _
  $region19: #{unet_decoder.19} parent=0 // pred_check_branch
    %19 = sbr.rel (0) target = $region21
  $region20: #{unet_decoder.19} parent=0 // pred_region
    _
  $region21: #{unet_decoder.19} parent=0 // pred_fallthru
    _
  %v21 = vld [vmem:[%s0] sm:$0xff]
  %v22 = vld [vmem:[%s0 + $0x8] sm:$0xff]
  %v23 = vld [vmem:[%s0 + $0x10] sm:$0xff]
  %v24 = vld [vmem:[%s0 + $0x18] sm:$0xff]
  %v25 = vld [vmem:[%s0 + $0x20] sm:$0xff]
  %v26 = vld [vmem:[%s0 + $0x28] sm:$0xff]
  %v27 = vld [vmem:[%s0 + $0x30] sm:$0xf]
  %v28 = vld [vmem:[%s0 + $0x34] sm:$0xff]
  %v29 = vld [vmem:[%s0 + $0x3c] sm:$0xff]
  %v30 = vld [vmem:[%s0 + $0x44] sm:$0xff]
  %v31 = vld [vmem:[%s0 + $0x4c] sm:$0xff]
  %v32 = vld [vmem:[%s0 + $0x54] sm:$0xff]
  %v33 = vld [vmem:[%s0 + $0x5c] sm:$0xff]
  %v34 = vld [vmem:[%s0 + $0x64] sm:$0xf]
  %v35 = vld [vmem:[%s0 + $0x68] sm:$0xff]
  %v36 = vld [vmem:[%s0 + $0x70] sm:$0xff]
  %v37 = vld [vmem:[%s0 + $0x78] sm:$0xff]
  %v38 = vld [vmem:[%s0 + $0x80] sm:$0xff]
  %v39 = vld [vmem:[%s0 + $0x88] sm:$0xff]
  %v40 = vld [vmem:[%s0 + $0x90] sm:$0xff]
  %v41 = vld [vmem:[%s0 + $0x98] sm:$0xf]
  %v42 = vld [vmem:[%s0 + $0x9c] sm:$0xff]
  %v43 = vld [vmem:[%s0 + $0xa4] sm:$0xff]
  %v44 = vld [vmem:[%s0 + $0xac] sm:$0xff]
  %v45 = vld [vmem:[%s0 + $0xb4] sm:$0xff]
  %v46 = vld [vmem:[%s0 + $0xbc] sm:$0xff]
  %v47 = vld [vmem:[%s0 + $0xc4] sm:$0xff]
  %v48 = vld [vmem:[%s0 + $0xcc] sm:$0xf]
  %v49 = vld [vmem:[%s0 + $0xd0] sm:$0xff]
  %v50 = vld [vmem:[%s0 + $0xd8] sm:$0xff]
  %v51 = vld [vmem:[%s0 + $0xe0] sm:$0xff]
  %v52 = vld [vmem:[%s0 + $0xe8] sm:$0xff]
  %v53 = vld [vmem:[%s0 + $0xf0] sm:$0xff]
  %v54 = vld [vmem:[%s0 + $0xf8] sm:$0xff]
  %v55 = vld [vmem:[%s0 + $0x100] sm:$0xf]
  %v56 = vld [vmem:[%s0 + $0x104] sm:$0xff]
  %v57 = vld [vmem:[%s0 + $0x10c] sm:$0xff]
  %v58 = vld [vmem:[%s0 + $0x114] sm:$0xff]
  %v59 = vld [vmem:[%s0 + $0x11c] sm:$0xff]
  %v60 = vld [vmem:[%s0 + $0x124] sm:$0xff]
  %v61 = vld [vmem:[%s0 + $0x12c] sm:$0xff]
  %v62 = vld [vmem:[%s0 + $0x134] sm:$0xf]
  %v63 = vld [vmem:[%s0 + $0x138] sm:$0xff]
  %v64 = vld [vmem:[%s0 + $0x140] sm:$0xff]
  %v65 = vld [vmem:[%s0 + $0x148] sm:$0xff]
  %v66 = vld [vmem:[%s0 + $0x150] sm:$0xff]
  %v67 = vld [vmem:[%s0 + $0x158] sm:$0xff]
  %v68 = vld [vmem:[%s0 + $0x160] sm:$0xff]
  %v69 = vld [vmem:[%s0 + $0x168] sm:$0xf]
  %v70 = vld [vmem:[%s0 + $0x16c] sm:$0xff]
  %v71 = vld [vmem:[%s0 + $0x174] sm:$0xff]
  %v72 = vld [vmem:[%s0 + $0x17c] sm:$0xff]
  %v73 = vld [vmem:[%s0 + $0x184] sm:$0xff]
  %v74 = vld [vmem:[%s0 + $0x18c] sm:$0xff]
  %v75 = vld [vmem:[%s0 + $0x194] sm:$0xff]
  %v76 = vld [vmem:[%s0 + $0x19c] sm:$0xf]
  %v77 = vld [vmem:[%s0 + $0x1a0] sm:$0xff]
  %v78 = vld [vmem:[%s0 + $0x1a8] sm:$0xff]
  %v79 = vld [vmem:[%s0 + $0x1b0] sm:$0xff]
  %v80 = vld [vmem:[%s0 + $0x1b8] sm:$0xff]
  %v81 = vld [vmem:[%s0 + $0x1c0] sm:$0xff]
  %v82 = vld [vmem:[%s0 + $0x1c8] sm:$0xff]
  %v83 = vld [vmem:[%s0 + $0x1d0] sm:$0xf]
  %v84 = vld [vmem:[%s0 + $0x1d4] sm:$0xff]
  %v85 = vld [vmem:[%s0 + $0x1dc] sm:$0xff]
  %v86 = vld [vmem:[%s0 + $0x1e4] sm:$0xff]
  %v87 = vld [vmem:[%s0 + $0x1ec] sm:$0xff]
  %v88 = vld [vmem:[%s0 + $0x1f4] sm:$0xff]
  %v89 = vld [vmem:[%s0 + $0x1fc] sm:$0xff]
  %v90 = vld [vmem:[%s0 + $0x204] sm:$0xf]
  %v91 = vld [vmem:[%s0 + $0x208] sm:$0xff]
  %v92 = vld [vmem:[%s0 + $0x210] sm:$0xff]
  %v93 = vld [vmem:[%s0 + $0x218] sm:$0xff]
  %v94 = vld [vmem:[%s0 + $0x220] sm:$0xff]
  %v95 = vld [vmem:[%s0 + $0x228] sm:$0xff]
  %v96 = vld [vmem:[%s0 + $0x230] sm:$0xff]
  %v97 = vld [vmem:[%s0 + $0x238] sm:$0xf]
  %v98 = vld [vmem:[%s0 + $0x23c] sm:$0xff]
  %v99 = vld [vmem:[%s0 + $0x244] sm:$0xff]
  %v100 = vld [vmem:[%s0 + $0x24c] sm:$0xff]
  %v101 = vld [vmem:[%s0 + $0x254] sm:$0xff]
  %v102 = vld [vmem:[%s0 + $0x25c] sm:$0xff]
  %v103 = vld [vmem:[%s0 + $0x264] sm:$0xff]
  %v104 = vld [vmem:[%s0 + $0x26c] sm:$0xf]
  %v105 = vld [vmem:[%s0 + $0x270] sm:$0xff]
  %v106 = vld [vmem:[%s0 + $0x278] sm:$0xff]
  %v107 = vld [vmem:[%s0 + $0x280] sm:$0xff]
  %v108 = vld [vmem:[%s0 + $0x288] sm:$0xff]
  %v109 = vld [vmem:[%s0 + $0x290] sm:$0xff]
  %v110 = vld [vmem:[%s0 + $0x298] sm:$0xff]
  %v111 = vld [vmem:[%s0 + $0x2a0] sm:$0xf]
  %v112 = vld [vmem:[%s0 + $0x2a4] sm:$0xff]
  %v113 = vld [vmem:[%s0 + $0x2ac] sm:$0xff]
  %v114 = vld [vmem:[%s0 + $0x2b4] sm:$0xff]
  %v115 = vld [vmem:[%s0 + $0x2bc] sm:$0xff]
  %v116 = vld [vmem:[%s0 + $0x2c4] sm:$0xff]
  %v117 = vld [vmem:[%s0 + $0x2cc] sm:$0xff]
  %v118 = vld [vmem:[%s0 + $0x2d4] sm:$0xf]
  %v119 = vld [vmem:[%s0 + $0x2d8] sm:$0xff]
  %v120 = vld [vmem:[%s0 + $0x2e0] sm:$0xff]
  %v121 = vld [vmem:[%s0 + $0x2e8] sm:$0xff]
  %v122 = vld [vmem:[%s0 + $0x2f0] sm:$0xff]
  %v123 = vld [vmem:[%s0 + $0x2f8] sm:$0xff]
  %v124 = vld [vmem:[%s0 + $0x300] sm:$0xff]
  %v125 = vld [vmem:[%s0 + $0x308] sm:$0xf]
  %v126 = vld [vmem:[%s0 + $0x30c] sm:$0xff]
  %v127 = vld [vmem:[%s0 + $0x314] sm:$0xff]
  %v128 = vld [vmem:[%s0 + $0x31c] sm:$0xff]
  %v129 = vld [vmem:[%s0 + $0x324] sm:$0xff]
  %v130 = vld [vmem:[%s0 + $0x32c] sm:$0xff]
  %v131 = vld [vmem:[%s0 + $0x334] sm:$0xff]
  %v132 = vld [vmem:[%s0 + $0x33c] sm:$0xf]
  %v133 = vld [vmem:[%s1] sm:$0xf]
  %v134 = vld [vmem:[%s1 + $0x4] sm:$0xf]
  %v135 = vld [vmem:[%s1 + $0x8] sm:$0xf]
  %v136 = vld [vmem:[%s1 + $0xc] sm:$0xf]
  %v137 = vld [vmem:[%s1 + $0x10] sm:$0xf]
  %v138 = vld [vmem:[%s1 + $0x14] sm:$0xf]
  %v139 = vld [vmem:[%s1 + $0x18] sm:$0xf]
  %v140 = vld [vmem:[%s1 + $0x1c] sm:$0xf]
  %v141 = vld [vmem:[%s1 + $0x20] sm:$0xf]
  %v142 = vld [vmem:[%s1 + $0x24] sm:$0xf]
  %v143 = vld [vmem:[%s1 + $0x28] sm:$0xf]
  %v144 = vld [vmem:[%s1 + $0x2c] sm:$0xf]
  %v145 = vld [vmem:[%s1 + $0x30] sm:$0xf]
  %v146 = vld [vmem:[%s1 + $0x34] sm:$0xf]
  %v147 = vld [vmem:[%s1 + $0x38] sm:$0xf]
  %v148 = vld [vmem:[%s1 + $0x3c] sm:$0xf]
  %v149 = vld [vmem:[%s1 + $0x40] sm:$0xf]
  %v150 = vld [vmem:[%s1 + $0x44] sm:$0xf]
  %v151 = vld [vmem:[%s1 + $0x48] sm:$0xf]
  %v152 = vld [vmem:[%s1 + $0x4c] sm:$0xf]
  %v153 = vld [vmem:[%s1 + $0x50] sm:$0xf]
  %v154 = vld [vmem:[%s1 + $0x54] sm:$0xf]
  %v155 = vld [vmem:[%s1 + $0x58] sm:$0xf]
  %v156 = vld [vmem:[%s1 + $0x5c] sm:$0xf]
  %v157 = vld [vmem:[%s1 + $0x60] sm:$0xf]
  %v158 = vld [vmem:[%s1 + $0x64] sm:$0xf]
  %v159 = vld [vmem:[%s1 + $0x68] sm:$0xf]
  %v160 = vld [vmem:[%s1 + $0x6c] sm:$0xf]
  %v161 = vld [vmem:[%s1 + $0x70] sm:$0xf]
  %v162 = vld [vmem:[%s1 + $0x74] sm:$0xf]
  %v163 = vld [vmem:[%s1 + $0x78] sm:$0xf]
  %v164 = vld [vmem:[%s1 + $0x7c] sm:$0xf]
  %v165 = vld [vmem:[%s1 + $0x80] sm:$0xf]
  %v166 = vld [vmem:[%s1 + $0x84] sm:$0xf]
  %v167 = vld [vmem:[%s1 + $0x88] sm:$0xf]
  %v168 = vld [vmem:[%s1 + $0x8c] sm:$0xf]
  %v169 = vld [vmem:[%s1 + $0x90] sm:$0xf]
  %v170 = vld [vmem:[%s1 + $0x94] sm:$0xf]
  %v171 = vld [vmem:[%s1 + $0x98] sm:$0xf]
  %v172 = vld [vmem:[%s1 + $0x9c] sm:$0xf]
  %v173 = vld [vmem:[%s1 + $0xa0] sm:$0xf]
  %v174 = vld [vmem:[%s1 + $0xa4] sm:$0xf]
  %v175 = vld [vmem:[%s1 + $0xa8] sm:$0xf]
  %v176 = vld [vmem:[%s1 + $0xac] sm:$0xf]
  %v177 = vld [vmem:[%s1 + $0xb0] sm:$0xf]
  %v178 = vld [vmem:[%s1 + $0xb4] sm:$0xf]
  %v179 = vld [vmem:[%s1 + $0xb8] sm:$0xf]
  %v180 = vld [vmem:[%s1 + $0xbc] sm:$0xf]
  %v181 = vld [vmem:[%s1 + $0xc0] sm:$0xf]
  %v182 = vld [vmem:[%s1 + $0xc4] sm:$0xf]
  %v183 = vld [vmem:[%s1 + $0xc8] sm:$0xf]
  %v184 = vld [vmem:[%s1 + $0xcc] sm:$0xf]
  %v185 = vld [vmem:[%s1 + $0xd0] sm:$0xf]
  %v186 = vld [vmem:[%s1 + $0xd4] sm:$0xf]
  %v187 = vld [vmem:[%s1 + $0xd8] sm:$0xf]
  %v188 = vld [vmem:[%s1 + $0xdc] sm:$0xf]
  %v189 = vld [vmem:[%s1 + $0xe0] sm:$0xf]
  %v190 = vld [vmem:[%s1 + $0xe4] sm:$0xf]
  %v191 = vld [vmem:[%s1 + $0xe8] sm:$0xf]
  %v192 = vld [vmem:[%s1 + $0xec] sm:$0xf]
  %v193 = vld [vmem:[%s1 + $0xf0] sm:$0xf]
  %v194 = vld [vmem:[%s1 + $0xf4] sm:$0xf]
  %v195 = vld [vmem:[%s1 + $0xf8] sm:$0xf]
  %v196 = vld [vmem:[%s1 + $0xfc] sm:$0xf]
  %v197 = vld [vmem:[%s1 + $0x100] sm:$0xf]
  %v198 = vld [vmem:[%s1 + $0x104] sm:$0xf]
  %v199 = vld [vmem:[%s1 + $0x108] sm:$0xf]
  %v200 = vld [vmem:[%s1 + $0x10c] sm:$0xf]
  %v201 = vld [vmem:[%s1 + $0x110] sm:$0xf]
  %v202 = vld [vmem:[%s1 + $0x114] sm:$0xf]
  %v203 = vld [vmem:[%s1 + $0x118] sm:$0xf]
  %v204 = vld [vmem:[%s1 + $0x11c] sm:$0xf]
  %v205 = vld [vmem:[%s1 + $0x120] sm:$0xf]
  %v206 = vld [vmem:[%s1 + $0x124] sm:$0xf]
  %v207 = vld [vmem:[%s1 + $0x128] sm:$0xf]
  %v208 = vld [vmem:[%s1 + $0x12c] sm:$0xf]
  %v209 = vld [vmem:[%s1 + $0x130] sm:$0xf]
  %v210 = vld [vmem:[%s1 + $0x134] sm:$0xf]
  %v211 = vld [vmem:[%s1 + $0x138] sm:$0xf]
  %v212 = vld [vmem:[%s1 + $0x13c] sm:$0xf]
  %v213 = vld [vmem:[%s1 + $0x140] sm:$0xf]
  %v214 = vld [vmem:[%s1 + $0x144] sm:$0xf]
  %v215 = vld [vmem:[%s1 + $0x148] sm:$0xf]
  %v216 = vld [vmem:[%s1 + $0x14c] sm:$0xf]
  %v217 = vld [vmem:[%s1 + $0x150] sm:$0xf]
  %v218 = vld [vmem:[%s1 + $0x154] sm:$0xf]
  %v219 = vld [vmem:[%s1 + $0x158] sm:$0xf]
  %v220 = vld [vmem:[%s1 + $0x15c] sm:$0xf]
  %v221 = vld [vmem:[%s1 + $0x160] sm:$0xf]
  %v222 = vld [vmem:[%s1 + $0x164] sm:$0xf]
  %v223 = vld [vmem:[%s1 + $0x168] sm:$0xf]
  %v224 = vld [vmem:[%s1 + $0x16c] sm:$0xf]
  %v225 = vld [vmem:[%s1 + $0x170] sm:$0xf]
  %v226 = vld [vmem:[%s1 + $0x174] sm:$0xf]
  %v227 = vld [vmem:[%s1 + $0x178] sm:$0xf]
  %v228 = vld [vmem:[%s1 + $0x17c] sm:$0xf]
  %v229 = vld [vmem:[%s1 + $0x180] sm:$0xf]
  %v230 = vld [vmem:[%s1 + $0x184] sm:$0xf]
  %v231 = vld [vmem:[%s1 + $0x188] sm:$0xf]
  %v232 = vld [vmem:[%s1 + $0x18c] sm:$0xf]
  %v233 = vld [vmem:[%s1 + $0x190] sm:$0xf]
  %v234 = vld [vmem:[%s1 + $0x194] sm:$0xf]
  %v235 = vld [vmem:[%s1 + $0x198] sm:$0xf]
  %v236 = vld [vmem:[%s1 + $0x19c] sm:$0xf]
  %v237 = vld [vmem:[%s1 + $0x1a0] sm:$0xf]
  %v238 = vld [vmem:[%s1 + $0x1a4] sm:$0xf]
  %v239 = vld [vmem:[%s1 + $0x1a8] sm:$0xf]
  %v240 = vld [vmem:[%s1 + $0x1ac] sm:$0xf]
  %v241 = vld [vmem:[%s1 + $0x1b0] sm:$0xf]
  %v242 = vld [vmem:[%s1 + $0x1b4] sm:$0xf]
  %v243 = vld [vmem:[%s1 + $0x1b8] sm:$0xf]
  %v244 = vld [vmem:[%s1 + $0x1bc] sm:$0xf]
  %v245 = vld [vmem:[%s1 + $0x1c0] sm:$0xf]
  %v246 = vld [vmem:[%s1 + $0x1c4] sm:$0xf]
  %v247 = vld [vmem:[%s1 + $0x1c8] sm:$0xf]
  %v248 = vld [vmem:[%s1 + $0x1cc] sm:$0xf]
  %v249 = vld [vmem:[%s1 + $0x1d0] sm:$0xf]
  %v250 = vld [vmem:[%s1 + $0x1d4] sm:$0xf]
  %v251 = vld [vmem:[%s1 + $0x1d8] sm:$0xf]
  %v252 = vld [vmem:[%s1 + $0x1dc] sm:$0xf]
  %v253 = vld [vmem:[%s1 + $0x1e0] sm:$0xf]
  %v254 = vld [vmem:[%s1 + $0x1e4] sm:$0xf]
  %v255 = vld [vmem:[%s1 + $0x1e8] sm:$0xf]
  %v256 = vld [vmem:[%s1 + $0x1ec] sm:$0xf]
  %v257 = vld [vmem:[%s1 + $0x1f0] sm:$0xf]
  %v258 = vld [vmem:[%s1 + $0x1f4] sm:$0xf]
  %v259 = vld [vmem:[%s1 + $0x1f8] sm:$0xf]
  %v260 = vld [vmem:[%s1 + $0x1fc] sm:$0xf]
  %v261 = vld [vmem:[%s1 + $0x200] sm:$0xf]
  %v262 = vld [vmem:[%s1 + $0x204] sm:$0xf]
  %v263 = vld [vmem:[%s1 + $0x208] sm:$0xf]
  %v264 = vld [vmem:[%s1 + $0x20c] sm:$0xf]
  %v265 = vld [vmem:[%s1 + $0x210] sm:$0xf]
  %v266 = vld [vmem:[%s1 + $0x214] sm:$0xf]
  %v267 = vld [vmem:[%s1 + $0x218] sm:$0xf]
  %v268 = vld [vmem:[%s1 + $0x21c] sm:$0xf]
  %v269 = vld [vmem:[%s1 + $0x220] sm:$0xf]
  %v270 = vld [vmem:[%s1 + $0x224] sm:$0xf]
  %v271 = vld [vmem:[%s1 + $0x228] sm:$0xf]
  %v272 = vld [vmem:[%s1 + $0x22c] sm:$0xf]
  %v273 = vld [vmem:[%s1 + $0x230] sm:$0xf]
  %v274 = vld [vmem:[%s1 + $0x234] sm:$0xf]
  %v275 = vld [vmem:[%s1 + $0x238] sm:$0xf]
  %v276 = vld [vmem:[%s1 + $0x23c] sm:$0xf]
  %v277 = vld [vmem:[%s1 + $0x240] sm:$0xf]
  %v278 = vld [vmem:[%s1 + $0x244] sm:$0xf]
  %v279 = vld [vmem:[%s1 + $0x248] sm:$0xf]
  %v280 = vld [vmem:[%s1 + $0x24c] sm:$0xf]
  %v281 = vld [vmem:[%s1 + $0x250] sm:$0xf]
  %v282 = vld [vmem:[%s1 + $0x254] sm:$0xf]
  %v283 = vld [vmem:[%s1 + $0x258] sm:$0xf]
  %v284 = vld [vmem:[%s1 + $0x25c] sm:$0xf]
  %v285 = vld [vmem:[%s1 + $0x260] sm:$0xf]
  %v286 = vld [vmem:[%s1 + $0x264] sm:$0xf]
  %v287 = vld [vmem:[%s1 + $0x268] sm:$0xf]
  %v288 = vld [vmem:[%s1 + $0x26c] sm:$0xf]
  %v289 = vld [vmem:[%s1 + $0x270] sm:$0xf]
  %v290 = vld [vmem:[%s1 + $0x274] sm:$0xf]
  %v291 = vld [vmem:[%s1 + $0x278] sm:$0xf]
  %v292 = vld [vmem:[%s1 + $0x27c] sm:$0xf]
  %v293 = vld [vmem:[%s1 + $0x280] sm:$0xf]
  %v294 = vld [vmem:[%s1 + $0x284] sm:$0xf]
  %v295 = vld [vmem:[%s1 + $0x288] sm:$0xf]
  %v296 = vld [vmem:[%s1 + $0x28c] sm:$0xf]
  %v297 = vld [vmem:[%s1 + $0x290] sm:$0xf]
  %v298 = vld [vmem:[%s1 + $0x294] sm:$0xf]
  %v299 = vld [vmem:[%s1 + $0x298] sm:$0xf]
  %v300 = vld [vmem:[%s1 + $0x29c] sm:$0xf]
  %v301 = vld [vmem:[%s1 + $0x2a0] sm:$0xf]
  %v302 = vld [vmem:[%s1 + $0x2a4] sm:$0xf]
  %v303 = vld [vmem:[%s1 + $0x2a8] sm:$0xf]
  %v304 = vld [vmem:[%s1 + $0x2ac] sm:$0xf]
  %v305 = vld [vmem:[%s1 + $0x2b0] sm:$0xf]
  %v306 = vld [vmem:[%s1 + $0x2b4] sm:$0xf]
  %v307 = vld [vmem:[%s1 + $0x2b8] sm:$0xf]
  %v308 = vld [vmem:[%s1 + $0x2bc] sm:$0xf]
  %v309 = vld [vmem:[%s1 + $0x2c0] sm:$0xf]
  %v310 = vld [vmem:[%s1 + $0x2c4] sm:$0xf]
  %v311 = vld [vmem:[%s1 + $0x2c8] sm:$0xf]
  %v312 = vld [vmem:[%s1 + $0x2cc] sm:$0xf]
  %v313 = vld [vmem:[%s1 + $0x2d0] sm:$0xf]
  %v314 = vld [vmem:[%s1 + $0x2d4] sm:$0xf]
  %v315 = vld [vmem:[%s1 + $0x2d8] sm:$0xf]
  %v316 = vld [vmem:[%s1 + $0x2dc] sm:$0xf]
  %v317 = vld [vmem:[%s1 + $0x2e0] sm:$0xf]
  %v318 = vld [vmem:[%s1 + $0x2e4] sm:$0xf]
  %v319 = vld [vmem:[%s1 + $0x2e8] sm:$0xf]
  %v320 = vld [vmem:[%s1 + $0x2ec] sm:$0xf]
  %v321 = vld [vmem:[%s1 + $0x2f0] sm:$0xf]
  %v322 = vld [vmem:[%s1 + $0x2f4] sm:$0xf]
  %v323 = vld [vmem:[%s1 + $0x2f8] sm:$0xf]
  %v324 = vld [vmem:[%s1 + $0x2fc] sm:$0xf]
  %v325 = vld [vmem:[%s1 + $0x300] sm:$0xf]
  %v326 = vld [vmem:[%s1 + $0x304] sm:$0xf]
  %v327 = vld [vmem:[%s1 + $0x308] sm:$0xf]
  %v328 = vld [vmem:[%s1 + $0x30c] sm:$0xf]
  %v329 = vld [vmem:[%s1 + $0x310] sm:$0xf]
  %v330 = vld [vmem:[%s1 + $0x314] sm:$0xf]
  %v331 = vld [vmem:[%s1 + $0x318] sm:$0xf]
  %v332 = vld [vmem:[%s1 + $0x31c] sm:$0xf]
  %v333 = vld [vmem:[%s2] sm:$0xff]
  %v334 = vld [vmem:[%s2 + $0x8] sm:$0xff]
  %v335 = vld [vmem:[%s2 + $0x10] sm:$0xff]
  %v336 = vld [vmem:[%s2 + $0x18] sm:$0xff]
  %v337 = vld [vmem:[%s2 + $0x20] sm:$0xff]
  %v338 = vld [vmem:[%s2 + $0x28] sm:$0xff]
  %v339 = vld [vmem:[%s2 + $0x30] sm:$0xff]
  %v340 = vld [vmem:[%s2 + $0x38] sm:$0xff]
  %v341 = vld [vmem:[%s2 + $0x40] sm:$0xff]
  %v342 = vld [vmem:[%s2 + $0x48] sm:$0xff]
  %v343 = vld [vmem:[%s2 + $0x50] sm:$0xff]
  %v344 = vld [vmem:[%s2 + $0x58] sm:$0xff]
  %v345 = vld [vmem:[%s2 + $0x60] sm:$0xff]
  %v346 = vld [vmem:[%s2 + $0x68] sm:$0xff]
  %v347 = vld [vmem:[%s2 + $0x70] sm:$0xff]
  %v348 = vld [vmem:[%s2 + $0x78] sm:$0xff]
  %v461 = vunpack.c.l.b16 %v21
  %v462 = vunpack.c.h.b16 %v21
  %v463 = vunpack.c.l.b16 %v22
  %v464 = vunpack.c.h.b16 %v22
  %v465 = vunpack.c.l.b16 %v23
  %v466 = vunpack.c.h.b16 %v23
  %v467 = vunpack.c.l.b16 %v24
  %v468 = vunpack.c.h.b16 %v24
  %v469 = vunpack.c.l.b16 %v25
  %v470 = vunpack.c.h.b16 %v25
  %v471 = vunpack.c.l.b16 %v26
  %v472 = vunpack.c.h.b16 %v26
  %v473 = vunpack.c.l.b16 %v27
  %v474 = vunpack.c.l.b16 %v28
  %v475 = vunpack.c.h.b16 %v28
  %v476 = vunpack.c.l.b16 %v29
  %v477 = vunpack.c.h.b16 %v29
  %v478 = vunpack.c.l.b16 %v30
  %v479 = vunpack.c.h.b16 %v30
  %v480 = vunpack.c.l.b16 %v31
  %v481 = vunpack.c.h.b16 %v31
  %v482 = vunpack.c.l.b16 %v32
  %v483 = vunpack.c.h.b16 %v32
  %v484 = vunpack.c.l.b16 %v33
  %v485 = vunpack.c.h.b16 %v33
  %v486 = vunpack.c.l.b16 %v34
  %v487 = vunpack.c.l.b16 %v35
  %v488 = vunpack.c.h.b16 %v35
  %v489 = vunpack.c.l.b16 %v36
  %v490 = vunpack.c.h.b16 %v36
  %v491 = vunpack.c.l.b16 %v37
  %v492 = vunpack.c.h.b16 %v37
  %v493 = vunpack.c.l.b16 %v38
  %v494 = vunpack.c.h.b16 %v38
  %v495 = vunpack.c.l.b16 %v39
  %v496 = vunpack.c.h.b16 %v39
  %v497 = vunpack.c.l.b16 %v40
  %v498 = vunpack.c.h.b16 %v40
  %v499 = vunpack.c.l.b16 %v41
  %v500 = vunpack.c.l.b16 %v42
  %v501 = vunpack.c.h.b16 %v42
  %v502 = vunpack.c.l.b16 %v43
  %v503 = vunpack.c.h.b16 %v43
  %v504 = vunpack.c.l.b16 %v44
  %v505 = vunpack.c.h.b16 %v44
  %v506 = vunpack.c.l.b16 %v45
  %v507 = vunpack.c.h.b16 %v45
  %v508 = vunpack.c.l.b16 %v46
  %v509 = vunpack.c.h.b16 %v46
  %v510 = vunpack.c.l.b16 %v47
  %v511 = vunpack.c.h.b16 %v47
  %v512 = vunpack.c.l.b16 %v48
  %v513 = vunpack.c.l.b16 %v49
  %v514 = vunpack.c.h.b16 %v49
  %v515 = vunpack.c.l.b16 %v50
  %v516 = vunpack.c.h.b16 %v50
  %v517 = vunpack.c.l.b16 %v51
  %v518 = vunpack.c.h.b16 %v51
  %v519 = vunpack.c.l.b16 %v52
  %v520 = vunpack.c.h.b16 %v52
  %v521 = vunpack.c.l.b16 %v53
  %v522 = vunpack.c.h.b16 %v53
  %v523 = vunpack.c.l.b16 %v54
  %v524 = vunpack.c.h.b16 %v54
  %v525 = vunpack.c.l.b16 %v55
  %v526 = vunpack.c.l.b16 %v56
  %v527 = vunpack.c.h.b16 %v56
  %v528 = vunpack.c.l.b16 %v57
  %v529 = vunpack.c.h.b16 %v57
  %v530 = vunpack.c.l.b16 %v58
  %v531 = vunpack.c.h.b16 %v58
  %v532 = vunpack.c.l.b16 %v59
  %v533 = vunpack.c.h.b16 %v59
  %v534 = vunpack.c.l.b16 %v60
  %v535 = vunpack.c.h.b16 %v60
  %v536 = vunpack.c.l.b16 %v61
  %v537 = vunpack.c.h.b16 %v61
  %v538 = vunpack.c.l.b16 %v62
  %v539 = vunpack.c.l.b16 %v63
  %v540 = vunpack.c.h.b16 %v63
  %v541 = vunpack.c.l.b16 %v64
  %v542 = vunpack.c.h.b16 %v64
  %v543 = vunpack.c.l.b16 %v65
  %v544 = vunpack.c.h.b16 %v65
  %v545 = vunpack.c.l.b16 %v66
  %v546 = vunpack.c.h.b16 %v66
  %v547 = vunpack.c.l.b16 %v67
  %v548 = vunpack.c.h.b16 %v67
  %v549 = vunpack.c.l.b16 %v68
  %v550 = vunpack.c.h.b16 %v68
  %v551 = vunpack.c.l.b16 %v69
  %v552 = vunpack.c.l.b16 %v70
  %v553 = vunpack.c.h.b16 %v70
  %v554 = vunpack.c.l.b16 %v71
  %v555 = vunpack.c.h.b16 %v71
  %v556 = vunpack.c.l.b16 %v72
  %v557 = vunpack.c.h.b16 %v72
  %v558 = vunpack.c.l.b16 %v73
  %v559 = vunpack.c.h.b16 %v73
  %v560 = vunpack.c.l.b16 %v74
  %v561 = vunpack.c.h.b16 %v74
  %v562 = vunpack.c.l.b16 %v75
  %v563 = vunpack.c.h.b16 %v75
  %v564 = vunpack.c.l.b16 %v76
  %v565 = vunpack.c.l.b16 %v77
  %v566 = vunpack.c.h.b16 %v77
  %v567 = vunpack.c.l.b16 %v78
  %v568 = vunpack.c.h.b16 %v78
  %v569 = vunpack.c.l.b16 %v79
  %v570 = vunpack.c.h.b16 %v79
  %v571 = vunpack.c.l.b16 %v80
  %v572 = vunpack.c.h.b16 %v80
  %v573 = vunpack.c.l.b16 %v81
  %v574 = vunpack.c.h.b16 %v81
  %v575 = vunpack.c.l.b16 %v82
  %v576 = vunpack.c.h.b16 %v82
  %v577 = vunpack.c.l.b16 %v83
  %v578 = vunpack.c.l.b16 %v84
  %v579 = vunpack.c.h.b16 %v84
  %v580 = vunpack.c.l.b16 %v85
  %v581 = vunpack.c.h.b16 %v85
  %v582 = vunpack.c.l.b16 %v86
  %v583 = vunpack.c.h.b16 %v86
  %v584 = vunpack.c.l.b16 %v87
  %v585 = vunpack.c.h.b16 %v87
  %v586 = vunpack.c.l.b16 %v88
  %v587 = vunpack.c.h.b16 %v88
  %v588 = vunpack.c.l.b16 %v89
  %v589 = vunpack.c.h.b16 %v89
  %v590 = vunpack.c.l.b16 %v90
  %v591 = vunpack.c.l.b16 %v91
  %v592 = vunpack.c.h.b16 %v91
  %v593 = vunpack.c.l.b16 %v92
  %v594 = vunpack.c.h.b16 %v92
  %v595 = vunpack.c.l.b16 %v93
  %v596 = vunpack.c.h.b16 %v93
  %v597 = vunpack.c.l.b16 %v94
  %v598 = vunpack.c.h.b16 %v94
  %v599 = vunpack.c.l.b16 %v95
  %v600 = vunpack.c.h.b16 %v95
  %v601 = vunpack.c.l.b16 %v96
  %v602 = vunpack.c.h.b16 %v96
  %v603 = vunpack.c.l.b16 %v97
  %v604 = vunpack.c.l.b16 %v98
  %v605 = vunpack.c.h.b16 %v98
  %v606 = vunpack.c.l.b16 %v99
  %v607 = vunpack.c.h.b16 %v99
  %v608 = vunpack.c.l.b16 %v100
  %v609 = vunpack.c.h.b16 %v100
  %v610 = vunpack.c.l.b16 %v101
  %v611 = vunpack.c.h.b16 %v101
  %v612 = vunpack.c.l.b16 %v102
  %v613 = vunpack.c.h.b16 %v102
  %v614 = vunpack.c.l.b16 %v103
  %v615 = vunpack.c.h.b16 %v103
  %v616 = vunpack.c.l.b16 %v104
  %v617 = vunpack.c.l.b16 %v105
  %v618 = vunpack.c.h.b16 %v105
  %v619 = vunpack.c.l.b16 %v106
  %v620 = vunpack.c.h.b16 %v106
  %v621 = vunpack.c.l.b16 %v107
  %v622 = vunpack.c.h.b16 %v107
  %v623 = vunpack.c.l.b16 %v108
  %v624 = vunpack.c.h.b16 %v108
  %v625 = vunpack.c.l.b16 %v109
  %v626 = vunpack.c.h.b16 %v109
  %v627 = vunpack.c.l.b16 %v110
  %v628 = vunpack.c.h.b16 %v110
  %v629 = vunpack.c.l.b16 %v111
  %v630 = vunpack.c.l.b16 %v112
  %v631 = vunpack.c.h.b16 %v112
  %v632 = vunpack.c.l.b16 %v113
  %v633 = vunpack.c.h.b16 %v113
  %v634 = vunpack.c.l.b16 %v114
  %v635 = vunpack.c.h.b16 %v114
  %v636 = vunpack.c.l.b16 %v115
  %v637 = vunpack.c.h.b16 %v115
  %v638 = vunpack.c.l.b16 %v116
  %v639 = vunpack.c.h.b16 %v116
  %v640 = vunpack.c.l.b16 %v117
  %v641 = vunpack.c.h.b16 %v117
  %v642 = vunpack.c.l.b16 %v118
  %v643 = vunpack.c.l.b16 %v119
  %v644 = vunpack.c.h.b16 %v119
  %v645 = vunpack.c.l.b16 %v120
  %v646 = vunpack.c.h.b16 %v120
  %v647 = vunpack.c.l.b16 %v121
  %v648 = vunpack.c.h.b16 %v121
  %v649 = vunpack.c.l.b16 %v122
  %v650 = vunpack.c.h.b16 %v122
  %v651 = vunpack.c.l.b16 %v123
  %v652 = vunpack.c.h.b16 %v123
  %v653 = vunpack.c.l.b16 %v124
  %v654 = vunpack.c.h.b16 %v124
  %v655 = vunpack.c.l.b16 %v125
  %v656 = vunpack.c.l.b16 %v126
  %v657 = vunpack.c.h.b16 %v126
  %v658 = vunpack.c.l.b16 %v127
  %v659 = vunpack.c.h.b16 %v127
  %v660 = vunpack.c.l.b16 %v128
  %v661 = vunpack.c.h.b16 %v128
  %v662 = vunpack.c.l.b16 %v129
  %v663 = vunpack.c.h.b16 %v129
  %v664 = vunpack.c.l.b16 %v130
  %v665 = vunpack.c.h.b16 %v130
  %v666 = vunpack.c.l.b16 %v131
  %v667 = vunpack.c.h.b16 %v131
  %v668 = vunpack.c.l.b16 %v132
  %v669 = vpack.c.b16 %v474, %v461
  %v670 = vpack.c.b16 %v475, %v462
  %v671 = vpack.c.b16 %v476, %v463
  %v672 = vpack.c.b16 %v477, %v464
  %v673 = vpack.c.b16 %v478, %v465
  %v674 = vpack.c.b16 %v479, %v466
  %v675 = vpack.c.b16 %v480, %v467
  %v676 = vpack.c.b16 %v481, %v468
  %v677 = vpack.c.b16 %v482, %v469
  %v678 = vpack.c.b16 %v483, %v470
  %v679 = vpack.c.b16 %v484, %v471
  %v680 = vpack.c.b16 %v485, %v472
  %v681 = vpack.c.b16 %v486, %v473
  %v682 = vpack.c.b16 %v500, %v487
  %v683 = vpack.c.b16 %v501, %v488
  %v684 = vpack.c.b16 %v502, %v489
  %v685 = vpack.c.b16 %v503, %v490
  %v686 = vpack.c.b16 %v504, %v491
  %v687 = vpack.c.b16 %v505, %v492
  %v688 = vpack.c.b16 %v506, %v493
  %v689 = vpack.c.b16 %v507, %v494
  %v690 = vpack.c.b16 %v508, %v495
  %v691 = vpack.c.b16 %v509, %v496
  %v692 = vpack.c.b16 %v510, %v497
  %v693 = vpack.c.b16 %v511, %v498
  %v694 = vpack.c.b16 %v512, %v499
  %v695 = vpack.c.b16 %v526, %v513
  %v696 = vpack.c.b16 %v527, %v514
  %v697 = vpack.c.b16 %v528, %v515
  %v698 = vpack.c.b16 %v529, %v516
  %v699 = vpack.c.b16 %v530, %v517
  %v700 = vpack.c.b16 %v531, %v518
  %v701 = vpack.c.b16 %v532, %v519
  %v702 = vpack.c.b16 %v533, %v520
  %v703 = vpack.c.b16 %v534, %v521
  %v704 = vpack.c.b16 %v535, %v522
  %v705 = vpack.c.b16 %v536, %v523
  %v706 = vpack.c.b16 %v537, %v524
  %v707 = vpack.c.b16 %v538, %v525
  %v708 = vpack.c.b16 %v552, %v539
  %v709 = vpack.c.b16 %v553, %v540
  %v710 = vpack.c.b16 %v554, %v541
  %v711 = vpack.c.b16 %v555, %v542
  %v712 = vpack.c.b16 %v556, %v543
  %v713 = vpack.c.b16 %v557, %v544
  %v714 = vpack.c.b16 %v558, %v545
  %v715 = vpack.c.b16 %v559, %v546
  %v716 = vpack.c.b16 %v560, %v547
  %v717 = vpack.c.b16 %v561, %v548
  %v718 = vpack.c.b16 %v562, %v549
  %v719 = vpack.c.b16 %v563, %v550
  %v720 = vpack.c.b16 %v564, %v551
  %v721 = vpack.c.b16 %v578, %v565
  %v722 = vpack.c.b16 %v579, %v566
  %v723 = vpack.c.b16 %v580, %v567
  %v724 = vpack.c.b16 %v581, %v568
  %v725 = vpack.c.b16 %v582, %v569
  %v726 = vpack.c.b16 %v583, %v570
  %v727 = vpack.c.b16 %v584, %v571
  %v728 = vpack.c.b16 %v585, %v572
  %v729 = vpack.c.b16 %v586, %v573
  %v730 = vpack.c.b16 %v587, %v574
  %v731 = vpack.c.b16 %v588, %v575
  %v732 = vpack.c.b16 %v589, %v576
  %v733 = vpack.c.b16 %v590, %v577
  %v734 = vpack.c.b16 %v604, %v591
  %v735 = vpack.c.b16 %v605, %v592
  %v736 = vpack.c.b16 %v606, %v593
  %v737 = vpack.c.b16 %v607, %v594
  %v738 = vpack.c.b16 %v608, %v595
  %v739 = vpack.c.b16 %v609, %v596
  %v740 = vpack.c.b16 %v610, %v597
  %v741 = vpack.c.b16 %v611, %v598
  %v742 = vpack.c.b16 %v612, %v599
  %v743 = vpack.c.b16 %v613, %v600
  %v744 = vpack.c.b16 %v614, %v601
  %v745 = vpack.c.b16 %v615, %v602
  %v746 = vpack.c.b16 %v616, %v603
  %v747 = vpack.c.b16 %v630, %v617
  %v748 = vpack.c.b16 %v631, %v618
  %v749 = vpack.c.b16 %v632, %v619
  %v750 = vpack.c.b16 %v633, %v620
  %v751 = vpack.c.b16 %v634, %v621
  %v752 = vpack.c.b16 %v635, %v622
  %v753 = vpack.c.b16 %v636, %v623
  %v754 = vpack.c.b16 %v637, %v624
  %v755 = vpack.c.b16 %v638, %v625
  %v756 = vpack.c.b16 %v639, %v626
  %v757 = vpack.c.b16 %v640, %v627
  %v758 = vpack.c.b16 %v641, %v628
  %v759 = vpack.c.b16 %v642, %v629
  %v760 = vpack.c.b16 %v656, %v643
  %v761 = vpack.c.b16 %v657, %v644
  %v762 = vpack.c.b16 %v658, %v645
  %v763 = vpack.c.b16 %v659, %v646
  %v764 = vpack.c.b16 %v660, %v647
  %v765 = vpack.c.b16 %v661, %v648
  %v766 = vpack.c.b16 %v662, %v649
  %v767 = vpack.c.b16 %v663, %v650
  %v768 = vpack.c.b16 %v664, %v651
  %v769 = vpack.c.b16 %v665, %v652
  %v770 = vpack.c.b16 %v666, %v653
  %v771 = vpack.c.b16 %v667, %v654
  %v772 = vpack.c.b16 %v668, %v655
  %v1069 = vunpack.c.l.b16 %v133
  %v1070 = vunpack.c.l.b16 %v134
  %v1071 = vunpack.c.l.b16 %v135
  %v1072 = vunpack.c.l.b16 %v136
  %v1073 = vunpack.c.l.b16 %v137
  %v1074 = vunpack.c.l.b16 %v138
  %v1075 = vunpack.c.l.b16 %v139
  %v1076 = vunpack.c.l.b16 %v140
  %v1077 = vunpack.c.l.b16 %v141
  %v1078 = vunpack.c.l.b16 %v142
  %v1079 = vunpack.c.l.b16 %v143
  %v1080 = vunpack.c.l.b16 %v144
  %v1081 = vunpack.c.l.b16 %v145
  %v1082 = vunpack.c.l.b16 %v146
  %v1083 = vunpack.c.l.b16 %v147
  %v1084 = vunpack.c.l.b16 %v148
  %v1085 = vunpack.c.l.b16 %v149
  %v1086 = vunpack.c.l.b16 %v150
  %v1087 = vunpack.c.l.b16 %v151
  %v1088 = vunpack.c.l.b16 %v152
  %v1089 = vunpack.c.l.b16 %v153
  %v1090 = vunpack.c.l.b16 %v154
  %v1091 = vunpack.c.l.b16 %v155
  %v1092 = vunpack.c.l.b16 %v156
  %v1093 = vunpack.c.l.b16 %v157
  %v1094 = vunpack.c.l.b16 %v158
  %v1095 = vunpack.c.l.b16 %v159
  %v1096 = vunpack.c.l.b16 %v160
  %v1097 = vunpack.c.l.b16 %v161
  %v1098 = vunpack.c.l.b16 %v162
  %v1099 = vunpack.c.l.b16 %v163
  %v1100 = vunpack.c.l.b16 %v164
  %v1101 = vunpack.c.l.b16 %v165
  %v1102 = vunpack.c.l.b16 %v166
  %v1103 = vunpack.c.l.b16 %v167
  %v1104 = vunpack.c.l.b16 %v168
  %v1105 = vunpack.c.l.b16 %v169
  %v1106 = vunpack.c.l.b16 %v170
  %v1107 = vunpack.c.l.b16 %v171
  %v1108 = vunpack.c.l.b16 %v172
  %v1109 = vunpack.c.l.b16 %v173
  %v1110 = vunpack.c.l.b16 %v174
  %v1111 = vunpack.c.l.b16 %v175
  %v1112 = vunpack.c.l.b16 %v176
  %v1113 = vunpack.c.l.b16 %v177
  %v1114 = vunpack.c.l.b16 %v178
  %v1115 = vunpack.c.l.b16 %v179
  %v1116 = vunpack.c.l.b16 %v180
  %v1117 = vunpack.c.l.b16 %v181
  %v1118 = vunpack.c.l.b16 %v182
  %v1119 = vunpack.c.l.b16 %v183
  %v1120 = vunpack.c.l.b16 %v184
  %v1121 = vunpack.c.l.b16 %v185
  %v1122 = vunpack.c.l.b16 %v186
  %v1123 = vunpack.c.l.b16 %v187
  %v1124 = vunpack.c.l.b16 %v188
  %v1125 = vunpack.c.l.b16 %v189
  %v1126 = vunpack.c.l.b16 %v190
  %v1127 = vunpack.c.l.b16 %v191
  %v1128 = vunpack.c.l.b16 %v192
  %v1129 = vunpack.c.l.b16 %v193
  %v1130 = vunpack.c.l.b16 %v194
  %v1131 = vunpack.c.l.b16 %v195
  %v1132 = vunpack.c.l.b16 %v196
  %v1133 = vunpack.c.l.b16 %v197
  %v1134 = vunpack.c.l.b16 %v198
  %v1135 = vunpack.c.l.b16 %v199
  %v1136 = vunpack.c.l.b16 %v200
  %v1137 = vunpack.c.l.b16 %v201
  %v1138 = vunpack.c.l.b16 %v202
  %v1139 = vunpack.c.l.b16 %v203
  %v1140 = vunpack.c.l.b16 %v204
  %v1141 = vunpack.c.l.b16 %v205
  %v1142 = vunpack.c.l.b16 %v206
  %v1143 = vunpack.c.l.b16 %v207
  %v1144 = vunpack.c.l.b16 %v208
  %v1145 = vunpack.c.l.b16 %v209
  %v1146 = vunpack.c.l.b16 %v210
  %v1147 = vunpack.c.l.b16 %v211
  %v1148 = vunpack.c.l.b16 %v212
  %v1149 = vunpack.c.l.b16 %v213
  %v1150 = vunpack.c.l.b16 %v214
  %v1151 = vunpack.c.l.b16 %v215
  %v1152 = vunpack.c.l.b16 %v216
  %v1153 = vunpack.c.l.b16 %v217
  %v1154 = vunpack.c.l.b16 %v218
  %v1155 = vunpack.c.l.b16 %v219
  %v1156 = vunpack.c.l.b16 %v220
  %v1157 = vunpack.c.l.b16 %v221
  %v1158 = vunpack.c.l.b16 %v222
  %v1159 = vunpack.c.l.b16 %v223
  %v1160 = vunpack.c.l.b16 %v224
  %v1161 = vunpack.c.l.b16 %v225
  %v1162 = vunpack.c.l.b16 %v226
  %v1163 = vunpack.c.l.b16 %v227
  %v1164 = vunpack.c.l.b16 %v228
  %v1165 = vunpack.c.l.b16 %v229
  %v1166 = vunpack.c.l.b16 %v230
  %v1167 = vunpack.c.l.b16 %v231
  %v1168 = vunpack.c.l.b16 %v232
  %v1169 = vunpack.c.l.b16 %v233
  %v1170 = vunpack.c.l.b16 %v234
  %v1171 = vunpack.c.l.b16 %v235
  %v1172 = vunpack.c.l.b16 %v236
  %v1173 = vunpack.c.l.b16 %v237
  %v1174 = vunpack.c.l.b16 %v238
  %v1175 = vunpack.c.l.b16 %v239
  %v1176 = vunpack.c.l.b16 %v240
  %v1177 = vunpack.c.l.b16 %v241
  %v1178 = vunpack.c.l.b16 %v242
  %v1179 = vunpack.c.l.b16 %v243
  %v1180 = vunpack.c.l.b16 %v244
  %v1181 = vunpack.c.l.b16 %v245
  %v1182 = vunpack.c.l.b16 %v246
  %v1183 = vunpack.c.l.b16 %v247
  %v1184 = vunpack.c.l.b16 %v248
  %v1185 = vunpack.c.l.b16 %v249
  %v1186 = vunpack.c.l.b16 %v250
  %v1187 = vunpack.c.l.b16 %v251
  %v1188 = vunpack.c.l.b16 %v252
  %v1189 = vunpack.c.l.b16 %v253
  %v1190 = vunpack.c.l.b16 %v254
  %v1191 = vunpack.c.l.b16 %v255
  %v1192 = vunpack.c.l.b16 %v256
  %v1193 = vunpack.c.l.b16 %v257
  %v1194 = vunpack.c.l.b16 %v258
  %v1195 = vunpack.c.l.b16 %v259
  %v1196 = vunpack.c.l.b16 %v260
  %v1197 = vunpack.c.l.b16 %v261
  %v1198 = vunpack.c.l.b16 %v262
  %v1199 = vunpack.c.l.b16 %v263
  %v1200 = vunpack.c.l.b16 %v264
  %v1201 = vunpack.c.l.b16 %v265
  %v1202 = vunpack.c.l.b16 %v266
  %v1203 = vunpack.c.l.b16 %v267
  %v1204 = vunpack.c.l.b16 %v268
  %v1205 = vunpack.c.l.b16 %v269
  %v1206 = vunpack.c.l.b16 %v270
  %v1207 = vunpack.c.l.b16 %v271
  %v1208 = vunpack.c.l.b16 %v272
  %v1209 = vunpack.c.l.b16 %v273
  %v1210 = vunpack.c.l.b16 %v274
  %v1211 = vunpack.c.l.b16 %v275
  %v1212 = vunpack.c.l.b16 %v276
  %v1213 = vunpack.c.l.b16 %v277
  %v1214 = vunpack.c.l.b16 %v278
  %v1215 = vunpack.c.l.b16 %v279
  %v1216 = vunpack.c.l.b16 %v280
  %v1217 = vunpack.c.l.b16 %v281
  %v1218 = vunpack.c.l.b16 %v282
  %v1219 = vunpack.c.l.b16 %v283
  %v1220 = vunpack.c.l.b16 %v284
  %v1221 = vunpack.c.l.b16 %v285
  %v1222 = vunpack.c.l.b16 %v286
  %v1223 = vunpack.c.l.b16 %v287
  %v1224 = vunpack.c.l.b16 %v288
  %v1225 = vunpack.c.l.b16 %v289
  %v1226 = vunpack.c.l.b16 %v290
  %v1227 = vunpack.c.l.b16 %v291
  %v1228 = vunpack.c.l.b16 %v292
  %v1229 = vunpack.c.l.b16 %v293
  %v1230 = vunpack.c.l.b16 %v294
  %v1231 = vunpack.c.l.b16 %v295
  %v1232 = vunpack.c.l.b16 %v296
  %v1233 = vunpack.c.l.b16 %v297
  %v1234 = vunpack.c.l.b16 %v298
  %v1235 = vunpack.c.l.b16 %v299
  %v1236 = vunpack.c.l.b16 %v300
  %v1237 = vunpack.c.l.b16 %v301
  %v1238 = vunpack.c.l.b16 %v302
  %v1239 = vunpack.c.l.b16 %v303
  %v1240 = vunpack.c.l.b16 %v304
  %v1241 = vunpack.c.l.b16 %v305
  %v1242 = vunpack.c.l.b16 %v306
  %v1243 = vunpack.c.l.b16 %v307
  %v1244 = vunpack.c.l.b16 %v308
  %v1245 = vunpack.c.l.b16 %v309
  %v1246 = vunpack.c.l.b16 %v310
  %v1247 = vunpack.c.l.b16 %v311
  %v1248 = vunpack.c.l.b16 %v312
  %v1249 = vunpack.c.l.b16 %v313
  %v1250 = vunpack.c.l.b16 %v314
  %v1251 = vunpack.c.l.b16 %v315
  %v1252 = vunpack.c.l.b16 %v316
  %v1253 = vunpack.c.l.b16 %v317
  %v1254 = vunpack.c.l.b16 %v318
  %v1255 = vunpack.c.l.b16 %v319
  %v1256 = vunpack.c.l.b16 %v320
  %v1257 = vunpack.c.l.b16 %v321
  %v1258 = vunpack.c.l.b16 %v322
  %v1259 = vunpack.c.l.b16 %v323
  %v1260 = vunpack.c.l.b16 %v324
  %v1261 = vunpack.c.l.b16 %v325
  %v1262 = vunpack.c.l.b16 %v326
  %v1263 = vunpack.c.l.b16 %v327
  %v1264 = vunpack.c.l.b16 %v328
  %v1265 = vunpack.c.l.b16 %v329
  %v1266 = vunpack.c.l.b16 %v330
  %v1267 = vunpack.c.l.b16 %v331
  %v1268 = vunpack.c.l.b16 %v332
  %v1269 = vpack.c.b16 %v1070, %v1069
  %v1270 = vpack.c.b16 %v1072, %v1071
  %v1271 = vpack.c.b16 %v1074, %v1073
  %v1272 = vpack.c.b16 %v1076, %v1075
  %v1273 = vpack.c.b16 %v1078, %v1077
  %v1274 = vpack.c.b16 %v1080, %v1079
  %v1275 = vpack.c.b16 %v1082, %v1081
  %v1276 = vpack.c.b16 %v1084, %v1083
  %v1277 = vpack.c.b16 %v1086, %v1085
  %v1278 = vpack.c.b16 %v1088, %v1087
  %v1279 = vpack.c.b16 %v1090, %v1089
  %v1280 = vpack.c.b16 %v1092, %v1091
  %v1281 = vpack.c.b16 %v1094, %v1093
  %v1282 = vpack.c.b16 %v1096, %v1095
  %v1283 = vpack.c.b16 %v1098, %v1097
  %v1284 = vpack.c.b16 %v1100, %v1099
  %v1285 = vpack.c.b16 %v1102, %v1101
  %v1286 = vpack.c.b16 %v1104, %v1103
  %v1287 = vpack.c.b16 %v1106, %v1105
  %v1288 = vpack.c.b16 %v1108, %v1107
  %v1289 = vpack.c.b16 %v1110, %v1109
  %v1290 = vpack.c.b16 %v1112, %v1111
  %v1291 = vpack.c.b16 %v1114, %v1113
  %v1292 = vpack.c.b16 %v1116, %v1115
  %v1293 = vpack.c.b16 %v1118, %v1117
  %v1294 = vpack.c.b16 %v1120, %v1119
  %v1295 = vpack.c.b16 %v1122, %v1121
  %v1296 = vpack.c.b16 %v1124, %v1123
  %v1297 = vpack.c.b16 %v1126, %v1125
  %v1298 = vpack.c.b16 %v1128, %v1127
  %v1299 = vpack.c.b16 %v1130, %v1129
  %v1300 = vpack.c.b16 %v1132, %v1131
  %v1301 = vpack.c.b16 %v1134, %v1133
  %v1302 = vpack.c.b16 %v1136, %v1135
  %v1303 = vpack.c.b16 %v1138, %v1137
  %v1304 = vpack.c.b16 %v1140, %v1139
  %v1305 = vpack.c.b16 %v1142, %v1141
  %v1306 = vpack.c.b16 %v1144, %v1143
  %v1307 = vpack.c.b16 %v1146, %v1145
  %v1308 = vpack.c.b16 %v1148, %v1147
  %v1309 = vpack.c.b16 %v1150, %v1149
  %v1310 = vpack.c.b16 %v1152, %v1151
  %v1311 = vpack.c.b16 %v1154, %v1153
  %v1312 = vpack.c.b16 %v1156, %v1155
  %v1313 = vpack.c.b16 %v1158, %v1157
  %v1314 = vpack.c.b16 %v1160, %v1159
  %v1315 = vpack.c.b16 %v1162, %v1161
  %v1316 = vpack.c.b16 %v1164, %v1163
  %v1317 = vpack.c.b16 %v1166, %v1165
  %v1318 = vpack.c.b16 %v1168, %v1167
  %v1319 = vpack.c.b16 %v1170, %v1169
  %v1320 = vpack.c.b16 %v1172, %v1171
  %v1321 = vpack.c.b16 %v1174, %v1173
  %v1322 = vpack.c.b16 %v1176, %v1175
  %v1323 = vpack.c.b16 %v1178, %v1177
  %v1324 = vpack.c.b16 %v1180, %v1179
  %v1325 = vpack.c.b16 %v1182, %v1181
  %v1326 = vpack.c.b16 %v1184, %v1183
  %v1327 = vpack.c.b16 %v1186, %v1185
  %v1328 = vpack.c.b16 %v1188, %v1187
  %v1329 = vpack.c.b16 %v1190, %v1189
  %v1330 = vpack.c.b16 %v1192, %v1191
  %v1331 = vpack.c.b16 %v1194, %v1193
  %v1332 = vpack.c.b16 %v1196, %v1195
  %v1333 = vpack.c.b16 %v1198, %v1197
  %v1334 = vpack.c.b16 %v1200, %v1199
  %v1335 = vpack.c.b16 %v1202, %v1201
  %v1336 = vpack.c.b16 %v1204, %v1203
  %v1337 = vpack.c.b16 %v1206, %v1205
  %v1338 = vpack.c.b16 %v1208, %v1207
  %v1339 = vpack.c.b16 %v1210, %v1209
  %v1340 = vpack.c.b16 %v1212, %v1211
  %v1341 = vpack.c.b16 %v1214, %v1213
  %v1342 = vpack.c.b16 %v1216, %v1215
  %v1343 = vpack.c.b16 %v1218, %v1217
  %v1344 = vpack.c.b16 %v1220, %v1219
  %v1345 = vpack.c.b16 %v1222, %v1221
  %v1346 = vpack.c.b16 %v1224, %v1223
  %v1347 = vpack.c.b16 %v1226, %v1225
  %v1348 = vpack.c.b16 %v1228, %v1227
  %v1349 = vpack.c.b16 %v1230, %v1229
  %v1350 = vpack.c.b16 %v1232, %v1231
  %v1351 = vpack.c.b16 %v1234, %v1233
  %v1352 = vpack.c.b16 %v1236, %v1235
  %v1353 = vpack.c.b16 %v1238, %v1237
  %v1354 = vpack.c.b16 %v1240, %v1239
  %v1355 = vpack.c.b16 %v1242, %v1241
  %v1356 = vpack.c.b16 %v1244, %v1243
  %v1357 = vpack.c.b16 %v1246, %v1245
  %v1358 = vpack.c.b16 %v1248, %v1247
  %v1359 = vpack.c.b16 %v1250, %v1249
  %v1360 = vpack.c.b16 %v1252, %v1251
  %v1361 = vpack.c.b16 %v1254, %v1253
  %v1362 = vpack.c.b16 %v1256, %v1255
  %v1363 = vpack.c.b16 %v1258, %v1257
  %v1364 = vpack.c.b16 %v1260, %v1259
  %v1365 = vpack.c.b16 %v1262, %v1261
  %v1366 = vpack.c.b16 %v1264, %v1263
  %v1367 = vpack.c.b16 %v1266, %v1265
  %v1368 = vpack.c.b16 %v1268, %v1267
  %vm1469 = vcmask 523264
  %v1471 = vsel %vm1469, %v681, 0
  %v1474 = vsel %vm1469, %v694, 0
  %v1477 = vsel %vm1469, %v707, 0
  %v1480 = vsel %vm1469, %v720, 0
  %v1483 = vsel %vm1469, %v733, 0
  %v1486 = vsel %vm1469, %v746, 0
  %v1489 = vsel %vm1469, %v759, 0
  %v1492 = vsel %vm1469, %v772, 0
  %1494 = vmatprep.subr.bf16.mxu0 0
  %1495 = vmatpush1.bf16.msra.mxu0 %v1269
  %1496 = vmatprep.subr.bf16.mxu0 0
  %1497 = vmatpush1.bf16.msra.mxu0 %v1270
  %1498 = vmatprep.subr.bf16.mxu0 0
  %1499 = vmatpush1.bf16.msra.mxu0 %v1271
  %1500 = vmatprep.subr.bf16.mxu0 0
  %1501 = vmatpush1.bf16.msra.mxu0 %v1272
  %1502 = vmatprep.subr.bf16.mxu0 0
  %1503 = vmatpush1.bf16.msra.mxu0 %v1273
  %1504 = vmatprep.subr.bf16.mxu0 0
  %1505 = vmatpush1.bf16.msra.mxu0 %v1274
  %1506 = vmatprep.subr.bf16.mxu0 0
  %1507 = vmatpush1.bf16.msra.mxu0 %v1275
  %1508 = vmatprep.subr.bf16.mxu0 0
  %1509 = vmatpush1.bf16.msra.mxu0 %v1276
  %1510 = vmatprep.subr.bf16.mxu0 0
  %1511 = vmatpush1.bf16.msra.mxu0 %v1277
  %1512 = vmatprep.subr.bf16.mxu0 0
  %1513 = vmatpush1.bf16.msra.mxu0 %v1278
  %1514 = vmatprep.subr.bf16.mxu0 0
  %1515 = vmatpush1.bf16.msra.mxu0 %v1279
  %1516 = vmatprep.subr.bf16.mxu0 0
  %1517 = vmatpush1.bf16.msra.mxu0 %v1280
  %1518 = vmatprep.subr.bf16.mxu0 0
  %1519 = vmatpush1.bf16.msra.mxu0 %v1281
  %1520 = vmatprep.subr.bf16.mxu0 0
  %1521 = vmatpush1.bf16.msra.mxu0 %v1282
  %1522 = vmatprep.subr.bf16.mxu0 0
  %1523 = vmatpush1.bf16.msra.mxu0 %v1283
  %1524 = vmatprep.subr.bf16.mxu0 0
  %1525 = vmatpush1.bf16.msra.mxu0 %v1284
  %1526 = vmatprep.mubr.bf16.mxu0 %v670
  %1527 = vmatmul.mubr.bf16.gmra.mrb[0].mxu0 %v669
  %v1528 = vpop.f32.mrb[0].mxu0
  %v1529 = vadd.f32 %v333, %v1528
  %v1530 = vpop.f32.mrb[0].mxu0
  %v1531 = vpop.f32.mrb[0].mxu0
  %v1532 = vadd.f32 %v334, %v1531
  %v1533 = vpop.f32.mrb[0].mxu0
  %1534 = vmatprep.mubr.bf16.mxu0 %v683
  %1535 = vmatmul.mubr.bf16.gmra.mrb[0].mxu0 %v682
  %v1536 = vpop.f32.mrb[0].mxu0
  %v1537 = vadd.f32 %v335, %v1536
  %v1538 = vpop.f32.mrb[0].mxu0
  %v1539 = vpop.f32.mrb[0].mxu0
  %v1540 = vadd.f32 %v336, %v1539
  %v1541 = vpop.f32.mrb[0].mxu0
  %1542 = vmatprep.mubr.bf16.mxu0 %v696
  %1543 = vmatmul.mubr.bf16.gmra.mrb[0].mxu0 %v695
  %v1544 = vpop.f32.mrb[0].mxu0
  %v1545 = vadd.f32 %v337, %v1544
  %v1546 = vpop.f32.mrb[0].mxu0
  %v1547 = vpop.f32.mrb[0].mxu0
  %v1548 = vadd.f32 %v338, %v1547
  %v1549 = vpop.f32.mrb[0].mxu0
  %1550 = vmatprep.mubr.bf16.mxu0 %v709
  %1551 = vmatmul.mubr.bf16.gmra.mrb[0].mxu0 %v708
  %v1552 = vpop.f32.mrb[0].mxu0
  %v1553 = vadd.f32 %v339, %v1552
  %v1554 = vpop.f32.mrb[0].mxu0
  %v1555 = vpop.f32.mrb[0].mxu0
  %v1556 = vadd.f32 %v340, %v1555
  %v1557 = vpop.f32.mrb[0].mxu0
  %1558 = vmatprep.mubr.bf16.mxu0 %v722
  %1559 = vmatmul.mubr.bf16.gmra.mrb[0].mxu0 %v721
  %v1560 = vpop.f32.mrb[0].mxu0
  %v1561 = vadd.f32 %v341, %v1560
  %v1562 = vpop.f32.mrb[0].mxu0
  %v1563 = vpop.f32.mrb[0].mxu0
  %v1564 = vadd.f32 %v342, %v1563
  %v1565 = vpop.f32.mrb[0].mxu0
  %1566 = vmatprep.mubr.bf16.mxu0 %v735
  %1567 = vmatmul.mubr.bf16.gmra.mrb[0].mxu0 %v734
  %v1568 = vpop.f32.mrb[0].mxu0
  %v1569 = vadd.f32 %v343, %v1568
  %v1570 = vpop.f32.mrb[0].mxu0
  %v1571 = vpop.f32.mrb[0].mxu0
  %v1572 = vadd.f32 %v344, %v1571
  %v1573 = vpop.f32.mrb[0].mxu0
  %1574 = vmatprep.mubr.bf16.mxu0 %v748
  %1575 = vmatmul.mubr.bf16.gmra.mrb[0].mxu0 %v747
  %v1576 = vpop.f32.mrb[0].mxu0
  %v1577 = vadd.f32 %v345, %v1576
  %v1578 = vpop.f32.mrb[0].mxu0
  %v1579 = vpop.f32.mrb[0].mxu0
  %v1580 = vadd.f32 %v346, %v1579
  %v1581 = vpop.f32.mrb[0].mxu0
  %1582 = vmatprep.mubr.bf16.mxu0 %v761
  %1583 = vmatmul.mubr.bf16.gmra.mrb[0].mxu0 %v760
  %v1584 = vpop.f32.mrb[0].mxu0
  %v1585 = vadd.f32 %v347, %v1584
  %v1586 = vpop.f32.mrb[0].mxu0
  %v1587 = vpop.f32.mrb[0].mxu0
  %v1588 = vadd.f32 %v348, %v1587
  %v1589 = vpop.f32.mrb[0].mxu0
  %1590 = vdwg.mxu0
  %1591 = vmatprep.subr.bf16.mxu0 0
  %1592 = vmatpush1.bf16.msra.mxu0 %v1285
  %1593 = vmatprep.subr.bf16.mxu0 0
  %1594 = vmatpush1.bf16.msra.mxu0 %v1286
  %1595 = vmatprep.subr.bf16.mxu0 0
  %1596 = vmatpush1.bf16.msra.mxu0 %v1287
  %1597 = vmatprep.subr.bf16.mxu0 0
  %1598 = vmatpush1.bf16.msra.mxu0 %v1288
  %1599 = vmatprep.subr.bf16.mxu0 0
  %1600 = vmatpush1.bf16.msra.mxu0 %v1289
  %1601 = vmatprep.subr.bf16.mxu0 0
  %1602 = vmatpush1.bf16.msra.mxu0 %v1290
  %1603 = vmatprep.subr.bf16.mxu0 0
  %1604 = vmatpush1.bf16.msra.mxu0 %v1291
  %1605 = vmatprep.subr.bf16.mxu0 0
  %1606 = vmatpush1.bf16.msra.mxu0 %v1292
  %1607 = vmatprep.subr.bf16.mxu0 0
  %1608 = vmatpush1.bf16.msra.mxu0 %v1293
  %1609 = vmatprep.subr.bf16.mxu0 0
  %1610 = vmatpush1.bf16.msra.mxu0 %v1294
  %1611 = vmatprep.subr.bf16.mxu0 0
  %1612 = vmatpush1.bf16.msra.mxu0 %v1295
  %1613 = vmatprep.subr.bf16.mxu0 0
  %1614 = vmatpush1.bf16.msra.mxu0 %v1296
  %1615 = vmatprep.subr.bf16.mxu0 0
  %1616 = vmatpush1.bf16.msra.mxu0 %v1297
  %1617 = vmatprep.subr.bf16.mxu0 0
  %1618 = vmatpush1.bf16.msra.mxu0 %v1298
  %1619 = vmatprep.subr.bf16.mxu0 0
  %1620 = vmatpush1.bf16.msra.mxu0 %v1299
  %1621 = vmatprep.subr.bf16.mxu0 0
  %1622 = vmatpush1.bf16.msra.mxu0 %v1300
  %1623 = vmatprep.mubr.bf16.mxu0 %v672
  %1624 = vmatmul.mubr.bf16.gmra.mrb[0].mxu0 %v671
  %v1625 = vpop.f32.mrb[0].mxu0
  %v1626 = vadd.f32 %v1529, %v1625
  %v1627 = vpop.f32.mrb[0].mxu0
  %v1628 = vpop.f32.mrb[0].mxu0
  %v1629 = vadd.f32 %v1532, %v1628
  %v1630 = vpop.f32.mrb[0].mxu0
  %1631 = vmatprep.mubr.bf16.mxu0 %v685
  %1632 = vmatmul.mubr.bf16.gmra.mrb[0].mxu0 %v684
  %v1633 = vpop.f32.mrb[0].mxu0
  %v1634 = vadd.f32 %v1537, %v1633
  %v1635 = vpop.f32.mrb[0].mxu0
  %v1636 = vpop.f32.mrb[0].mxu0
  %v1637 = vadd.f32 %v1540, %v1636
  %v1638 = vpop.f32.mrb[0].mxu0
  %1639 = vmatprep.mubr.bf16.mxu0 %v698
  %1640 = vmatmul.mubr.bf16.gmra.mrb[0].mxu0 %v697
  %v1641 = vpop.f32.mrb[0].mxu0
  %v1642 = vadd.f32 %v1545, %v1641
  %v1643 = vpop.f32.mrb[0].mxu0
  %v1644 = vpop.f32.mrb[0].mxu0
  %v1645 = vadd.f32 %v1548, %v1644
  %v1646 = vpop.f32.mrb[0].mxu0
  %1647 = vmatprep.mubr.bf16.mxu0 %v711
  %1648 = vmatmul.mubr.bf16.gmra.mrb[0].mxu0 %v710
  %v1649 = vpop.f32.mrb[0].mxu0
  %v1650 = vadd.f32 %v1553, %v1649
  %v1651 = vpop.f32.mrb[0].mxu0
  %v1652 = vpop.f32.mrb[0].mxu0
  %v1653 = vadd.f32 %v1556, %v1652
  %v1654 = vpop.f32.mrb[0].mxu0
  %1655 = vmatprep.mubr.bf16.mxu0 %v724
  %1656 = vmatmul.mubr.bf16.gmra.mrb[0].mxu0 %v723
  %v1657 = vpop.f32.mrb[0].mxu0
  %v1658 = vadd.f32 %v1561, %v1657
  %v1659 = vpop.f32.mrb[0].mxu0
  %v1660 = vpop.f32.mrb[0].mxu0
  %v1661 = vadd.f32 %v1564, %v1660
  %v1662 = vpop.f32.mrb[0].mxu0
  %1663 = vmatprep.mubr.bf16.mxu0 %v737
  %1664 = vmatmul.mubr.bf16.gmra.mrb[0].mxu0 %v736
  %v1665 = vpop.f32.mrb[0].mxu0
  %v1666 = vadd.f32 %v1569, %v1665
  %v1667 = vpop.f32.mrb[0].mxu0
  %v1668 = vpop.f32.mrb[0].mxu0
  %v1669 = vadd.f32 %v1572, %v1668
  %v1670 = vpop.f32.mrb[0].mxu0
  %1671 = vmatprep.mubr.bf16.mxu0 %v750
  %1672 = vmatmul.mubr.bf16.gmra.mrb[0].mxu0 %v749
  %v1673 = vpop.f32.mrb[0].mxu0
  %v1674 = vadd.f32 %v1577, %v1673
  %v1675 = vpop.f32.mrb[0].mxu0
  %v1676 = vpop.f32.mrb[0].mxu0
  %v1677 = vadd.f32 %v1580, %v1676
  %v1678 = vpop.f32.mrb[0].mxu0
  %1679 = vmatprep.mubr.bf16.mxu0 %v763
  %1680 = vmatmul.mubr.bf16.gmra.mrb[0].mxu0 %v762
  %v1681 = vpop.f32.mrb[0].mxu0
  %v1682 = vadd.f32 %v1585, %v1681
  %v1683 = vpop.f32.mrb[0].mxu0
  %v1684 = vpop.f32.mrb[0].mxu0
  %v1685 = vadd.f32 %v1588, %v1684
  %v1686 = vpop.f32.mrb[0].mxu0
  %1687 = vdwg.mxu0
  %1688 = vmatprep.subr.bf16.mxu0 0
  %1689 = vmatpush1.bf16.msra.mxu0 %v1301
  %1690 = vmatprep.subr.bf16.mxu0 0
  %1691 = vmatpush1.bf16.msra.mxu0 %v1302
  %1692 = vmatprep.subr.bf16.mxu0 0
  %1693 = vmatpush1.bf16.msra.mxu0 %v1303
  %1694 = vmatprep.subr.bf16.mxu0 0
  %1695 = vmatpush1.bf16.msra.mxu0 %v1304
  %1696 = vmatprep.subr.bf16.mxu0 0
  %1697 = vmatpush1.bf16.msra.mxu0 %v1305
  %1698 = vmatprep.subr.bf16.mxu0 0
  %1699 = vmatpush1.bf16.msra.mxu0 %v1306
  %1700 = vmatprep.subr.bf16.mxu0 0
  %1701 = vmatpush1.bf16.msra.mxu0 %v1307
  %1702 = vmatprep.subr.bf16.mxu0 0
  %1703 = vmatpush1.bf16.msra.mxu0 %v1308
  %1704 = vmatprep.subr.bf16.mxu0 0
  %1705 = vmatpush1.bf16.msra.mxu0 %v1309
  %1706 = vmatprep.subr.bf16.mxu0 0
  %1707 = vmatpush1.bf16.msra.mxu0 %v1310
  %1708 = vmatprep.subr.bf16.mxu0 0
  %1709 = vmatpush1.bf16.msra.mxu0 %v1311
  %1710 = vmatprep.subr.bf16.mxu0 0
  %1711 = vmatpush1.bf16.msra.mxu0 %v1312
  %1712 = vmatprep.subr.bf16.mxu0 0
  %1713 = vmatpush1.bf16.msra.mxu0 %v1313
  %1714 = vmatprep.subr.bf16.mxu0 0
  %1715 = vmatpush1.bf16.msra.mxu0 %v1314
  %1716 = vmatprep.subr.bf16.mxu0 0
  %1717 = vmatpush1.bf16.msra.mxu0 %v1315
  %1718 = vmatprep.subr.bf16.mxu0 0
  %1719 = vmatpush1.bf16.msra.mxu0 %v1316
  %1720 = vmatprep.mubr.bf16.mxu0 %v674
  %1721 = vmatmul.mubr.bf16.gmra.mrb[0].mxu0 %v673
  %v1722 = vpop.f32.mrb[0].mxu0
  %v1723 = vadd.f32 %v1626, %v1722
  %v1724 = vpop.f32.mrb[0].mxu0
  %v1725 = vpop.f32.mrb[0].mxu0
  %v1726 = vadd.f32 %v1629, %v1725
  %v1727 = vpop.f32.mrb[0].mxu0
  %1728 = vmatprep.mubr.bf16.mxu0 %v687
  %1729 = vmatmul.mubr.bf16.gmra.mrb[0].mxu0 %v686
  %v1730 = vpop.f32.mrb[0].mxu0
  %v1731 = vadd.f32 %v1634, %v1730
  %v1732 = vpop.f32.mrb[0].mxu0
  %v1733 = vpop.f32.mrb[0].mxu0
  %v1734 = vadd.f32 %v1637, %v1733
  %v1735 = vpop.f32.mrb[0].mxu0
  %1736 = vmatprep.mubr.bf16.mxu0 %v700
  %1737 = vmatmul.mubr.bf16.gmra.mrb[0].mxu0 %v699
  %v1738 = vpop.f32.mrb[0].mxu0
  %v1739 = vadd.f32 %v1642, %v1738
  %v1740 = vpop.f32.mrb[0].mxu0
  %v1741 = vpop.f32.mrb[0].mxu0
  %v1742 = vadd.f32 %v1645, %v1741
  %v1743 = vpop.f32.mrb[0].mxu0
  %1744 = vmatprep.mubr.bf16.mxu0 %v713
  %1745 = vmatmul.mubr.bf16.gmra.mrb[0].mxu0 %v712
  %v1746 = vpop.f32.mrb[0].mxu0
  %v1747 = vadd.f32 %v1650, %v1746
  %v1748 = vpop.f32.mrb[0].mxu0
  %v1749 = vpop.f32.mrb[0].mxu0
  %v1750 = vadd.f32 %v1653, %v1749
  %v1751 = vpop.f32.mrb[0].mxu0
  %1752 = vmatprep.mubr.bf16.mxu0 %v726
  %1753 = vmatmul.mubr.bf16.gmra.mrb[0].mxu0 %v725
  %v1754 = vpop.f32.mrb[0].mxu0
  %v1755 = vadd.f32 %v1658, %v1754
  %v1756 = vpop.f32.mrb[0].mxu0
  %v1757 = vpop.f32.mrb[0].mxu0
  %v1758 = vadd.f32 %v1661, %v1757
  %v1759 = vpop.f32.mrb[0].mxu0
  %1760 = vmatprep.mubr.bf16.mxu0 %v739
  %1761 = vmatmul.mubr.bf16.gmra.mrb[0].mxu0 %v738
  %v1762 = vpop.f32.mrb[0].mxu0
  %v1763 = vadd.f32 %v1666, %v1762
  %v1764 = vpop.f32.mrb[0].mxu0
  %v1765 = vpop.f32.mrb[0].mxu0
  %v1766 = vadd.f32 %v1669, %v1765
  %v1767 = vpop.f32.mrb[0].mxu0
  %1768 = vmatprep.mubr.bf16.mxu0 %v752
  %1769 = vmatmul.mubr.bf16.gmra.mrb[0].mxu0 %v751
  %v1770 = vpop.f32.mrb[0].mxu0
  %v1771 = vadd.f32 %v1674, %v1770
  %v1772 = vpop.f32.mrb[0].mxu0
  %v1773 = vpop.f32.mrb[0].mxu0
  %v1774 = vadd.f32 %v1677, %v1773
  %v1775 = vpop.f32.mrb[0].mxu0
  %1776 = vmatprep.mubr.bf16.mxu0 %v765
  %1777 = vmatmul.mubr.bf16.gmra.mrb[0].mxu0 %v764
  %v1778 = vpop.f32.mrb[0].mxu0
  %v1779 = vadd.f32 %v1682, %v1778
  %v1780 = vpop.f32.mrb[0].mxu0
  %v1781 = vpop.f32.mrb[0].mxu0
  %v1782 = vadd.f32 %v1685, %v1781
  %v1783 = vpop.f32.mrb[0].mxu0
  %1784 = vdwg.mxu0
  %1785 = vmatprep.subr.bf16.mxu0 0
  %1786 = vmatpush1.bf16.msra.mxu0 %v1317
  %1787 = vmatprep.subr.bf16.mxu0 0
  %1788 = vmatpush1.bf16.msra.mxu0 %v1318
  %1789 = vmatprep.subr.bf16.mxu0 0
  %1790 = vmatpush1.bf16.msra.mxu0 %v1319
  %1791 = vmatprep.subr.bf16.mxu0 0
  %1792 = vmatpush1.bf16.msra.mxu0 %v1320
  %1793 = vmatprep.subr.bf16.mxu0 0
  %1794 = vmatpush1.bf16.msra.mxu0 %v1321
  %1795 = vmatprep.subr.bf16.mxu0 0
  %1796 = vmatpush1.bf16.msra.mxu0 %v1322
  %1797 = vmatprep.subr.bf16.mxu0 0
  %1798 = vmatpush1.bf16.msra.mxu0 %v1323
  %1799 = vmatprep.subr.bf16.mxu0 0
  %1800 = vmatpush1.bf16.msra.mxu0 %v1324
  %1801 = vmatprep.subr.bf16.mxu0 0
  %1802 = vmatpush1.bf16.msra.mxu0 %v1325
  %1803 = vmatprep.subr.bf16.mxu0 0
  %1804 = vmatpush1.bf16.msra.mxu0 %v1326
  %1805 = vmatprep.subr.bf16.mxu0 0
  %1806 = vmatpush1.bf16.msra.mxu0 %v1327
  %1807 = vmatprep.subr.bf16.mxu0 0
  %1808 = vmatpush1.bf16.msra.mxu0 %v1328
  %1809 = vmatprep.subr.bf16.mxu0 0
  %1810 = vmatpush1.bf16.msra.mxu0 %v1329
  %1811 = vmatprep.subr.bf16.mxu0 0
  %1812 = vmatpush1.bf16.msra.mxu0 %v1330
  %1813 = vmatprep.subr.bf16.mxu0 0
  %1814 = vmatpush1.bf16.msra.mxu0 %v1331
  %1815 = vmatprep.subr.bf16.mxu0 0
  %1816 = vmatpush1.bf16.msra.mxu0 %v1332
  %1817 = vmatprep.mubr.bf16.mxu0 %v676
  %1818 = vmatmul.mubr.bf16.gmra.mrb[0].mxu0 %v675
  %v1819 = vpop.f32.mrb[0].mxu0
  %v1820 = vadd.f32 %v1723, %v1819
  %v1821 = vpop.f32.mrb[0].mxu0
  %v1822 = vpop.f32.mrb[0].mxu0
  %v1823 = vadd.f32 %v1726, %v1822
  %v1824 = vpop.f32.mrb[0].mxu0
  %1825 = vmatprep.mubr.bf16.mxu0 %v689
  %1826 = vmatmul.mubr.bf16.gmra.mrb[0].mxu0 %v688
  %v1827 = vpop.f32.mrb[0].mxu0
  %v1828 = vadd.f32 %v1731, %v1827
  %v1829 = vpop.f32.mrb[0].mxu0
  %v1830 = vpop.f32.mrb[0].mxu0
  %v1831 = vadd.f32 %v1734, %v1830
  %v1832 = vpop.f32.mrb[0].mxu0
  %1833 = vmatprep.mubr.bf16.mxu0 %v702
  %1834 = vmatmul.mubr.bf16.gmra.mrb[0].mxu0 %v701
  %v1835 = vpop.f32.mrb[0].mxu0
  %v1836 = vadd.f32 %v1739, %v1835
  %v1837 = vpop.f32.mrb[0].mxu0
  %v1838 = vpop.f32.mrb[0].mxu0
  %v1839 = vadd.f32 %v1742, %v1838
  %v1840 = vpop.f32.mrb[0].mxu0
  %1841 = vmatprep.mubr.bf16.mxu0 %v715
  %1842 = vmatmul.mubr.bf16.gmra.mrb[0].mxu0 %v714
  %v1843 = vpop.f32.mrb[0].mxu0
  %v1844 = vadd.f32 %v1747, %v1843
  %v1845 = vpop.f32.mrb[0].mxu0
  %v1846 = vpop.f32.mrb[0].mxu0
  %v1847 = vadd.f32 %v1750, %v1846
  %v1848 = vpop.f32.mrb[0].mxu0
  %1849 = vmatprep.mubr.bf16.mxu0 %v728
  %1850 = vmatmul.mubr.bf16.gmra.mrb[0].mxu0 %v727
  %v1851 = vpop.f32.mrb[0].mxu0
  %v1852 = vadd.f32 %v1755, %v1851
  %v1853 = vpop.f32.mrb[0].mxu0
  %v1854 = vpop.f32.mrb[0].mxu0
  %v1855 = vadd.f32 %v1758, %v1854
  %v1856 = vpop.f32.mrb[0].mxu0
  %1857 = vmatprep.mubr.bf16.mxu0 %v741
  %1858 = vmatmul.mubr.bf16.gmra.mrb[0].mxu0 %v740
  %v1859 = vpop.f32.mrb[0].mxu0
  %v1860 = vadd.f32 %v1763, %v1859
  %v1861 = vpop.f32.mrb[0].mxu0
  %v1862 = vpop.f32.mrb[0].mxu0
  %v1863 = vadd.f32 %v1766, %v1862
  %v1864 = vpop.f32.mrb[0].mxu0
  %1865 = vmatprep.mubr.bf16.mxu0 %v754
  %1866 = vmatmul.mubr.bf16.gmra.mrb[0].mxu0 %v753
  %v1867 = vpop.f32.mrb[0].mxu0
  %v1868 = vadd.f32 %v1771, %v1867
  %v1869 = vpop.f32.mrb[0].mxu0
  %v1870 = vpop.f32.mrb[0].mxu0
  %v1871 = vadd.f32 %v1774, %v1870
  %v1872 = vpop.f32.mrb[0].mxu0
  %1873 = vmatprep.mubr.bf16.mxu0 %v767
  %1874 = vmatmul.mubr.bf16.gmra.mrb[0].mxu0 %v766
  %v1875 = vpop.f32.mrb[0].mxu0
  %v1876 = vadd.f32 %v1779, %v1875
  %v1877 = vpop.f32.mrb[0].mxu0
  %v1878 = vpop.f32.mrb[0].mxu0
  %v1879 = vadd.f32 %v1782, %v1878
  %v1880 = vpop.f32.mrb[0].mxu0
  %1881 = vdwg.mxu0
  %1882 = vmatprep.subr.bf16.mxu0 0
  %1883 = vmatpush1.bf16.msra.mxu0 %v1333
  %1884 = vmatprep.subr.bf16.mxu0 0
  %1885 = vmatpush1.bf16.msra.mxu0 %v1334
  %1886 = vmatprep.subr.bf16.mxu0 0
  %1887 = vmatpush1.bf16.msra.mxu0 %v1335
  %1888 = vmatprep.subr.bf16.mxu0 0
  %1889 = vmatpush1.bf16.msra.mxu0 %v1336
  %1890 = vmatprep.subr.bf16.mxu0 0
  %1891 = vmatpush1.bf16.msra.mxu0 %v1337
  %1892 = vmatprep.subr.bf16.mxu0 0
  %1893 = vmatpush1.bf16.msra.mxu0 %v1338
  %1894 = vmatprep.subr.bf16.mxu0 0
  %1895 = vmatpush1.bf16.msra.mxu0 %v1339
  %1896 = vmatprep.subr.bf16.mxu0 0
  %1897 = vmatpush1.bf16.msra.mxu0 %v1340
  %1898 = vmatprep.subr.bf16.mxu0 0
  %1899 = vmatpush1.bf16.msra.mxu0 %v1341
  %1900 = vmatprep.subr.bf16.mxu0 0
  %1901 = vmatpush1.bf16.msra.mxu0 %v1342
  %1902 = vmatprep.subr.bf16.mxu0 0
  %1903 = vmatpush1.bf16.msra.mxu0 %v1343
  %1904 = vmatprep.subr.bf16.mxu0 0
  %1905 = vmatpush1.bf16.msra.mxu0 %v1344
  %1906 = vmatprep.subr.bf16.mxu0 0
  %1907 = vmatpush1.bf16.msra.mxu0 %v1345
  %1908 = vmatprep.subr.bf16.mxu0 0
  %1909 = vmatpush1.bf16.msra.mxu0 %v1346
  %1910 = vmatprep.subr.bf16.mxu0 0
  %1911 = vmatpush1.bf16.msra.mxu0 %v1347
  %1912 = vmatprep.subr.bf16.mxu0 0
  %1913 = vmatpush1.bf16.msra.mxu0 %v1348
  %1914 = vmatprep.mubr.bf16.mxu0 %v678
  %1915 = vmatmul.mubr.bf16.gmra.mrb[0].mxu0 %v677
  %v1916 = vpop.f32.mrb[0].mxu0
  %v1917 = vadd.f32 %v1820, %v1916
  %v1918 = vpop.f32.mrb[0].mxu0
  %v1919 = vpop.f32.mrb[0].mxu0
  %v1920 = vadd.f32 %v1823, %v1919
  %v1921 = vpop.f32.mrb[0].mxu0
  %1922 = vmatprep.mubr.bf16.mxu0 %v691
  %1923 = vmatmul.mubr.bf16.gmra.mrb[0].mxu0 %v690
  %v1924 = vpop.f32.mrb[0].mxu0
  %v1925 = vadd.f32 %v1828, %v1924
  %v1926 = vpop.f32.mrb[0].mxu0
  %v1927 = vpop.f32.mrb[0].mxu0
  %v1928 = vadd.f32 %v1831, %v1927
  %v1929 = vpop.f32.mrb[0].mxu0
  %1930 = vmatprep.mubr.bf16.mxu0 %v704
  %1931 = vmatmul.mubr.bf16.gmra.mrb[0].mxu0 %v703
  %v1932 = vpop.f32.mrb[0].mxu0
  %v1933 = vadd.f32 %v1836, %v1932
  %v1934 = vpop.f32.mrb[0].mxu0
  %v1935 = vpop.f32.mrb[0].mxu0
  %v1936 = vadd.f32 %v1839, %v1935
  %v1937 = vpop.f32.mrb[0].mxu0
  %1938 = vmatprep.mubr.bf16.mxu0 %v717
  %1939 = vmatmul.mubr.bf16.gmra.mrb[0].mxu0 %v716
  %v1940 = vpop.f32.mrb[0].mxu0
  %v1941 = vadd.f32 %v1844, %v1940
  %v1942 = vpop.f32.mrb[0].mxu0
  %v1943 = vpop.f32.mrb[0].mxu0
  %v1944 = vadd.f32 %v1847, %v1943
  %v1945 = vpop.f32.mrb[0].mxu0
  %1946 = vmatprep.mubr.bf16.mxu0 %v730
  %1947 = vmatmul.mubr.bf16.gmra.mrb[0].mxu0 %v729
  %v1948 = vpop.f32.mrb[0].mxu0
  %v1949 = vadd.f32 %v1852, %v1948
  %v1950 = vpop.f32.mrb[0].mxu0
  %v1951 = vpop.f32.mrb[0].mxu0
  %v1952 = vadd.f32 %v1855, %v1951
  %v1953 = vpop.f32.mrb[0].mxu0
  %1954 = vmatprep.mubr.bf16.mxu0 %v743
  %1955 = vmatmul.mubr.bf16.gmra.mrb[0].mxu0 %v742
  %v1956 = vpop.f32.mrb[0].mxu0
  %v1957 = vadd.f32 %v1860, %v1956
  %v1958 = vpop.f32.mrb[0].mxu0
  %v1959 = vpop.f32.mrb[0].mxu0
  %v1960 = vadd.f32 %v1863, %v1959
  %v1961 = vpop.f32.mrb[0].mxu0
  %1962 = vmatprep.mubr.bf16.mxu0 %v756
  %1963 = vmatmul.mubr.bf16.gmra.mrb[0].mxu0 %v755
  %v1964 = vpop.f32.mrb[0].mxu0
  %v1965 = vadd.f32 %v1868, %v1964
  %v1966 = vpop.f32.mrb[0].mxu0
  %v1967 = vpop.f32.mrb[0].mxu0
  %v1968 = vadd.f32 %v1871, %v1967
  %v1969 = vpop.f32.mrb[0].mxu0
  %1970 = vmatprep.mubr.bf16.mxu0 %v769
  %1971 = vmatmul.mubr.bf16.gmra.mrb[0].mxu0 %v768
  %v1972 = vpop.f32.mrb[0].mxu0
  %v1973 = vadd.f32 %v1876, %v1972
  %v1974 = vpop.f32.mrb[0].mxu0
  %v1975 = vpop.f32.mrb[0].mxu0
  %v1976 = vadd.f32 %v1879, %v1975
  %v1977 = vpop.f32.mrb[0].mxu0
  %1978 = vdwg.mxu0
  %1979 = vmatprep.subr.bf16.mxu0 0
  %1980 = vmatpush1.bf16.msra.mxu0 %v1349
  %1981 = vmatprep.subr.bf16.mxu0 0
  %1982 = vmatpush1.bf16.msra.mxu0 %v1350
  %1983 = vmatprep.subr.bf16.mxu0 0
  %1984 = vmatpush1.bf16.msra.mxu0 %v1351
  %1985 = vmatprep.subr.bf16.mxu0 0
  %1986 = vmatpush1.bf16.msra.mxu0 %v1352
  %1987 = vmatprep.subr.bf16.mxu0 0
  %1988 = vmatpush1.bf16.msra.mxu0 %v1353
  %1989 = vmatprep.subr.bf16.mxu0 0
  %1990 = vmatpush1.bf16.msra.mxu0 %v1354
  %1991 = vmatprep.subr.bf16.mxu0 0
  %1992 = vmatpush1.bf16.msra.mxu0 %v1355
  %1993 = vmatprep.subr.bf16.mxu0 0
  %1994 = vmatpush1.bf16.msra.mxu0 %v1356
  %1995 = vmatprep.subr.bf16.mxu0 0
  %1996 = vmatpush1.bf16.msra.mxu0 %v1357
  %1997 = vmatprep.subr.bf16.mxu0 0
  %1998 = vmatpush1.bf16.msra.mxu0 %v1358
  %1999 = vmatprep.subr.bf16.mxu0 0
  %2000 = vmatpush1.bf16.msra.mxu0 %v1359
  %2001 = vmatprep.subr.bf16.mxu0 0
  %2002 = vmatpush1.bf16.msra.mxu0 %v1360
  %2003 = vmatprep.subr.bf16.mxu0 0
  %2004 = vmatpush1.bf16.msra.mxu0 %v1361
  %2005 = vmatprep.subr.bf16.mxu0 0
  %2006 = vmatpush1.bf16.msra.mxu0 %v1362
  %2007 = vmatprep.subr.bf16.mxu0 0
  %2008 = vmatpush1.bf16.msra.mxu0 %v1363
  %2009 = vmatprep.subr.bf16.mxu0 0
  %2010 = vmatpush1.bf16.msra.mxu0 %v1364
  %2011 = vmatprep.mubr.bf16.mxu0 %v680
  %2012 = vmatmul.mubr.bf16.gmra.mrb[0].mxu0 %v679
  %v2013 = vpop.f32.mrb[0].mxu0
  %v2014 = vadd.f32 %v1917, %v2013
  %v2015 = vpop.f32.mrb[0].mxu0
  %v2016 = vpop.f32.mrb[0].mxu0
  %v2017 = vadd.f32 %v1920, %v2016
  %v2018 = vpop.f32.mrb[0].mxu0
  %2019 = vmatprep.mubr.bf16.mxu0 %v693
  %2020 = vmatmul.mubr.bf16.gmra.mrb[0].mxu0 %v692
  %v2021 = vpop.f32.mrb[0].mxu0
  %v2022 = vadd.f32 %v1925, %v2021
  %v2023 = vpop.f32.mrb[0].mxu0
  %v2024 = vpop.f32.mrb[0].mxu0
  %v2025 = vadd.f32 %v1928, %v2024
  %v2026 = vpop.f32.mrb[0].mxu0
  %2027 = vmatprep.mubr.bf16.mxu0 %v706
  %2028 = vmatmul.mubr.bf16.gmra.mrb[0].mxu0 %v705
  %v2029 = vpop.f32.mrb[0].mxu0
  %v2030 = vadd.f32 %v1933, %v2029
  %v2031 = vpop.f32.mrb[0].mxu0
  %v2032 = vpop.f32.mrb[0].mxu0
  %v2033 = vadd.f32 %v1936, %v2032
  %v2034 = vpop.f32.mrb[0].mxu0
  %2035 = vmatprep.mubr.bf16.mxu0 %v719
  %2036 = vmatmul.mubr.bf16.gmra.mrb[0].mxu0 %v718
  %v2037 = vpop.f32.mrb[0].mxu0
  %v2038 = vadd.f32 %v1941, %v2037
  %v2039 = vpop.f32.mrb[0].mxu0
  %v2040 = vpop.f32.mrb[0].mxu0
  %v2041 = vadd.f32 %v1944, %v2040
  %v2042 = vpop.f32.mrb[0].mxu0
  %2043 = vmatprep.mubr.bf16.mxu0 %v732
  %2044 = vmatmul.mubr.bf16.gmra.mrb[0].mxu0 %v731
  %v2045 = vpop.f32.mrb[0].mxu0
  %v2046 = vadd.f32 %v1949, %v2045
  %v2047 = vpop.f32.mrb[0].mxu0
  %v2048 = vpop.f32.mrb[0].mxu0
  %v2049 = vadd.f32 %v1952, %v2048
  %v2050 = vpop.f32.mrb[0].mxu0
  %2051 = vmatprep.mubr.bf16.mxu0 %v745
  %2052 = vmatmul.mubr.bf16.gmra.mrb[0].mxu0 %v744
  %v2053 = vpop.f32.mrb[0].mxu0
  %v2054 = vadd.f32 %v1957, %v2053
  %v2055 = vpop.f32.mrb[0].mxu0
  %v2056 = vpop.f32.mrb[0].mxu0
  %v2057 = vadd.f32 %v1960, %v2056
  %v2058 = vpop.f32.mrb[0].mxu0
  %2059 = vmatprep.mubr.bf16.mxu0 %v758
  %2060 = vmatmul.mubr.bf16.gmra.mrb[0].mxu0 %v757
  %v2061 = vpop.f32.mrb[0].mxu0
  %v2062 = vadd.f32 %v1965, %v2061
  %v2063 = vpop.f32.mrb[0].mxu0
  %v2064 = vpop.f32.mrb[0].mxu0
  %v2065 = vadd.f32 %v1968, %v2064
  %v2066 = vpop.f32.mrb[0].mxu0
  %2067 = vmatprep.mubr.bf16.mxu0 %v771
  %2068 = vmatmul.mubr.bf16.gmra.mrb[0].mxu0 %v770
  %v2069 = vpop.f32.mrb[0].mxu0
  %v2070 = vadd.f32 %v1973, %v2069
  %v2071 = vpop.f32.mrb[0].mxu0
  %v2072 = vpop.f32.mrb[0].mxu0
  %v2073 = vadd.f32 %v1976, %v2072
  %v2074 = vpop.f32.mrb[0].mxu0
  %2075 = vdwg.mxu0
  %2076 = vmatprep.subr.bf16.mxu0 0
  %2077 = vmatpush1.bf16.msra.mxu0 %v1365
  %2078 = vmatprep.subr.bf16.mxu0 0
  %2079 = vmatpush1.bf16.msra.mxu0 %v1366
  %2080 = vmatprep.subr.bf16.mxu0 0
  %2081 = vmatpush1.bf16.msra.mxu0 %v1367
  %2082 = vmatprep.subr.bf16.mxu0 0
  %2083 = vmatpush1.bf16.msra.mxu0 %v1368
  %2084 = vmatprep.subr.bf16.mxu0 0
  %2085 = vmatpush1.bf16.msra.mxu0 0
  %2086 = vmatprep.subr.bf16.mxu0 0
  %2087 = vmatpush1.bf16.msra.mxu0 0
  %2088 = vmatprep.subr.bf16.mxu0 0
  %2089 = vmatpush1.bf16.msra.mxu0 0
  %2090 = vmatprep.subr.bf16.mxu0 0
  %2091 = vmatpush1.bf16.msra.mxu0 0
  %2092 = vmatprep.subr.bf16.mxu0 0
  %2093 = vmatpush1.bf16.msra.mxu0 0
  %2094 = vmatprep.subr.bf16.mxu0 0
  %2095 = vmatpush1.bf16.msra.mxu0 0
  %2096 = vmatprep.subr.bf16.mxu0 0
  %2097 = vmatpush1.bf16.msra.mxu0 0
  %2098 = vmatprep.subr.bf16.mxu0 0
  %2099 = vmatpush1.bf16.msra.mxu0 0
  %2100 = vmatprep.subr.bf16.mxu0 0
  %2101 = vmatpush1.bf16.msra.mxu0 0
  %2102 = vmatprep.subr.bf16.mxu0 0
  %2103 = vmatpush1.bf16.msra.mxu0 0
  %2104 = vmatprep.subr.bf16.mxu0 0
  %2105 = vmatpush1.bf16.msra.mxu0 0
  %2106 = vmatprep.subr.bf16.mxu0 0
  %2107 = vmatpush1.bf16.msra.mxu0 0
  %2108 = vmatprep.mubr.bf16.mxu0 0
  %2109 = vmatmul.mubr.bf16.gmra.mrb[0].mxu0 %v1471
  %v2110 = vpop.f32.mrb[0].mxu0
  %v2111 = vadd.f32 %v2014, %v2110
  %v2112 = vpop.f32.mrb[0].mxu0
  %v2113 = vpop.f32.mrb[0].mxu0
  %v2114 = vadd.f32 %v2017, %v2113
  %v2115 = vpop.f32.mrb[0].mxu0
  %2116 = vmatprep.mubr.bf16.mxu0 0
  %2117 = vmatmul.mubr.bf16.gmra.mrb[0].mxu0 %v1474
  %v2118 = vpop.f32.mrb[0].mxu0
  %v2119 = vadd.f32 %v2022, %v2118
  %v2120 = vpop.f32.mrb[0].mxu0
  %v2121 = vpop.f32.mrb[0].mxu0
  %v2122 = vadd.f32 %v2025, %v2121
  %v2123 = vpop.f32.mrb[0].mxu0
  %2124 = vmatprep.mubr.bf16.mxu0 0
  %2125 = vmatmul.mubr.bf16.gmra.mrb[0].mxu0 %v1477
  %v2126 = vpop.f32.mrb[0].mxu0
  %v2127 = vadd.f32 %v2030, %v2126
  %v2128 = vpop.f32.mrb[0].mxu0
  %v2129 = vpop.f32.mrb[0].mxu0
  %v2130 = vadd.f32 %v2033, %v2129
  %v2131 = vpop.f32.mrb[0].mxu0
  %2132 = vmatprep.mubr.bf16.mxu0 0
  %2133 = vmatmul.mubr.bf16.gmra.mrb[0].mxu0 %v1480
  %v2134 = vpop.f32.mrb[0].mxu0
  %v2135 = vadd.f32 %v2038, %v2134
  %v2136 = vpop.f32.mrb[0].mxu0
  %v2137 = vpop.f32.mrb[0].mxu0
  %v2138 = vadd.f32 %v2041, %v2137
  %v2139 = vpop.f32.mrb[0].mxu0
  %2140 = vmatprep.mubr.bf16.mxu0 0
  %2141 = vmatmul.mubr.bf16.gmra.mrb[0].mxu0 %v1483
  %v2142 = vpop.f32.mrb[0].mxu0
  %v2143 = vadd.f32 %v2046, %v2142
  %v2144 = vpop.f32.mrb[0].mxu0
  %v2145 = vpop.f32.mrb[0].mxu0
  %v2146 = vadd.f32 %v2049, %v2145
  %v2147 = vpop.f32.mrb[0].mxu0
  %2148 = vmatprep.mubr.bf16.mxu0 0
  %2149 = vmatmul.mubr.bf16.gmra.mrb[0].mxu0 %v1486
  %v2150 = vpop.f32.mrb[0].mxu0
  %v2151 = vadd.f32 %v2054, %v2150
  %v2152 = vpop.f32.mrb[0].mxu0
  %v2153 = vpop.f32.mrb[0].mxu0
  %v2154 = vadd.f32 %v2057, %v2153
  %v2155 = vpop.f32.mrb[0].mxu0
  %2156 = vmatprep.mubr.bf16.mxu0 0
  %2157 = vmatmul.mubr.bf16.gmra.mrb[0].mxu0 %v1489
  %v2158 = vpop.f32.mrb[0].mxu0
  %v2159 = vadd.f32 %v2062, %v2158
  %v2160 = vpop.f32.mrb[0].mxu0
  %v2161 = vpop.f32.mrb[0].mxu0
  %v2162 = vadd.f32 %v2065, %v2161
  %v2163 = vpop.f32.mrb[0].mxu0
  %2164 = vmatprep.mubr.bf16.mxu0 0
  %2165 = vmatmul.mubr.bf16.gmra.mrb[0].mxu0 %v1492
  %v2166 = vpop.f32.mrb[0].mxu0
  %v2167 = vadd.f32 %v2070, %v2166
  %v2168 = vpop.f32.mrb[0].mxu0
  %v2169 = vpop.f32.mrb[0].mxu0
  %v2170 = vadd.f32 %v2073, %v2169
  %v2171 = vpop.f32.mrb[0].mxu0
  %2172 = vdwg.mxu0
  %v2173 = vpack.c.bf16 %v2114, %v2111
  %v2174 = vpack.c.bf16 %v2122, %v2119
  %v2175 = vpack.c.bf16 %v2130, %v2127
  %v2176 = vpack.c.bf16 %v2138, %v2135
  %v2177 = vpack.c.bf16 %v2146, %v2143
  %v2178 = vpack.c.bf16 %v2154, %v2151
  %v2179 = vpack.c.bf16 %v2162, %v2159
  %v2180 = vpack.c.bf16 %v2170, %v2167
  %v2181 = vld [vmem:[%s3] sm:$0xf]
  %v2182 = vld [vmem:[%s3 + $0x4] sm:$0xf]
  %v2183 = vld [vmem:[%s3 + $0x8] sm:$0xf]
  %v2184 = vld [vmem:[%s3 + $0xc] sm:$0xf]
  %v2185 = vld [vmem:[%s4] sm:$0x1]
  %v2187 = vlaneseq
  %v2188 = vshrl.u32 %v2187, 7
  %v2189 = vsub.s32 0, %v2188
  %v2190 = vrot.slane %v2185, %v2189
  %v2196 = vunpack.c.l.b16 %v2181
  %v2197 = vunpack.c.l.b16 %v2182
  %v2198 = vunpack.c.l.b16 %v2183
  %v2199 = vunpack.c.l.b16 %v2184
  %v2200 = vpack.c.b16 %v2197, %v2196
  %v2201 = vpack.c.b16 %v2199, %v2198
  %vm2204 = vcmask 261120
  %v2206 = vsel %vm2204, %v2173, 0
  %v2209 = vsel %vm2204, %v2174, 0
  %v2212 = vsel %vm2204, %v2175, 0
  %v2215 = vsel %vm2204, %v2176, 0
  %v2218 = vsel %vm2204, %v2177, 0
  %v2221 = vsel %vm2204, %v2178, 0
  %v2224 = vsel %vm2204, %v2179, 0
  %v2227 = vsel %vm2204, %v2180, 0
  %2229 = vmatprep.subr.bf16.mxu0 0
  %2230 = vmatpush1.bf16.msra.mxu0 %v2200
  %2231 = vmatprep.subr.bf16.mxu0 0
  %2232 = vmatpush1.bf16.msra.mxu0 %v2201
  %2233 = vmatprep.subr.bf16.mxu0 0
  %2234 = vmatpush1.bf16.msra.mxu0 0
  %2235 = vmatprep.subr.bf16.mxu0 0
  %2236 = vmatpush1.bf16.msra.mxu0 0
  %2237 = vmatprep.subr.bf16.mxu0 0
  %2238 = vmatpush1.bf16.msra.mxu0 0
  %2239 = vmatprep.subr.bf16.mxu0 0
  %2240 = vmatpush1.bf16.msra.mxu0 0
  %2241 = vmatprep.subr.bf16.mxu0 0
  %2242 = vmatpush1.bf16.msra.mxu0 0
  %2243 = vmatprep.subr.bf16.mxu0 0
  %2244 = vmatpush1.bf16.msra.mxu0 0
  %2245 = vmatprep.subr.bf16.mxu0 0
  %2246 = vmatpush1.bf16.msra.mxu0 0
  %2247 = vmatprep.subr.bf16.mxu0 0
  %2248 = vmatpush1.bf16.msra.mxu0 0
  %2249 = vmatprep.subr.bf16.mxu0 0
  %2250 = vmatpush1.bf16.msra.mxu0 0
  %2251 = vmatprep.subr.bf16.mxu0 0
  %2252 = vmatpush1.bf16.msra.mxu0 0
  %2253 = vmatprep.subr.bf16.mxu0 0
  %2254 = vmatpush1.bf16.msra.mxu0 0
  %2255 = vmatprep.subr.bf16.mxu0 0
  %2256 = vmatpush1.bf16.msra.mxu0 0
  %2257 = vmatprep.subr.bf16.mxu0 0
  %2258 = vmatpush1.bf16.msra.mxu0 0
  %2259 = vmatprep.subr.bf16.mxu0 0
  %2260 = vmatpush1.bf16.msra.mxu0 0
  %2261 = vmatprep.mubr.bf16.mxu0 0
  %2262 = vmatmul.mubr.bf16.gmra.mrb[0].mxu0 %v2206
  %v2263 = vpop.f32.mrb[0].mxu0
  %v2264 = vadd.f32 %v2190, %v2263
  %v2265 = vpop.f32.mrb[0].mxu0
  %v2266 = vpop.f32.mrb[0].mxu0
  %v2267 = vadd.f32 %v2190, %v2266
  %v2268 = vpop.f32.mrb[0].mxu0
  %2269 = vmatprep.mubr.bf16.mxu0 0
  %2270 = vmatmul.mubr.bf16.gmra.mrb[0].mxu0 %v2209
  %v2271 = vpop.f32.mrb[0].mxu0
  %v2272 = vadd.f32 %v2190, %v2271
  %v2273 = vpop.f32.mrb[0].mxu0
  %v2274 = vpop.f32.mrb[0].mxu0
  %v2275 = vadd.f32 %v2190, %v2274
  %v2276 = vpop.f32.mrb[0].mxu0
  %2277 = vmatprep.mubr.bf16.mxu0 0
  %2278 = vmatmul.mubr.bf16.gmra.mrb[0].mxu0 %v2212
  %v2279 = vpop.f32.mrb[0].mxu0
  %v2280 = vadd.f32 %v2190, %v2279
  %v2281 = vpop.f32.mrb[0].mxu0
  %v2282 = vpop.f32.mrb[0].mxu0
  %v2283 = vadd.f32 %v2190, %v2282
  %v2284 = vpop.f32.mrb[0].mxu0
  %2285 = vmatprep.mubr.bf16.mxu0 0
  %2286 = vmatmul.mubr.bf16.gmra.mrb[0].mxu0 %v2215
  %v2287 = vpop.f32.mrb[0].mxu0
  %v2288 = vadd.f32 %v2190, %v2287
  %v2289 = vpop.f32.mrb[0].mxu0
  %v2290 = vpop.f32.mrb[0].mxu0
  %v2291 = vadd.f32 %v2190, %v2290
  %v2292 = vpop.f32.mrb[0].mxu0
  %2293 = vmatprep.mubr.bf16.mxu0 0
  %2294 = vmatmul.mubr.bf16.gmra.mrb[0].mxu0 %v2218
  %v2295 = vpop.f32.mrb[0].mxu0
  %v2296 = vadd.f32 %v2190, %v2295
  %v2297 = vpop.f32.mrb[0].mxu0
  %v2298 = vpop.f32.mrb[0].mxu0
  %v2299 = vadd.f32 %v2190, %v2298
  %v2300 = vpop.f32.mrb[0].mxu0
  %2301 = vmatprep.mubr.bf16.mxu0 0
  %2302 = vmatmul.mubr.bf16.gmra.mrb[0].mxu0 %v2221
  %v2303 = vpop.f32.mrb[0].mxu0
  %v2304 = vadd.f32 %v2190, %v2303
  %v2305 = vpop.f32.mrb[0].mxu0
  %v2306 = vpop.f32.mrb[0].mxu0
  %v2307 = vadd.f32 %v2190, %v2306
  %v2308 = vpop.f32.mrb[0].mxu0
  %2309 = vmatprep.mubr.bf16.mxu0 0
  %2310 = vmatmul.mubr.bf16.gmra.mrb[0].mxu0 %v2224
  %v2311 = vpop.f32.mrb[0].mxu0
  %v2312 = vadd.f32 %v2190, %v2311
  %v2313 = vpop.f32.mrb[0].mxu0
  %v2314 = vpop.f32.mrb[0].mxu0
  %v2315 = vadd.f32 %v2190, %v2314
  %v2316 = vpop.f32.mrb[0].mxu0
  %2317 = vmatprep.mubr.bf16.mxu0 0
  %2318 = vmatmul.mubr.bf16.gmra.mrb[0].mxu0 %v2227
  %v2319 = vpop.f32.mrb[0].mxu0
  %v2320 = vadd.f32 %v2190, %v2319
  %v2321 = vpop.f32.mrb[0].mxu0
  %v2322 = vpop.f32.mrb[0].mxu0
  %v2323 = vadd.f32 %v2190, %v2322
  %v2324 = vpop.f32.mrb[0].mxu0
  %2325 = vdwg.mxu0
  %vm2326 = vcmp.ge.f32.partialorder %v2264, 0.0
  %vm2327 = vcmp.ge.f32.partialorder %v2267, 0.0
  %vm2328 = vcmp.ge.f32.partialorder %v2272, 0.0
  %vm2329 = vcmp.ge.f32.partialorder %v2275, 0.0
  %vm2330 = vcmp.ge.f32.partialorder %v2280, 0.0
  %vm2331 = vcmp.ge.f32.partialorder %v2283, 0.0
  %vm2332 = vcmp.ge.f32.partialorder %v2288, 0.0
  %vm2333 = vcmp.ge.f32.partialorder %v2291, 0.0
  %vm2334 = vcmp.ge.f32.partialorder %v2296, 0.0
  %vm2335 = vcmp.ge.f32.partialorder %v2299, 0.0
  %vm2336 = vcmp.ge.f32.partialorder %v2304, 0.0
  %vm2337 = vcmp.ge.f32.partialorder %v2307, 0.0
  %vm2338 = vcmp.ge.f32.partialorder %v2312, 0.0
  %vm2339 = vcmp.ge.f32.partialorder %v2315, 0.0
  %vm2340 = vcmp.ge.f32.partialorder %v2320, 0.0
  %vm2341 = vcmp.ge.f32.partialorder %v2323, 0.0
  %v2342 = vmul.f32 %v2264, 0.1
  %v2343 = vmul.f32 %v2267, 0.1
  %v2344 = vmul.f32 %v2272, 0.1
  %v2345 = vmul.f32 %v2275, 0.1
  %v2346 = vmul.f32 %v2280, 0.1
  %v2347 = vmul.f32 %v2283, 0.1
  %v2348 = vmul.f32 %v2288, 0.1
  %v2349 = vmul.f32 %v2291, 0.1
  %v2350 = vmul.f32 %v2296, 0.1
  %v2351 = vmul.f32 %v2299, 0.1
  %v2352 = vmul.f32 %v2304, 0.1
  %v2353 = vmul.f32 %v2307, 0.1
  %v2354 = vmul.f32 %v2312, 0.1
  %v2355 = vmul.f32 %v2315, 0.1
  %v2356 = vmul.f32 %v2320, 0.1
  %v2357 = vmul.f32 %v2323, 0.1
  %v2358 = vsel %vm2326, %v2264, %v2342
  %v2359 = vsel %vm2327, %v2267, %v2343
  %v2360 = vsel %vm2328, %v2272, %v2344
  %v2361 = vsel %vm2329, %v2275, %v2345
  %v2362 = vsel %vm2330, %v2280, %v2346
  %v2363 = vsel %vm2331, %v2283, %v2347
  %v2364 = vsel %vm2332, %v2288, %v2348
  %v2365 = vsel %vm2333, %v2291, %v2349
  %v2366 = vsel %vm2334, %v2296, %v2350
  %v2367 = vsel %vm2335, %v2299, %v2351
  %v2368 = vsel %vm2336, %v2304, %v2352
  %v2369 = vsel %vm2337, %v2307, %v2353
  %v2370 = vsel %vm2338, %v2312, %v2354
  %v2371 = vsel %vm2339, %v2315, %v2355
  %v2372 = vsel %vm2340, %v2320, %v2356
  %v2373 = vsel %vm2341, %v2323, %v2357
  %2374 = vst [vmem:[%s5] sm:$0xff] %v2358
  %2375 = vst [vmem:[%s5 + $0x8] sm:$0xff] %v2359
  %2376 = vst [vmem:[%s5 + $0x10] sm:$0xff] %v2360
  %2377 = vst [vmem:[%s5 + $0x18] sm:$0xff] %v2361
  %2378 = vst [vmem:[%s5 + $0x20] sm:$0xff] %v2362
  %2379 = vst [vmem:[%s5 + $0x28] sm:$0xff] %v2363
  %2380 = vst [vmem:[%s5 + $0x30] sm:$0xff] %v2364
  %2381 = vst [vmem:[%s5 + $0x38] sm:$0xff] %v2365
  %2382 = vst [vmem:[%s5 + $0x40] sm:$0xff] %v2366
  %2383 = vst [vmem:[%s5 + $0x48] sm:$0xff] %v2367
  %2384 = vst [vmem:[%s5 + $0x50] sm:$0xff] %v2368
  %2385 = vst [vmem:[%s5 + $0x58] sm:$0xff] %v2369
  %2386 = vst [vmem:[%s5 + $0x60] sm:$0xff] %v2370
  %2387 = vst [vmem:[%s5 + $0x68] sm:$0xff] %v2371
  %2388 = vst [vmem:[%s5 + $0x70] sm:$0xff] %v2372
  %2389 = vst [vmem:[%s5 + $0x78] sm:$0xff] %v2373
  // Predicated region
  $region22: #{unet_decoder.19} parent=0 // pred_check
    _
  $region23: #{unet_decoder.19} parent=0 // pred_check_branch
    %2391 = sbr.rel (0) target = $region25
  $region24: #{unet_decoder.19} parent=0 // pred_region
    _
  $region25: #{unet_decoder.19} parent=0 // pred_fallthru
    _
  // Predicated region
  $region26: #{unet_decoder.19} parent=0 // pred_check
    _
  $region27: #{unet_decoder.19} parent=0 // pred_check_branch
    %2393 = sbr.rel (0) target = $region29
  $region28: #{unet_decoder.19} parent=0 // pred_region
    _
  $region29: #{unet_decoder.19} parent=0 // pred_fallthru
    _

// kernel: unet_decoder.20
$region0: #{unet_decoder.20}
  #allocation0 [shape = 'u32[]', space=smem, size = 0x4, offset = 0x4, fixed_abs, tag = 'smem constant byte address 0x4 - core index']
  #allocation1 [shape = 'u32[144,128]{1,0:T(1,128)}', space=vmem, size = 0x12000, scoped, tag = 'internal scratch']
  %s0 = inlined_call_operand.vmem [shape: bf16[512,288], index: 0, kind: input, shape index: {}]
  %s1 = inlined_call_operand.vmem [shape: bf16[288,3], index: 1, kind: input, shape index: {}]
  %s2 = inlined_call_operand.vmem [shape: f32[1,3], index: 2, kind: input, shape index: {}]
  %s3 = inlined_call_operand.vmem [shape: f32[512,3], index: 3, kind: output, shape index: {}]
  %s4 = sld [smem:[#allocation0]]
  $region45: #{unet_decoder.20} parent=0
    _
  %s6 = ssub.s32 1, %s4
  %s7 = scalar_select 0, %s6, %s4
  loop: start=0, step=1, limit=4
  $region2: #{unet_decoder.20} parent=0 // loop_pre_header
    _
  $region3: #{unet_decoder.20} parent=0 // loop_header
    %s9 = sphi 0, %s13
    %p10 = scmp.ge.s32.totalorder %s9, 4
    %s19 = sphi 0, %s21
    %s22 = sphi 0, %s19
    %s23 = sphi 0, %s22
    %s39 = sphi 0, %s23
    %s43 = sphi 0, %s43
    %s45 = sphi 0, %s43
    %s46 = sphi 0, %s45
    %s60 = sphi 0, %s46
    %s64 = sphi 0, %s64
    %s66 = sphi 0, %s64
    %s67 = sphi 0, %s66
    %s81 = sphi 0, %s67
    %s87 = sphi 0, %s89
    %s90 = sphi 0, %s87
    %s91 = sphi 0, %s90
    %s107 = sphi 0, %s91
  $region4: #{unet_decoder.20} parent=0 // loop_header_branch
    %12 = sbr.rel (%p10) target = $region8
  $region5: #{unet_decoder.20} parent=0 // loop_body
    %s14 = ssub.s32 %s9, 1
    %s15 = ssub.s32 %s9, 2
    %s16 = sadd.s32 %s9, 1
    %s17 = ssub.s32 %s9, %s16
    %p18 = scmp.eq.s32.totalorder %s17, 0
    %s20 = sadd.s32 %s19, 1
    %s21 = scalar_select %p18, %s19, %s20
    %p24 = pneg %p18
    %p25 = scmp.eq.s32.totalorder %s9, 1
    %p26 = por %p24, %p25
    %p27 = scmp.ne.s32.totalorder %s19, %s22
    %p28 = scmp.eq.s32.totalorder %s9, 0
    %p29 = por %p27, %p28
    %p30 = scmp.ne.s32.totalorder %s19, %s22
    %p31 = scmp.eq.s32.totalorder %s14, 1
    %p32 = por %p30, %p31
    %p33 = scmp.ne.s32.totalorder %s22, %s23
    %p34 = scmp.eq.s32.totalorder %s14, 0
    %p35 = por %p33, %p34
    %p36 = scmp.ne.s32.totalorder %s22, %s23
    %p37 = scmp.eq.s32.totalorder %s15, 1
    %p38 = por %p36, %p37
    %p40 = scmp.ne.s32.totalorder %s23, %s39
    %p41 = scmp.eq.s32.totalorder %s15, 0
    %p42 = por %p40, %p41
    %s44 = sadd.s32 %s43, 1
    %p47 = scmp.eq.s32.totalorder %s9, 1
    %p48 = scmp.ne.s32.totalorder %s43, %s45
    %p49 = scmp.eq.s32.totalorder %s9, 0
    %p50 = por %p48, %p49
    %p51 = scmp.ne.s32.totalorder %s43, %s45
    %p52 = scmp.eq.s32.totalorder %s14, 1
    %p53 = por %p51, %p52
    %p54 = scmp.ne.s32.totalorder %s45, %s46
    %p55 = scmp.eq.s32.totalorder %s14, 0
    %p56 = por %p54, %p55
    %p57 = scmp.ne.s32.totalorder %s45, %s46
    %p58 = scmp.eq.s32.totalorder %s15, 1
    %p59 = por %p57, %p58
    %p61 = scmp.ne.s32.totalorder %s46, %s60
    %p62 = scmp.eq.s32.totalorder %s15, 0
    %p63 = por %p61, %p62
    %s65 = sadd.s32 %s64, 1
    %p68 = scmp.eq.s32.totalorder %s9, 1
    %p69 = scmp.ne.s32.totalorder %s64, %s66
    %p70 = scmp.eq.s32.totalorder %s9, 0
    %p71 = por %p69, %p70
    %p72 = scmp.ne.s32.totalorder %s64, %s66
    %p73 = scmp.eq.s32.totalorder %s14, 1
    %p74 = por %p72, %p73
    %p75 = scmp.ne.s32.totalorder %s66, %s67
    %p76 = scmp.eq.s32.totalorder %s14, 0
    %p77 = por %p75, %p76
    %p78 = scmp.ne.s32.totalorder %s66, %s67
    %p79 = scmp.eq.s32.totalorder %s15, 1
    %p80 = por %p78, %p79
    %p82 = scmp.ne.s32.totalorder %s67, %s81
    %p83 = scmp.eq.s32.totalorder %s15, 0
    %p84 = por %p82, %p83
    %s85 = ssub.s32 %s9, %s16
    %p86 = scmp.eq.s32.totalorder %s85, 0
    %s88 = sadd.s32 %s87, 1
    %s89 = scalar_select %p86, %s87, %s88
    %p92 = pneg %p86
    %p93 = scmp.eq.s32.totalorder %s9, 1
    %p94 = por %p92, %p93
    %p95 = scmp.ne.s32.totalorder %s87, %s90
    %p96 = scmp.eq.s32.totalorder %s9, 0
    %p97 = por %p95, %p96
    %p98 = scmp.ne.s32.totalorder %s87, %s90
    %p99 = scmp.eq.s32.totalorder %s14, 1
    %p100 = por %p98, %p99
    %p101 = scmp.ne.s32.totalorder %s90, %s91
    %p102 = scmp.eq.s32.totalorder %s14, 0
    %p103 = por %p101, %p102
    %p104 = scmp.ne.s32.totalorder %s90, %s91
    %p105 = scmp.eq.s32.totalorder %s15, 1
    %p106 = por %p104, %p105
    %p108 = scmp.ne.s32.totalorder %s91, %s107
    %p109 = scmp.eq.s32.totalorder %s15, 0
    %p110 = por %p108, %p109
    %p111 = scmp.le.s32.totalorder 1, %s9
    %p112 = scmp.lt.s32.totalorder %s9, 3
    %p113 = pnand %p111, %p112
    %p114 = pneg %p113
    // Predicated region
    $region9: #{unet_decoder.20} parent=5 // pred_check
      _
    $region10: #{unet_decoder.20} parent=5 // pred_check_branch
      %116 = sbr.rel (%p113) target = $region12
    $region11: #{unet_decoder.20} parent=5 // pred_region
      %s117 = ssub.s32 %s9, 1
      // Predicated region
      $region13: #{unet_decoder.20} parent=11 // pred_check
        %p118 = pneg %p56
      $region14: #{unet_decoder.20} parent=11 // pred_check_branch
        %120 = sbr.rel (%p118) target = $region16
      $region15: #{unet_decoder.20} parent=11 // pred_region
        _
      $region16: #{unet_decoder.20} parent=11 // pred_fallthru
        _
      // Predicated region
      $region17: #{unet_decoder.20} parent=11 // pred_check
        %p121 = pneg %p77
      $region18: #{unet_decoder.20} parent=11 // pred_check_branch
        %123 = sbr.rel (%p121) target = $region20
      $region19: #{unet_decoder.20} parent=11 // pred_region
        _
      $region20: #{unet_decoder.20} parent=11 // pred_fallthru
        _
    $region12: #{unet_decoder.20} parent=5 // pred_fallthru
      _
    %p124 = scmp.lt.s32.totalorder %s9, 2
    // Predicated region
    $region21: #{unet_decoder.20} parent=5 // pred_check
      %p125 = pneg %p124
    $region22: #{unet_decoder.20} parent=5 // pred_check_branch
      %127 = sbr.rel (%p125) target = $region24
    $region23: #{unet_decoder.20} parent=5 // pred_region
      // Predicated region
      $region25: #{unet_decoder.20} parent=23 // pred_check
        %p128 = pneg %p29
      $region26: #{unet_decoder.20} parent=23 // pred_check_branch
        %130 = sbr.rel (%p128) target = $region28
      $region27: #{unet_decoder.20} parent=23 // pred_region
        %s131 = smul.u32 32, %s9
        %p132 = scmp.lt.s32.totalorder %s131, 63
        %s133 = scalar_select %p132, %s131, 63
        %s134 = smul.addr %s133, 3
        %s135 = smul.addr %s134, 4
        %s136 = scalar_lea.vmem %s0, %s135
        %s137 = smul.u32 32, %s9
      $region28: #{unet_decoder.20} parent=23 // pred_fallthru
        _
    $region24: #{unet_decoder.20} parent=5 // pred_fallthru
      _
    %p138 = scmp.le.s32.totalorder 1, %s9
    %p139 = scmp.lt.s32.totalorder %s9, 3
    %p140 = pnand %p138, %p139
    %p141 = pneg %p140
    // Predicated region
    $region29: #{unet_decoder.20} parent=5 // pred_check
      _
    $region30: #{unet_decoder.20} parent=5 // pred_check_branch
      %143 = sbr.rel (%p140) target = $region32
    $region31: #{unet_decoder.20} parent=5 // pred_region
      %s144 = ssub.s32 %s9, 1
      %s145 = smul.u32 32, %s14
      %p146 = scmp.lt.s32.totalorder %s145, 63
      %s147 = scalar_select %p146, %s145, 63
      %s148 = smul.addr %s147, 3
      %s149 = smul.addr %s148, 4
      %s150 = scalar_lea.vmem %s0, %s149
      %p151 = pneg %p35
      %p152 = pneg %p32
      %p153 = pneg %p56
      %p154 = pneg %p53
      %p155 = pneg %p77
      %p156 = pneg %p74
      %p157 = pneg %p103
      %p158 = pneg %p100
      %s159 = smul.u32 32, %s14
      %p160 = scmp.lt.s32.totalorder %s159, 63
      %s161 = scalar_select %p160, %s159, 63
      %s162 = smul.addr %s161, 8
      %s163 = scalar_lea.vmem %s3, %s162
      %s164 = smul.u32 32, %s14
      %p165 = scmp.lt.s32.totalorder %s164, 63
      %s166 = scalar_select %p165, %s164, 63
      %s167 = smul.addr %s166, 3
      %s168 = smul.addr %s167, 4
      %s169 = scalar_lea.vmem %s0, %s168
      %s170 = smul.u32 32, %s14
      %s171 = smul.u32 32, %s14
      %p172 = scmp.lt.s32.totalorder %s171, 63
      %s173 = scalar_select %p172, %s171, 63
      %s174 = smul.addr %s173, 8
      %s175 = scalar_lea.vmem %s3, %s174
      %s176 = smul.u32 32, %s14
      %v178 = vld [vmem:[%s169] sm:$0xff]
      %v179 = vld [vmem:[%s169 + $0x8] sm:$0xf]
      %v180 = vld [vmem:[%s169 + $0xc] sm:$0xff]
      %v181 = vld [vmem:[%s169 + $0x14] sm:$0xf]
      %v182 = vld [vmem:[%s169 + $0x18] sm:$0xff]
      %v183 = vld [vmem:[%s169 + $0x20] sm:$0xf]
      %v184 = vld [vmem:[%s169 + $0x24] sm:$0xff]
      %v185 = vld [vmem:[%s169 + $0x2c] sm:$0xf]
      %v186 = vld [vmem:[%s169 + $0x30] sm:$0xff]
      %v187 = vld [vmem:[%s169 + $0x38] sm:$0xf]
      %v188 = vld [vmem:[%s169 + $0x3c] sm:$0xff]
      %v189 = vld [vmem:[%s169 + $0x44] sm:$0xf]
      %v190 = vld [vmem:[%s169 + $0x48] sm:$0xff]
      %v191 = vld [vmem:[%s169 + $0x50] sm:$0xf]
      %v192 = vld [vmem:[%s169 + $0x54] sm:$0xff]
      %v193 = vld [vmem:[%s169 + $0x5c] sm:$0xf]
      %v194 = vld [vmem:[%s169 + $0x60] sm:$0xff]
      %v195 = vld [vmem:[%s169 + $0x68] sm:$0xf]
      %v196 = vld [vmem:[%s169 + $0x6c] sm:$0xff]
      %v197 = vld [vmem:[%s169 + $0x74] sm:$0xf]
      %v198 = vld [vmem:[%s169 + $0x78] sm:$0xff]
      %v199 = vld [vmem:[%s169 + $0x80] sm:$0xf]
      %v200 = vld [vmem:[%s169 + $0x84] sm:$0xff]
      %v201 = vld [vmem:[%s169 + $0x8c] sm:$0xf]
      %v202 = vld [vmem:[%s169 + $0x90] sm:$0xff]
      %v203 = vld [vmem:[%s169 + $0x98] sm:$0xf]
      %v204 = vld [vmem:[%s169 + $0x9c] sm:$0xff]
      %v205 = vld [vmem:[%s169 + $0xa4] sm:$0xf]
      %v206 = vld [vmem:[%s169 + $0xa8] sm:$0xff]
      %v207 = vld [vmem:[%s169 + $0xb0] sm:$0xf]
      %v208 = vld [vmem:[%s169 + $0xb4] sm:$0xff]
      %v209 = vld [vmem:[%s169 + $0xbc] sm:$0xf]
      %v210 = vld [vmem:[%s169 + $0xc0] sm:$0xff]
      %v211 = vld [vmem:[%s169 + $0xc8] sm:$0xf]
      %v212 = vld [vmem:[%s169 + $0xcc] sm:$0xff]
      %v213 = vld [vmem:[%s169 + $0xd4] sm:$0xf]
      %v214 = vld [vmem:[%s169 + $0xd8] sm:$0xff]
      %v215 = vld [vmem:[%s169 + $0xe0] sm:$0xf]
      %v216 = vld [vmem:[%s169 + $0xe4] sm:$0xff]
      %v217 = vld [vmem:[%s169 + $0xec] sm:$0xf]
      %v218 = vld [vmem:[%s169 + $0xf0] sm:$0xff]
      %v219 = vld [vmem:[%s169 + $0xf8] sm:$0xf]
      %v220 = vld [vmem:[%s169 + $0xfc] sm:$0xff]
      %v221 = vld [vmem:[%s169 + $0x104] sm:$0xf]
      %v222 = vld [vmem:[%s169 + $0x108] sm:$0xff]
      %v223 = vld [vmem:[%s169 + $0x110] sm:$0xf]
      %v224 = vld [vmem:[%s169 + $0x114] sm:$0xff]
      %v225 = vld [vmem:[%s169 + $0x11c] sm:$0xf]
      %v226 = vld [vmem:[%s169 + $0x120] sm:$0xff]
      %v227 = vld [vmem:[%s169 + $0x128] sm:$0xf]
      %v228 = vld [vmem:[%s169 + $0x12c] sm:$0xff]
      %v229 = vld [vmem:[%s169 + $0x134] sm:$0xf]
      %v230 = vld [vmem:[%s169 + $0x138] sm:$0xff]
      %v231 = vld [vmem:[%s169 + $0x140] sm:$0xf]
      %v232 = vld [vmem:[%s169 + $0x144] sm:$0xff]
      %v233 = vld [vmem:[%s169 + $0x14c] sm:$0xf]
      %v234 = vld [vmem:[%s169 + $0x150] sm:$0xff]
      %v235 = vld [vmem:[%s169 + $0x158] sm:$0xf]
      %v236 = vld [vmem:[%s169 + $0x15c] sm:$0xff]
      %v237 = vld [vmem:[%s169 + $0x164] sm:$0xf]
      %v238 = vld [vmem:[%s169 + $0x168] sm:$0xff]
      %v239 = vld [vmem:[%s169 + $0x170] sm:$0xf]
      %v240 = vld [vmem:[%s169 + $0x174] sm:$0xff]
      %v241 = vld [vmem:[%s169 + $0x17c] sm:$0xf]
      %v242 = vld [vmem:[%s1] sm:$0xf]
      %v243 = vld [vmem:[%s1 + $0x4] sm:$0xf]
      %v244 = vld [vmem:[%s1 + $0x8] sm:$0xf]
      %v245 = vld [vmem:[%s1 + $0xc] sm:$0xf]
      %v246 = vld [vmem:[%s1 + $0x10] sm:$0xf]
      %v247 = vld [vmem:[%s1 + $0x14] sm:$0xf]
      %v248 = vld [vmem:[%s1 + $0x18] sm:$0xf]
      %v249 = vld [vmem:[%s1 + $0x1c] sm:$0xf]
      %v250 = vld [vmem:[%s1 + $0x20] sm:$0xf]
      %v251 = vld [vmem:[%s1 + $0x24] sm:$0xf]
      %v252 = vld [vmem:[%s1 + $0x28] sm:$0xf]
      %v253 = vld [vmem:[%s1 + $0x2c] sm:$0xf]
      %v254 = vld [vmem:[%s1 + $0x30] sm:$0xf]
      %v255 = vld [vmem:[%s1 + $0x34] sm:$0xf]
      %v256 = vld [vmem:[%s1 + $0x38] sm:$0xf]
      %v257 = vld [vmem:[%s1 + $0x3c] sm:$0xf]
      %v258 = vld [vmem:[%s1 + $0x40] sm:$0xf]
      %v259 = vld [vmem:[%s1 + $0x44] sm:$0xf]
      %v260 = vld [vmem:[%s1 + $0x48] sm:$0xf]
      %v261 = vld [vmem:[%s1 + $0x4c] sm:$0xf]
      %v262 = vld [vmem:[%s1 + $0x50] sm:$0xf]
      %v263 = vld [vmem:[%s1 + $0x54] sm:$0xf]
      %v264 = vld [vmem:[%s1 + $0x58] sm:$0xf]
      %v265 = vld [vmem:[%s1 + $0x5c] sm:$0xf]
      %v266 = vld [vmem:[%s1 + $0x60] sm:$0xf]
      %v267 = vld [vmem:[%s1 + $0x64] sm:$0xf]
      %v268 = vld [vmem:[%s1 + $0x68] sm:$0xf]
      %v269 = vld [vmem:[%s1 + $0x6c] sm:$0xf]
      %v270 = vld [vmem:[%s1 + $0x70] sm:$0xf]
      %v271 = vld [vmem:[%s1 + $0x74] sm:$0xf]
      %v272 = vld [vmem:[%s1 + $0x78] sm:$0xf]
      %v273 = vld [vmem:[%s1 + $0x7c] sm:$0xf]
      %v274 = vld [vmem:[%s1 + $0x80] sm:$0xf]
      %v275 = vld [vmem:[%s1 + $0x84] sm:$0xf]
      %v276 = vld [vmem:[%s1 + $0x88] sm:$0xf]
      %v277 = vld [vmem:[%s1 + $0x8c] sm:$0xf]
      %v278 = vld [vmem:[%s2] sm:$0x1]
      %v280 = vlaneseq
      %v281 = vshrl.u32 %v280, 7
      %v282 = vsub.s32 0, %v281
      %v283 = vrot.slane %v278, %v282
      %v349 = vunpack.c.l.b16 %v178
      %v350 = vunpack.c.h.b16 %v178
      %v351 = vunpack.c.l.b16 %v179
      %v352 = vunpack.c.l.b16 %v180
      %v353 = vunpack.c.h.b16 %v180
      %v354 = vunpack.c.l.b16 %v181
      %v355 = vunpack.c.l.b16 %v182
      %v356 = vunpack.c.h.b16 %v182
      %v357 = vunpack.c.l.b16 %v183
      %v358 = vunpack.c.l.b16 %v184
      %v359 = vunpack.c.h.b16 %v184
      %v360 = vunpack.c.l.b16 %v185
      %v361 = vunpack.c.l.b16 %v186
      %v362 = vunpack.c.h.b16 %v186
      %v363 = vunpack.c.l.b16 %v187
      %v364 = vunpack.c.l.b16 %v188
      %v365 = vunpack.c.h.b16 %v188
      %v366 = vunpack.c.l.b16 %v189
      %v367 = vunpack.c.l.b16 %v190
      %v368 = vunpack.c.h.b16 %v190
      %v369 = vunpack.c.l.b16 %v191
      %v370 = vunpack.c.l.b16 %v192
      %v371 = vunpack.c.h.b16 %v192
      %v372 = vunpack.c.l.b16 %v193
      %v373 = vunpack.c.l.b16 %v194
      %v374 = vunpack.c.h.b16 %v194
      %v375 = vunpack.c.l.b16 %v195
      %v376 = vunpack.c.l.b16 %v196
      %v377 = vunpack.c.h.b16 %v196
      %v378 = vunpack.c.l.b16 %v197
      %v379 = vunpack.c.l.b16 %v198
      %v380 = vunpack.c.h.b16 %v198
      %v381 = vunpack.c.l.b16 %v199
      %v382 = vunpack.c.l.b16 %v200
      %v383 = vunpack.c.h.b16 %v200
      %v384 = vunpack.c.l.b16 %v201
      %v385 = vunpack.c.l.b16 %v202
      %v386 = vunpack.c.h.b16 %v202
      %v387 = vunpack.c.l.b16 %v203
      %v388 = vunpack.c.l.b16 %v204
      %v389 = vunpack.c.h.b16 %v204
      %v390 = vunpack.c.l.b16 %v205
      %v391 = vunpack.c.l.b16 %v206
      %v392 = vunpack.c.h.b16 %v206
      %v393 = vunpack.c.l.b16 %v207
      %v394 = vunpack.c.l.b16 %v208
      %v395 = vunpack.c.h.b16 %v208
      %v396 = vunpack.c.l.b16 %v209
      %v397 = vunpack.c.l.b16 %v210
      %v398 = vunpack.c.h.b16 %v210
      %v399 = vunpack.c.l.b16 %v211
      %v400 = vunpack.c.l.b16 %v212
      %v401 = vunpack.c.h.b16 %v212
      %v402 = vunpack.c.l.b16 %v213
      %v403 = vunpack.c.l.b16 %v214
      %v404 = vunpack.c.h.b16 %v214
      %v405 = vunpack.c.l.b16 %v215
      %v406 = vunpack.c.l.b16 %v216
      %v407 = vunpack.c.h.b16 %v216
      %v408 = vunpack.c.l.b16 %v217
      %v409 = vunpack.c.l.b16 %v218
      %v410 = vunpack.c.h.b16 %v218
      %v411 = vunpack.c.l.b16 %v219
      %v412 = vunpack.c.l.b16 %v220
      %v413 = vunpack.c.h.b16 %v220
      %v414 = vunpack.c.l.b16 %v221
      %v415 = vunpack.c.l.b16 %v222
      %v416 = vunpack.c.h.b16 %v222
      %v417 = vunpack.c.l.b16 %v223
      %v418 = vunpack.c.l.b16 %v224
      %v419 = vunpack.c.h.b16 %v224
      %v420 = vunpack.c.l.b16 %v225
      %v421 = vunpack.c.l.b16 %v226
      %v422 = vunpack.c.h.b16 %v226
      %v423 = vunpack.c.l.b16 %v227
      %v424 = vunpack.c.l.b16 %v228
      %v425 = vunpack.c.h.b16 %v228
      %v426 = vunpack.c.l.b16 %v229
      %v427 = vunpack.c.l.b16 %v230
      %v428 = vunpack.c.h.b16 %v230
      %v429 = vunpack.c.l.b16 %v231
      %v430 = vunpack.c.l.b16 %v232
      %v431 = vunpack.c.h.b16 %v232
      %v432 = vunpack.c.l.b16 %v233
      %v433 = vunpack.c.l.b16 %v234
      %v434 = vunpack.c.h.b16 %v234
      %v435 = vunpack.c.l.b16 %v235
      %v436 = vunpack.c.l.b16 %v236
      %v437 = vunpack.c.h.b16 %v236
      %v438 = vunpack.c.l.b16 %v237
      %v439 = vunpack.c.l.b16 %v238
      %v440 = vunpack.c.h.b16 %v238
      %v441 = vunpack.c.l.b16 %v239
      %v442 = vunpack.c.l.b16 %v240
      %v443 = vunpack.c.h.b16 %v240
      %v444 = vunpack.c.l.b16 %v241
      %v445 = vpack.c.b16 %v352, %v349
      %v446 = vpack.c.b16 %v353, %v350
      %v447 = vpack.c.b16 %v354, %v351
      %v448 = vpack.c.b16 %v358, %v355
      %v449 = vpack.c.b16 %v359, %v356
      %v450 = vpack.c.b16 %v360, %v357
      %v451 = vpack.c.b16 %v364, %v361
      %v452 = vpack.c.b16 %v365, %v362
      %v453 = vpack.c.b16 %v366, %v363
      %v454 = vpack.c.b16 %v370, %v367
      %v455 = vpack.c.b16 %v371, %v368
      %v456 = vpack.c.b16 %v372, %v369
      %v457 = vpack.c.b16 %v376, %v373
      %v458 = vpack.c.b16 %v377, %v374
      %v459 = vpack.c.b16 %v378, %v375
      %v460 = vpack.c.b16 %v382, %v379
      %v461 = vpack.c.b16 %v383, %v380
      %v462 = vpack.c.b16 %v384, %v381
      %v463 = vpack.c.b16 %v388, %v385
      %v464 = vpack.c.b16 %v389, %v386
      %v465 = vpack.c.b16 %v390, %v387
      %v466 = vpack.c.b16 %v394, %v391
      %v467 = vpack.c.b16 %v395, %v392
      %v468 = vpack.c.b16 %v396, %v393
      %v469 = vpack.c.b16 %v400, %v397
      %v470 = vpack.c.b16 %v401, %v398
      %v471 = vpack.c.b16 %v402, %v399
      %v472 = vpack.c.b16 %v406, %v403
      %v473 = vpack.c.b16 %v407, %v404
      %v474 = vpack.c.b16 %v408, %v405
      %v475 = vpack.c.b16 %v412, %v409
      %v476 = vpack.c.b16 %v413, %v410
      %v477 = vpack.c.b16 %v414, %v411
      %v478 = vpack.c.b16 %v418, %v415
      %v479 = vpack.c.b16 %v419, %v416
      %v480 = vpack.c.b16 %v420, %v417
      %v481 = vpack.c.b16 %v424, %v421
      %v482 = vpack.c.b16 %v425, %v422
      %v483 = vpack.c.b16 %v426, %v423
      %v484 = vpack.c.b16 %v430, %v427
      %v485 = vpack.c.b16 %v431, %v428
      %v486 = vpack.c.b16 %v432, %v429
      %v487 = vpack.c.b16 %v436, %v433
      %v488 = vpack.c.b16 %v437, %v434
      %v489 = vpack.c.b16 %v438, %v435
      %v490 = vpack.c.b16 %v442, %v439
      %v491 = vpack.c.b16 %v443, %v440
      %v492 = vpack.c.b16 %v444, %v441
      %v561 = vunpack.c.l.b16 %v242
      %v562 = vunpack.c.l.b16 %v243
      %v563 = vunpack.c.l.b16 %v244
      %v564 = vunpack.c.l.b16 %v245
      %v565 = vunpack.c.l.b16 %v246
      %v566 = vunpack.c.l.b16 %v247
      %v567 = vunpack.c.l.b16 %v248
      %v568 = vunpack.c.l.b16 %v249
      %v569 = vunpack.c.l.b16 %v250
      %v570 = vunpack.c.l.b16 %v251
      %v571 = vunpack.c.l.b16 %v252
      %v572 = vunpack.c.l.b16 %v253
      %v573 = vunpack.c.l.b16 %v254
      %v574 = vunpack.c.l.b16 %v255
      %v575 = vunpack.c.l.b16 %v256
      %v576 = vunpack.c.l.b16 %v257
      %v577 = vunpack.c.l.b16 %v258
      %v578 = vunpack.c.l.b16 %v259
      %v579 = vunpack.c.l.b16 %v260
      %v580 = vunpack.c.l.b16 %v261
      %v581 = vunpack.c.l.b16 %v262
      %v582 = vunpack.c.l.b16 %v263
      %v583 = vunpack.c.l.b16 %v264
      %v584 = vunpack.c.l.b16 %v265
      %v585 = vunpack.c.l.b16 %v266
      %v586 = vunpack.c.l.b16 %v267
      %v587 = vunpack.c.l.b16 %v268
      %v588 = vunpack.c.l.b16 %v269
      %v589 = vunpack.c.l.b16 %v270
      %v590 = vunpack.c.l.b16 %v271
      %v591 = vunpack.c.l.b16 %v272
      %v592 = vunpack.c.l.b16 %v273
      %v593 = vunpack.c.l.b16 %v274
      %v594 = vunpack.c.l.b16 %v275
      %v595 = vunpack.c.l.b16 %v276
      %v596 = vunpack.c.l.b16 %v277
      %v597 = vpack.c.b16 %v562, %v561
      %v598 = vpack.c.b16 %v564, %v563
      %v599 = vpack.c.b16 %v566, %v565
      %v600 = vpack.c.b16 %v568, %v567
      %v601 = vpack.c.b16 %v570, %v569
      %v602 = vpack.c.b16 %v572, %v571
      %v603 = vpack.c.b16 %v574, %v573
      %v604 = vpack.c.b16 %v576, %v575
      %v605 = vpack.c.b16 %v578, %v577
      %v606 = vpack.c.b16 %v580, %v579
      %v607 = vpack.c.b16 %v582, %v581
      %v608 = vpack.c.b16 %v584, %v583
      %v609 = vpack.c.b16 %v586, %v585
      %v610 = vpack.c.b16 %v588, %v587
      %v611 = vpack.c.b16 %v590, %v589
      %v612 = vpack.c.b16 %v592, %v591
      %v613 = vpack.c.b16 %v594, %v593
      %v614 = vpack.c.b16 %v596, %v595
      %vm633 = vcmask 261120
      %v635 = vsel %vm633, %v447, 0
      %v638 = vsel %vm633, %v450, 0
      %v641 = vsel %vm633, %v453, 0
      %v644 = vsel %vm633, %v456, 0
      %v647 = vsel %vm633, %v459, 0
      %v650 = vsel %vm633, %v462, 0
      %v653 = vsel %vm633, %v465, 0
      %v656 = vsel %vm633, %v468, 0
      %v659 = vsel %vm633, %v471, 0
      %v662 = vsel %vm633, %v474, 0
      %v665 = vsel %vm633, %v477, 0
      %v668 = vsel %vm633, %v480, 0
      %v671 = vsel %vm633, %v483, 0
      %v674 = vsel %vm633, %v486, 0
      %v677 = vsel %vm633, %v489, 0
      %v680 = vsel %vm633, %v492, 0
      %682 = vmatprep.subr.bf16.mxu0 0
      %683 = vmatpush1.bf16.msra.mxu0 %v597
      %684 = vmatprep.subr.bf16.mxu0 0
      %685 = vmatpush1.bf16.msra.mxu0 %v598
      %686 = vmatprep.subr.bf16.mxu0 0
      %687 = vmatpush1.bf16.msra.mxu0 %v599
      %688 = vmatprep.subr.bf16.mxu0 0
      %689 = vmatpush1.bf16.msra.mxu0 %v600
      %690 = vmatprep.subr.bf16.mxu0 0
      %691 = vmatpush1.bf16.msra.mxu0 %v601
      %692 = vmatprep.subr.bf16.mxu0 0
      %693 = vmatpush1.bf16.msra.mxu0 %v602
      %694 = vmatprep.subr.bf16.mxu0 0
      %695 = vmatpush1.bf16.msra.mxu0 %v603
      %696 = vmatprep.subr.bf16.mxu0 0
      %697 = vmatpush1.bf16.msra.mxu0 %v604
      %698 = vmatprep.subr.bf16.mxu0 0
      %699 = vmatpush1.bf16.msra.mxu0 %v605
      %700 = vmatprep.subr.bf16.mxu0 0
      %701 = vmatpush1.bf16.msra.mxu0 %v606
      %702 = vmatprep.subr.bf16.mxu0 0
      %703 = vmatpush1.bf16.msra.mxu0 %v607
      %704 = vmatprep.subr.bf16.mxu0 0
      %705 = vmatpush1.bf16.msra.mxu0 %v608
      %706 = vmatprep.subr.bf16.mxu0 0
      %707 = vmatpush1.bf16.msra.mxu0 %v609
      %708 = vmatprep.subr.bf16.mxu0 0
      %709 = vmatpush1.bf16.msra.mxu0 %v610
      %710 = vmatprep.subr.bf16.mxu0 0
      %711 = vmatpush1.bf16.msra.mxu0 %v611
      %712 = vmatprep.subr.bf16.mxu0 0
      %713 = vmatpush1.bf16.msra.mxu0 %v612
      %714 = vmatprep.mubr.bf16.mxu0 %v446
      %715 = vmatmul.mubr.bf16.gmra.mrb[0].mxu0 %v445
      %v716 = vpop.f32.mrb[0].mxu0
      %v717 = vadd.f32 %v283, %v716
      %v718 = vpop.f32.mrb[0].mxu0
      %v719 = vpop.f32.mrb[0].mxu0
      %v720 = vadd.f32 %v283, %v719
      %v721 = vpop.f32.mrb[0].mxu0
      %722 = vmatprep.mubr.bf16.mxu0 %v449
      %723 = vmatmul.mubr.bf16.gmra.mrb[0].mxu0 %v448
      %v724 = vpop.f32.mrb[0].mxu0
      %v725 = vadd.f32 %v283, %v724
      %v726 = vpop.f32.mrb[0].mxu0
      %v727 = vpop.f32.mrb[0].mxu0
      %v728 = vadd.f32 %v283, %v727
      %v729 = vpop.f32.mrb[0].mxu0
      %730 = vmatprep.mubr.bf16.mxu0 %v452
      %731 = vmatmul.mubr.bf16.gmra.mrb[0].mxu0 %v451
      %v732 = vpop.f32.mrb[0].mxu0
      %v733 = vadd.f32 %v283, %v732
      %v734 = vpop.f32.mrb[0].mxu0
      %v735 = vpop.f32.mrb[0].mxu0
      %v736 = vadd.f32 %v283, %v735
      %v737 = vpop.f32.mrb[0].mxu0
      %738 = vmatprep.mubr.bf16.mxu0 %v455
      %739 = vmatmul.mubr.bf16.gmra.mrb[0].mxu0 %v454
      %v740 = vpop.f32.mrb[0].mxu0
      %v741 = vadd.f32 %v283, %v740
      %v742 = vpop.f32.mrb[0].mxu0
      %v743 = vpop.f32.mrb[0].mxu0
      %v744 = vadd.f32 %v283, %v743
      %v745 = vpop.f32.mrb[0].mxu0
      %746 = vmatprep.mubr.bf16.mxu0 %v458
      %747 = vmatmul.mubr.bf16.gmra.mrb[0].mxu0 %v457
      %v748 = vpop.f32.mrb[0].mxu0
      %v749 = vadd.f32 %v283, %v748
      %v750 = vpop.f32.mrb[0].mxu0
      %v751 = vpop.f32.mrb[0].mxu0
      %v752 = vadd.f32 %v283, %v751
      %v753 = vpop.f32.mrb[0].mxu0
      %754 = vmatprep.mubr.bf16.mxu0 %v461
      %755 = vmatmul.mubr.bf16.gmra.mrb[0].mxu0 %v460
      %v756 = vpop.f32.mrb[0].mxu0
      %v757 = vadd.f32 %v283, %v756
      %v758 = vpop.f32.mrb[0].mxu0
      %v759 = vpop.f32.mrb[0].mxu0
      %v760 = vadd.f32 %v283, %v759
      %v761 = vpop.f32.mrb[0].mxu0
      %762 = vmatprep.mubr.bf16.mxu0 %v464
      %763 = vmatmul.mubr.bf16.gmra.mrb[0].mxu0 %v463
      %v764 = vpop.f32.mrb[0].mxu0
      %v765 = vadd.f32 %v283, %v764
      %v766 = vpop.f32.mrb[0].mxu0
      %v767 = vpop.f32.mrb[0].mxu0
      %v768 = vadd.f32 %v283, %v767
      %v769 = vpop.f32.mrb[0].mxu0
      %770 = vmatprep.mubr.bf16.mxu0 %v467
      %771 = vmatmul.mubr.bf16.gmra.mrb[0].mxu0 %v466
      %v772 = vpop.f32.mrb[0].mxu0
      %v773 = vadd.f32 %v283, %v772
      %v774 = vpop.f32.mrb[0].mxu0
      %v775 = vpop.f32.mrb[0].mxu0
      %v776 = vadd.f32 %v283, %v775
      %v777 = vpop.f32.mrb[0].mxu0
      %778 = vmatprep.mubr.bf16.mxu0 %v470
      %779 = vmatmul.mubr.bf16.gmra.mrb[0].mxu0 %v469
      %v780 = vpop.f32.mrb[0].mxu0
      %v781 = vadd.f32 %v283, %v780
      %v782 = vpop.f32.mrb[0].mxu0
      %v783 = vpop.f32.mrb[0].mxu0
      %v784 = vadd.f32 %v283, %v783
      %v785 = vpop.f32.mrb[0].mxu0
      %786 = vmatprep.mubr.bf16.mxu0 %v473
      %787 = vmatmul.mubr.bf16.gmra.mrb[0].mxu0 %v472
      %v788 = vpop.f32.mrb[0].mxu0
      %v789 = vadd.f32 %v283, %v788
      %v790 = vpop.f32.mrb[0].mxu0
      %v791 = vpop.f32.mrb[0].mxu0
      %v792 = vadd.f32 %v283, %v791
      %v793 = vpop.f32.mrb[0].mxu0
      %794 = vmatprep.mubr.bf16.mxu0 %v476
      %795 = vmatmul.mubr.bf16.gmra.mrb[0].mxu0 %v475
      %v796 = vpop.f32.mrb[0].mxu0
      %v797 = vadd.f32 %v283, %v796
      %v798 = vpop.f32.mrb[0].mxu0
      %v799 = vpop.f32.mrb[0].mxu0
      %v800 = vadd.f32 %v283, %v799
      %v801 = vpop.f32.mrb[0].mxu0
      %802 = vmatprep.mubr.bf16.mxu0 %v479
      %803 = vmatmul.mubr.bf16.gmra.mrb[0].mxu0 %v478
      %v804 = vpop.f32.mrb[0].mxu0
      %v805 = vadd.f32 %v283, %v804
      %v806 = vpop.f32.mrb[0].mxu0
      %v807 = vpop.f32.mrb[0].mxu0
      %v808 = vadd.f32 %v283, %v807
      %v809 = vpop.f32.mrb[0].mxu0
      %810 = vmatprep.mubr.bf16.mxu0 %v482
      %811 = vmatmul.mubr.bf16.gmra.mrb[0].mxu0 %v481
      %v812 = vpop.f32.mrb[0].mxu0
      %v813 = vadd.f32 %v283, %v812
      %v814 = vpop.f32.mrb[0].mxu0
      %v815 = vpop.f32.mrb[0].mxu0
      %v816 = vadd.f32 %v283, %v815
      %v817 = vpop.f32.mrb[0].mxu0
      %818 = vmatprep.mubr.bf16.mxu0 %v485
      %819 = vmatmul.mubr.bf16.gmra.mrb[0].mxu0 %v484
      %v820 = vpop.f32.mrb[0].mxu0
      %v821 = vadd.f32 %v283, %v820
      %v822 = vpop.f32.mrb[0].mxu0
      %v823 = vpop.f32.mrb[0].mxu0
      %v824 = vadd.f32 %v283, %v823
      %v825 = vpop.f32.mrb[0].mxu0
      %826 = vmatprep.mubr.bf16.mxu0 %v488
      %827 = vmatmul.mubr.bf16.gmra.mrb[0].mxu0 %v487
      %v828 = vpop.f32.mrb[0].mxu0
      %v829 = vadd.f32 %v283, %v828
      %v830 = vpop.f32.mrb[0].mxu0
      %v831 = vpop.f32.mrb[0].mxu0
      %v832 = vadd.f32 %v283, %v831
      %v833 = vpop.f32.mrb[0].mxu0
      %834 = vmatprep.mubr.bf16.mxu0 %v491
      %835 = vmatmul.mubr.bf16.gmra.mrb[0].mxu0 %v490
      %v836 = vpop.f32.mrb[0].mxu0
      %v837 = vadd.f32 %v283, %v836
      %v838 = vpop.f32.mrb[0].mxu0
      %v839 = vpop.f32.mrb[0].mxu0
      %v840 = vadd.f32 %v283, %v839
      %v841 = vpop.f32.mrb[0].mxu0
      %842 = vdwg.mxu0
      %843 = vmatprep.subr.bf16.mxu0 0
      %844 = vmatpush1.bf16.msra.mxu0 %v613
      %845 = vmatprep.subr.bf16.mxu0 0
      %846 = vmatpush1.bf16.msra.mxu0 %v614
      %847 = vmatprep.subr.bf16.mxu0 0
      %848 = vmatpush1.bf16.msra.mxu0 0
      %849 = vmatprep.subr.bf16.mxu0 0
      %850 = vmatpush1.bf16.msra.mxu0 0
      %851 = vmatprep.subr.bf16.mxu0 0
      %852 = vmatpush1.bf16.msra.mxu0 0
      %853 = vmatprep.subr.bf16.mxu0 0
      %854 = vmatpush1.bf16.msra.mxu0 0
      %855 = vmatprep.subr.bf16.mxu0 0
      %856 = vmatpush1.bf16.msra.mxu0 0
      %857 = vmatprep.subr.bf16.mxu0 0
      %858 = vmatpush1.bf16.msra.mxu0 0
      %859 = vmatprep.subr.bf16.mxu0 0
      %860 = vmatpush1.bf16.msra.mxu0 0
      %861 = vmatprep.subr.bf16.mxu0 0
      %862 = vmatpush1.bf16.msra.mxu0 0
      %863 = vmatprep.subr.bf16.mxu0 0
      %864 = vmatpush1.bf16.msra.mxu0 0
      %865 = vmatprep.subr.bf16.mxu0 0
      %866 = vmatpush1.bf16.msra.mxu0 0
      %867 = vmatprep.subr.bf16.mxu0 0
      %868 = vmatpush1.bf16.msra.mxu0 0
      %869 = vmatprep.subr.bf16.mxu0 0
      %870 = vmatpush1.bf16.msra.mxu0 0
      %871 = vmatprep.subr.bf16.mxu0 0
      %872 = vmatpush1.bf16.msra.mxu0 0
      %873 = vmatprep.subr.bf16.mxu0 0
      %874 = vmatpush1.bf16.msra.mxu0 0
      %875 = vmatprep.mubr.bf16.mxu0 0
      %876 = vmatmul.mubr.bf16.gmra.mrb[0].mxu0 %v635
      %v877 = vpop.f32.mrb[0].mxu0
      %v878 = vadd.f32 %v717, %v877
      %v879 = vpop.f32.mrb[0].mxu0
      %v880 = vpop.f32.mrb[0].mxu0
      %v881 = vadd.f32 %v720, %v880
      %v882 = vpop.f32.mrb[0].mxu0
      %883 = vmatprep.mubr.bf16.mxu0 0
      %884 = vmatmul.mubr.bf16.gmra.mrb[0].mxu0 %v638
      %v885 = vpop.f32.mrb[0].mxu0
      %v886 = vadd.f32 %v725, %v885
      %v887 = vpop.f32.mrb[0].mxu0
      %v888 = vpop.f32.mrb[0].mxu0
      %v889 = vadd.f32 %v728, %v888
      %v890 = vpop.f32.mrb[0].mxu0
      %891 = vmatprep.mubr.bf16.mxu0 0
      %892 = vmatmul.mubr.bf16.gmra.mrb[0].mxu0 %v641
      %v893 = vpop.f32.mrb[0].mxu0
      %v894 = vadd.f32 %v733, %v893
      %v895 = vpop.f32.mrb[0].mxu0
      %v896 = vpop.f32.mrb[0].mxu0
      %v897 = vadd.f32 %v736, %v896
      %v898 = vpop.f32.mrb[0].mxu0
      %899 = vmatprep.mubr.bf16.mxu0 0
      %900 = vmatmul.mubr.bf16.gmra.mrb[0].mxu0 %v644
      %v901 = vpop.f32.mrb[0].mxu0
      %v902 = vadd.f32 %v741, %v901
      %v903 = vpop.f32.mrb[0].mxu0
      %v904 = vpop.f32.mrb[0].mxu0
      %v905 = vadd.f32 %v744, %v904
      %v906 = vpop.f32.mrb[0].mxu0
      %907 = vmatprep.mubr.bf16.mxu0 0
      %908 = vmatmul.mubr.bf16.gmra.mrb[0].mxu0 %v647
      %v909 = vpop.f32.mrb[0].mxu0
      %v910 = vadd.f32 %v749, %v909
      %v911 = vpop.f32.mrb[0].mxu0
      %v912 = vpop.f32.mrb[0].mxu0
      %v913 = vadd.f32 %v752, %v912
      %v914 = vpop.f32.mrb[0].mxu0
      %915 = vmatprep.mubr.bf16.mxu0 0
      %916 = vmatmul.mubr.bf16.gmra.mrb[0].mxu0 %v650
      %v917 = vpop.f32.mrb[0].mxu0
      %v918 = vadd.f32 %v757, %v917
      %v919 = vpop.f32.mrb[0].mxu0
      %v920 = vpop.f32.mrb[0].mxu0
      %v921 = vadd.f32 %v760, %v920
      %v922 = vpop.f32.mrb[0].mxu0
      %923 = vmatprep.mubr.bf16.mxu0 0
      %924 = vmatmul.mubr.bf16.gmra.mrb[0].mxu0 %v653
      %v925 = vpop.f32.mrb[0].mxu0
      %v926 = vadd.f32 %v765, %v925
      %v927 = vpop.f32.mrb[0].mxu0
      %v928 = vpop.f32.mrb[0].mxu0
      %v929 = vadd.f32 %v768, %v928
      %v930 = vpop.f32.mrb[0].mxu0
      %931 = vmatprep.mubr.bf16.mxu0 0
      %932 = vmatmul.mubr.bf16.gmra.mrb[0].mxu0 %v656
      %v933 = vpop.f32.mrb[0].mxu0
      %v934 = vadd.f32 %v773, %v933
      %v935 = vpop.f32.mrb[0].mxu0
      %v936 = vpop.f32.mrb[0].mxu0
      %v937 = vadd.f32 %v776, %v936
      %v938 = vpop.f32.mrb[0].mxu0
      %939 = vmatprep.mubr.bf16.mxu0 0
      %940 = vmatmul.mubr.bf16.gmra.mrb[0].mxu0 %v659
      %v941 = vpop.f32.mrb[0].mxu0
      %v942 = vadd.f32 %v781, %v941
      %v943 = vpop.f32.mrb[0].mxu0
      %v944 = vpop.f32.mrb[0].mxu0
      %v945 = vadd.f32 %v784, %v944
      %v946 = vpop.f32.mrb[0].mxu0
      %947 = vmatprep.mubr.bf16.mxu0 0
      %948 = vmatmul.mubr.bf16.gmra.mrb[0].mxu0 %v662
      %v949 = vpop.f32.mrb[0].mxu0
      %v950 = vadd.f32 %v789, %v949
      %v951 = vpop.f32.mrb[0].mxu0
      %v952 = vpop.f32.mrb[0].mxu0
      %v953 = vadd.f32 %v792, %v952
      %v954 = vpop.f32.mrb[0].mxu0
      %955 = vmatprep.mubr.bf16.mxu0 0
      %956 = vmatmul.mubr.bf16.gmra.mrb[0].mxu0 %v665
      %v957 = vpop.f32.mrb[0].mxu0
      %v958 = vadd.f32 %v797, %v957
      %v959 = vpop.f32.mrb[0].mxu0
      %v960 = vpop.f32.mrb[0].mxu0
      %v961 = vadd.f32 %v800, %v960
      %v962 = vpop.f32.mrb[0].mxu0
      %963 = vmatprep.mubr.bf16.mxu0 0
      %964 = vmatmul.mubr.bf16.gmra.mrb[0].mxu0 %v668
      %v965 = vpop.f32.mrb[0].mxu0
      %v966 = vadd.f32 %v805, %v965
      %v967 = vpop.f32.mrb[0].mxu0
      %v968 = vpop.f32.mrb[0].mxu0
      %v969 = vadd.f32 %v808, %v968
      %v970 = vpop.f32.mrb[0].mxu0
      %971 = vmatprep.mubr.bf16.mxu0 0
      %972 = vmatmul.mubr.bf16.gmra.mrb[0].mxu0 %v671
      %v973 = vpop.f32.mrb[0].mxu0
      %v974 = vadd.f32 %v813, %v973
      %v975 = vpop.f32.mrb[0].mxu0
      %v976 = vpop.f32.mrb[0].mxu0
      %v977 = vadd.f32 %v816, %v976
      %v978 = vpop.f32.mrb[0].mxu0
      %979 = vmatprep.mubr.bf16.mxu0 0
      %980 = vmatmul.mubr.bf16.gmra.mrb[0].mxu0 %v674
      %v981 = vpop.f32.mrb[0].mxu0
      %v982 = vadd.f32 %v821, %v981
      %v983 = vpop.f32.mrb[0].mxu0
      %v984 = vpop.f32.mrb[0].mxu0
      %v985 = vadd.f32 %v824, %v984
      %v986 = vpop.f32.mrb[0].mxu0
      %987 = vmatprep.mubr.bf16.mxu0 0
      %988 = vmatmul.mubr.bf16.gmra.mrb[0].mxu0 %v677
      %v989 = vpop.f32.mrb[0].mxu0
      %v990 = vadd.f32 %v829, %v989
      %v991 = vpop.f32.mrb[0].mxu0
      %v992 = vpop.f32.mrb[0].mxu0
      %v993 = vadd.f32 %v832, %v992
      %v994 = vpop.f32.mrb[0].mxu0
      %995 = vmatprep.mubr.bf16.mxu0 0
      %996 = vmatmul.mubr.bf16.gmra.mrb[0].mxu0 %v680
      %v997 = vpop.f32.mrb[0].mxu0
      %v998 = vadd.f32 %v837, %v997
      %v999 = vpop.f32.mrb[0].mxu0
      %v1000 = vpop.f32.mrb[0].mxu0
      %v1001 = vadd.f32 %v840, %v1000
      %v1002 = vpop.f32.mrb[0].mxu0
      %1003 = vdwg.mxu0
      %vm1004 = vcmask 23552
      %1005 = vst.msk [vmem:[%s175] sm:$0xff] %vm1004, %v878
      %1006 = vst.msk [vmem:[%s175 + $0x8] sm:$0xff] %vm1004, %v881
      %1007 = vst.msk [vmem:[%s175 + $0x10] sm:$0xff] %vm1004, %v886
      %1008 = vst.msk [vmem:[%s175 + $0x18] sm:$0xff] %vm1004, %v889
      %1009 = vst.msk [vmem:[%s175 + $0x20] sm:$0xff] %vm1004, %v894
      %1010 = vst.msk [vmem:[%s175 + $0x28] sm:$0xff] %vm1004, %v897
      %1011 = vst.msk [vmem:[%s175 + $0x30] sm:$0xff] %vm1004, %v902
      %1012 = vst.msk [vmem:[%s175 + $0x38] sm:$0xff] %vm1004, %v905
      %1013 = vst.msk [vmem:[%s175 + $0x40] sm:$0xff] %vm1004, %v910
      %1014 = vst.msk [vmem:[%s175 + $0x48] sm:$0xff] %vm1004, %v913
      %1015 = vst.msk [vmem:[%s175 + $0x50] sm:$0xff] %vm1004, %v918
      %1016 = vst.msk [vmem:[%s175 + $0x58] sm:$0xff] %vm1004, %v921
      %1017 = vst.msk [vmem:[%s175 + $0x60] sm:$0xff] %vm1004, %v926
      %1018 = vst.msk [vmem:[%s175 + $0x68] sm:$0xff] %vm1004, %v929
      %1019 = vst.msk [vmem:[%s175 + $0x70] sm:$0xff] %vm1004, %v934
      %1020 = vst.msk [vmem:[%s175 + $0x78] sm:$0xff] %vm1004, %v937
      %1021 = vst.msk [vmem:[%s175 + $0x80] sm:$0xff] %vm1004, %v942
      %1022 = vst.msk [vmem:[%s175 + $0x88] sm:$0xff] %vm1004, %v945
      %1023 = vst.msk [vmem:[%s175 + $0x90] sm:$0xff] %vm1004, %v950
      %1024 = vst.msk [vmem:[%s175 + $0x98] sm:$0xff] %vm1004, %v953
      %1025 = vst.msk [vmem:[%s175 + $0xa0] sm:$0xff] %vm1004, %v958
      %1026 = vst.msk [vmem:[%s175 + $0xa8] sm:$0xff] %vm1004, %v961
      %1027 = vst.msk [vmem:[%s175 + $0xb0] sm:$0xff] %vm1004, %v966
      %1028 = vst.msk [vmem:[%s175 + $0xb8] sm:$0xff] %vm1004, %v969
      %1029 = vst.msk [vmem:[%s175 + $0xc0] sm:$0xff] %vm1004, %v974
      %1030 = vst.msk [vmem:[%s175 + $0xc8] sm:$0xff] %vm1004, %v977
      %1031 = vst.msk [vmem:[%s175 + $0xd0] sm:$0xff] %vm1004, %v982
      %1032 = vst.msk [vmem:[%s175 + $0xd8] sm:$0xff] %vm1004, %v985
      %1033 = vst.msk [vmem:[%s175 + $0xe0] sm:$0xff] %vm1004, %v990
      %1034 = vst.msk [vmem:[%s175 + $0xe8] sm:$0xff] %vm1004, %v993
      %1035 = vst.msk [vmem:[%s175 + $0xf0] sm:$0xff] %vm1004, %v998
      %1036 = vst.msk [vmem:[%s175 + $0xf8] sm:$0xff] %vm1004, %v1001
      %s1037 = smul.u32 32, %s14
      %p1038 = scmp.lt.s32.totalorder %s1037, 63
      %s1039 = scalar_select %p1038, %s1037, 63
      %s1040 = smul.addr %s1039, 8
      %s1041 = scalar_lea.vmem %s3, %s1040
      // Predicated region
      $region33: #{unet_decoder.20} parent=31 // pred_check
        %p1042 = pneg %p100
      $region34: #{unet_decoder.20} parent=31 // pred_check_branch
        %1044 = sbr.rel (%p1042) target = $region36
      $region35: #{unet_decoder.20} parent=31 // pred_region
        %s1045 = smul.u32 32, %s14
      $region36: #{unet_decoder.20} parent=31 // pred_fallthru
        _
    $region32: #{unet_decoder.20} parent=5 // pred_fallthru
      _
    %p1046 = scmp.le.s32.totalorder 2, %s9
    // Predicated region
    $region37: #{unet_decoder.20} parent=5 // pred_check
      %p1047 = pneg %p1046
    $region38: #{unet_decoder.20} parent=5 // pred_check_branch
      %1049 = sbr.rel (%p1047) target = $region40
    $region39: #{unet_decoder.20} parent=5 // pred_region
      %s1050 = ssub.s32 %s9, 2
      // Predicated region
      $region41: #{unet_decoder.20} parent=39 // pred_check
        %p1051 = pneg %p106
      $region42: #{unet_decoder.20} parent=39 // pred_check_branch
        %1053 = sbr.rel (%p1051) target = $region44
      $region43: #{unet_decoder.20} parent=39 // pred_region
        %s1054 = smul.u32 32, %s15
        %p1055 = scmp.lt.s32.totalorder %s1054, 63
        %s1056 = scalar_select %p1055, %s1054, 63
        %s1057 = smul.addr %s1056, 8
        %s1058 = scalar_lea.vmem %s3, %s1057
      $region44: #{unet_decoder.20} parent=39 // pred_fallthru
        _
    $region40: #{unet_decoder.20} parent=5 // pred_fallthru
      _
  $region6: #{unet_decoder.20} parent=0 // loop_footer
    %s13 = sadd.s32 1, %s9
  $region7: #{unet_decoder.20} parent=0 // loop_footer_branch
    %8 = sbr.rel target = $region3
  $region8: #{unet_decoder.20} parent=0 // loop_exit
    _

// kernel: unet_decoder.21
$region0: #{unet_decoder.21}
  #allocation0 [shape = 'u32[]', space=smem, size = 0x4, offset = 0x4, fixed_abs, tag = 'smem constant byte address 0x4 - core index']
  #allocation1 [shape = 'u32[144,128]{1,0:T(1,128)}', space=vmem, size = 0x12000, scoped, tag = 'internal scratch']
  %s0 = inlined_call_operand.vmem [shape: bf16[512,27], index: 0, kind: input, shape index: {}]
  %s1 = inlined_call_operand.vmem [shape: bf16[27,3], index: 1, kind: input, shape index: {}]
  %s2 = inlined_call_operand.vmem [shape: f32[1,3], index: 2, kind: input, shape index: {}]
  %s3 = inlined_call_operand.vmem [shape: bf16[3,3], index: 3, kind: input, shape index: {}]
  %s4 = inlined_call_operand.vmem [shape: f32[1,3], index: 4, kind: input, shape index: {}]
  %s5 = inlined_call_operand.vmem [shape: f32[512,3], index: 5, kind: output, shape index: {}]
  %s6 = sld [smem:[#allocation0]]
  $region53: #{unet_decoder.21} parent=0
    _
  %s8 = ssub.s32 1, %s6
  %s9 = scalar_select 0, %s8, %s6
  loop: start=0, step=1, limit=4
  $region2: #{unet_decoder.21} parent=0 // loop_pre_header
    _
  $region3: #{unet_decoder.21} parent=0 // loop_header
    %s11 = sphi 0, %s15
    %p12 = scmp.ge.s32.totalorder %s11, 4
    %s21 = sphi 0, %s23
    %s24 = sphi 0, %s21
    %s25 = sphi 0, %s24
    %s41 = sphi 0, %s25
    %s45 = sphi 0, %s45
    %s47 = sphi 0, %s45
    %s48 = sphi 0, %s47
    %s62 = sphi 0, %s48
    %s66 = sphi 0, %s66
    %s68 = sphi 0, %s66
    %s69 = sphi 0, %s68
    %s83 = sphi 0, %s69
    %s87 = sphi 0, %s87
    %s89 = sphi 0, %s87
    %s90 = sphi 0, %s89
    %s104 = sphi 0, %s90
    %s108 = sphi 0, %s108
    %s110 = sphi 0, %s108
    %s111 = sphi 0, %s110
    %s125 = sphi 0, %s111
    %s131 = sphi 0, %s133
    %s134 = sphi 0, %s131
    %s135 = sphi 0, %s134
    %s151 = sphi 0, %s135
  $region4: #{unet_decoder.21} parent=0 // loop_header_branch
    %14 = sbr.rel (%p12) target = $region8
  $region5: #{unet_decoder.21} parent=0 // loop_body
    %s16 = ssub.s32 %s11, 1
    %s17 = ssub.s32 %s11, 2
    %s18 = sadd.s32 %s11, 1
    %s19 = ssub.s32 %s11, %s18
    %p20 = scmp.eq.s32.totalorder %s19, 0
    %s22 = sadd.s32 %s21, 1
    %s23 = scalar_select %p20, %s21, %s22
    %p26 = pneg %p20
    %p27 = scmp.eq.s32.totalorder %s11, 1
    %p28 = por %p26, %p27
    %p29 = scmp.ne.s32.totalorder %s21, %s24
    %p30 = scmp.eq.s32.totalorder %s11, 0
    %p31 = por %p29, %p30
    %p32 = scmp.ne.s32.totalorder %s21, %s24
    %p33 = scmp.eq.s32.totalorder %s16, 1
    %p34 = por %p32, %p33
    %p35 = scmp.ne.s32.totalorder %s24, %s25
    %p36 = scmp.eq.s32.totalorder %s16, 0
    %p37 = por %p35, %p36
    %p38 = scmp.ne.s32.totalorder %s24, %s25
    %p39 = scmp.eq.s32.totalorder %s17, 1
    %p40 = por %p38, %p39
    %p42 = scmp.ne.s32.totalorder %s25, %s41
    %p43 = scmp.eq.s32.totalorder %s17, 0
    %p44 = por %p42, %p43
    %s46 = sadd.s32 %s45, 1
    %p49 = scmp.eq.s32.totalorder %s11, 1
    %p50 = scmp.ne.s32.totalorder %s45, %s47
    %p51 = scmp.eq.s32.totalorder %s11, 0
    %p52 = por %p50, %p51
    %p53 = scmp.ne.s32.totalorder %s45, %s47
    %p54 = scmp.eq.s32.totalorder %s16, 1
    %p55 = por %p53, %p54
    %p56 = scmp.ne.s32.totalorder %s47, %s48
    %p57 = scmp.eq.s32.totalorder %s16, 0
    %p58 = por %p56, %p57
    %p59 = scmp.ne.s32.totalorder %s47, %s48
    %p60 = scmp.eq.s32.totalorder %s17, 1
    %p61 = por %p59, %p60
    %p63 = scmp.ne.s32.totalorder %s48, %s62
    %p64 = scmp.eq.s32.totalorder %s17, 0
    %p65 = por %p63, %p64
    %s67 = sadd.s32 %s66, 1
    %p70 = scmp.eq.s32.totalorder %s11, 1
    %p71 = scmp.ne.s32.totalorder %s66, %s68
    %p72 = scmp.eq.s32.totalorder %s11, 0
    %p73 = por %p71, %p72
    %p74 = scmp.ne.s32.totalorder %s66, %s68
    %p75 = scmp.eq.s32.totalorder %s16, 1
    %p76 = por %p74, %p75
    %p77 = scmp.ne.s32.totalorder %s68, %s69
    %p78 = scmp.eq.s32.totalorder %s16, 0
    %p79 = por %p77, %p78
    %p80 = scmp.ne.s32.totalorder %s68, %s69
    %p81 = scmp.eq.s32.totalorder %s17, 1
    %p82 = por %p80, %p81
    %p84 = scmp.ne.s32.totalorder %s69, %s83
    %p85 = scmp.eq.s32.totalorder %s17, 0
    %p86 = por %p84, %p85
    %s88 = sadd.s32 %s87, 1
    %p91 = scmp.eq.s32.totalorder %s11, 1
    %p92 = scmp.ne.s32.totalorder %s87, %s89
    %p93 = scmp.eq.s32.totalorder %s11, 0
    %p94 = por %p92, %p93
    %p95 = scmp.ne.s32.totalorder %s87, %s89
    %p96 = scmp.eq.s32.totalorder %s16, 1
    %p97 = por %p95, %p96
    %p98 = scmp.ne.s32.totalorder %s89, %s90
    %p99 = scmp.eq.s32.totalorder %s16, 0
    %p100 = por %p98, %p99
    %p101 = scmp.ne.s32.totalorder %s89, %s90
    %p102 = scmp.eq.s32.totalorder %s17, 1
    %p103 = por %p101, %p102
    %p105 = scmp.ne.s32.totalorder %s90, %s104
    %p106 = scmp.eq.s32.totalorder %s17, 0
    %p107 = por %p105, %p106
    %s109 = sadd.s32 %s108, 1
    %p112 = scmp.eq.s32.totalorder %s11, 1
    %p113 = scmp.ne.s32.totalorder %s108, %s110
    %p114 = scmp.eq.s32.totalorder %s11, 0
    %p115 = por %p113, %p114
    %p116 = scmp.ne.s32.totalorder %s108, %s110
    %p117 = scmp.eq.s32.totalorder %s16, 1
    %p118 = por %p116, %p117
    %p119 = scmp.ne.s32.totalorder %s110, %s111
    %p120 = scmp.eq.s32.totalorder %s16, 0
    %p121 = por %p119, %p120
    %p122 = scmp.ne.s32.totalorder %s110, %s111
    %p123 = scmp.eq.s32.totalorder %s17, 1
    %p124 = por %p122, %p123
    %p126 = scmp.ne.s32.totalorder %s111, %s125
    %p127 = scmp.eq.s32.totalorder %s17, 0
    %p128 = por %p126, %p127
    %s129 = ssub.s32 %s11, %s18
    %p130 = scmp.eq.s32.totalorder %s129, 0
    %s132 = sadd.s32 %s131, 1
    %s133 = scalar_select %p130, %s131, %s132
    %p136 = pneg %p130
    %p137 = scmp.eq.s32.totalorder %s11, 1
    %p138 = por %p136, %p137
    %p139 = scmp.ne.s32.totalorder %s131, %s134
    %p140 = scmp.eq.s32.totalorder %s11, 0
    %p141 = por %p139, %p140
    %p142 = scmp.ne.s32.totalorder %s131, %s134
    %p143 = scmp.eq.s32.totalorder %s16, 1
    %p144 = por %p142, %p143
    %p145 = scmp.ne.s32.totalorder %s134, %s135
    %p146 = scmp.eq.s32.totalorder %s16, 0
    %p147 = por %p145, %p146
    %p148 = scmp.ne.s32.totalorder %s134, %s135
    %p149 = scmp.eq.s32.totalorder %s17, 1
    %p150 = por %p148, %p149
    %p152 = scmp.ne.s32.totalorder %s135, %s151
    %p153 = scmp.eq.s32.totalorder %s17, 0
    %p154 = por %p152, %p153
    %p155 = scmp.le.s32.totalorder 1, %s11
    %p156 = scmp.lt.s32.totalorder %s11, 3
    %p157 = pnand %p155, %p156
    %p158 = pneg %p157
    // Predicated region
    $region9: #{unet_decoder.21} parent=5 // pred_check
      _
    $region10: #{unet_decoder.21} parent=5 // pred_check_branch
      %160 = sbr.rel (%p157) target = $region12
    $region11: #{unet_decoder.21} parent=5 // pred_region
      %s161 = ssub.s32 %s11, 1
      // Predicated region
      $region13: #{unet_decoder.21} parent=11 // pred_check
        %p162 = pneg %p58
      $region14: #{unet_decoder.21} parent=11 // pred_check_branch
        %164 = sbr.rel (%p162) target = $region16
      $region15: #{unet_decoder.21} parent=11 // pred_region
        _
      $region16: #{unet_decoder.21} parent=11 // pred_fallthru
        _
      // Predicated region
      $region17: #{unet_decoder.21} parent=11 // pred_check
        %p165 = pneg %p79
      $region18: #{unet_decoder.21} parent=11 // pred_check_branch
        %167 = sbr.rel (%p165) target = $region20
      $region19: #{unet_decoder.21} parent=11 // pred_region
        _
      $region20: #{unet_decoder.21} parent=11 // pred_fallthru
        _
      // Predicated region
      $region21: #{unet_decoder.21} parent=11 // pred_check
        %p168 = pneg %p100
      $region22: #{unet_decoder.21} parent=11 // pred_check_branch
        %170 = sbr.rel (%p168) target = $region24
      $region23: #{unet_decoder.21} parent=11 // pred_region
        _
      $region24: #{unet_decoder.21} parent=11 // pred_fallthru
        _
      // Predicated region
      $region25: #{unet_decoder.21} parent=11 // pred_check
        %p171 = pneg %p121
      $region26: #{unet_decoder.21} parent=11 // pred_check_branch
        %173 = sbr.rel (%p171) target = $region28
      $region27: #{unet_decoder.21} parent=11 // pred_region
        _
      $region28: #{unet_decoder.21} parent=11 // pred_fallthru
        _
    $region12: #{unet_decoder.21} parent=5 // pred_fallthru
      _
    %p174 = scmp.lt.s32.totalorder %s11, 2
    // Predicated region
    $region29: #{unet_decoder.21} parent=5 // pred_check
      %p175 = pneg %p174
    $region30: #{unet_decoder.21} parent=5 // pred_check_branch
      %177 = sbr.rel (%p175) target = $region32
    $region31: #{unet_decoder.21} parent=5 // pred_region
      // Predicated region
      $region33: #{unet_decoder.21} parent=31 // pred_check
        %p178 = pneg %p31
      $region34: #{unet_decoder.21} parent=31 // pred_check_branch
        %180 = sbr.rel (%p178) target = $region36
      $region35: #{unet_decoder.21} parent=31 // pred_region
        %s181 = smul.u32 32, %s11
        %p182 = scmp.lt.s32.totalorder %s181, 63
        %s183 = scalar_select %p182, %s181, 63
        %s184 = smul.addr %s183, 4
        %s185 = scalar_lea.vmem %s0, %s184
        %s186 = smul.u32 32, %s11
      $region36: #{unet_decoder.21} parent=31 // pred_fallthru
        _
    $region32: #{unet_decoder.21} parent=5 // pred_fallthru
      _
    %p187 = scmp.le.s32.totalorder 1, %s11
    %p188 = scmp.lt.s32.totalorder %s11, 3
    %p189 = pnand %p187, %p188
    %p190 = pneg %p189
    // Predicated region
    $region37: #{unet_decoder.21} parent=5 // pred_check
      _
    $region38: #{unet_decoder.21} parent=5 // pred_check_branch
      %192 = sbr.rel (%p189) target = $region40
    $region39: #{unet_decoder.21} parent=5 // pred_region
      %s193 = ssub.s32 %s11, 1
      %s194 = smul.u32 32, %s16
      %p195 = scmp.lt.s32.totalorder %s194, 63
      %s196 = scalar_select %p195, %s194, 63
      %s197 = smul.addr %s196, 4
      %s198 = scalar_lea.vmem %s0, %s197
      %p199 = pneg %p37
      %p200 = pneg %p34
      %p201 = pneg %p58
      %p202 = pneg %p55
      %p203 = pneg %p79
      %p204 = pneg %p76
      %p205 = pneg %p100
      %p206 = pneg %p97
      %p207 = pneg %p121
      %p208 = pneg %p118
      %p209 = pneg %p147
      %p210 = pneg %p144
      %s211 = smul.u32 32, %s16
      %p212 = scmp.lt.s32.totalorder %s211, 63
      %s213 = scalar_select %p212, %s211, 63
      %s214 = smul.addr %s213, 8
      %s215 = scalar_lea.vmem %s5, %s214
      %s216 = smul.u32 32, %s16
      %p217 = scmp.lt.s32.totalorder %s216, 63
      %s218 = scalar_select %p217, %s216, 63
      %s219 = smul.addr %s218, 4
      %s220 = scalar_lea.vmem %s0, %s219
      %s221 = smul.u32 32, %s16
      %s222 = smul.u32 32, %s16
      %p223 = scmp.lt.s32.totalorder %s222, 63
      %s224 = scalar_select %p223, %s222, 63
      %s225 = smul.addr %s224, 8
      %s226 = scalar_lea.vmem %s5, %s225
      %s227 = smul.u32 32, %s16
      %v229 = vld [vmem:[%s220] sm:$0xf]
      %v230 = vld [vmem:[%s220 + $0x4] sm:$0xf]
      %v231 = vld [vmem:[%s220 + $0x8] sm:$0xf]
      %v232 = vld [vmem:[%s220 + $0xc] sm:$0xf]
      %v233 = vld [vmem:[%s220 + $0x10] sm:$0xf]
      %v234 = vld [vmem:[%s220 + $0x14] sm:$0xf]
      %v235 = vld [vmem:[%s220 + $0x18] sm:$0xf]
      %v236 = vld [vmem:[%s220 + $0x1c] sm:$0xf]
      %v237 = vld [vmem:[%s220 + $0x20] sm:$0xf]
      %v238 = vld [vmem:[%s220 + $0x24] sm:$0xf]
      %v239 = vld [vmem:[%s220 + $0x28] sm:$0xf]
      %v240 = vld [vmem:[%s220 + $0x2c] sm:$0xf]
      %v241 = vld [vmem:[%s220 + $0x30] sm:$0xf]
      %v242 = vld [vmem:[%s220 + $0x34] sm:$0xf]
      %v243 = vld [vmem:[%s220 + $0x38] sm:$0xf]
      %v244 = vld [vmem:[%s220 + $0x3c] sm:$0xf]
      %v245 = vld [vmem:[%s220 + $0x40] sm:$0xf]
      %v246 = vld [vmem:[%s220 + $0x44] sm:$0xf]
      %v247 = vld [vmem:[%s220 + $0x48] sm:$0xf]
      %v248 = vld [vmem:[%s220 + $0x4c] sm:$0xf]
      %v249 = vld [vmem:[%s220 + $0x50] sm:$0xf]
      %v250 = vld [vmem:[%s220 + $0x54] sm:$0xf]
      %v251 = vld [vmem:[%s220 + $0x58] sm:$0xf]
      %v252 = vld [vmem:[%s220 + $0x5c] sm:$0xf]
      %v253 = vld [vmem:[%s220 + $0x60] sm:$0xf]
      %v254 = vld [vmem:[%s220 + $0x64] sm:$0xf]
      %v255 = vld [vmem:[%s220 + $0x68] sm:$0xf]
      %v256 = vld [vmem:[%s220 + $0x6c] sm:$0xf]
      %v257 = vld [vmem:[%s220 + $0x70] sm:$0xf]
      %v258 = vld [vmem:[%s220 + $0x74] sm:$0xf]
      %v259 = vld [vmem:[%s220 + $0x78] sm:$0xf]
      %v260 = vld [vmem:[%s220 + $0x7c] sm:$0xf]
      %v261 = vld [vmem:[%s1] sm:$0xf]
      %v262 = vld [vmem:[%s1 + $0x4] sm:$0xf]
      %v263 = vld [vmem:[%s1 + $0x8] sm:$0xf]
      %v264 = vld [vmem:[%s1 + $0xc] sm:$0x3]
      %v265 = vld [vmem:[%s2] sm:$0x1]
      %v267 = vlaneseq
      %v268 = vshrl.u32 %v267, 7
      %v269 = vsub.s32 0, %v268
      %v270 = vrot.slane %v265, %v269
      %v304 = vunpack.c.l.b16 %v229
      %v305 = vunpack.c.l.b16 %v230
      %v306 = vunpack.c.l.b16 %v231
      %v307 = vunpack.c.l.b16 %v232
      %v308 = vunpack.c.l.b16 %v233
      %v309 = vunpack.c.l.b16 %v234
      %v310 = vunpack.c.l.b16 %v235
      %v311 = vunpack.c.l.b16 %v236
      %v312 = vunpack.c.l.b16 %v237
      %v313 = vunpack.c.l.b16 %v238
      %v314 = vunpack.c.l.b16 %v239
      %v315 = vunpack.c.l.b16 %v240
      %v316 = vunpack.c.l.b16 %v241
      %v317 = vunpack.c.l.b16 %v242
      %v318 = vunpack.c.l.b16 %v243
      %v319 = vunpack.c.l.b16 %v244
      %v320 = vunpack.c.l.b16 %v245
      %v321 = vunpack.c.l.b16 %v246
      %v322 = vunpack.c.l.b16 %v247
      %v323 = vunpack.c.l.b16 %v248
      %v324 = vunpack.c.l.b16 %v249
      %v325 = vunpack.c.l.b16 %v250
      %v326 = vunpack.c.l.b16 %v251
      %v327 = vunpack.c.l.b16 %v252
      %v328 = vunpack.c.l.b16 %v253
      %v329 = vunpack.c.l.b16 %v254
      %v330 = vunpack.c.l.b16 %v255
      %v331 = vunpack.c.l.b16 %v256
      %v332 = vunpack.c.l.b16 %v257
      %v333 = vunpack.c.l.b16 %v258
      %v334 = vunpack.c.l.b16 %v259
      %v335 = vunpack.c.l.b16 %v260
      %v336 = vpack.c.b16 %v305, %v304
      %v337 = vpack.c.b16 %v307, %v306
      %v338 = vpack.c.b16 %v309, %v308
      %v339 = vpack.c.b16 %v311, %v310
      %v340 = vpack.c.b16 %v313, %v312
      %v341 = vpack.c.b16 %v315, %v314
      %v342 = vpack.c.b16 %v317, %v316
      %v343 = vpack.c.b16 %v319, %v318
      %v344 = vpack.c.b16 %v321, %v320
      %v345 = vpack.c.b16 %v323, %v322
      %v346 = vpack.c.b16 %v325, %v324
      %v347 = vpack.c.b16 %v327, %v326
      %v348 = vpack.c.b16 %v329, %v328
      %v349 = vpack.c.b16 %v331, %v330
      %v350 = vpack.c.b16 %v333, %v332
      %v351 = vpack.c.b16 %v335, %v334
      %v356 = vunpack.c.l.b16 %v261
      %v357 = vunpack.c.l.b16 %v262
      %v358 = vunpack.c.l.b16 %v263
      %v359 = vunpack.c.l.b16 %v264
      %v360 = vpack.c.b16 %v357, %v356
      %v361 = vpack.c.b16 %v359, %v358
      %vm363 = vcmask 220160
      %v365 = vsel %vm363, %v336, 0
      %v368 = vsel %vm363, %v337, 0
      %v371 = vsel %vm363, %v338, 0
      %v374 = vsel %vm363, %v339, 0
      %v377 = vsel %vm363, %v340, 0
      %v380 = vsel %vm363, %v341, 0
      %v383 = vsel %vm363, %v342, 0
      %v386 = vsel %vm363, %v343, 0
      %v389 = vsel %vm363, %v344, 0
      %v392 = vsel %vm363, %v345, 0
      %v395 = vsel %vm363, %v346, 0
      %v398 = vsel %vm363, %v347, 0
      %v401 = vsel %vm363, %v348, 0
      %v404 = vsel %vm363, %v349, 0
      %v407 = vsel %vm363, %v350, 0
      %v410 = vsel %vm363, %v351, 0
      %vm412 = vcmask 1044480
      %vm413 = vcmask 1045504
      %v414 = vsel %vm412, 4294967295, 65535
      %v415 = vsel %vm413, %v414, 0
      %v417 = vand.u32 %v361, %v415
      %419 = vmatprep.subr.bf16.mxu0 0
      %420 = vmatpush1.bf16.msra.mxu0 %v360
      %421 = vmatprep.subr.bf16.mxu0 0
      %422 = vmatpush1.bf16.msra.mxu0 %v417
      %423 = vmatprep.subr.bf16.mxu0 0
      %424 = vmatpush1.bf16.msra.mxu0 0
      %425 = vmatprep.subr.bf16.mxu0 0
      %426 = vmatpush1.bf16.msra.mxu0 0
      %427 = vmatprep.subr.bf16.mxu0 0
      %428 = vmatpush1.bf16.msra.mxu0 0
      %429 = vmatprep.subr.bf16.mxu0 0
      %430 = vmatpush1.bf16.msra.mxu0 0
      %431 = vmatprep.subr.bf16.mxu0 0
      %432 = vmatpush1.bf16.msra.mxu0 0
      %433 = vmatprep.subr.bf16.mxu0 0
      %434 = vmatpush1.bf16.msra.mxu0 0
      %435 = vmatprep.subr.bf16.mxu0 0
      %436 = vmatpush1.bf16.msra.mxu0 0
      %437 = vmatprep.subr.bf16.mxu0 0
      %438 = vmatpush1.bf16.msra.mxu0 0
      %439 = vmatprep.subr.bf16.mxu0 0
      %440 = vmatpush1.bf16.msra.mxu0 0
      %441 = vmatprep.subr.bf16.mxu0 0
      %442 = vmatpush1.bf16.msra.mxu0 0
      %443 = vmatprep.subr.bf16.mxu0 0
      %444 = vmatpush1.bf16.msra.mxu0 0
      %445 = vmatprep.subr.bf16.mxu0 0
      %446 = vmatpush1.bf16.msra.mxu0 0
      %447 = vmatprep.subr.bf16.mxu0 0
      %448 = vmatpush1.bf16.msra.mxu0 0
      %449 = vmatprep.subr.bf16.mxu0 0
      %450 = vmatpush1.bf16.msra.mxu0 0
      %451 = vmatprep.mubr.bf16.mxu0 0
      %452 = vmatmul.mubr.bf16.gmra.mrb[0].mxu0 %v365
      %v453 = vpop.f32.mrb[0].mxu0
      %v454 = vadd.f32 %v270, %v453
      %v455 = vpop.f32.mrb[0].mxu0
      %v456 = vpop.f32.mrb[0].mxu0
      %v457 = vadd.f32 %v270, %v456
      %v458 = vpop.f32.mrb[0].mxu0
      %459 = vmatprep.mubr.bf16.mxu0 0
      %460 = vmatmul.mubr.bf16.gmra.mrb[0].mxu0 %v368
      %v461 = vpop.f32.mrb[0].mxu0
      %v462 = vadd.f32 %v270, %v461
      %v463 = vpop.f32.mrb[0].mxu0
      %v464 = vpop.f32.mrb[0].mxu0
      %v465 = vadd.f32 %v270, %v464
      %v466 = vpop.f32.mrb[0].mxu0
      %467 = vmatprep.mubr.bf16.mxu0 0
      %468 = vmatmul.mubr.bf16.gmra.mrb[0].mxu0 %v371
      %v469 = vpop.f32.mrb[0].mxu0
      %v470 = vadd.f32 %v270, %v469
      %v471 = vpop.f32.mrb[0].mxu0
      %v472 = vpop.f32.mrb[0].mxu0
      %v473 = vadd.f32 %v270, %v472
      %v474 = vpop.f32.mrb[0].mxu0
      %475 = vmatprep.mubr.bf16.mxu0 0
      %476 = vmatmul.mubr.bf16.gmra.mrb[0].mxu0 %v374
      %v477 = vpop.f32.mrb[0].mxu0
      %v478 = vadd.f32 %v270, %v477
      %v479 = vpop.f32.mrb[0].mxu0
      %v480 = vpop.f32.mrb[0].mxu0
      %v481 = vadd.f32 %v270, %v480
      %v482 = vpop.f32.mrb[0].mxu0
      %483 = vmatprep.mubr.bf16.mxu0 0
      %484 = vmatmul.mubr.bf16.gmra.mrb[0].mxu0 %v377
      %v485 = vpop.f32.mrb[0].mxu0
      %v486 = vadd.f32 %v270, %v485
      %v487 = vpop.f32.mrb[0].mxu0
      %v488 = vpop.f32.mrb[0].mxu0
      %v489 = vadd.f32 %v270, %v488
      %v490 = vpop.f32.mrb[0].mxu0
      %491 = vmatprep.mubr.bf16.mxu0 0
      %492 = vmatmul.mubr.bf16.gmra.mrb[0].mxu0 %v380
      %v493 = vpop.f32.mrb[0].mxu0
      %v494 = vadd.f32 %v270, %v493
      %v495 = vpop.f32.mrb[0].mxu0
      %v496 = vpop.f32.mrb[0].mxu0
      %v497 = vadd.f32 %v270, %v496
      %v498 = vpop.f32.mrb[0].mxu0
      %499 = vmatprep.mubr.bf16.mxu0 0
      %500 = vmatmul.mubr.bf16.gmra.mrb[0].mxu0 %v383
      %v501 = vpop.f32.mrb[0].mxu0
      %v502 = vadd.f32 %v270, %v501
      %v503 = vpop.f32.mrb[0].mxu0
      %v504 = vpop.f32.mrb[0].mxu0
      %v505 = vadd.f32 %v270, %v504
      %v506 = vpop.f32.mrb[0].mxu0
      %507 = vmatprep.mubr.bf16.mxu0 0
      %508 = vmatmul.mubr.bf16.gmra.mrb[0].mxu0 %v386
      %v509 = vpop.f32.mrb[0].mxu0
      %v510 = vadd.f32 %v270, %v509
      %v511 = vpop.f32.mrb[0].mxu0
      %v512 = vpop.f32.mrb[0].mxu0
      %v513 = vadd.f32 %v270, %v512
      %v514 = vpop.f32.mrb[0].mxu0
      %515 = vmatprep.mubr.bf16.mxu0 0
      %516 = vmatmul.mubr.bf16.gmra.mrb[0].mxu0 %v389
      %v517 = vpop.f32.mrb[0].mxu0
      %v518 = vadd.f32 %v270, %v517
      %v519 = vpop.f32.mrb[0].mxu0
      %v520 = vpop.f32.mrb[0].mxu0
      %v521 = vadd.f32 %v270, %v520
      %v522 = vpop.f32.mrb[0].mxu0
      %523 = vmatprep.mubr.bf16.mxu0 0
      %524 = vmatmul.mubr.bf16.gmra.mrb[0].mxu0 %v392
      %v525 = vpop.f32.mrb[0].mxu0
      %v526 = vadd.f32 %v270, %v525
      %v527 = vpop.f32.mrb[0].mxu0
      %v528 = vpop.f32.mrb[0].mxu0
      %v529 = vadd.f32 %v270, %v528
      %v530 = vpop.f32.mrb[0].mxu0
      %531 = vmatprep.mubr.bf16.mxu0 0
      %532 = vmatmul.mubr.bf16.gmra.mrb[0].mxu0 %v395
      %v533 = vpop.f32.mrb[0].mxu0
      %v534 = vadd.f32 %v270, %v533
      %v535 = vpop.f32.mrb[0].mxu0
      %v536 = vpop.f32.mrb[0].mxu0
      %v537 = vadd.f32 %v270, %v536
      %v538 = vpop.f32.mrb[0].mxu0
      %539 = vmatprep.mubr.bf16.mxu0 0
      %540 = vmatmul.mubr.bf16.gmra.mrb[0].mxu0 %v398
      %v541 = vpop.f32.mrb[0].mxu0
      %v542 = vadd.f32 %v270, %v541
      %v543 = vpop.f32.mrb[0].mxu0
      %v544 = vpop.f32.mrb[0].mxu0
      %v545 = vadd.f32 %v270, %v544
      %v546 = vpop.f32.mrb[0].mxu0
      %547 = vmatprep.mubr.bf16.mxu0 0
      %548 = vmatmul.mubr.bf16.gmra.mrb[0].mxu0 %v401
      %v549 = vpop.f32.mrb[0].mxu0
      %v550 = vadd.f32 %v270, %v549
      %v551 = vpop.f32.mrb[0].mxu0
      %v552 = vpop.f32.mrb[0].mxu0
      %v553 = vadd.f32 %v270, %v552
      %v554 = vpop.f32.mrb[0].mxu0
      %555 = vmatprep.mubr.bf16.mxu0 0
      %556 = vmatmul.mubr.bf16.gmra.mrb[0].mxu0 %v404
      %v557 = vpop.f32.mrb[0].mxu0
      %v558 = vadd.f32 %v270, %v557
      %v559 = vpop.f32.mrb[0].mxu0
      %v560 = vpop.f32.mrb[0].mxu0
      %v561 = vadd.f32 %v270, %v560
      %v562 = vpop.f32.mrb[0].mxu0
      %563 = vmatprep.mubr.bf16.mxu0 0
      %564 = vmatmul.mubr.bf16.gmra.mrb[0].mxu0 %v407
      %v565 = vpop.f32.mrb[0].mxu0
      %v566 = vadd.f32 %v270, %v565
      %v567 = vpop.f32.mrb[0].mxu0
      %v568 = vpop.f32.mrb[0].mxu0
      %v569 = vadd.f32 %v270, %v568
      %v570 = vpop.f32.mrb[0].mxu0
      %571 = vmatprep.mubr.bf16.mxu0 0
      %572 = vmatmul.mubr.bf16.gmra.mrb[0].mxu0 %v410
      %v573 = vpop.f32.mrb[0].mxu0
      %v574 = vadd.f32 %v270, %v573
      %v575 = vpop.f32.mrb[0].mxu0
      %v576 = vpop.f32.mrb[0].mxu0
      %v577 = vadd.f32 %v270, %v576
      %v578 = vpop.f32.mrb[0].mxu0
      %579 = vdwg.mxu0
      %v580 = vpack.c.bf16 %v457, %v454
      %v581 = vpack.c.bf16 %v465, %v462
      %v582 = vpack.c.bf16 %v473, %v470
      %v583 = vpack.c.bf16 %v481, %v478
      %v584 = vpack.c.bf16 %v489, %v486
      %v585 = vpack.c.bf16 %v497, %v494
      %v586 = vpack.c.bf16 %v505, %v502
      %v587 = vpack.c.bf16 %v513, %v510
      %v588 = vpack.c.bf16 %v521, %v518
      %v589 = vpack.c.bf16 %v529, %v526
      %v590 = vpack.c.bf16 %v537, %v534
      %v591 = vpack.c.bf16 %v545, %v542
      %v592 = vpack.c.bf16 %v553, %v550
      %v593 = vpack.c.bf16 %v561, %v558
      %v594 = vpack.c.bf16 %v569, %v566
      %v595 = vpack.c.bf16 %v577, %v574
      %v596 = vld [vmem:[%s3] sm:$0x3]
      %v597 = vld [vmem:[%s4] sm:$0x1]
      %v599 = vlaneseq
      %v600 = vshrl.u32 %v599, 7
      %v601 = vsub.s32 0, %v600
      %v602 = vrot.slane %v597, %v601
      %vm604 = vcmask 23552
      %v606 = vsel %vm604, %v580, 0
      %v609 = vsel %vm604, %v581, 0
      %v612 = vsel %vm604, %v582, 0
      %v615 = vsel %vm604, %v583, 0
      %v618 = vsel %vm604, %v584, 0
      %v621 = vsel %vm604, %v585, 0
      %v624 = vsel %vm604, %v586, 0
      %v627 = vsel %vm604, %v587, 0
      %v630 = vsel %vm604, %v588, 0
      %v633 = vsel %vm604, %v589, 0
      %v636 = vsel %vm604, %v590, 0
      %v639 = vsel %vm604, %v591, 0
      %v642 = vsel %vm604, %v592, 0
      %v645 = vsel %vm604, %v593, 0
      %v648 = vsel %vm604, %v594, 0
      %v651 = vsel %vm604, %v595, 0
      %vm653 = vcmask 1040384
      %vm654 = vcmask 1041408
      %v655 = vsel %vm653, 4294967295, 65535
      %v656 = vsel %vm654, %v655, 0
      %v658 = vand.u32 %v596, %v656
      %660 = vmatprep.subr.bf16.mxu0 0
      %661 = vmatpush1.bf16.msra.mxu0 %v658
      %662 = vmatprep.subr.bf16.mxu0 0
      %663 = vmatpush1.bf16.msra.mxu0 0
      %664 = vmatprep.subr.bf16.mxu0 0
      %665 = vmatpush1.bf16.msra.mxu0 0
      %666 = vmatprep.subr.bf16.mxu0 0
      %667 = vmatpush1.bf16.msra.mxu0 0
      %668 = vmatprep.subr.bf16.mxu0 0
      %669 = vmatpush1.bf16.msra.mxu0 0
      %670 = vmatprep.subr.bf16.mxu0 0
      %671 = vmatpush1.bf16.msra.mxu0 0
      %672 = vmatprep.subr.bf16.mxu0 0
      %673 = vmatpush1.bf16.msra.mxu0 0
      %674 = vmatprep.subr.bf16.mxu0 0
      %675 = vmatpush1.bf16.msra.mxu0 0
      %676 = vmatprep.subr.bf16.mxu0 0
      %677 = vmatpush1.bf16.msra.mxu0 0
      %678 = vmatprep.subr.bf16.mxu0 0
      %679 = vmatpush1.bf16.msra.mxu0 0
      %680 = vmatprep.subr.bf16.mxu0 0
      %681 = vmatpush1.bf16.msra.mxu0 0
      %682 = vmatprep.subr.bf16.mxu0 0
      %683 = vmatpush1.bf16.msra.mxu0 0
      %684 = vmatprep.subr.bf16.mxu0 0
      %685 = vmatpush1.bf16.msra.mxu0 0
      %686 = vmatprep.subr.bf16.mxu0 0
      %687 = vmatpush1.bf16.msra.mxu0 0
      %688 = vmatprep.subr.bf16.mxu0 0
      %689 = vmatpush1.bf16.msra.mxu0 0
      %690 = vmatprep.subr.bf16.mxu0 0
      %691 = vmatpush1.bf16.msra.mxu0 0
      %692 = vmatprep.mubr.bf16.mxu0 0
      %693 = vmatmul.mubr.bf16.gmra.mrb[0].mxu0 %v606
      %v694 = vpop.f32.mrb[0].mxu0
      %v695 = vadd.f32 %v602, %v694
      %v696 = vpop.f32.mrb[0].mxu0
      %v697 = vpop.f32.mrb[0].mxu0
      %v698 = vadd.f32 %v602, %v697
      %v699 = vpop.f32.mrb[0].mxu0
      %700 = vmatprep.mubr.bf16.mxu0 0
      %701 = vmatmul.mubr.bf16.gmra.mrb[0].mxu0 %v609
      %v702 = vpop.f32.mrb[0].mxu0
      %v703 = vadd.f32 %v602, %v702
      %v704 = vpop.f32.mrb[0].mxu0
      %v705 = vpop.f32.mrb[0].mxu0
      %v706 = vadd.f32 %v602, %v705
      %v707 = vpop.f32.mrb[0].mxu0
      %708 = vmatprep.mubr.bf16.mxu0 0
      %709 = vmatmul.mubr.bf16.gmra.mrb[0].mxu0 %v612
      %v710 = vpop.f32.mrb[0].mxu0
      %v711 = vadd.f32 %v602, %v710
      %v712 = vpop.f32.mrb[0].mxu0
      %v713 = vpop.f32.mrb[0].mxu0
      %v714 = vadd.f32 %v602, %v713
      %v715 = vpop.f32.mrb[0].mxu0
      %716 = vmatprep.mubr.bf16.mxu0 0
      %717 = vmatmul.mubr.bf16.gmra.mrb[0].mxu0 %v615
      %v718 = vpop.f32.mrb[0].mxu0
      %v719 = vadd.f32 %v602, %v718
      %v720 = vpop.f32.mrb[0].mxu0
      %v721 = vpop.f32.mrb[0].mxu0
      %v722 = vadd.f32 %v602, %v721
      %v723 = vpop.f32.mrb[0].mxu0
      %724 = vmatprep.mubr.bf16.mxu0 0
      %725 = vmatmul.mubr.bf16.gmra.mrb[0].mxu0 %v618
      %v726 = vpop.f32.mrb[0].mxu0
      %v727 = vadd.f32 %v602, %v726
      %v728 = vpop.f32.mrb[0].mxu0
      %v729 = vpop.f32.mrb[0].mxu0
      %v730 = vadd.f32 %v602, %v729
      %v731 = vpop.f32.mrb[0].mxu0
      %732 = vmatprep.mubr.bf16.mxu0 0
      %733 = vmatmul.mubr.bf16.gmra.mrb[0].mxu0 %v621
      %v734 = vpop.f32.mrb[0].mxu0
      %v735 = vadd.f32 %v602, %v734
      %v736 = vpop.f32.mrb[0].mxu0
      %v737 = vpop.f32.mrb[0].mxu0
      %v738 = vadd.f32 %v602, %v737
      %v739 = vpop.f32.mrb[0].mxu0
      %740 = vmatprep.mubr.bf16.mxu0 0
      %741 = vmatmul.mubr.bf16.gmra.mrb[0].mxu0 %v624
      %v742 = vpop.f32.mrb[0].mxu0
      %v743 = vadd.f32 %v602, %v742
      %v744 = vpop.f32.mrb[0].mxu0
      %v745 = vpop.f32.mrb[0].mxu0
      %v746 = vadd.f32 %v602, %v745
      %v747 = vpop.f32.mrb[0].mxu0
      %748 = vmatprep.mubr.bf16.mxu0 0
      %749 = vmatmul.mubr.bf16.gmra.mrb[0].mxu0 %v627
      %v750 = vpop.f32.mrb[0].mxu0
      %v751 = vadd.f32 %v602, %v750
      %v752 = vpop.f32.mrb[0].mxu0
      %v753 = vpop.f32.mrb[0].mxu0
      %v754 = vadd.f32 %v602, %v753
      %v755 = vpop.f32.mrb[0].mxu0
      %756 = vmatprep.mubr.bf16.mxu0 0
      %757 = vmatmul.mubr.bf16.gmra.mrb[0].mxu0 %v630
      %v758 = vpop.f32.mrb[0].mxu0
      %v759 = vadd.f32 %v602, %v758
      %v760 = vpop.f32.mrb[0].mxu0
      %v761 = vpop.f32.mrb[0].mxu0
      %v762 = vadd.f32 %v602, %v761
      %v763 = vpop.f32.mrb[0].mxu0
      %764 = vmatprep.mubr.bf16.mxu0 0
      %765 = vmatmul.mubr.bf16.gmra.mrb[0].mxu0 %v633
      %v766 = vpop.f32.mrb[0].mxu0
      %v767 = vadd.f32 %v602, %v766
      %v768 = vpop.f32.mrb[0].mxu0
      %v769 = vpop.f32.mrb[0].mxu0
      %v770 = vadd.f32 %v602, %v769
      %v771 = vpop.f32.mrb[0].mxu0
      %772 = vmatprep.mubr.bf16.mxu0 0
      %773 = vmatmul.mubr.bf16.gmra.mrb[0].mxu0 %v636
      %v774 = vpop.f32.mrb[0].mxu0
      %v775 = vadd.f32 %v602, %v774
      %v776 = vpop.f32.mrb[0].mxu0
      %v777 = vpop.f32.mrb[0].mxu0
      %v778 = vadd.f32 %v602, %v777
      %v779 = vpop.f32.mrb[0].mxu0
      %780 = vmatprep.mubr.bf16.mxu0 0
      %781 = vmatmul.mubr.bf16.gmra.mrb[0].mxu0 %v639
      %v782 = vpop.f32.mrb[0].mxu0
      %v783 = vadd.f32 %v602, %v782
      %v784 = vpop.f32.mrb[0].mxu0
      %v785 = vpop.f32.mrb[0].mxu0
      %v786 = vadd.f32 %v602, %v785
      %v787 = vpop.f32.mrb[0].mxu0
      %788 = vmatprep.mubr.bf16.mxu0 0
      %789 = vmatmul.mubr.bf16.gmra.mrb[0].mxu0 %v642
      %v790 = vpop.f32.mrb[0].mxu0
      %v791 = vadd.f32 %v602, %v790
      %v792 = vpop.f32.mrb[0].mxu0
      %v793 = vpop.f32.mrb[0].mxu0
      %v794 = vadd.f32 %v602, %v793
      %v795 = vpop.f32.mrb[0].mxu0
      %796 = vmatprep.mubr.bf16.mxu0 0
      %797 = vmatmul.mubr.bf16.gmra.mrb[0].mxu0 %v645
      %v798 = vpop.f32.mrb[0].mxu0
      %v799 = vadd.f32 %v602, %v798
      %v800 = vpop.f32.mrb[0].mxu0
      %v801 = vpop.f32.mrb[0].mxu0
      %v802 = vadd.f32 %v602, %v801
      %v803 = vpop.f32.mrb[0].mxu0
      %804 = vmatprep.mubr.bf16.mxu0 0
      %805 = vmatmul.mubr.bf16.gmra.mrb[0].mxu0 %v648
      %v806 = vpop.f32.mrb[0].mxu0
      %v807 = vadd.f32 %v602, %v806
      %v808 = vpop.f32.mrb[0].mxu0
      %v809 = vpop.f32.mrb[0].mxu0
      %v810 = vadd.f32 %v602, %v809
      %v811 = vpop.f32.mrb[0].mxu0
      %812 = vmatprep.mubr.bf16.mxu0 0
      %813 = vmatmul.mubr.bf16.gmra.mrb[0].mxu0 %v651
      %v814 = vpop.f32.mrb[0].mxu0
      %v815 = vadd.f32 %v602, %v814
      %v816 = vpop.f32.mrb[0].mxu0
      %v817 = vpop.f32.mrb[0].mxu0
      %v818 = vadd.f32 %v602, %v817
      %v819 = vpop.f32.mrb[0].mxu0
      %820 = vdwg.mxu0
      %821 = vst.msk [vmem:[%s226] sm:$0xff] %vm604, %v695
      %822 = vst.msk [vmem:[%s226 + $0x8] sm:$0xff] %vm604, %v698
      %823 = vst.msk [vmem:[%s226 + $0x10] sm:$0xff] %vm604, %v703
      %824 = vst.msk [vmem:[%s226 + $0x18] sm:$0xff] %vm604, %v706
      %825 = vst.msk [vmem:[%s226 + $0x20] sm:$0xff] %vm604, %v711
      %826 = vst.msk [vmem:[%s226 + $0x28] sm:$0xff] %vm604, %v714
      %827 = vst.msk [vmem:[%s226 + $0x30] sm:$0xff] %vm604, %v719
      %828 = vst.msk [vmem:[%s226 + $0x38] sm:$0xff] %vm604, %v722
      %829 = vst.msk [vmem:[%s226 + $0x40] sm:$0xff] %vm604, %v727
      %830 = vst.msk [vmem:[%s226 + $0x48] sm:$0xff] %vm604, %v730
      %831 = vst.msk [vmem:[%s226 + $0x50] sm:$0xff] %vm604, %v735
      %832 = vst.msk [vmem:[%s226 + $0x58] sm:$0xff] %vm604, %v738
      %833 = vst.msk [vmem:[%s226 + $0x60] sm:$0xff] %vm604, %v743
      %834 = vst.msk [vmem:[%s226 + $0x68] sm:$0xff] %vm604, %v746
      %835 = vst.msk [vmem:[%s226 + $0x70] sm:$0xff] %vm604, %v751
      %836 = vst.msk [vmem:[%s226 + $0x78] sm:$0xff] %vm604, %v754
      %837 = vst.msk [vmem:[%s226 + $0x80] sm:$0xff] %vm604, %v759
      %838 = vst.msk [vmem:[%s226 + $0x88] sm:$0xff] %vm604, %v762
      %839 = vst.msk [vmem:[%s226 + $0x90] sm:$0xff] %vm604, %v767
      %840 = vst.msk [vmem:[%s226 + $0x98] sm:$0xff] %vm604, %v770
      %841 = vst.msk [vmem:[%s226 + $0xa0] sm:$0xff] %vm604, %v775
      %842 = vst.msk [vmem:[%s226 + $0xa8] sm:$0xff] %vm604, %v778
      %843 = vst.msk [vmem:[%s226 + $0xb0] sm:$0xff] %vm604, %v783
      %844 = vst.msk [vmem:[%s226 + $0xb8] sm:$0xff] %vm604, %v786
      %845 = vst.msk [vmem:[%s226 + $0xc0] sm:$0xff] %vm604, %v791
      %846 = vst.msk [vmem:[%s226 + $0xc8] sm:$0xff] %vm604, %v794
      %847 = vst.msk [vmem:[%s226 + $0xd0] sm:$0xff] %vm604, %v799
      %848 = vst.msk [vmem:[%s226 + $0xd8] sm:$0xff] %vm604, %v802
      %849 = vst.msk [vmem:[%s226 + $0xe0] sm:$0xff] %vm604, %v807
      %850 = vst.msk [vmem:[%s226 + $0xe8] sm:$0xff] %vm604, %v810
      %851 = vst.msk [vmem:[%s226 + $0xf0] sm:$0xff] %vm604, %v815
      %852 = vst.msk [vmem:[%s226 + $0xf8] sm:$0xff] %vm604, %v818
      %s853 = smul.u32 32, %s16
      %p854 = scmp.lt.s32.totalorder %s853, 63
      %s855 = scalar_select %p854, %s853, 63
      %s856 = smul.addr %s855, 8
      %s857 = scalar_lea.vmem %s5, %s856
      // Predicated region
      $region41: #{unet_decoder.21} parent=39 // pred_check
        %p858 = pneg %p144
      $region42: #{unet_decoder.21} parent=39 // pred_check_branch
        %860 = sbr.rel (%p858) target = $region44
      $region43: #{unet_decoder.21} parent=39 // pred_region
        %s861 = smul.u32 32, %s16
      $region44: #{unet_decoder.21} parent=39 // pred_fallthru
        _
    $region40: #{unet_decoder.21} parent=5 // pred_fallthru
      _
    %p862 = scmp.le.s32.totalorder 2, %s11
    // Predicated region
    $region45: #{unet_decoder.21} parent=5 // pred_check
      %p863 = pneg %p862
    $region46: #{unet_decoder.21} parent=5 // pred_check_branch
      %865 = sbr.rel (%p863) target = $region48
    $region47: #{unet_decoder.21} parent=5 // pred_region
      %s866 = ssub.s32 %s11, 2
      // Predicated region
      $region49: #{unet_decoder.21} parent=47 // pred_check
        %p867 = pneg %p150
      $region50: #{unet_decoder.21} parent=47 // pred_check_branch
        %869 = sbr.rel (%p867) target = $region52
      $region51: #{unet_decoder.21} parent=47 // pred_region
        %s870 = smul.u32 32, %s17
        %p871 = scmp.lt.s32.totalorder %s870, 63
        %s872 = scalar_select %p871, %s870, 63
        %s873 = smul.addr %s872, 8
        %s874 = scalar_lea.vmem %s5, %s873
      $region52: #{unet_decoder.21} parent=47 // pred_fallthru
        _
    $region48: #{unet_decoder.21} parent=5 // pred_fallthru
      _
  $region6: #{unet_decoder.21} parent=0 // loop_footer
    %s15 = sadd.s32 1, %s11
  $region7: #{unet_decoder.21} parent=0 // loop_footer_branch
    %10 = sbr.rel target = $region3
  $region8: #{unet_decoder.21} parent=0 // loop_exit
    _

</llo_original>
